<compile_context>
chip_gen: v7x
topology: tpu7x:2x2x1
jax: 0.10.0
libtpu: 0.0.40
codegen_flags: <defaults>
</compile_context>

<pallas_src>
import math

import jax
import jax.numpy as jnp
from jax import lax
from jax.experimental import pallas as pl
from jax.experimental.pallas import tpu as pltpu

# ---------------------------------------------------------------------------
# Hyper-parameters fixed by ViTEncoder.__init__
# ---------------------------------------------------------------------------
PATCH_SIZE = 16
EMBED_DIM = 256                       # == PATCH_SIZE * PATCH_SIZE
DEPTH = 8
TOKENS_DIM = int(0.5 * EMBED_DIM)     # 128   (mlp_ratio[0] * dim)
CHANNELS_DIM = int(4.0 * EMBED_DIM)   # 1024  (mlp_ratio[1] * dim)
LN_EPS = 1e-6
BN_EPS = 1e-5

# Small, module-consistent problem instance
DATA_SIZE = (300, 212)                                   # two modality widths
LENGTH = sum(DATA_SIZE)                                  # 512
PATCH_NUM = math.ceil(math.sqrt(LENGTH) / PATCH_SIZE)    # 2
IMG_SIZE = PATCH_NUM * PATCH_SIZE                        # 32
SEQ_LEN = PATCH_NUM * PATCH_NUM                          # 4 tokens
LATENT = PATCH_NUM * PATCH_NUM                           # 4 (encoder2latent out)
BATCH = 4

ROWS = SEQ_LEN * BATCH                                   # 16  (row = s*B + b)
TOK_ROWS = TOKENS_DIM * BATCH                            # 512 (row = t*B + b)


# ---------------------------------------------------------------------------
# In-kernel math helpers
# ---------------------------------------------------------------------------
def _erf(x):
    # TODO(synk): lax.erf lowering is not guaranteed in Mosaic; use the
    # Abramowitz & Stegun 7.1.26 polynomial (max abs err ~1.5e-7) so semantics
    # match torch.nn.GELU() (exact erf form) to fp32 accuracy.
    a1, a2, a3, a4, a5 = 0.254829592, -0.284496736, 1.421413741, -1.453152027, 1.061405429
    p = 0.3275911
    s = jnp.where(x >= 0.0, 1.0, -1.0)
    ax = jnp.abs(x)
    t = 1.0 / (1.0 + p * ax)
    poly = ((((a5 * t + a4) * t + a3) * t + a2) * t + a1) * t
    return s * (1.0 - poly * jnp.exp(-ax * ax))


def _gelu(x):
    return 0.5 * x * (1.0 + _erf(x * (1.0 / math.sqrt(2.0))))


def _layernorm(x, gamma, beta):
    mu = jnp.mean(x, axis=-1, keepdims=True)
    var = jnp.mean((x - mu) ** 2, axis=-1, keepdims=True)
    return (x - mu) * lax.rsqrt(var + LN_EPS) * gamma + beta


# ---------------------------------------------------------------------------
# Kernel: one MixerBlock per grid step; epilogue fused into the last step.
# ---------------------------------------------------------------------------
def vit_encoder_kernel(
    x_ref,                         # (ROWS, D)             f32  (resident)
    ln1_g_ref, ln1_b_ref,          # (1, 1, D)             f32  per-layer
    tw1k_ref, tb1k_ref,            # (1, TOK_ROWS, ROWS) bf16 / (1, TOK_ROWS, 1) f32
    tw2k_ref, tb2k_ref,            # (1, ROWS, TOK_ROWS) bf16 / (1, ROWS, 1) f32
    ln2_g_ref, ln2_b_ref,          # (1, 1, D)             f32
    cw1_ref, cb1_ref,              # (1, D, CH) bf16 / (1, 1, CH) f32
    cw2_ref, cb2_ref,              # (1, CH, D) bf16 / (1, 1, D) f32
    ng_ref, nb_ref,                # (1, D)                f32  (resident)
    e2l_w_ref, e2l_b_ref,          # (S, D, P) / (1, P)    f32  (resident)
    bn_g_ref, bn_b_ref,            # (1, P)                f32  (resident)
    out_ref,                       # (B, P)                f32
    x_scr,                         # VMEM (ROWS, D) f32 — residual-stream carry
):
    layer = pl.program_id(0)

    @pl.when(layer == 0)
    def _load_input():
        x_scr[...] = x_ref[...]

    x = x_scr[...]

    # ---- token-mixing MLP, batched over B via block-diagonal (W ⊗ I_B) ----
    y = _layernorm(x, ln1_g_ref[0], ln1_b_ref[0])                     # (16, 256)
    h = jnp.dot(tw1k_ref[0], y.astype(jnp.bfloat16),
                preferred_element_type=jnp.float32) + tb1k_ref[0]     # (512, 256)
    h = _gelu(h)
    x = x + (jnp.dot(tw2k_ref[0], h.astype(jnp.bfloat16),
                     preferred_element_type=jnp.float32) + tb2k_ref[0])  # (16, 256)

    # ---- channel-mixing MLP (single matmul over all B*S rows) ----
    y = _layernorm(x, ln2_g_ref[0], ln2_b_ref[0])                     # (16, 256)
    h = jnp.dot(y.astype(jnp.bfloat16), cw1_ref[0],
                preferred_element_type=jnp.float32) + cb1_ref[0]      # (16, 1024)
    h = _gelu(h)
    x = x + (jnp.dot(h.astype(jnp.bfloat16), cw2_ref[0],
                     preferred_element_type=jnp.float32) + cb2_ref[0])  # (16, 256)

    x_scr[...] = x

    # ---- final LayerNorm + encoder2latent + BatchNorm1d + GELU ----
    @pl.when(layer == DEPTH - 1)
    def _finalize():
        xn = _layernorm(x, ng_ref[...], nb_ref[...])                  # (16, 256)
        z = jnp.zeros((BATCH, LATENT), jnp.float32)
        for s in range(SEQ_LEN):   # rows s*B .. (s+1)*B hold token s for all batches
            z = z + jnp.dot(xn[s * BATCH:(s + 1) * BATCH, :], e2l_w_ref[s],
                            preferred_element_type=jnp.float32)       # (4, 4)
        z = z + e2l_b_ref[...]
        # BatchNorm1d, training-mode batch statistics (biased variance)
        mu = jnp.mean(z, axis=0, keepdims=True)
        var = jnp.mean((z - mu) ** 2, axis=0, keepdims=True)
        zhat = (z - mu) * lax.rsqrt(var + BN_EPS)
        out_ref[...] = _gelu(zhat * bn_g_ref[...] + bn_b_ref[...])


# ---------------------------------------------------------------------------
# Wrapper: depth grid with per-layer weight streaming
# ---------------------------------------------------------------------------
def _layer_spec(shape):
    # One layer's slice of an (L, ...) stacked weight — streamed per grid step.
    return pl.BlockSpec((1,) + shape, lambda l: (l,) + (0,) * len(shape))


def _const_spec(shape):
    # Constant block index → DMA'd once and kept resident across the grid.
    return pl.BlockSpec(shape, lambda l: (0,) * len(shape))


@jax.jit
def vit_encoder_forward(x_tokens, kernel_params):
    # (B, S, D) -> (S*B, D), row index = s*B + b (token-major, batch-minor).
    x_in = jnp.transpose(x_tokens, (1, 0, 2)).reshape(ROWS, EMBED_DIM)

    in_specs = [
        _const_spec((ROWS, EMBED_DIM)),                 # x_in (resident)
        _layer_spec((1, EMBED_DIM)),                    # ln1_g
        _layer_spec((1, EMBED_DIM)),                    # ln1_b
        _layer_spec((TOK_ROWS, ROWS)),                  # tw1 ⊗ I_B   (bf16)
        _layer_spec((TOK_ROWS, 1)),                     # tb1 (repeated)
        _layer_spec((ROWS, TOK_ROWS)),                  # tw2 ⊗ I_B   (bf16)
        _layer_spec((ROWS, 1)),                         # tb2 (repeated)
        _layer_spec((1, EMBED_DIM)),                    # ln2_g
        _layer_spec((1, EMBED_DIM)),                    # ln2_b
        _layer_spec((EMBED_DIM, CHANNELS_DIM)),         # cw1 (bf16)
        _layer_spec((1, CHANNELS_DIM)),                 # cb1
        _layer_spec((CHANNELS_DIM, EMBED_DIM)),         # cw2 (bf16)
        _layer_spec((1, EMBED_DIM)),                    # cb2
        _const_spec((1, EMBED_DIM)),                    # ng
        _const_spec((1, EMBED_DIM)),                    # nb
        _const_spec((SEQ_LEN, EMBED_DIM, LATENT)),      # e2l_w
        _const_spec((1, LATENT)),                       # e2l_b
        _const_spec((1, LATENT)),                       # bn_g
        _const_spec((1, LATENT)),                       # bn_b
    ]

    grid_spec = pltpu.PrefetchScalarGridSpec(
        num_scalar_prefetch=0,
        grid=(DEPTH,),
        in_specs=in_specs,
        out_specs=pl.BlockSpec((BATCH, LATENT), lambda l: (0, 0)),
        scratch_shapes=[pltpu.VMEM((ROWS, EMBED_DIM), jnp.float32)],
    )

    return pl.pallas_call(
        vit_encoder_kernel,
        out_shape=jax.ShapeDtypeStruct((BATCH, LATENT), jnp.float32),
        grid_spec=grid_spec,
        compiler_params=pltpu.CompilerParams(
            # Depth carries the residual stream -> sequential ("arbitrary").
            # No vmem_limit_bytes: streamed footprint ~2.5 MiB << default.
            dimension_semantics=("arbitrary",),
        ),
    )(x_in, *kernel_params)


# ---------------------------------------------------------------------------
# Glue: ViTEncoder.data_process  (concat modalities -> pad -> (B, S, D))
# ---------------------------------------------------------------------------
def data_process(xs):
    x = jnp.concatenate(xs, axis=1)
    b, f = x.shape
    pad = IMG_SIZE * IMG_SIZE - f
    x = jnp.concatenate([x, jnp.zeros((b, pad), x.dtype)], axis=1)
    return x.reshape(b, -1, PATCH_SIZE * PATCH_SIZE)        # (B, S, D)


# ---------------------------------------------------------------------------
# Deterministic synthetic parameters (logical, torch-like layouts)
# ---------------------------------------------------------------------------
def init_params(key):
    L, S, D, TOK, CH, P = DEPTH, SEQ_LEN, EMBED_DIM, TOKENS_DIM, CHANNELS_DIM, LATENT
    ks = jax.random.split(key, 10)

    def w(k, shape, scale=0.02, dtype=jnp.float32):
        return (scale * jax.random.normal(k, shape)).astype(dtype)

    ln1_g = jnp.ones((L, 1, D), jnp.float32)
    ln1_b = jnp.zeros((L, 1, D), jnp.float32)
    ln2_g = jnp.ones((L, 1, D), jnp.float32)
    ln2_b = jnp.zeros((L, 1, D), jnp.float32)
    tw1 = w(ks[0], (L, TOK, S), dtype=jnp.bfloat16)   # Linear(S->TOK) weight, (out,in)
    tb1 = w(ks[1], (L, TOK, 1))
    tw2 = w(ks[2], (L, S, TOK), dtype=jnp.bfloat16)   # Linear(TOK->S) weight, (out,in)
    tb2 = w(ks[3], (L, S, 1))
    cw1 = w(ks[4], (L, D, CH), dtype=jnp.bfloat16)    # Linear(D->CH) weight transposed
    cb1 = w(ks[5], (L, 1, CH))
    cw2 = w(ks[6], (L, CH, D), dtype=jnp.bfloat16)    # Linear(CH->D) weight transposed
    cb2 = w(ks[7], (L, 1, D))
    ng = jnp.ones((1, D), jnp.float32)
    nb = jnp.zeros((1, D), jnp.float32)
    e2l_w = w(ks[8], (S, D, P))                       # Linear(IMG^2->P) weight.T as (S,D,P)
    e2l_b = w(ks[9], (1, P))
    bn_g = jnp.ones((1, P), jnp.float32)
    bn_b = jnp.zeros((1, P), jnp.float32)
    return (ln1_g, ln1_b, tw1, tb1, tw2, tb2,
            ln2_g, ln2_b, cw1, cb1, cw2, cb2,
            ng, nb, e2l_w, e2l_b, bn_g, bn_b)


def prepare_kernel_params(params):
    """Build the kernel-layout parameter tuple (host-side, exact value-preserving)."""
    (ln1_g, ln1_b, tw1, tb1, tw2, tb2, ln2_g, ln2_b,
     cw1, cb1, cw2, cb2, ng, nb, e2l_w, e2l_b, bn_g, bn_b) = params
    eye = jnp.eye(BATCH, dtype=jnp.float32)
    # (W ⊗ I_B) block-diagonal expansion: batches the per-sample token mixing
    # into a single 2-D matmul over (s*B + b)-ordered rows. Entries are either
    # the original bf16 value or 0, so no extra rounding is introduced.
    tw1k = jnp.einsum('lts,bc->ltbsc', tw1.astype(jnp.float32), eye).reshape(
        DEPTH, TOK_ROWS, ROWS).astype(jnp.bfloat16)
    tw2k = jnp.einsum('lst,bc->lsbtc', tw2.astype(jnp.float32), eye).reshape(
        DEPTH, ROWS, TOK_ROWS).astype(jnp.bfloat16)
    tb1k = jnp.repeat(tb1, BATCH, axis=1)             # (L, TOK_ROWS, 1)
    tb2k = jnp.repeat(tb2, BATCH, axis=1)             # (L, ROWS, 1)
    return (ln1_g, ln1_b, tw1k, tb1k, tw2k, tb2k, ln2_g, ln2_b,
            cw1, cb1, cw2, cb2, ng, nb, e2l_w, e2l_b, bn_g, bn_b)


# ---------------------------------------------------------------------------
# Pure-JAX reference (same bf16-rounded weights, f32 math)
# ---------------------------------------------------------------------------
def reference_forward(x_tokens, params):
    (ln1_g, ln1_b, tw1, tb1, tw2, tb2, ln2_g, ln2_b,
     cw1, cb1, cw2, cb2, ng, nb, e2l_w, e2l_b, bn_g, bn_b) = params
    hp = lax.Precision.HIGHEST

    def ln(x, g, b):
        mu = jnp.mean(x, axis=-1, keepdims=True)
        var = jnp.mean((x - mu) ** 2, axis=-1, keepdims=True)
        return (x - mu) * lax.rsqrt(var + LN_EPS) * g + b

    def gelu(v):  # exact erf form, like torch.nn.GELU()
        return 0.5 * v * (1.0 + jax.scipy.special.erf(v / jnp.sqrt(2.0)))

    x = x_tokens
    for l in range(DEPTH):
        y = ln(x, ln1_g[l], ln1_b[l])
        h = gelu(jnp.einsum('ts,bsd->btd', tw1[l].astype(jnp.float32), y,
                            precision=hp) + tb1[l][None])
        x = x + jnp.einsum('st,btd->bsd', tw2[l].astype(jnp.float32), h,
                           precision=hp) + tb2[l][None]
        y = ln(x, ln2_g[l], ln2_b[l])
        h = gelu(jnp.einsum('bsd,dc->bsc', y, cw1[l].astype(jnp.float32),
                            precision=hp) + cb1[l][None])
        x = x + jnp.einsum('bsc,cd->bsd', h, cw2[l].astype(jnp.float32),
                           precision=hp) + cb2[l][None]
    x = ln(x, ng, nb)
    z = jnp.einsum('bsd,sdp->bp', x, e2l_w, precision=hp) + e2l_b
    mu = jnp.mean(z, axis=0, keepdims=True)
    var = jnp.mean((z - mu) ** 2, axis=0, keepdims=True)
    zhat = (z - mu) * lax.rsqrt(var + BN_EPS)
    return gelu(zhat * bn_g + bn_b)


if __name__ == "__main__":
    key = jax.random.PRNGKey(0)
    kx1, kx2, kp = jax.random.split(key, 3)
    x1 = jax.random.normal(kx1, (BATCH, DATA_SIZE[0]), jnp.float32)
    x2 = jax.random.normal(kx2, (BATCH, DATA_SIZE[1]), jnp.float32)
    params = init_params(kp)
    kparams = prepare_kernel_params(params)

    x_tokens = data_process([x1, x2])            # (4, 4, 256)

    out = vit_encoder_forward(x_tokens, kparams)
    out = jax.block_until_ready(out)

    ref = reference_forward(x_tokens, params)
    assert out.shape == (BATCH, LATENT), out.shape
    assert bool(jnp.all(jnp.isfinite(out)))
    assert jnp.allclose(out, ref, atol=5e-2, rtol=5e-2), (out, ref)

    print("KERNEL_OK")
</pallas_src>

<mosaic_0001>
module attributes {stable_mosaic.version = 11 : i64} {
  func.func @vit_encoder_kernel(%arg0: i32, %arg1: memref<16x256xf32, #tpu.memory_space<vmem>>, %arg2: memref<1x1x256xf32, #tpu.memory_space<vmem>>, %arg3: memref<1x1x256xf32, #tpu.memory_space<vmem>>, %arg4: memref<1x512x16xbf16, #tpu.memory_space<vmem>>, %arg5: memref<1x512x1xf32, #tpu.memory_space<vmem>>, %arg6: memref<1x16x512xbf16, #tpu.memory_space<vmem>>, %arg7: memref<1x16x1xf32, #tpu.memory_space<vmem>>, %arg8: memref<1x1x256xf32, #tpu.memory_space<vmem>>, %arg9: memref<1x1x256xf32, #tpu.memory_space<vmem>>, %arg10: memref<1x256x1024xbf16, #tpu.memory_space<vmem>>, %arg11: memref<1x1x1024xf32, #tpu.memory_space<vmem>>, %arg12: memref<1x1024x256xbf16, #tpu.memory_space<vmem>>, %arg13: memref<1x1x256xf32, #tpu.memory_space<vmem>>, %arg14: memref<1x256xf32, #tpu.memory_space<vmem>>, %arg15: memref<1x256xf32, #tpu.memory_space<vmem>>, %arg16: memref<4x256x4xf32, #tpu.memory_space<vmem>>, %arg17: memref<1x4xf32, #tpu.memory_space<vmem>>, %arg18: memref<1x4xf32, #tpu.memory_space<vmem>>, %arg19: memref<1x4xf32, #tpu.memory_space<vmem>>, %arg20: memref<4x4xf32, #tpu.memory_space<vmem>>, %arg21: memref<16x256xf32, #tpu.memory_space<vmem>>) attributes {dimension_semantics = [#tpu.dimension_semantics<arbitrary>], iteration_bounds = array<i64: 8>, scalar_prefetch = 0 : i64, scratch_operands = 1 : i64, tpu.core_type = #tpu.core_type<tc>, window_params = [{pipeline_mode = #tpu.pipeline_mode<synchronous>, transform_indices = @transform_0, window_bounds = array<i64: 16, 256>}, {transform_indices = @transform_1, window_bounds = array<i64: 1, 1, 256>}, {transform_indices = @transform_2, window_bounds = array<i64: 1, 1, 256>}, {transform_indices = @transform_3, window_bounds = array<i64: 1, 512, 16>}, {transform_indices = @transform_4, window_bounds = array<i64: 1, 512, 1>}, {transform_indices = @transform_5, window_bounds = array<i64: 1, 16, 512>}, {transform_indices = @transform_6, window_bounds = array<i64: 1, 16, 1>}, {transform_indices = @transform_7, window_bounds = array<i64: 1, 1, 256>}, {transform_indices = @transform_8, window_bounds = array<i64: 1, 1, 256>}, {transform_indices = @transform_9, window_bounds = array<i64: 1, 256, 1024>}, {transform_indices = @transform_10, window_bounds = array<i64: 1, 1, 1024>}, {transform_indices = @transform_11, window_bounds = array<i64: 1, 1024, 256>}, {transform_indices = @transform_12, window_bounds = array<i64: 1, 1, 256>}, {pipeline_mode = #tpu.pipeline_mode<synchronous>, transform_indices = @transform_13, window_bounds = array<i64: 1, 256>}, {pipeline_mode = #tpu.pipeline_mode<synchronous>, transform_indices = @transform_14, window_bounds = array<i64: 1, 256>}, {pipeline_mode = #tpu.pipeline_mode<synchronous>, transform_indices = @transform_15, window_bounds = array<i64: 4, 256, 4>}, {pipeline_mode = #tpu.pipeline_mode<synchronous>, transform_indices = @transform_16, window_bounds = array<i64: 1, 4>}, {pipeline_mode = #tpu.pipeline_mode<synchronous>, transform_indices = @transform_17, window_bounds = array<i64: 1, 4>}, {pipeline_mode = #tpu.pipeline_mode<synchronous>, transform_indices = @transform_18, window_bounds = array<i64: 1, 4>}, {pipeline_mode = #tpu.pipeline_mode<synchronous>, transform_indices = @transform_19, window_bounds = array<i64: 4, 4>}]} {
    %c0_i32 = arith.constant 0 : i32
    %0 = arith.cmpi eq, %arg0, %c0_i32 : i32
    %1 = arith.extui %0 : i1 to i32
    %c0_i32_0 = arith.constant 0 : i32
    %2 = arith.cmpi ne, %1, %c0_i32_0 : i32
    scf.if %2 {
      %c0_86 = arith.constant 0 : index
      %c0_87 = arith.constant 0 : index
      %176 = vector.load %arg1[%c0_86, %c0_87] : memref<16x256xf32, #tpu.memory_space<vmem>>, vector<16x256xf32>
      %c0_88 = arith.constant 0 : index
      %c0_89 = arith.constant 0 : index
      %177 = vector.load %arg21[%c0_88, %c0_89] : memref<16x256xf32, #tpu.memory_space<vmem>>, vector<16x256xf32>
      tpu.vector_store %arg21[%c0_88, %c0_89], %176 {strides = array<i32>} : memref<16x256xf32, #tpu.memory_space<vmem>>, vector<16x256xf32>,
    } else {
    }
    %c0 = arith.constant 0 : index
    %c0_1 = arith.constant 0 : index
    %3 = vector.load %arg21[%c0, %c0_1] : memref<16x256xf32, #tpu.memory_space<vmem>>, vector<16x256xf32>
    %c0_2 = arith.constant 0 : index
    %c0_3 = arith.constant 0 : index
    %c0_4 = arith.constant 0 : index
    %4 = vector.load %arg2[%c0_2, %c0_3, %c0_4] : memref<1x1x256xf32, #tpu.memory_space<vmem>>, vector<1x1x256xf32>
    %5 = vector.shape_cast %4 : vector<1x1x256xf32> to vector<1x256xf32>
    %c0_5 = arith.constant 0 : index
    %c0_6 = arith.constant 0 : index
    %c0_7 = arith.constant 0 : index
    %6 = vector.load %arg3[%c0_5, %c0_6, %c0_7] : memref<1x1x256xf32, #tpu.memory_space<vmem>>, vector<1x1x256xf32>
    %7 = vector.shape_cast %6 : vector<1x1x256xf32> to vector<1x256xf32>
    %cst = arith.constant dense<0.000000e+00> : vector<16xf32>
    %8 = vector.multi_reduction <add>, %3, %cst [1] : vector<16x256xf32> to vector<16xf32>
    %9 = vector.shape_cast %8 : vector<16xf32> to vector<16x1xf32>
    %cst_8 = arith.constant 2.560000e+02 : f32
    %10 = vector.broadcast %cst_8 : f32 to vector<16x1xf32>
    %11 = arith.divf %9, %10 : vector<16x1xf32>
    %12 = vector.broadcast %11 : vector<16x1xf32> to vector<16x256xf32>
    %13 = arith.subf %3, %12 : vector<16x256xf32>
    %14 = arith.mulf %13, %13 : vector<16x256xf32>
    %cst_9 = arith.constant dense<0.000000e+00> : vector<16xf32>
    %15 = vector.multi_reduction <add>, %14, %cst_9 [1] : vector<16x256xf32> to vector<16xf32>
    %16 = vector.shape_cast %15 : vector<16xf32> to vector<16x1xf32>
    %cst_10 = arith.constant 2.560000e+02 : f32
    %17 = vector.broadcast %cst_10 : f32 to vector<16x1xf32>
    %18 = arith.divf %16, %17 : vector<16x1xf32>
    %19 = vector.broadcast %11 : vector<16x1xf32> to vector<16x256xf32>
    %20 = arith.subf %3, %19 : vector<16x256xf32>
    %cst_11 = arith.constant 9.99999997E-7 : f32
    %21 = vector.broadcast %cst_11 : f32 to vector<16x1xf32>
    %22 = arith.addf %18, %21 : vector<16x1xf32>
    %23 = math.rsqrt %22 : vector<16x1xf32>
    %24 = vector.broadcast %23 : vector<16x1xf32> to vector<16x256xf32>
    %25 = arith.mulf %20, %24 : vector<16x256xf32>
    %26 = vector.broadcast %5 : vector<1x256xf32> to vector<16x256xf32>
    %27 = arith.mulf %25, %26 : vector<16x256xf32>
    %28 = vector.broadcast %7 : vector<1x256xf32> to vector<16x256xf32>
    %29 = arith.addf %27, %28 : vector<16x256xf32>
    %c0_12 = arith.constant 0 : index
    %c0_13 = arith.constant 0 : index
    %c0_14 = arith.constant 0 : index
    %30 = vector.load %arg4[%c0_12, %c0_13, %c0_14] : memref<1x512x16xbf16, #tpu.memory_space<vmem>>, vector<1x512x16xbf16>
    %31 = vector.shape_cast %30 : vector<1x512x16xbf16> to vector<512x16xbf16>
    %32 = arith.truncf %29 : vector<16x256xf32> to vector<16x256xbf16>
    %cst_15 = arith.constant dense<0.000000e+00> : vector<512x256xf32>
    %33 = tpu.matmul %31, %32, %cst_15 {dimension_numbers = #tpu.dot_dimension_numbers<[1], [0], [0], [1], [0, 0, 1, 1], [], []>} : vector<512x16xbf16>, vector<16x256xbf16>, vector<512x256xf32> -> vector<512x256xf32>
    %c0_16 = arith.constant 0 : index
    %c0_17 = arith.constant 0 : index
    %c0_18 = arith.constant 0 : index
    %34 = vector.load %arg5[%c0_16, %c0_17, %c0_18] : memref<1x512x1xf32, #tpu.memory_space<vmem>>, vector<1x512x1xf32>
    %35 = vector.shape_cast %34 : vector<1x512x1xf32> to vector<512x1xf32>
    %36 = vector.broadcast %35 : vector<512x1xf32> to vector<512x256xf32>
    %37 = arith.addf %33, %36 : vector<512x256xf32>
    %cst_19 = arith.constant 5.000000e-01 : f32
    %38 = vector.broadcast %cst_19 : f32 to vector<512x256xf32>
    %39 = arith.mulf %38, %37 : vector<512x256xf32>
    %cst_20 = arith.constant 0.707106769 : f32
    %40 = vector.broadcast %cst_20 : f32 to vector<512x256xf32>
    %41 = arith.mulf %37, %40 : vector<512x256xf32>
    %cst_21 = arith.constant 0.000000e+00 : f32
    %42 = vector.broadcast %cst_21 : f32 to vector<512x256xf32>
    %43 = arith.cmpf oge, %41, %42 : vector<512x256xf32>
    %cst_22 = arith.constant 1.000000e+00 : f32
    %cst_23 = arith.constant -1.000000e+00 : f32
    %44 = vector.broadcast %cst_22 : f32 to vector<512x256xf32>
    %45 = vector.broadcast %cst_23 : f32 to vector<512x256xf32>
    %46 = arith.select %43, %44, %45 : vector<512x256xi1>, vector<512x256xf32>
    %47 = math.absf %41 : vector<512x256xf32>
    %cst_24 = arith.constant 0.327591091 : f32
    %48 = vector.broadcast %cst_24 : f32 to vector<512x256xf32>
    %49 = arith.mulf %48, %47 : vector<512x256xf32>
    %cst_25 = arith.constant 1.000000e+00 : f32
    %50 = vector.broadcast %cst_25 : f32 to vector<512x256xf32>
    %51 = arith.addf %50, %49 : vector<512x256xf32>
    %cst_26 = arith.constant 1.000000e+00 : f32
    %52 = vector.broadcast %cst_26 : f32 to vector<512x256xf32>
    %53 = arith.divf %52, %51 : vector<512x256xf32>
    %cst_27 = arith.constant 1.06140542 : f32
    %54 = vector.broadcast %cst_27 : f32 to vector<512x256xf32>
    %55 = arith.mulf %54, %53 : vector<512x256xf32>
    %cst_28 = arith.constant -1.45315206 : f32
    %56 = vector.broadcast %cst_28 : f32 to vector<512x256xf32>
    %57 = arith.addf %55, %56 : vector<512x256xf32>
    %58 = arith.mulf %57, %53 : vector<512x256xf32>
    %cst_29 = arith.constant 1.42141378 : f32
    %59 = vector.broadcast %cst_29 : f32 to vector<512x256xf32>
    %60 = arith.addf %58, %59 : vector<512x256xf32>
    %61 = arith.mulf %60, %53 : vector<512x256xf32>
    %cst_30 = arith.constant -0.284496725 : f32
    %62 = vector.broadcast %cst_30 : f32 to vector<512x256xf32>
    %63 = arith.addf %61, %62 : vector<512x256xf32>
    %64 = arith.mulf %63, %53 : vector<512x256xf32>
    %cst_31 = arith.constant 0.254829586 : f32
    %65 = vector.broadcast %cst_31 : f32 to vector<512x256xf32>
    %66 = arith.addf %64, %65 : vector<512x256xf32>
    %67 = arith.mulf %66, %53 : vector<512x256xf32>
    %cst_32 = arith.constant 0.000000e+00 : f32
    %68 = vector.broadcast %cst_32 : f32 to vector<512x256xf32>
    %69 = arith.subf %68, %47 : vector<512x256xf32>
    %70 = arith.mulf %69, %47 : vector<512x256xf32>
    %71 = math.exp %70 : vector<512x256xf32>
    %72 = arith.mulf %67, %71 : vector<512x256xf32>
    %cst_33 = arith.constant 1.000000e+00 : f32
    %73 = vector.broadcast %cst_33 : f32 to vector<512x256xf32>
    %74 = arith.subf %73, %72 : vector<512x256xf32>
    %75 = arith.mulf %46, %74 : vector<512x256xf32>
    %cst_34 = arith.constant 1.000000e+00 : f32
    %76 = vector.broadcast %cst_34 : f32 to vector<512x256xf32>
    %77 = arith.addf %76, %75 : vector<512x256xf32>
    %78 = arith.mulf %39, %77 : vector<512x256xf32>
    %c0_35 = arith.constant 0 : index
    %c0_36 = arith.constant 0 : index
    %c0_37 = arith.constant 0 : index
    %79 = vector.load %arg6[%c0_35, %c0_36, %c0_37] : memref<1x16x512xbf16, #tpu.memory_space<vmem>>, vector<1x16x512xbf16>
    %80 = vector.shape_cast %79 : vector<1x16x512xbf16> to vector<16x512xbf16>
    %81 = arith.truncf %78 : vector<512x256xf32> to vector<512x256xbf16>
    %cst_38 = arith.constant dense<0.000000e+00> : vector<16x256xf32>
    %82 = tpu.matmul %80, %81, %cst_38 {dimension_numbers = #tpu.dot_dimension_numbers<[1], [0], [0], [1], [0, 0, 1, 1], [], []>} : vector<16x512xbf16>, vector<512x256xbf16>, vector<16x256xf32> -> vector<16x256xf32>
    %c0_39 = arith.constant 0 : index
    %c0_40 = arith.constant 0 : index
    %c0_41 = arith.constant 0 : index
    %83 = vector.load %arg7[%c0_39, %c0_40, %c0_41] : memref<1x16x1xf32, #tpu.memory_space<vmem>>, vector<1x16x1xf32>
    %84 = vector.shape_cast %83 : vector<1x16x1xf32> to vector<16x1xf32>
    %85 = vector.broadcast %84 : vector<16x1xf32> to vector<16x256xf32>
    %86 = arith.addf %82, %85 : vector<16x256xf32>
    %87 = arith.addf %3, %86 : vector<16x256xf32>
    %c0_42 = arith.constant 0 : index
    %c0_43 = arith.constant 0 : index
    %c0_44 = arith.constant 0 : index
    %88 = vector.load %arg8[%c0_42, %c0_43, %c0_44] : memref<1x1x256xf32, #tpu.memory_space<vmem>>, vector<1x1x256xf32>
    %89 = vector.shape_cast %88 : vector<1x1x256xf32> to vector<1x256xf32>
    %c0_45 = arith.constant 0 : index
    %c0_46 = arith.constant 0 : index
    %c0_47 = arith.constant 0 : index
    %90 = vector.load %arg9[%c0_45, %c0_46, %c0_47] : memref<1x1x256xf32, #tpu.memory_space<vmem>>, vector<1x1x256xf32>
    %91 = vector.shape_cast %90 : vector<1x1x256xf32> to vector<1x256xf32>
    %cst_48 = arith.constant dense<0.000000e+00> : vector<16xf32>
    %92 = vector.multi_reduction <add>, %87, %cst_48 [1] : vector<16x256xf32> to vector<16xf32>
    %93 = vector.shape_cast %92 : vector<16xf32> to vector<16x1xf32>
    %cst_49 = arith.constant 2.560000e+02 : f32
    %94 = vector.broadcast %cst_49 : f32 to vector<16x1xf32>
    %95 = arith.divf %93, %94 : vector<16x1xf32>
    %96 = vector.broadcast %95 : vector<16x1xf32> to vector<16x256xf32>
    %97 = arith.subf %87, %96 : vector<16x256xf32>
    %98 = arith.mulf %97, %97 : vector<16x256xf32>
    %cst_50 = arith.constant dense<0.000000e+00> : vector<16xf32>
    %99 = vector.multi_reduction <add>, %98, %cst_50 [1] : vector<16x256xf32> to vector<16xf32>
    %100 = vector.shape_cast %99 : vector<16xf32> to vector<16x1xf32>
    %cst_51 = arith.constant 2.560000e+02 : f32
    %101 = vector.broadcast %cst_51 : f32 to vector<16x1xf32>
    %102 = arith.divf %100, %101 : vector<16x1xf32>
    %103 = vector.broadcast %95 : vector<16x1xf32> to vector<16x256xf32>
    %104 = arith.subf %87, %103 : vector<16x256xf32>
    %cst_52 = arith.constant 9.99999997E-7 : f32
    %105 = vector.broadcast %cst_52 : f32 to vector<16x1xf32>
    %106 = arith.addf %102, %105 : vector<16x1xf32>
    %107 = math.rsqrt %106 : vector<16x1xf32>
    %108 = vector.broadcast %107 : vector<16x1xf32> to vector<16x256xf32>
    %109 = arith.mulf %104, %108 : vector<16x256xf32>
    %110 = vector.broadcast %89 : vector<1x256xf32> to vector<16x256xf32>
    %111 = arith.mulf %109, %110 : vector<16x256xf32>
    %112 = vector.broadcast %91 : vector<1x256xf32> to vector<16x256xf32>
    %113 = arith.addf %111, %112 : vector<16x256xf32>
    %114 = arith.truncf %113 : vector<16x256xf32> to vector<16x256xbf16>
    %c0_53 = arith.constant 0 : index
    %c0_54 = arith.constant 0 : index
    %c0_55 = arith.constant 0 : index
    %115 = vector.load %arg10[%c0_53, %c0_54, %c0_55] : memref<1x256x1024xbf16, #tpu.memory_space<vmem>>, vector<1x256x1024xbf16>
    %116 = vector.shape_cast %115 : vector<1x256x1024xbf16> to vector<256x1024xbf16>
    %cst_56 = arith.constant dense<0.000000e+00> : vector<16x1024xf32>
    %117 = tpu.matmul %114, %116, %cst_56 {dimension_numbers = #tpu.dot_dimension_numbers<[1], [0], [0], [1], [0, 0, 1, 1], [], []>} : vector<16x256xbf16>, vector<256x1024xbf16>, vector<16x1024xf32> -> vector<16x1024xf32>
    %c0_57 = arith.constant 0 : index
    %c0_58 = arith.constant 0 : index
    %c0_59 = arith.constant 0 : index
    %118 = vector.load %arg11[%c0_57, %c0_58, %c0_59] : memref<1x1x1024xf32, #tpu.memory_space<vmem>>, vector<1x1x1024xf32>
    %119 = vector.shape_cast %118 : vector<1x1x1024xf32> to vector<1x1024xf32>
    %120 = vector.broadcast %119 : vector<1x1024xf32> to vector<16x1024xf32>
    %121 = arith.addf %117, %120 : vector<16x1024xf32>
    %cst_60 = arith.constant 5.000000e-01 : f32
    %122 = vector.broadcast %cst_60 : f32 to vector<16x1024xf32>
    %123 = arith.mulf %122, %121 : vector<16x1024xf32>
    %cst_61 = arith.constant 0.707106769 : f32
    %124 = vector.broadcast %cst_61 : f32 to vector<16x1024xf32>
    %125 = arith.mulf %121, %124 : vector<16x1024xf32>
    %cst_62 = arith.constant 0.000000e+00 : f32
    %126 = vector.broadcast %cst_62 : f32 to vector<16x1024xf32>
    %127 = arith.cmpf oge, %125, %126 : vector<16x1024xf32>
    %cst_63 = arith.constant 1.000000e+00 : f32
    %cst_64 = arith.constant -1.000000e+00 : f32
    %128 = vector.broadcast %cst_63 : f32 to vector<16x1024xf32>
    %129 = vector.broadcast %cst_64 : f32 to vector<16x1024xf32>
    %130 = arith.select %127, %128, %129 : vector<16x1024xi1>, vector<16x1024xf32>
    %131 = math.absf %125 : vector<16x1024xf32>
    %cst_65 = arith.constant 0.327591091 : f32
    %132 = vector.broadcast %cst_65 : f32 to vector<16x1024xf32>
    %133 = arith.mulf %132, %131 : vector<16x1024xf32>
    %cst_66 = arith.constant 1.000000e+00 : f32
    %134 = vector.broadcast %cst_66 : f32 to vector<16x1024xf32>
    %135 = arith.addf %134, %133 : vector<16x1024xf32>
    %cst_67 = arith.constant 1.000000e+00 : f32
    %136 = vector.broadcast %cst_67 : f32 to vector<16x1024xf32>
    %137 = arith.divf %136, %135 : vector<16x1024xf32>
    %cst_68 = arith.constant 1.06140542 : f32
    %138 = vector.broadcast %cst_68 : f32 to vector<16x1024xf32>
    %139 = arith.mulf %138, %137 : vector<16x1024xf32>
    %cst_69 = arith.constant -1.45315206 : f32
    %140 = vector.broadcast %cst_69 : f32 to vector<16x1024xf32>
    %141 = arith.addf %139, %140 : vector<16x1024xf32>
    %142 = arith.mulf %141, %137 : vector<16x1024xf32>
    %cst_70 = arith.constant 1.42141378 : f32
    %143 = vector.broadcast %cst_70 : f32 to vector<16x1024xf32>
    %144 = arith.addf %142, %143 : vector<16x1024xf32>
    %145 = arith.mulf %144, %137 : vector<16x1024xf32>
    %cst_71 = arith.constant -0.284496725 : f32
    %146 = vector.broadcast %cst_71 : f32 to vector<16x1024xf32>
    %147 = arith.addf %145, %146 : vector<16x1024xf32>
    %148 = arith.mulf %147, %137 : vector<16x1024xf32>
    %cst_72 = arith.constant 0.254829586 : f32
    %149 = vector.broadcast %cst_72 : f32 to vector<16x1024xf32>
    %150 = arith.addf %148, %149 : vector<16x1024xf32>
    %151 = arith.mulf %150, %137 : vector<16x1024xf32>
    %cst_73 = arith.constant 0.000000e+00 : f32
    %152 = vector.broadcast %cst_73 : f32 to vector<16x1024xf32>
    %153 = arith.subf %152, %131 : vector<16x1024xf32>
    %154 = arith.mulf %153, %131 : vector<16x1024xf32>
    %155 = math.exp %154 : vector<16x1024xf32>
    %156 = arith.mulf %151, %155 : vector<16x1024xf32>
    %cst_74 = arith.constant 1.000000e+00 : f32
    %157 = vector.broadcast %cst_74 : f32 to vector<16x1024xf32>
    %158 = arith.subf %157, %156 : vector<16x1024xf32>
    %159 = arith.mulf %130, %158 : vector<16x1024xf32>
    %cst_75 = arith.constant 1.000000e+00 : f32
    %160 = vector.broadcast %cst_75 : f32 to vector<16x1024xf32>
    %161 = arith.addf %160, %159 : vector<16x1024xf32>
    %162 = arith.mulf %123, %161 : vector<16x1024xf32>
    %163 = arith.truncf %162 : vector<16x1024xf32> to vector<16x1024xbf16>
    %c0_76 = arith.constant 0 : index
    %c0_77 = arith.constant 0 : index
    %c0_78 = arith.constant 0 : index
    %164 = vector.load %arg12[%c0_76, %c0_77, %c0_78] : memref<1x1024x256xbf16, #tpu.memory_space<vmem>>, vector<1x1024x256xbf16>
    %165 = vector.shape_cast %164 : vector<1x1024x256xbf16> to vector<1024x256xbf16>
    %cst_79 = arith.constant dense<0.000000e+00> : vector<16x256xf32>
    %166 = tpu.matmul %163, %165, %cst_79 {dimension_numbers = #tpu.dot_dimension_numbers<[1], [0], [0], [1], [0, 0, 1, 1], [], []>} : vector<16x1024xbf16>, vector<1024x256xbf16>, vector<16x256xf32> -> vector<16x256xf32>
    %c0_80 = arith.constant 0 : index
    %c0_81 = arith.constant 0 : index
    %c0_82 = arith.constant 0 : index
    %167 = vector.load %arg13[%c0_80, %c0_81, %c0_82] : memref<1x1x256xf32, #tpu.memory_space<vmem>>, vector<1x1x256xf32>
    %168 = vector.shape_cast %167 : vector<1x1x256xf32> to vector<1x256xf32>
    %169 = vector.broadcast %168 : vector<1x256xf32> to vector<16x256xf32>
    %170 = arith.addf %166, %169 : vector<16x256xf32>
    %171 = arith.addf %87, %170 : vector<16x256xf32>
    %c0_83 = arith.constant 0 : index
    %c0_84 = arith.constant 0 : index
    %172 = vector.load %arg21[%c0_83, %c0_84] : memref<16x256xf32, #tpu.memory_space<vmem>>, vector<16x256xf32>
    tpu.vector_store %arg21[%c0_83, %c0_84], %171 {strides = array<i32>} : memref<16x256xf32, #tpu.memory_space<vmem>>, vector<16x256xf32>,
    %c7_i32 = arith.constant 7 : i32
    %173 = arith.cmpi eq, %arg0, %c7_i32 : i32
    %174 = arith.extui %173 : i1 to i32
    %c0_i32_85 = arith.constant 0 : i32
    %175 = arith.cmpi ne, %174, %c0_i32_85 : i32
    scf.if %175 {
      %c0_86 = arith.constant 0 : index
      %c0_87 = arith.constant 0 : index
      %176 = vector.load %arg14[%c0_86, %c0_87] : memref<1x256xf32, #tpu.memory_space<vmem>>, vector<1x256xf32>
      %c0_88 = arith.constant 0 : index
      %c0_89 = arith.constant 0 : index
      %177 = vector.load %arg15[%c0_88, %c0_89] : memref<1x256xf32, #tpu.memory_space<vmem>>, vector<1x256xf32>
      %cst_90 = arith.constant dense<0.000000e+00> : vector<16xf32>
      %178 = vector.multi_reduction <add>, %171, %cst_90 [1] : vector<16x256xf32> to vector<16xf32>
      %179 = vector.shape_cast %178 : vector<16xf32> to vector<16x1xf32>
      %cst_91 = arith.constant 2.560000e+02 : f32
      %180 = vector.broadcast %cst_91 : f32 to vector<16x1xf32>
      %181 = arith.divf %179, %180 : vector<16x1xf32>
      %182 = vector.broadcast %181 : vector<16x1xf32> to vector<16x256xf32>
      %183 = arith.subf %171, %182 : vector<16x256xf32>
      %184 = arith.mulf %183, %183 : vector<16x256xf32>
      %cst_92 = arith.constant dense<0.000000e+00> : vector<16xf32>
      %185 = vector.multi_reduction <add>, %184, %cst_92 [1] : vector<16x256xf32> to vector<16xf32>
      %186 = vector.shape_cast %185 : vector<16xf32> to vector<16x1xf32>
      %cst_93 = arith.constant 2.560000e+02 : f32
      %187 = vector.broadcast %cst_93 : f32 to vector<16x1xf32>
      %188 = arith.divf %186, %187 : vector<16x1xf32>
      %189 = vector.broadcast %181 : vector<16x1xf32> to vector<16x256xf32>
      %190 = arith.subf %171, %189 : vector<16x256xf32>
      %cst_94 = arith.constant 9.99999997E-7 : f32
      %191 = vector.broadcast %cst_94 : f32 to vector<16x1xf32>
      %192 = arith.addf %188, %191 : vector<16x1xf32>
      %193 = math.rsqrt %192 : vector<16x1xf32>
      %194 = vector.broadcast %193 : vector<16x1xf32> to vector<16x256xf32>
      %195 = arith.mulf %190, %194 : vector<16x256xf32>
      %196 = vector.broadcast %176 : vector<1x256xf32> to vector<16x256xf32>
      %197 = arith.mulf %195, %196 : vector<16x256xf32>
      %198 = vector.broadcast %177 : vector<1x256xf32> to vector<16x256xf32>
      %199 = arith.addf %197, %198 : vector<16x256xf32>
      %cst_95 = arith.constant 0.000000e+00 : f32
      %200 = vector.broadcast %cst_95 : f32 to vector<4x4xf32>
      %201 = vector.extract_strided_slice %199 {offsets = [0, 0], sizes = [4, 256], strides = [1, 1]} : vector<16x256xf32> to vector<4x256xf32>
      %c0_96 = arith.constant 0 : index
      %c0_97 = arith.constant 0 : index
      %c0_98 = arith.constant 0 : index
      %202 = vector.load %arg16[%c0_96, %c0_97, %c0_98] : memref<4x256x4xf32, #tpu.memory_space<vmem>>, vector<1x256x4xf32>
      %203 = vector.shape_cast %202 : vector<1x256x4xf32> to vector<256x4xf32>
      %cst_99 = arith.constant dense<0.000000e+00> : vector<4x4xf32>
      %204 = tpu.matmul %201, %203, %cst_99 {dimension_numbers = #tpu.dot_dimension_numbers<[1], [0], [0], [1], [0, 0, 1, 1], [], []>} : vector<4x256xf32>, vector<256x4xf32>, vector<4x4xf32> -> vector<4x4xf32>
      %205 = arith.addf %200, %204 : vector<4x4xf32>
      %206 = vector.extract_strided_slice %199 {offsets = [4, 0], sizes = [4, 256], strides = [1, 1]} : vector<16x256xf32> to vector<4x256xf32>
      %c1 = arith.constant 1 : index
      %c0_100 = arith.constant 0 : index
      %c0_101 = arith.constant 0 : index
      %207 = vector.load %arg16[%c1, %c0_100, %c0_101] : memref<4x256x4xf32, #tpu.memory_space<vmem>>, vector<1x256x4xf32>
      %208 = vector.shape_cast %207 : vector<1x256x4xf32> to vector<256x4xf32>
      %cst_102 = arith.constant dense<0.000000e+00> : vector<4x4xf32>
      %209 = tpu.matmul %206, %208, %cst_102 {dimension_numbers = #tpu.dot_dimension_numbers<[1], [0], [0], [1], [0, 0, 1, 1], [], []>} : vector<4x256xf32>, vector<256x4xf32>, vector<4x4xf32> -> vector<4x4xf32>
      %210 = arith.addf %205, %209 : vector<4x4xf32>
      %211 = vector.extract_strided_slice %199 {offsets = [8, 0], sizes = [4, 256], strides = [1, 1]} : vector<16x256xf32> to vector<4x256xf32>
      %c2 = arith.constant 2 : index
      %c0_103 = arith.constant 0 : index
      %c0_104 = arith.constant 0 : index
      %212 = vector.load %arg16[%c2, %c0_103, %c0_104] : memref<4x256x4xf32, #tpu.memory_space<vmem>>, vector<1x256x4xf32>
      %213 = vector.shape_cast %212 : vector<1x256x4xf32> to vector<256x4xf32>
      %cst_105 = arith.constant dense<0.000000e+00> : vector<4x4xf32>
      %214 = tpu.matmul %211, %213, %cst_105 {dimension_numbers = #tpu.dot_dimension_numbers<[1], [0], [0], [1], [0, 0, 1, 1], [], []>} : vector<4x256xf32>, vector<256x4xf32>, vector<4x4xf32> -> vector<4x4xf32>
      %215 = arith.addf %210, %214 : vector<4x4xf32>
      %216 = vector.extract_strided_slice %199 {offsets = [12, 0], sizes = [4, 256], strides = [1, 1]} : vector<16x256xf32> to vector<4x256xf32>
      %c3 = arith.constant 3 : index
      %c0_106 = arith.constant 0 : index
      %c0_107 = arith.constant 0 : index
      %217 = vector.load %arg16[%c3, %c0_106, %c0_107] : memref<4x256x4xf32, #tpu.memory_space<vmem>>, vector<1x256x4xf32>
      %218 = vector.shape_cast %217 : vector<1x256x4xf32> to vector<256x4xf32>
      %cst_108 = arith.constant dense<0.000000e+00> : vector<4x4xf32>
      %219 = tpu.matmul %216, %218, %cst_108 {dimension_numbers = #tpu.dot_dimension_numbers<[1], [0], [0], [1], [0, 0, 1, 1], [], []>} : vector<4x256xf32>, vector<256x4xf32>, vector<4x4xf32> -> vector<4x4xf32>
      %220 = arith.addf %215, %219 : vector<4x4xf32>
      %c0_109 = arith.constant 0 : index
      %c0_110 = arith.constant 0 : index
      %221 = vector.load %arg17[%c0_109, %c0_110] : memref<1x4xf32, #tpu.memory_space<vmem>>, vector<1x4xf32>
      %222 = vector.broadcast %221 : vector<1x4xf32> to vector<4x4xf32>
      %223 = arith.addf %220, %222 : vector<4x4xf32>
      %cst_111 = arith.constant dense<0.000000e+00> : vector<4xf32>
      %224 = vector.multi_reduction <add>, %223, %cst_111 [0] : vector<4x4xf32> to vector<4xf32>
      %225 = vector.shape_cast %224 : vector<4xf32> to vector<1x4xf32>
      %cst_112 = arith.constant 4.000000e+00 : f32
      %226 = vector.broadcast %cst_112 : f32 to vector<1x4xf32>
      %227 = arith.divf %225, %226 : vector<1x4xf32>
      %228 = vector.broadcast %227 : vector<1x4xf32> to vector<4x4xf32>
      %229 = arith.subf %223, %228 : vector<4x4xf32>
      %230 = arith.mulf %229, %229 : vector<4x4xf32>
      %cst_113 = arith.constant dense<0.000000e+00> : vector<4xf32>
      %231 = vector.multi_reduction <add>, %230, %cst_113 [0] : vector<4x4xf32> to vector<4xf32>
      %232 = vector.shape_cast %231 : vector<4xf32> to vector<1x4xf32>
      %cst_114 = arith.constant 4.000000e+00 : f32
      %233 = vector.broadcast %cst_114 : f32 to vector<1x4xf32>
      %234 = arith.divf %232, %233 : vector<1x4xf32>
      %235 = vector.broadcast %227 : vector<1x4xf32> to vector<4x4xf32>
      %236 = arith.subf %223, %235 : vector<4x4xf32>
      %cst_115 = arith.constant 9.99999974E-6 : f32
      %237 = vector.broadcast %cst_115 : f32 to vector<1x4xf32>
      %238 = arith.addf %234, %237 : vector<1x4xf32>
      %239 = math.rsqrt %238 : vector<1x4xf32>
      %240 = vector.broadcast %239 : vector<1x4xf32> to vector<4x4xf32>
      %241 = arith.mulf %236, %240 : vector<4x4xf32>
      %c0_116 = arith.constant 0 : index
      %c0_117 = arith.constant 0 : index
      %242 = vector.load %arg18[%c0_116, %c0_117] : memref<1x4xf32, #tpu.memory_space<vmem>>, vector<1x4xf32>
      %243 = vector.broadcast %242 : vector<1x4xf32> to vector<4x4xf32>
      %244 = arith.mulf %241, %243 : vector<4x4xf32>
      %c0_118 = arith.constant 0 : index
      %c0_119 = arith.constant 0 : index
      %245 = vector.load %arg19[%c0_118, %c0_119] : memref<1x4xf32, #tpu.memory_space<vmem>>, vector<1x4xf32>
      %246 = vector.broadcast %245 : vector<1x4xf32> to vector<4x4xf32>
      %247 = arith.addf %244, %246 : vector<4x4xf32>
      %cst_120 = arith.constant 5.000000e-01 : f32
      %248 = vector.broadcast %cst_120 : f32 to vector<4x4xf32>
      %249 = arith.mulf %248, %247 : vector<4x4xf32>
      %cst_121 = arith.constant 0.707106769 : f32
      %250 = vector.broadcast %cst_121 : f32 to vector<4x4xf32>
      %251 = arith.mulf %247, %250 : vector<4x4xf32>
      %cst_122 = arith.constant 0.000000e+00 : f32
      %252 = vector.broadcast %cst_122 : f32 to vector<4x4xf32>
      %253 = arith.cmpf oge, %251, %252 : vector<4x4xf32>
      %cst_123 = arith.constant 1.000000e+00 : f32
      %cst_124 = arith.constant -1.000000e+00 : f32
      %254 = vector.broadcast %cst_123 : f32 to vector<4x4xf32>
      %255 = vector.broadcast %cst_124 : f32 to vector<4x4xf32>
      %256 = arith.select %253, %254, %255 : vector<4x4xi1>, vector<4x4xf32>
      %257 = math.absf %251 : vector<4x4xf32>
      %cst_125 = arith.constant 0.327591091 : f32
      %258 = vector.broadcast %cst_125 : f32 to vector<4x4xf32>
      %259 = arith.mulf %258, %257 : vector<4x4xf32>
      %cst_126 = arith.constant 1.000000e+00 : f32
      %260 = vector.broadcast %cst_126 : f32 to vector<4x4xf32>
      %261 = arith.addf %260, %259 : vector<4x4xf32>
      %cst_127 = arith.constant 1.000000e+00 : f32
      %262 = vector.broadcast %cst_127 : f32 to vector<4x4xf32>
      %263 = arith.divf %262, %261 : vector<4x4xf32>
      %cst_128 = arith.constant 1.06140542 : f32
      %264 = vector.broadcast %cst_128 : f32 to vector<4x4xf32>
      %265 = arith.mulf %264, %263 : vector<4x4xf32>
      %cst_129 = arith.constant -1.45315206 : f32
      %266 = vector.broadcast %cst_129 : f32 to vector<4x4xf32>
      %267 = arith.addf %265, %266 : vector<4x4xf32>
      %268 = arith.mulf %267, %263 : vector<4x4xf32>
      %cst_130 = arith.constant 1.42141378 : f32
      %269 = vector.broadcast %cst_130 : f32 to vector<4x4xf32>
      %270 = arith.addf %268, %269 : vector<4x4xf32>
      %271 = arith.mulf %270, %263 : vector<4x4xf32>
      %cst_131 = arith.constant -0.284496725 : f32
      %272 = vector.broadcast %cst_131 : f32 to vector<4x4xf32>
      %273 = arith.addf %271, %272 : vector<4x4xf32>
      %274 = arith.mulf %273, %263 : vector<4x4xf32>
      %cst_132 = arith.constant 0.254829586 : f32
      %275 = vector.broadcast %cst_132 : f32 to vector<4x4xf32>
      %276 = arith.addf %274, %275 : vector<4x4xf32>
      %277 = arith.mulf %276, %263 : vector<4x4xf32>
      %cst_133 = arith.constant 0.000000e+00 : f32
      %278 = vector.broadcast %cst_133 : f32 to vector<4x4xf32>
      %279 = arith.subf %278, %257 : vector<4x4xf32>
      %280 = arith.mulf %279, %257 : vector<4x4xf32>
      %281 = math.exp %280 : vector<4x4xf32>
      %282 = arith.mulf %277, %281 : vector<4x4xf32>
      %cst_134 = arith.constant 1.000000e+00 : f32
      %283 = vector.broadcast %cst_134 : f32 to vector<4x4xf32>
      %284 = arith.subf %283, %282 : vector<4x4xf32>
      %285 = arith.mulf %256, %284 : vector<4x4xf32>
      %cst_135 = arith.constant 1.000000e+00 : f32
      %286 = vector.broadcast %cst_135 : f32 to vector<4x4xf32>
      %287 = arith.addf %286, %285 : vector<4x4xf32>
      %288 = arith.mulf %249, %287 : vector<4x4xf32>
      %c0_136 = arith.constant 0 : index
      %c0_137 = arith.constant 0 : index
      %289 = vector.load %arg20[%c0_136, %c0_137] : memref<4x4xf32, #tpu.memory_space<vmem>>, vector<4x4xf32>
      tpu.vector_store %arg20[%c0_136, %c0_137], %288 {strides = array<i32>} : memref<4x4xf32, #tpu.memory_space<vmem>>, vector<4x4xf32>,
    } else {
    }
    return
  }
  func.func @transform_0(%arg0: i32) -> (i32, i32) {
    %c0_i32 = arith.constant 0 : i32
    %c0_i32_0 = arith.constant 0 : i32
    %c0_i32_1 = arith.constant 0 : i32
    return %c0_i32, %c0_i32_0 : i32, i32
  }
  func.func @transform_1(%arg0: i32) -> (i32, i32, i32) {
    %c0_i32 = arith.constant 0 : i32
    %c0_i32_0 = arith.constant 0 : i32
    %c0_i32_1 = arith.constant 0 : i32
    return %arg0, %c0_i32, %c0_i32_0 : i32, i32, i32
  }
  func.func @transform_2(%arg0: i32) -> (i32, i32, i32) {
    %c0_i32 = arith.constant 0 : i32
    %c0_i32_0 = arith.constant 0 : i32
    %c0_i32_1 = arith.constant 0 : i32
    return %arg0, %c0_i32, %c0_i32_0 : i32, i32, i32
  }
  func.func @transform_3(%arg0: i32) -> (i32, i32, i32) {
    %c0_i32 = arith.constant 0 : i32
    %c0_i32_0 = arith.constant 0 : i32
    %c0_i32_1 = arith.constant 0 : i32
    return %arg0, %c0_i32, %c0_i32_0 : i32, i32, i32
  }
  func.func @transform_4(%arg0: i32) -> (i32, i32, i32) {
    %c0_i32 = arith.constant 0 : i32
    %c0_i32_0 = arith.constant 0 : i32
    %c0_i32_1 = arith.constant 0 : i32
    return %arg0, %c0_i32, %c0_i32_0 : i32, i32, i32
  }
  func.func @transform_5(%arg0: i32) -> (i32, i32, i32) {
    %c0_i32 = arith.constant 0 : i32
    %c0_i32_0 = arith.constant 0 : i32
    %c0_i32_1 = arith.constant 0 : i32
    return %arg0, %c0_i32, %c0_i32_0 : i32, i32, i32
  }
  func.func @transform_6(%arg0: i32) -> (i32, i32, i32) {
    %c0_i32 = arith.constant 0 : i32
    %c0_i32_0 = arith.constant 0 : i32
    %c0_i32_1 = arith.constant 0 : i32
    return %arg0, %c0_i32, %c0_i32_0 : i32, i32, i32
  }
  func.func @transform_7(%arg0: i32) -> (i32, i32, i32) {
    %c0_i32 = arith.constant 0 : i32
    %c0_i32_0 = arith.constant 0 : i32
    %c0_i32_1 = arith.constant 0 : i32
    return %arg0, %c0_i32, %c0_i32_0 : i32, i32, i32
  }
  func.func @transform_8(%arg0: i32) -> (i32, i32, i32) {
    %c0_i32 = arith.constant 0 : i32
    %c0_i32_0 = arith.constant 0 : i32
    %c0_i32_1 = arith.constant 0 : i32
    return %arg0, %c0_i32, %c0_i32_0 : i32, i32, i32
  }
  func.func @transform_9(%arg0: i32) -> (i32, i32, i32) {
    %c0_i32 = arith.constant 0 : i32
    %c0_i32_0 = arith.constant 0 : i32
    %c0_i32_1 = arith.constant 0 : i32
    return %arg0, %c0_i32, %c0_i32_0 : i32, i32, i32
  }
  func.func @transform_10(%arg0: i32) -> (i32, i32, i32) {
    %c0_i32 = arith.constant 0 : i32
    %c0_i32_0 = arith.constant 0 : i32
    %c0_i32_1 = arith.constant 0 : i32
    return %arg0, %c0_i32, %c0_i32_0 : i32, i32, i32
  }
  func.func @transform_11(%arg0: i32) -> (i32, i32, i32) {
    %c0_i32 = arith.constant 0 : i32
    %c0_i32_0 = arith.constant 0 : i32
    %c0_i32_1 = arith.constant 0 : i32
    return %arg0, %c0_i32, %c0_i32_0 : i32, i32, i32
  }
  func.func @transform_12(%arg0: i32) -> (i32, i32, i32) {
    %c0_i32 = arith.constant 0 : i32
    %c0_i32_0 = arith.constant 0 : i32
    %c0_i32_1 = arith.constant 0 : i32
    return %arg0, %c0_i32, %c0_i32_0 : i32, i32, i32
  }
  func.func @transform_13(%arg0: i32) -> (i32, i32) {
    %c0_i32 = arith.constant 0 : i32
    %c0_i32_0 = arith.constant 0 : i32
    %c0_i32_1 = arith.constant 0 : i32
    return %c0_i32, %c0_i32_0 : i32, i32
  }
  func.func @transform_14(%arg0: i32) -> (i32, i32) {
    %c0_i32 = arith.constant 0 : i32
    %c0_i32_0 = arith.constant 0 : i32
    %c0_i32_1 = arith.constant 0 : i32
    return %c0_i32, %c0_i32_0 : i32, i32
  }
  func.func @transform_15(%arg0: i32) -> (i32, i32, i32) {
    %c0_i32 = arith.constant 0 : i32
    %c0_i32_0 = arith.constant 0 : i32
    %c0_i32_1 = arith.constant 0 : i32
    %c0_i32_2 = arith.constant 0 : i32
    return %c0_i32, %c0_i32_0, %c0_i32_1 : i32, i32, i32
  }
  func.func @transform_16(%arg0: i32) -> (i32, i32) {
    %c0_i32 = arith.constant 0 : i32
    %c0_i32_0 = arith.constant 0 : i32
    %c0_i32_1 = arith.constant 0 : i32
    return %c0_i32, %c0_i32_0 : i32, i32
  }
  func.func @transform_17(%arg0: i32) -> (i32, i32) {
    %c0_i32 = arith.constant 0 : i32
    %c0_i32_0 = arith.constant 0 : i32
    %c0_i32_1 = arith.constant 0 : i32
    return %c0_i32, %c0_i32_0 : i32, i32
  }
  func.func @transform_18(%arg0: i32) -> (i32, i32) {
    %c0_i32 = arith.constant 0 : i32
    %c0_i32_0 = arith.constant 0 : i32
    %c0_i32_1 = arith.constant 0 : i32
    return %c0_i32, %c0_i32_0 : i32, i32
  }
  func.func @transform_19(%arg0: i32) -> (i32, i32) {
    %c0_i32 = arith.constant 0 : i32
    %c0_i32_0 = arith.constant 0 : i32
    %c0_i32_1 = arith.constant 0 : i32
    return %c0_i32, %c0_i32_0 : i32, i32
  }
}

</mosaic_0001>

<llo_original>
// kernel: vit_encoder_forward.1
$region0: #{vit_encoder_forward.1}
  #allocation0 [shape = 'u32[]', space=smem, size = 0x4, offset = 0x4, fixed_abs, tag = 'smem constant byte address 0x4 - core index']
  #allocation1 [shape = 'u32[144,128]{1,0:T(1,128)}', space=vmem, size = 0x12000, scoped, tag = 'internal scratch']
  #allocation2 [shape = 'f32[16,256]{1,0:T(8,128)}', space=vmem, size = 0x4000, scoped, tag = 'scratch operand']
  %s0 = inlined_call_operand.vmem [shape: f32[16,256], index: 0, kind: input, shape index: {}]
  %s1 = inlined_call_operand.hbm [shape: f32[8,1,256], index: 1, kind: input, shape index: {}]
  %s2 = inlined_call_operand.hbm [shape: f32[8,1,256], index: 2, kind: input, shape index: {}]
  %s3 = inlined_call_operand.vmem [shape: bf16[8,512,16], index: 3, kind: input, shape index: {}]
  %s4 = inlined_call_operand.vmem [shape: f32[8,512,1], index: 4, kind: input, shape index: {}]
  %s5 = inlined_call_operand.hbm [shape: bf16[8,16,512], index: 5, kind: input, shape index: {}]
  %s6 = inlined_call_operand.vmem [shape: f32[8,16,1], index: 6, kind: input, shape index: {}]
  %s7 = inlined_call_operand.hbm [shape: f32[8,1,256], index: 7, kind: input, shape index: {}]
  %s8 = inlined_call_operand.hbm [shape: f32[8,1,256], index: 8, kind: input, shape index: {}]
  %s9 = inlined_call_operand.hbm [shape: bf16[8,256,1024], index: 9, kind: input, shape index: {}]
  %s10 = inlined_call_operand.hbm [shape: f32[8,1,1024], index: 10, kind: input, shape index: {}]
  %s11 = inlined_call_operand.hbm [shape: bf16[8,1024,256], index: 11, kind: input, shape index: {}]
  %s12 = inlined_call_operand.hbm [shape: f32[8,1,256], index: 12, kind: input, shape index: {}]
  %s13 = inlined_call_operand.hbm [shape: f32[1,256], index: 13, kind: input, shape index: {}]
  %s14 = inlined_call_operand.hbm [shape: f32[1,256], index: 14, kind: input, shape index: {}]
  %s15 = inlined_call_operand.vmem [shape: f32[4,256,4], index: 15, kind: input, shape index: {}]
  %s16 = inlined_call_operand.hbm [shape: f32[1,4], index: 16, kind: input, shape index: {}]
  %s17 = inlined_call_operand.hbm [shape: f32[1,4], index: 17, kind: input, shape index: {}]
  %s18 = inlined_call_operand.hbm [shape: f32[1,4], index: 18, kind: input, shape index: {}]
  %s19 = inlined_call_operand.hbm [shape: f32[4,4], index: 19, kind: output, shape index: {}]
  %s20 = sld [smem:[#allocation0]]
  $region173: #{vit_encoder_forward.1} parent=0
    _
  %s22 = ssub.s32 1, %s20
  %s23 = scalar_select 0, %s22, %s20
  $region1: #{vit_encoder_forward.1} parent=0
    #allocation3 [shape = 'u8[2048]{0}', space=vmem, size = 0x800, scoped, tag = 'input window, operand 1']
    #allocation4 [shape = 's32[2]{0}', space=sflag, size = 0x8, scoped, tag = 'scoped memory for vit_encoder_forward.1']
    #allocation5 [shape = 's32[2]{0}', space=sflag, size = 0x8, scoped, tag = 'scoped memory for vit_encoder_forward.1']
    #allocation6 [shape = 'u8[2048]{0}', space=vmem, size = 0x800, scoped, tag = 'input window, operand 2']
    #allocation7 [shape = 's32[2]{0}', space=sflag, size = 0x8, scoped, tag = 'scoped memory for vit_encoder_forward.1']
    #allocation8 [shape = 'u8[32768]{0}', space=vmem, size = 0x8000, scoped, tag = 'input window, operand 5']
    #allocation9 [shape = 'u8[2048]{0}', space=vmem, size = 0x800, scoped, tag = 'input window, operand 7']
    #allocation10 [shape = 's32[2]{0}', space=sflag, size = 0x8, scoped, tag = 'scoped memory for vit_encoder_forward.1']
    #allocation11 [shape = 'u8[2048]{0}', space=vmem, size = 0x800, scoped, tag = 'input window, operand 8']
    #allocation12 [shape = 'u8[1048576]{0}', space=vmem, size = 0x100000, scoped, tag = 'input window, operand 9']
    #allocation13 [shape = 's32[2]{0}', space=sflag, size = 0x8, scoped, tag = 'scoped memory for vit_encoder_forward.1']
    #allocation14 [shape = 'u8[8192]{0}', space=vmem, size = 0x2000, scoped, tag = 'input window, operand 10']
    #allocation15 [shape = 'u8[1048576]{0}', space=vmem, size = 0x100000, scoped, tag = 'input window, operand 11']
    #allocation16 [shape = 's32[2]{0}', space=sflag, size = 0x8, scoped, tag = 'scoped memory for vit_encoder_forward.1']
    #allocation17 [shape = 'u8[2048]{0}', space=vmem, size = 0x800, scoped, tag = 'input window, operand 12']
    #allocation18 [shape = 'u8[1024]{0}', space=vmem, size = 0x400, scoped, tag = 'input window, operand 13, single buffered']
    #allocation19 [shape = 's32[1]{0}', space=sflag, size = 0x4, scoped, tag = 'scoped memory for vit_encoder_forward.1']
    #allocation20 [shape = 'u8[1024]{0}', space=vmem, size = 0x400, scoped, tag = 'input window, operand 14, single buffered']
    #allocation21 [shape = 'u8[512]{0}', space=vmem, size = 0x400, scoped, tag = 'input window, operand 16, single buffered']
    #allocation22 [shape = 's32[1]{0}', space=sflag, size = 0x4, scoped, tag = 'scoped memory for vit_encoder_forward.1']
    #allocation23 [shape = 'u8[512]{0}', space=vmem, size = 0x400, scoped, tag = 'input window, operand 17, single buffered']
    #allocation24 [shape = 'u8[512]{0}', space=vmem, size = 0x400, scoped, tag = 'input window, operand 18, single buffered']
    #allocation25 [shape = 's32[1]{0}', space=sflag, size = 0x4, scoped, tag = 'scoped memory for vit_encoder_forward.1']
    #allocation26 [shape = 'u8[2048]{0}', space=vmem, size = 0x800, scoped, tag = 'output window, operand 0, single buffered']
    %24 = vsyncpa [#allocation4], 0
    %s25 = scalar_lea.sflag [#allocation4], 1
    %26 = vsyncpa %s25, 0
    %27 = vsyncpa [#allocation7], 0
    %s28 = scalar_lea.sflag [#allocation7], 1
    %29 = vsyncpa %s28, 0
    %30 = vsyncpa [#allocation10], 0
    %s31 = scalar_lea.sflag [#allocation10], 1
    %32 = vsyncpa %s31, 0
    %33 = vsyncpa [#allocation13], 0
    %s34 = scalar_lea.sflag [#allocation13], 1
    %35 = vsyncpa %s34, 0
    %36 = vsyncpa [#allocation16], 0
    %s37 = scalar_lea.sflag [#allocation16], 1
    %38 = vsyncpa %s37, 0
    %39 = vsyncpa [#allocation19], 0
    %40 = vsyncpa [#allocation22], 0
    %41 = vsyncpa [#allocation25], 0
    %42 = vsyncpa [#allocation5], 0
    loop: start=0, step=1, limit=10
    $region2: #{vit_encoder_forward.1} parent=1 // loop_pre_header
      _
    $region3: #{vit_encoder_forward.1} parent=1 // loop_header
      %s44 = sphi 0, %s48
      %p45 = scmp.ge.s32.totalorder %s44, 10
      %s52 = sphi 0, %s52
      %s54 = sphi 0, %s52
      %s55 = sphi 0, %s54
      %s69 = sphi 0, %s55
      %s75 = sphi 0, %s77
      %s78 = sphi 0, %s75
      %s79 = sphi 0, %s78
      %s95 = sphi 0, %s79
      %s101 = sphi 0, %s103
      %s104 = sphi 0, %s101
      %s105 = sphi 0, %s104
      %s121 = sphi 0, %s105
      %s127 = sphi 0, %s129
      %s130 = sphi 0, %s127
      %s131 = sphi 0, %s130
      %s147 = sphi 0, %s131
      %s153 = sphi 0, %s155
      %s156 = sphi 0, %s153
      %s157 = sphi 0, %s156
      %s173 = sphi 0, %s157
      %s179 = sphi 0, %s181
      %s182 = sphi 0, %s179
      %s183 = sphi 0, %s182
      %s199 = sphi 0, %s183
      %s205 = sphi 0, %s207
      %s208 = sphi 0, %s205
      %s209 = sphi 0, %s208
      %s225 = sphi 0, %s209
      %s231 = sphi 0, %s233
      %s234 = sphi 0, %s231
      %s235 = sphi 0, %s234
      %s251 = sphi 0, %s235
      %s257 = sphi 0, %s259
      %s260 = sphi 0, %s257
      %s261 = sphi 0, %s260
      %s277 = sphi 0, %s261
      %s283 = sphi 0, %s285
      %s286 = sphi 0, %s283
      %s287 = sphi 0, %s286
      %s303 = sphi 0, %s287
      %s309 = sphi 0, %s311
      %s312 = sphi 0, %s309
      %s313 = sphi 0, %s312
      %s329 = sphi 0, %s313
      %s335 = sphi 0, %s337
      %s338 = sphi 0, %s335
      %s339 = sphi 0, %s338
      %s355 = sphi 0, %s339
      %s361 = sphi 0, %s363
      %s364 = sphi 0, %s361
      %s365 = sphi 0, %s364
      %s381 = sphi 0, %s365
      %s385 = sphi 0, %s385
      %s387 = sphi 0, %s385
      %s388 = sphi 0, %s387
      %s402 = sphi 0, %s388
      %s406 = sphi 0, %s406
      %s408 = sphi 0, %s406
      %s409 = sphi 0, %s408
      %s423 = sphi 0, %s409
      %s427 = sphi 0, %s427
      %s429 = sphi 0, %s427
      %s430 = sphi 0, %s429
      %s444 = sphi 0, %s430
      %s448 = sphi 0, %s448
      %s450 = sphi 0, %s448
      %s451 = sphi 0, %s450
      %s465 = sphi 0, %s451
      %s469 = sphi 0, %s469
      %s471 = sphi 0, %s469
      %s472 = sphi 0, %s471
      %s486 = sphi 0, %s472
      %s490 = sphi 0, %s490
      %s492 = sphi 0, %s490
      %s493 = sphi 0, %s492
      %s507 = sphi 0, %s493
      %s511 = sphi 0, %s511
      %s513 = sphi 0, %s511
      %s514 = sphi 0, %s513
      %s528 = sphi 0, %s514
    $region4: #{vit_encoder_forward.1} parent=1 // loop_header_branch
      %47 = sbr.rel (%p45) target = $region8
    $region5: #{vit_encoder_forward.1} parent=1 // loop_body
      %s49 = ssub.s32 %s44, 1
      %s50 = ssub.s32 %s44, 2
      %s51 = sadd.s32 %s44, 1
      %s53 = sadd.s32 %s52, 1
      %p56 = scmp.eq.s32.totalorder %s44, 7
      %p57 = scmp.ne.s32.totalorder %s52, %s54
      %p58 = scmp.eq.s32.totalorder %s44, 0
      %p59 = por %p57, %p58
      %p60 = scmp.ne.s32.totalorder %s52, %s54
      %p61 = scmp.eq.s32.totalorder %s49, 7
      %p62 = por %p60, %p61
      %p63 = scmp.ne.s32.totalorder %s54, %s55
      %p64 = scmp.eq.s32.totalorder %s49, 0
      %p65 = por %p63, %p64
      %p66 = scmp.ne.s32.totalorder %s54, %s55
      %p67 = scmp.eq.s32.totalorder %s50, 7
      %p68 = por %p66, %p67
      %p70 = scmp.ne.s32.totalorder %s55, %s69
      %p71 = scmp.eq.s32.totalorder %s50, 0
      %p72 = por %p70, %p71
      %s73 = ssub.s32 %s44, %s51
      %p74 = scmp.eq.s32.totalorder %s73, 0
      %s76 = sadd.s32 %s75, 1
      %s77 = scalar_select %p74, %s75, %s76
      %p80 = pneg %p74
      %p81 = scmp.eq.s32.totalorder %s44, 7
      %p82 = por %p80, %p81
      %p83 = scmp.ne.s32.totalorder %s75, %s78
      %p84 = scmp.eq.s32.totalorder %s44, 0
      %p85 = por %p83, %p84
      %p86 = scmp.ne.s32.totalorder %s75, %s78
      %p87 = scmp.eq.s32.totalorder %s49, 7
      %p88 = por %p86, %p87
      %p89 = scmp.ne.s32.totalorder %s78, %s79
      %p90 = scmp.eq.s32.totalorder %s49, 0
      %p91 = por %p89, %p90
      %p92 = scmp.ne.s32.totalorder %s78, %s79
      %p93 = scmp.eq.s32.totalorder %s50, 7
      %p94 = por %p92, %p93
      %p96 = scmp.ne.s32.totalorder %s79, %s95
      %p97 = scmp.eq.s32.totalorder %s50, 0
      %p98 = por %p96, %p97
      %s99 = ssub.s32 %s44, %s51
      %p100 = scmp.eq.s32.totalorder %s99, 0
      %s102 = sadd.s32 %s101, 1
      %s103 = scalar_select %p100, %s101, %s102
      %p106 = pneg %p100
      %p107 = scmp.eq.s32.totalorder %s44, 7
      %p108 = por %p106, %p107
      %p109 = scmp.ne.s32.totalorder %s101, %s104
      %p110 = scmp.eq.s32.totalorder %s44, 0
      %p111 = por %p109, %p110
      %p112 = scmp.ne.s32.totalorder %s101, %s104
      %p113 = scmp.eq.s32.totalorder %s49, 7
      %p114 = por %p112, %p113
      %p115 = scmp.ne.s32.totalorder %s104, %s105
      %p116 = scmp.eq.s32.totalorder %s49, 0
      %p117 = por %p115, %p116
      %p118 = scmp.ne.s32.totalorder %s104, %s105
      %p119 = scmp.eq.s32.totalorder %s50, 7
      %p120 = por %p118, %p119
      %p122 = scmp.ne.s32.totalorder %s105, %s121
      %p123 = scmp.eq.s32.totalorder %s50, 0
      %p124 = por %p122, %p123
      %s125 = ssub.s32 %s44, %s51
      %p126 = scmp.eq.s32.totalorder %s125, 0
      %s128 = sadd.s32 %s127, 1
      %s129 = scalar_select %p126, %s127, %s128
      %p132 = pneg %p126
      %p133 = scmp.eq.s32.totalorder %s44, 7
      %p134 = por %p132, %p133
      %p135 = scmp.ne.s32.totalorder %s127, %s130
      %p136 = scmp.eq.s32.totalorder %s44, 0
      %p137 = por %p135, %p136
      %p138 = scmp.ne.s32.totalorder %s127, %s130
      %p139 = scmp.eq.s32.totalorder %s49, 7
      %p140 = por %p138, %p139
      %p141 = scmp.ne.s32.totalorder %s130, %s131
      %p142 = scmp.eq.s32.totalorder %s49, 0
      %p143 = por %p141, %p142
      %p144 = scmp.ne.s32.totalorder %s130, %s131
      %p145 = scmp.eq.s32.totalorder %s50, 7
      %p146 = por %p144, %p145
      %p148 = scmp.ne.s32.totalorder %s131, %s147
      %p149 = scmp.eq.s32.totalorder %s50, 0
      %p150 = por %p148, %p149
      %s151 = ssub.s32 %s44, %s51
      %p152 = scmp.eq.s32.totalorder %s151, 0
      %s154 = sadd.s32 %s153, 1
      %s155 = scalar_select %p152, %s153, %s154
      %p158 = pneg %p152
      %p159 = scmp.eq.s32.totalorder %s44, 7
      %p160 = por %p158, %p159
      %p161 = scmp.ne.s32.totalorder %s153, %s156
      %p162 = scmp.eq.s32.totalorder %s44, 0
      %p163 = por %p161, %p162
      %p164 = scmp.ne.s32.totalorder %s153, %s156
      %p165 = scmp.eq.s32.totalorder %s49, 7
      %p166 = por %p164, %p165
      %p167 = scmp.ne.s32.totalorder %s156, %s157
      %p168 = scmp.eq.s32.totalorder %s49, 0
      %p169 = por %p167, %p168
      %p170 = scmp.ne.s32.totalorder %s156, %s157
      %p171 = scmp.eq.s32.totalorder %s50, 7
      %p172 = por %p170, %p171
      %p174 = scmp.ne.s32.totalorder %s157, %s173
      %p175 = scmp.eq.s32.totalorder %s50, 0
      %p176 = por %p174, %p175
      %s177 = ssub.s32 %s44, %s51
      %p178 = scmp.eq.s32.totalorder %s177, 0
      %s180 = sadd.s32 %s179, 1
      %s181 = scalar_select %p178, %s179, %s180
      %p184 = pneg %p178
      %p185 = scmp.eq.s32.totalorder %s44, 7
      %p186 = por %p184, %p185
      %p187 = scmp.ne.s32.totalorder %s179, %s182
      %p188 = scmp.eq.s32.totalorder %s44, 0
      %p189 = por %p187, %p188
      %p190 = scmp.ne.s32.totalorder %s179, %s182
      %p191 = scmp.eq.s32.totalorder %s49, 7
      %p192 = por %p190, %p191
      %p193 = scmp.ne.s32.totalorder %s182, %s183
      %p194 = scmp.eq.s32.totalorder %s49, 0
      %p195 = por %p193, %p194
      %p196 = scmp.ne.s32.totalorder %s182, %s183
      %p197 = scmp.eq.s32.totalorder %s50, 7
      %p198 = por %p196, %p197
      %p200 = scmp.ne.s32.totalorder %s183, %s199
      %p201 = scmp.eq.s32.totalorder %s50, 0
      %p202 = por %p200, %p201
      %s203 = ssub.s32 %s44, %s51
      %p204 = scmp.eq.s32.totalorder %s203, 0
      %s206 = sadd.s32 %s205, 1
      %s207 = scalar_select %p204, %s205, %s206
      %p210 = pneg %p204
      %p211 = scmp.eq.s32.totalorder %s44, 7
      %p212 = por %p210, %p211
      %p213 = scmp.ne.s32.totalorder %s205, %s208
      %p214 = scmp.eq.s32.totalorder %s44, 0
      %p215 = por %p213, %p214
      %p216 = scmp.ne.s32.totalorder %s205, %s208
      %p217 = scmp.eq.s32.totalorder %s49, 7
      %p218 = por %p216, %p217
      %p219 = scmp.ne.s32.totalorder %s208, %s209
      %p220 = scmp.eq.s32.totalorder %s49, 0
      %p221 = por %p219, %p220
      %p222 = scmp.ne.s32.totalorder %s208, %s209
      %p223 = scmp.eq.s32.totalorder %s50, 7
      %p224 = por %p222, %p223
      %p226 = scmp.ne.s32.totalorder %s209, %s225
      %p227 = scmp.eq.s32.totalorder %s50, 0
      %p228 = por %p226, %p227
      %s229 = ssub.s32 %s44, %s51
      %p230 = scmp.eq.s32.totalorder %s229, 0
      %s232 = sadd.s32 %s231, 1
      %s233 = scalar_select %p230, %s231, %s232
      %p236 = pneg %p230
      %p237 = scmp.eq.s32.totalorder %s44, 7
      %p238 = por %p236, %p237
      %p239 = scmp.ne.s32.totalorder %s231, %s234
      %p240 = scmp.eq.s32.totalorder %s44, 0
      %p241 = por %p239, %p240
      %p242 = scmp.ne.s32.totalorder %s231, %s234
      %p243 = scmp.eq.s32.totalorder %s49, 7
      %p244 = por %p242, %p243
      %p245 = scmp.ne.s32.totalorder %s234, %s235
      %p246 = scmp.eq.s32.totalorder %s49, 0
      %p247 = por %p245, %p246
      %p248 = scmp.ne.s32.totalorder %s234, %s235
      %p249 = scmp.eq.s32.totalorder %s50, 7
      %p250 = por %p248, %p249
      %p252 = scmp.ne.s32.totalorder %s235, %s251
      %p253 = scmp.eq.s32.totalorder %s50, 0
      %p254 = por %p252, %p253
      %s255 = ssub.s32 %s44, %s51
      %p256 = scmp.eq.s32.totalorder %s255, 0
      %s258 = sadd.s32 %s257, 1
      %s259 = scalar_select %p256, %s257, %s258
      %p262 = pneg %p256
      %p263 = scmp.eq.s32.totalorder %s44, 7
      %p264 = por %p262, %p263
      %p265 = scmp.ne.s32.totalorder %s257, %s260
      %p266 = scmp.eq.s32.totalorder %s44, 0
      %p267 = por %p265, %p266
      %p268 = scmp.ne.s32.totalorder %s257, %s260
      %p269 = scmp.eq.s32.totalorder %s49, 7
      %p270 = por %p268, %p269
      %p271 = scmp.ne.s32.totalorder %s260, %s261
      %p272 = scmp.eq.s32.totalorder %s49, 0
      %p273 = por %p271, %p272
      %p274 = scmp.ne.s32.totalorder %s260, %s261
      %p275 = scmp.eq.s32.totalorder %s50, 7
      %p276 = por %p274, %p275
      %p278 = scmp.ne.s32.totalorder %s261, %s277
      %p279 = scmp.eq.s32.totalorder %s50, 0
      %p280 = por %p278, %p279
      %s281 = ssub.s32 %s44, %s51
      %p282 = scmp.eq.s32.totalorder %s281, 0
      %s284 = sadd.s32 %s283, 1
      %s285 = scalar_select %p282, %s283, %s284
      %p288 = pneg %p282
      %p289 = scmp.eq.s32.totalorder %s44, 7
      %p290 = por %p288, %p289
      %p291 = scmp.ne.s32.totalorder %s283, %s286
      %p292 = scmp.eq.s32.totalorder %s44, 0
      %p293 = por %p291, %p292
      %p294 = scmp.ne.s32.totalorder %s283, %s286
      %p295 = scmp.eq.s32.totalorder %s49, 7
      %p296 = por %p294, %p295
      %p297 = scmp.ne.s32.totalorder %s286, %s287
      %p298 = scmp.eq.s32.totalorder %s49, 0
      %p299 = por %p297, %p298
      %p300 = scmp.ne.s32.totalorder %s286, %s287
      %p301 = scmp.eq.s32.totalorder %s50, 7
      %p302 = por %p300, %p301
      %p304 = scmp.ne.s32.totalorder %s287, %s303
      %p305 = scmp.eq.s32.totalorder %s50, 0
      %p306 = por %p304, %p305
      %s307 = ssub.s32 %s44, %s51
      %p308 = scmp.eq.s32.totalorder %s307, 0
      %s310 = sadd.s32 %s309, 1
      %s311 = scalar_select %p308, %s309, %s310
      %p314 = pneg %p308
      %p315 = scmp.eq.s32.totalorder %s44, 7
      %p316 = por %p314, %p315
      %p317 = scmp.ne.s32.totalorder %s309, %s312
      %p318 = scmp.eq.s32.totalorder %s44, 0
      %p319 = por %p317, %p318
      %p320 = scmp.ne.s32.totalorder %s309, %s312
      %p321 = scmp.eq.s32.totalorder %s49, 7
      %p322 = por %p320, %p321
      %p323 = scmp.ne.s32.totalorder %s312, %s313
      %p324 = scmp.eq.s32.totalorder %s49, 0
      %p325 = por %p323, %p324
      %p326 = scmp.ne.s32.totalorder %s312, %s313
      %p327 = scmp.eq.s32.totalorder %s50, 7
      %p328 = por %p326, %p327
      %p330 = scmp.ne.s32.totalorder %s313, %s329
      %p331 = scmp.eq.s32.totalorder %s50, 0
      %p332 = por %p330, %p331
      %s333 = ssub.s32 %s44, %s51
      %p334 = scmp.eq.s32.totalorder %s333, 0
      %s336 = sadd.s32 %s335, 1
      %s337 = scalar_select %p334, %s335, %s336
      %p340 = pneg %p334
      %p341 = scmp.eq.s32.totalorder %s44, 7
      %p342 = por %p340, %p341
      %p343 = scmp.ne.s32.totalorder %s335, %s338
      %p344 = scmp.eq.s32.totalorder %s44, 0
      %p345 = por %p343, %p344
      %p346 = scmp.ne.s32.totalorder %s335, %s338
      %p347 = scmp.eq.s32.totalorder %s49, 7
      %p348 = por %p346, %p347
      %p349 = scmp.ne.s32.totalorder %s338, %s339
      %p350 = scmp.eq.s32.totalorder %s49, 0
      %p351 = por %p349, %p350
      %p352 = scmp.ne.s32.totalorder %s338, %s339
      %p353 = scmp.eq.s32.totalorder %s50, 7
      %p354 = por %p352, %p353
      %p356 = scmp.ne.s32.totalorder %s339, %s355
      %p357 = scmp.eq.s32.totalorder %s50, 0
      %p358 = por %p356, %p357
      %s359 = ssub.s32 %s44, %s51
      %p360 = scmp.eq.s32.totalorder %s359, 0
      %s362 = sadd.s32 %s361, 1
      %s363 = scalar_select %p360, %s361, %s362
      %p366 = pneg %p360
      %p367 = scmp.eq.s32.totalorder %s44, 7
      %p368 = por %p366, %p367
      %p369 = scmp.ne.s32.totalorder %s361, %s364
      %p370 = scmp.eq.s32.totalorder %s44, 0
      %p371 = por %p369, %p370
      %p372 = scmp.ne.s32.totalorder %s361, %s364
      %p373 = scmp.eq.s32.totalorder %s49, 7
      %p374 = por %p372, %p373
      %p375 = scmp.ne.s32.totalorder %s364, %s365
      %p376 = scmp.eq.s32.totalorder %s49, 0
      %p377 = por %p375, %p376
      %p378 = scmp.ne.s32.totalorder %s364, %s365
      %p379 = scmp.eq.s32.totalorder %s50, 7
      %p380 = por %p378, %p379
      %p382 = scmp.ne.s32.totalorder %s365, %s381
      %p383 = scmp.eq.s32.totalorder %s50, 0
      %p384 = por %p382, %p383
      %s386 = sadd.s32 %s385, 1
      %p389 = scmp.eq.s32.totalorder %s44, 7
      %p390 = scmp.ne.s32.totalorder %s385, %s387
      %p391 = scmp.eq.s32.totalorder %s44, 0
      %p392 = por %p390, %p391
      %p393 = scmp.ne.s32.totalorder %s385, %s387
      %p394 = scmp.eq.s32.totalorder %s49, 7
      %p395 = por %p393, %p394
      %p396 = scmp.ne.s32.totalorder %s387, %s388
      %p397 = scmp.eq.s32.totalorder %s49, 0
      %p398 = por %p396, %p397
      %p399 = scmp.ne.s32.totalorder %s387, %s388
      %p400 = scmp.eq.s32.totalorder %s50, 7
      %p401 = por %p399, %p400
      %p403 = scmp.ne.s32.totalorder %s388, %s402
      %p404 = scmp.eq.s32.totalorder %s50, 0
      %p405 = por %p403, %p404
      %s407 = sadd.s32 %s406, 1
      %p410 = scmp.eq.s32.totalorder %s44, 7
      %p411 = scmp.ne.s32.totalorder %s406, %s408
      %p412 = scmp.eq.s32.totalorder %s44, 0
      %p413 = por %p411, %p412
      %p414 = scmp.ne.s32.totalorder %s406, %s408
      %p415 = scmp.eq.s32.totalorder %s49, 7
      %p416 = por %p414, %p415
      %p417 = scmp.ne.s32.totalorder %s408, %s409
      %p418 = scmp.eq.s32.totalorder %s49, 0
      %p419 = por %p417, %p418
      %p420 = scmp.ne.s32.totalorder %s408, %s409
      %p421 = scmp.eq.s32.totalorder %s50, 7
      %p422 = por %p420, %p421
      %p424 = scmp.ne.s32.totalorder %s409, %s423
      %p425 = scmp.eq.s32.totalorder %s50, 0
      %p426 = por %p424, %p425
      %s428 = sadd.s32 %s427, 1
      %p431 = scmp.eq.s32.totalorder %s44, 7
      %p432 = scmp.ne.s32.totalorder %s427, %s429
      %p433 = scmp.eq.s32.totalorder %s44, 0
      %p434 = por %p432, %p433
      %p435 = scmp.ne.s32.totalorder %s427, %s429
      %p436 = scmp.eq.s32.totalorder %s49, 7
      %p437 = por %p435, %p436
      %p438 = scmp.ne.s32.totalorder %s429, %s430
      %p439 = scmp.eq.s32.totalorder %s49, 0
      %p440 = por %p438, %p439
      %p441 = scmp.ne.s32.totalorder %s429, %s430
      %p442 = scmp.eq.s32.totalorder %s50, 7
      %p443 = por %p441, %p442
      %p445 = scmp.ne.s32.totalorder %s430, %s444
      %p446 = scmp.eq.s32.totalorder %s50, 0
      %p447 = por %p445, %p446
      %s449 = sadd.s32 %s448, 1
      %p452 = scmp.eq.s32.totalorder %s44, 7
      %p453 = scmp.ne.s32.totalorder %s448, %s450
      %p454 = scmp.eq.s32.totalorder %s44, 0
      %p455 = por %p453, %p454
      %p456 = scmp.ne.s32.totalorder %s448, %s450
      %p457 = scmp.eq.s32.totalorder %s49, 7
      %p458 = por %p456, %p457
      %p459 = scmp.ne.s32.totalorder %s450, %s451
      %p460 = scmp.eq.s32.totalorder %s49, 0
      %p461 = por %p459, %p460
      %p462 = scmp.ne.s32.totalorder %s450, %s451
      %p463 = scmp.eq.s32.totalorder %s50, 7
      %p464 = por %p462, %p463
      %p466 = scmp.ne.s32.totalorder %s451, %s465
      %p467 = scmp.eq.s32.totalorder %s50, 0
      %p468 = por %p466, %p467
      %s470 = sadd.s32 %s469, 1
      %p473 = scmp.eq.s32.totalorder %s44, 7
      %p474 = scmp.ne.s32.totalorder %s469, %s471
      %p475 = scmp.eq.s32.totalorder %s44, 0
      %p476 = por %p474, %p475
      %p477 = scmp.ne.s32.totalorder %s469, %s471
      %p478 = scmp.eq.s32.totalorder %s49, 7
      %p479 = por %p477, %p478
      %p480 = scmp.ne.s32.totalorder %s471, %s472
      %p481 = scmp.eq.s32.totalorder %s49, 0
      %p482 = por %p480, %p481
      %p483 = scmp.ne.s32.totalorder %s471, %s472
      %p484 = scmp.eq.s32.totalorder %s50, 7
      %p485 = por %p483, %p484
      %p487 = scmp.ne.s32.totalorder %s472, %s486
      %p488 = scmp.eq.s32.totalorder %s50, 0
      %p489 = por %p487, %p488
      %s491 = sadd.s32 %s490, 1
      %p494 = scmp.eq.s32.totalorder %s44, 7
      %p495 = scmp.ne.s32.totalorder %s490, %s492
      %p496 = scmp.eq.s32.totalorder %s44, 0
      %p497 = por %p495, %p496
      %p498 = scmp.ne.s32.totalorder %s490, %s492
      %p499 = scmp.eq.s32.totalorder %s49, 7
      %p500 = por %p498, %p499
      %p501 = scmp.ne.s32.totalorder %s492, %s493
      %p502 = scmp.eq.s32.totalorder %s49, 0
      %p503 = por %p501, %p502
      %p504 = scmp.ne.s32.totalorder %s492, %s493
      %p505 = scmp.eq.s32.totalorder %s50, 7
      %p506 = por %p504, %p505
      %p508 = scmp.ne.s32.totalorder %s493, %s507
      %p509 = scmp.eq.s32.totalorder %s50, 0
      %p510 = por %p508, %p509
      %s512 = sadd.s32 %s511, 1
      %p515 = scmp.eq.s32.totalorder %s44, 7
      %p516 = scmp.ne.s32.totalorder %s511, %s513
      %p517 = scmp.eq.s32.totalorder %s44, 0
      %p518 = por %p516, %p517
      %p519 = scmp.ne.s32.totalorder %s511, %s513
      %p520 = scmp.eq.s32.totalorder %s49, 7
      %p521 = por %p519, %p520
      %p522 = scmp.ne.s32.totalorder %s513, %s514
      %p523 = scmp.eq.s32.totalorder %s49, 0
      %p524 = por %p522, %p523
      %p525 = scmp.ne.s32.totalorder %s513, %s514
      %p526 = scmp.eq.s32.totalorder %s50, 7
      %p527 = por %p525, %p526
      %p529 = scmp.ne.s32.totalorder %s514, %s528
      %p530 = scmp.eq.s32.totalorder %s50, 0
      %p531 = por %p529, %p530
      %p532 = scmp.le.s32.totalorder 1, %s44
      %p533 = scmp.lt.s32.totalorder %s44, 9
      %p534 = pnand %p532, %p533
      %p535 = pneg %p534
      // Predicated region
      $region9: #{vit_encoder_forward.1} parent=5 // pred_check
        _
      $region10: #{vit_encoder_forward.1} parent=5 // pred_check_branch
        %537 = sbr.rel (%p534) target = $region12
      $region11: #{vit_encoder_forward.1} parent=5 // pred_region
        %s538 = ssub.s32 %s44, 1
        // Predicated region
        $region13: #{vit_encoder_forward.1} parent=11 // pred_check
          %p539 = pneg %p65
        $region14: #{vit_encoder_forward.1} parent=11 // pred_check_branch
          %541 = sbr.rel (%p539) target = $region16
        $region15: #{vit_encoder_forward.1} parent=11 // pred_region
          _
        $region16: #{vit_encoder_forward.1} parent=11 // pred_fallthru
          _
        // Predicated region
        $region17: #{vit_encoder_forward.1} parent=11 // pred_check
          %p542 = pneg %p398
        $region18: #{vit_encoder_forward.1} parent=11 // pred_check_branch
          %544 = sbr.rel (%p542) target = $region20
        $region19: #{vit_encoder_forward.1} parent=11 // pred_region
          %s546 = ssub.s32 32, 32
          %547 = vsyncadd [#allocation19], %s546
          %s549 = sshll.u32 [#allocation18], 4
          %s550 = int_to_ptr.vmem [resolvable:$true] %s549
          %552 = dma.hbm_to_vmem [thread:$0]  %s13, 32, %s550, [#allocation19]
        $region20: #{vit_encoder_forward.1} parent=11 // pred_fallthru
          _
        // Predicated region
        $region21: #{vit_encoder_forward.1} parent=11 // pred_check
          %p553 = pneg %p419
        $region22: #{vit_encoder_forward.1} parent=11 // pred_check_branch
          %555 = sbr.rel (%p553) target = $region24
        $region23: #{vit_encoder_forward.1} parent=11 // pred_region
          %s557 = ssub.s32 32, 32
          %558 = vsyncadd [#allocation19], %s557
          %s560 = sshll.u32 [#allocation20], 4
          %s561 = int_to_ptr.vmem [resolvable:$true] %s560
          %563 = dma.hbm_to_vmem [thread:$0]  %s14, 32, %s561, [#allocation19]
        $region24: #{vit_encoder_forward.1} parent=11 // pred_fallthru
          _
        // Predicated region
        $region25: #{vit_encoder_forward.1} parent=11 // pred_check
          %p564 = pneg %p440
        $region26: #{vit_encoder_forward.1} parent=11 // pred_check_branch
          %566 = sbr.rel (%p564) target = $region28
        $region27: #{vit_encoder_forward.1} parent=11 // pred_region
          _
        $region28: #{vit_encoder_forward.1} parent=11 // pred_fallthru
          _
        // Predicated region
        $region29: #{vit_encoder_forward.1} parent=11 // pred_check
          %p567 = pneg %p461
        $region30: #{vit_encoder_forward.1} parent=11 // pred_check_branch
          %569 = sbr.rel (%p567) target = $region32
        $region31: #{vit_encoder_forward.1} parent=11 // pred_region
          %s571 = ssub.s32 16, 16
          %572 = vsyncadd [#allocation22], %s571
          %s574 = sshll.u32 [#allocation21], 4
          %s575 = int_to_ptr.vmem [resolvable:$true] %s574
          %577 = dma.hbm_to_vmem [thread:$0]  %s16, 16, %s575, [#allocation22]
        $region32: #{vit_encoder_forward.1} parent=11 // pred_fallthru
          _
        // Predicated region
        $region33: #{vit_encoder_forward.1} parent=11 // pred_check
          %p578 = pneg %p482
        $region34: #{vit_encoder_forward.1} parent=11 // pred_check_branch
          %580 = sbr.rel (%p578) target = $region36
        $region35: #{vit_encoder_forward.1} parent=11 // pred_region
          %s582 = ssub.s32 16, 16
          %583 = vsyncadd [#allocation22], %s582
          %s585 = sshll.u32 [#allocation23], 4
          %s586 = int_to_ptr.vmem [resolvable:$true] %s585
          %588 = dma.hbm_to_vmem [thread:$0]  %s17, 16, %s586, [#allocation22]
        $region36: #{vit_encoder_forward.1} parent=11 // pred_fallthru
          _
        // Predicated region
        $region37: #{vit_encoder_forward.1} parent=11 // pred_check
          %p589 = pneg %p503
        $region38: #{vit_encoder_forward.1} parent=11 // pred_check_branch
          %591 = sbr.rel (%p589) target = $region40
        $region39: #{vit_encoder_forward.1} parent=11 // pred_region
          %s593 = ssub.s32 16, 16
          %594 = vsyncadd [#allocation25], %s593
          %s596 = sshll.u32 [#allocation24], 4
          %s597 = int_to_ptr.vmem [resolvable:$true] %s596
          %599 = dma.hbm_to_vmem [thread:$0]  %s18, 16, %s597, [#allocation25]
        $region40: #{vit_encoder_forward.1} parent=11 // pred_fallthru
          _
      $region12: #{vit_encoder_forward.1} parent=5 // pred_fallthru
        _
      %p600 = scmp.lt.s32.totalorder %s44, 8
      // Predicated region
      $region41: #{vit_encoder_forward.1} parent=5 // pred_check
        %p601 = pneg %p600
      $region42: #{vit_encoder_forward.1} parent=5 // pred_check_branch
        %603 = sbr.rel (%p601) target = $region44
      $region43: #{vit_encoder_forward.1} parent=5 // pred_region
        // Predicated region
        $region45: #{vit_encoder_forward.1} parent=43 // pred_check
          %p604 = pneg %p85
        $region46: #{vit_encoder_forward.1} parent=43 // pred_check_branch
          %606 = sbr.rel (%p604) target = $region48
        $region47: #{vit_encoder_forward.1} parent=43 // pred_region
          %s607 = sand.u32 %s75, 1
          %s608 = scalar_lea.sflag [#allocation4], %s607
          %s609 = sand.u32 %s75, 1
          %s610 = smul.addr %s609, 2
          %s611 = scalar_lea.vmem [#allocation3], %s610
          %s613 = ssub.s32 32, 32
          %614 = vsyncadd %s608, %s613
          %s615 = smul.addr %s44, 2
          %s616 = smul.addr %s615, 16
          %s617 = scalar_lea.hbm %s1, %s616
          %s619 = sshll.u32 %s611, 4
          %s620 = int_to_ptr.vmem [resolvable:$true] %s619
          %622 = dma.hbm_to_vmem [thread:$0]  %s617, 32, %s620, %s608
        $region48: #{vit_encoder_forward.1} parent=43 // pred_fallthru
          _
        // Predicated region
        $region49: #{vit_encoder_forward.1} parent=43 // pred_check
          %p623 = pneg %p111
        $region50: #{vit_encoder_forward.1} parent=43 // pred_check_branch
          %625 = sbr.rel (%p623) target = $region52
        $region51: #{vit_encoder_forward.1} parent=43 // pred_region
          %s626 = sand.u32 %s44, 1
          %s627 = scalar_lea.sflag [#allocation7], %s626
          %s628 = sand.u32 %s101, 1
          %s629 = smul.addr %s628, 2
          %s630 = scalar_lea.vmem [#allocation6], %s629
          %s632 = ssub.s32 32, 32
          %633 = vsyncadd %s627, %s632
          %s634 = smul.addr %s44, 2
          %s635 = smul.addr %s634, 16
          %s636 = scalar_lea.hbm %s2, %s635
          %s638 = sshll.u32 %s630, 4
          %s639 = int_to_ptr.vmem [resolvable:$true] %s638
          %641 = dma.hbm_to_vmem [thread:$0]  %s636, 32, %s639, %s627
        $region52: #{vit_encoder_forward.1} parent=43 // pred_fallthru
          _
        // Predicated region
        $region53: #{vit_encoder_forward.1} parent=43 // pred_check
          %p642 = pneg %p137
        $region54: #{vit_encoder_forward.1} parent=43 // pred_check_branch
          %644 = sbr.rel (%p642) target = $region56
        $region55: #{vit_encoder_forward.1} parent=43 // pred_region
          %p645 = scmp.lt.s32.totalorder %s44, 7
          %s646 = scalar_select %p645, %s44, 7
          %s647 = smul.addr %s646, 64
          %s648 = smul.addr %s647, 4
          %s649 = scalar_lea.vmem %s3, %s648
        $region56: #{vit_encoder_forward.1} parent=43 // pred_fallthru
          _
        // Predicated region
        $region57: #{vit_encoder_forward.1} parent=43 // pred_check
          %p650 = pneg %p163
        $region58: #{vit_encoder_forward.1} parent=43 // pred_check_branch
          %652 = sbr.rel (%p650) target = $region60
        $region59: #{vit_encoder_forward.1} parent=43 // pred_region
          %p653 = scmp.lt.s32.totalorder %s44, 7
          %s654 = scalar_select %p653, %s44, 7
          %s655 = smul.addr %s654, 64
          %s656 = smul.addr %s655, 8
          %s657 = scalar_lea.vmem %s4, %s656
        $region60: #{vit_encoder_forward.1} parent=43 // pred_fallthru
          _
        // Predicated region
        $region61: #{vit_encoder_forward.1} parent=43 // pred_check
          %p658 = pneg %p189
        $region62: #{vit_encoder_forward.1} parent=43 // pred_check_branch
          %660 = sbr.rel (%p658) target = $region64
        $region63: #{vit_encoder_forward.1} parent=43 // pred_region
          %s661 = sand.u32 %s44, 1
          %s662 = scalar_lea.sflag [#allocation7], %s661
          %s663 = sand.u32 %s179, 1
          %s664 = smul.addr %s663, 32
          %s665 = scalar_lea.vmem [#allocation8], %s664
          %s667 = ssub.s32 512, 512
          %668 = vsyncadd %s662, %s667
          %s669 = smul.addr %s44, 8
          %s670 = smul.addr %s669, 64
          %s671 = scalar_lea.hbm %s5, %s670
          %s672 = sshll.u32 %s665, 4
          %s673 = int_to_ptr.vmem [resolvable:$true] %s672
          %678 = dma.hbm_to_vmem [thread:$0]  %s671, 512, %s673, %s662, 256, 256, 16
        $region64: #{vit_encoder_forward.1} parent=43 // pred_fallthru
          _
        // Predicated region
        $region65: #{vit_encoder_forward.1} parent=43 // pred_check
          %p679 = pneg %p215
        $region66: #{vit_encoder_forward.1} parent=43 // pred_check_branch
          %681 = sbr.rel (%p679) target = $region68
        $region67: #{vit_encoder_forward.1} parent=43 // pred_region
          %p682 = scmp.lt.s32.totalorder %s44, 7
          %s683 = scalar_select %p682, %s44, 7
          %s684 = smul.addr %s683, 2
          %s685 = smul.addr %s684, 8
          %s686 = scalar_lea.vmem %s6, %s685
        $region68: #{vit_encoder_forward.1} parent=43 // pred_fallthru
          _
        // Predicated region
        $region69: #{vit_encoder_forward.1} parent=43 // pred_check
          %p687 = pneg %p241
        $region70: #{vit_encoder_forward.1} parent=43 // pred_check_branch
          %689 = sbr.rel (%p687) target = $region72
        $region71: #{vit_encoder_forward.1} parent=43 // pred_region
          %s690 = sand.u32 %s44, 1
          %s691 = scalar_lea.sflag [#allocation10], %s690
          %s692 = sand.u32 %s231, 1
          %s693 = smul.addr %s692, 2
          %s694 = scalar_lea.vmem [#allocation9], %s693
          %s696 = ssub.s32 32, 32
          %697 = vsyncadd %s691, %s696
          %s698 = smul.addr %s44, 2
          %s699 = smul.addr %s698, 16
          %s700 = scalar_lea.hbm %s7, %s699
          %s702 = sshll.u32 %s694, 4
          %s703 = int_to_ptr.vmem [resolvable:$true] %s702
          %705 = dma.hbm_to_vmem [thread:$0]  %s700, 32, %s703, %s691
        $region72: #{vit_encoder_forward.1} parent=43 // pred_fallthru
          _
        // Predicated region
        $region73: #{vit_encoder_forward.1} parent=43 // pred_check
          %p706 = pneg %p267
        $region74: #{vit_encoder_forward.1} parent=43 // pred_check_branch
          %708 = sbr.rel (%p706) target = $region76
        $region75: #{vit_encoder_forward.1} parent=43 // pred_region
          %s709 = sand.u32 %s44, 1
          %s710 = scalar_lea.sflag [#allocation10], %s709
          %s711 = sand.u32 %s257, 1
          %s712 = smul.addr %s711, 2
          %s713 = scalar_lea.vmem [#allocation11], %s712
          %s715 = ssub.s32 32, 32
          %716 = vsyncadd %s710, %s715
          %s717 = smul.addr %s44, 2
          %s718 = smul.addr %s717, 16
          %s719 = scalar_lea.hbm %s8, %s718
          %s721 = sshll.u32 %s713, 4
          %s722 = int_to_ptr.vmem [resolvable:$true] %s721
          %724 = dma.hbm_to_vmem [thread:$0]  %s719, 32, %s722, %s710
        $region76: #{vit_encoder_forward.1} parent=43 // pred_fallthru
          _
        // Predicated region
        $region77: #{vit_encoder_forward.1} parent=43 // pred_check
          %p725 = pneg %p293
        $region78: #{vit_encoder_forward.1} parent=43 // pred_check_branch
          %727 = sbr.rel (%p725) target = $region80
        $region79: #{vit_encoder_forward.1} parent=43 // pred_region
          %s728 = sand.u32 %s44, 1
          %s729 = scalar_lea.sflag [#allocation13], %s728
          %s730 = sand.u32 %s283, 1
          %s731 = smul.addr %s730, 1024
          %s732 = scalar_lea.vmem [#allocation12], %s731
          %s734 = ssub.s32 16384, 16384
          %735 = vsyncadd %s729, %s734
          %s736 = smul.addr %s44, 256
          %s737 = smul.addr %s736, 64
          %s738 = scalar_lea.hbm %s9, %s737
          %s739 = sshll.u32 %s732, 4
          %s740 = int_to_ptr.vmem [resolvable:$true] %s739
          %745 = dma.hbm_to_vmem [thread:$0]  %s738, 16384, %s740, %s729, 512, 512, 32
        $region80: #{vit_encoder_forward.1} parent=43 // pred_fallthru
          _
        // Predicated region
        $region81: #{vit_encoder_forward.1} parent=43 // pred_check
          %p746 = pneg %p319
        $region82: #{vit_encoder_forward.1} parent=43 // pred_check_branch
          %748 = sbr.rel (%p746) target = $region84
        $region83: #{vit_encoder_forward.1} parent=43 // pred_region
          %s749 = sand.u32 %s44, 1
          %s750 = scalar_lea.sflag [#allocation13], %s749
          %s751 = sand.u32 %s309, 1
          %s752 = smul.addr %s751, 8
          %s753 = scalar_lea.vmem [#allocation14], %s752
          %s755 = ssub.s32 128, 128
          %756 = vsyncadd %s750, %s755
          %s757 = smul.addr %s44, 8
          %s758 = smul.addr %s757, 16
          %s759 = scalar_lea.hbm %s10, %s758
          %s761 = sshll.u32 %s753, 4
          %s762 = int_to_ptr.vmem [resolvable:$true] %s761
          %764 = dma.hbm_to_vmem [thread:$0]  %s759, 128, %s762, %s750
        $region84: #{vit_encoder_forward.1} parent=43 // pred_fallthru
          _
        // Predicated region
        $region85: #{vit_encoder_forward.1} parent=43 // pred_check
          %p765 = pneg %p345
        $region86: #{vit_encoder_forward.1} parent=43 // pred_check_branch
          %767 = sbr.rel (%p765) target = $region88
        $region87: #{vit_encoder_forward.1} parent=43 // pred_region
          %s768 = sand.u32 %s44, 1
          %s769 = scalar_lea.sflag [#allocation16], %s768
          %s770 = sand.u32 %s335, 1
          %s771 = smul.addr %s770, 1024
          %s772 = scalar_lea.vmem [#allocation15], %s771
          %s774 = ssub.s32 16384, 16384
          %775 = vsyncadd %s769, %s774
          %s776 = smul.addr %s44, 256
          %s777 = smul.addr %s776, 64
          %s778 = scalar_lea.hbm %s11, %s777
          %s779 = sshll.u32 %s772, 4
          %s780 = int_to_ptr.vmem [resolvable:$true] %s779
          %785 = dma.hbm_to_vmem [thread:$0]  %s778, 16384, %s780, %s769, 128, 128, 8
        $region88: #{vit_encoder_forward.1} parent=43 // pred_fallthru
          _
        // Predicated region
        $region89: #{vit_encoder_forward.1} parent=43 // pred_check
          %p786 = pneg %p371
        $region90: #{vit_encoder_forward.1} parent=43 // pred_check_branch
          %788 = sbr.rel (%p786) target = $region92
        $region91: #{vit_encoder_forward.1} parent=43 // pred_region
          %s789 = sand.u32 %s44, 1
          %s790 = scalar_lea.sflag [#allocation16], %s789
          %s791 = sand.u32 %s361, 1
          %s792 = smul.addr %s791, 2
          %s793 = scalar_lea.vmem [#allocation17], %s792
          %s795 = ssub.s32 32, 32
          %796 = vsyncadd %s790, %s795
          %s797 = smul.addr %s44, 2
          %s798 = smul.addr %s797, 16
          %s799 = scalar_lea.hbm %s12, %s798
          %s801 = sshll.u32 %s793, 4
          %s802 = int_to_ptr.vmem [resolvable:$true] %s801
          %804 = dma.hbm_to_vmem [thread:$0]  %s799, 32, %s802, %s790
        $region92: #{vit_encoder_forward.1} parent=43 // pred_fallthru
          _
      $region44: #{vit_encoder_forward.1} parent=5 // pred_fallthru
        _
      %p805 = scmp.le.s32.totalorder 1, %s44
      %p806 = scmp.lt.s32.totalorder %s44, 9
      %p807 = pnand %p805, %p806
      %p808 = pneg %p807
      // Predicated region
      $region93: #{vit_encoder_forward.1} parent=5 // pred_check
        _
      $region94: #{vit_encoder_forward.1} parent=5 // pred_check_branch
        %810 = sbr.rel (%p807) target = $region96
      $region95: #{vit_encoder_forward.1} parent=5 // pred_region
        %s811 = ssub.s32 %s44, 1
        %s812 = sand.u32 %s78, 1
        %s813 = scalar_lea.sflag [#allocation4], %s812
        %s814 = sand.u32 %s78, 1
        %s815 = smul.addr %s814, 2
        %s816 = scalar_lea.vmem [#allocation3], %s815
        // Predicated region
        $region97: #{vit_encoder_forward.1} parent=95 // pred_check
          %p817 = pneg %p91
        $region98: #{vit_encoder_forward.1} parent=95 // pred_check_branch
          %819 = sbr.rel (%p817) target = $region100
        $region99: #{vit_encoder_forward.1} parent=95 // pred_region
          %820 = dma.done %s813, 32
        $region100: #{vit_encoder_forward.1} parent=95 // pred_fallthru
          _
        %s821 = sand.u32 %s49, 1
        %s822 = scalar_lea.sflag [#allocation7], %s821
        %s823 = sand.u32 %s104, 1
        %s824 = smul.addr %s823, 2
        %s825 = scalar_lea.vmem [#allocation6], %s824
        // Predicated region
        $region101: #{vit_encoder_forward.1} parent=95 // pred_check
          %p826 = pneg %p117
        $region102: #{vit_encoder_forward.1} parent=95 // pred_check_branch
          %828 = sbr.rel (%p826) target = $region104
        $region103: #{vit_encoder_forward.1} parent=95 // pred_region
          %829 = dma.done %s822, 32
        $region104: #{vit_encoder_forward.1} parent=95 // pred_fallthru
          _
        %s830 = sand.u32 %s49, 1
        %s831 = scalar_lea.sflag [#allocation7], %s830
        %s832 = sand.u32 %s182, 1
        %s833 = smul.addr %s832, 32
        %s834 = scalar_lea.vmem [#allocation8], %s833
        // Predicated region
        $region105: #{vit_encoder_forward.1} parent=95 // pred_check
          %p835 = pneg %p195
        $region106: #{vit_encoder_forward.1} parent=95 // pred_check_branch
          %837 = sbr.rel (%p835) target = $region108
        $region107: #{vit_encoder_forward.1} parent=95 // pred_region
          %838 = dma.done %s831, 512
        $region108: #{vit_encoder_forward.1} parent=95 // pred_fallthru
          _
        %s839 = sand.u32 %s49, 1
        %s840 = scalar_lea.sflag [#allocation10], %s839
        %s841 = sand.u32 %s234, 1
        %s842 = smul.addr %s841, 2
        %s843 = scalar_lea.vmem [#allocation9], %s842
        // Predicated region
        $region109: #{vit_encoder_forward.1} parent=95 // pred_check
          %p844 = pneg %p247
        $region110: #{vit_encoder_forward.1} parent=95 // pred_check_branch
          %846 = sbr.rel (%p844) target = $region112
        $region111: #{vit_encoder_forward.1} parent=95 // pred_region
          %847 = dma.done %s840, 32
        $region112: #{vit_encoder_forward.1} parent=95 // pred_fallthru
          _
        %s848 = sand.u32 %s49, 1
        %s849 = scalar_lea.sflag [#allocation10], %s848
        %s850 = sand.u32 %s260, 1
        %s851 = smul.addr %s850, 2
        %s852 = scalar_lea.vmem [#allocation11], %s851
        // Predicated region
        $region113: #{vit_encoder_forward.1} parent=95 // pred_check
          %p853 = pneg %p273
        $region114: #{vit_encoder_forward.1} parent=95 // pred_check_branch
          %855 = sbr.rel (%p853) target = $region116
        $region115: #{vit_encoder_forward.1} parent=95 // pred_region
          %856 = dma.done %s849, 32
        $region116: #{vit_encoder_forward.1} parent=95 // pred_fallthru
          _
        %s857 = sand.u32 %s49, 1
        %s858 = scalar_lea.sflag [#allocation13], %s857
        %s859 = sand.u32 %s286, 1
        %s860 = smul.addr %s859, 1024
        %s861 = scalar_lea.vmem [#allocation12], %s860
        // Predicated region
        $region117: #{vit_encoder_forward.1} parent=95 // pred_check
          %p862 = pneg %p299
        $region118: #{vit_encoder_forward.1} parent=95 // pred_check_branch
          %864 = sbr.rel (%p862) target = $region120
        $region119: #{vit_encoder_forward.1} parent=95 // pred_region
          %865 = dma.done %s858, 16384
        $region120: #{vit_encoder_forward.1} parent=95 // pred_fallthru
          _
        %s866 = sand.u32 %s49, 1
        %s867 = scalar_lea.sflag [#allocation13], %s866
        %s868 = sand.u32 %s312, 1
        %s869 = smul.addr %s868, 8
        %s870 = scalar_lea.vmem [#allocation14], %s869
        // Predicated region
        $region121: #{vit_encoder_forward.1} parent=95 // pred_check
          %p871 = pneg %p325
        $region122: #{vit_encoder_forward.1} parent=95 // pred_check_branch
          %873 = sbr.rel (%p871) target = $region124
        $region123: #{vit_encoder_forward.1} parent=95 // pred_region
          %874 = dma.done %s867, 128
        $region124: #{vit_encoder_forward.1} parent=95 // pred_fallthru
          _
        %s875 = sand.u32 %s49, 1
        %s876 = scalar_lea.sflag [#allocation16], %s875
        %s877 = sand.u32 %s338, 1
        %s878 = smul.addr %s877, 1024
        %s879 = scalar_lea.vmem [#allocation15], %s878
        // Predicated region
        $region125: #{vit_encoder_forward.1} parent=95 // pred_check
          %p880 = pneg %p351
        $region126: #{vit_encoder_forward.1} parent=95 // pred_check_branch
          %882 = sbr.rel (%p880) target = $region128
        $region127: #{vit_encoder_forward.1} parent=95 // pred_region
          %883 = dma.done %s876, 16384
        $region128: #{vit_encoder_forward.1} parent=95 // pred_fallthru
          _
        %s884 = sand.u32 %s49, 1
        %s885 = scalar_lea.sflag [#allocation16], %s884
        %s886 = sand.u32 %s364, 1
        %s887 = smul.addr %s886, 2
        %s888 = scalar_lea.vmem [#allocation17], %s887
        // Predicated region
        $region129: #{vit_encoder_forward.1} parent=95 // pred_check
          %p889 = pneg %p377
        $region130: #{vit_encoder_forward.1} parent=95 // pred_check_branch
          %891 = sbr.rel (%p889) target = $region132
        $region131: #{vit_encoder_forward.1} parent=95 // pred_region
          %892 = dma.done %s885, 32
        $region132: #{vit_encoder_forward.1} parent=95 // pred_fallthru
          _
        // Predicated region
        $region133: #{vit_encoder_forward.1} parent=95 // pred_check
          %p893 = pneg %p398
        $region134: #{vit_encoder_forward.1} parent=95 // pred_check_branch
          %895 = sbr.rel (%p893) target = $region136
        $region135: #{vit_encoder_forward.1} parent=95 // pred_region
          %896 = dma.done [#allocation19], 32
        $region136: #{vit_encoder_forward.1} parent=95 // pred_fallthru
          _
        // Predicated region
        $region137: #{vit_encoder_forward.1} parent=95 // pred_check
          %p897 = pneg %p419
        $region138: #{vit_encoder_forward.1} parent=95 // pred_check_branch
          %899 = sbr.rel (%p897) target = $region140
        $region139: #{vit_encoder_forward.1} parent=95 // pred_region
          %900 = dma.done [#allocation19], 32
        $region140: #{vit_encoder_forward.1} parent=95 // pred_fallthru
          _
        // Predicated region
        $region141: #{vit_encoder_forward.1} parent=95 // pred_check
          %p901 = pneg %p461
        $region142: #{vit_encoder_forward.1} parent=95 // pred_check_branch
          %903 = sbr.rel (%p901) target = $region144
        $region143: #{vit_encoder_forward.1} parent=95 // pred_region
          %904 = dma.done [#allocation22], 16
        $region144: #{vit_encoder_forward.1} parent=95 // pred_fallthru
          _
        // Predicated region
        $region145: #{vit_encoder_forward.1} parent=95 // pred_check
          %p905 = pneg %p482
        $region146: #{vit_encoder_forward.1} parent=95 // pred_check_branch
          %907 = sbr.rel (%p905) target = $region148
        $region147: #{vit_encoder_forward.1} parent=95 // pred_region
          %908 = dma.done [#allocation22], 16
        $region148: #{vit_encoder_forward.1} parent=95 // pred_fallthru
          _
        // Predicated region
        $region149: #{vit_encoder_forward.1} parent=95 // pred_check
          %p909 = pneg %p503
        $region150: #{vit_encoder_forward.1} parent=95 // pred_check_branch
          %911 = sbr.rel (%p909) target = $region152
        $region151: #{vit_encoder_forward.1} parent=95 // pred_region
          %912 = dma.done [#allocation25], 16
        $region152: #{vit_encoder_forward.1} parent=95 // pred_fallthru
          _
        %p913 = pneg %p65
        %p914 = pneg %p62
        %s915 = sand.u32 %s78, 1
        %s916 = scalar_lea.sflag [#allocation4], %s915
        %s917 = sand.u32 %s78, 1
        %s918 = smul.addr %s917, 2
        %s919 = scalar_lea.vmem [#allocation3], %s918
        %p920 = pneg %p91
        %p921 = pneg %p88
        %s922 = sand.u32 %s49, 1
        %s923 = scalar_lea.sflag [#allocation7], %s922
        %s924 = sand.u32 %s104, 1
        %s925 = smul.addr %s924, 2
        %s926 = scalar_lea.vmem [#allocation6], %s925
        %p927 = pneg %p117
        %p928 = pneg %p114
        %p929 = scmp.lt.s32.totalorder %s49, 7
        %s930 = scalar_select %p929, %s49, 7
        %s931 = smul.addr %s930, 64
        %s932 = smul.addr %s931, 4
        %s933 = scalar_lea.vmem %s3, %s932
        %p934 = pneg %p143
        %p935 = pneg %p140
        %p936 = scmp.lt.s32.totalorder %s49, 7
        %s937 = scalar_select %p936, %s49, 7
        %s938 = smul.addr %s937, 64
        %s939 = smul.addr %s938, 8
        %s940 = scalar_lea.vmem %s4, %s939
        %p941 = pneg %p169
        %p942 = pneg %p166
        %s943 = sand.u32 %s49, 1
        %s944 = scalar_lea.sflag [#allocation7], %s943
        %s945 = sand.u32 %s182, 1
        %s946 = smul.addr %s945, 32
        %s947 = scalar_lea.vmem [#allocation8], %s946
        %p948 = pneg %p195
        %p949 = pneg %p192
        %p950 = scmp.lt.s32.totalorder %s49, 7
        %s951 = scalar_select %p950, %s49, 7
        %s952 = smul.addr %s951, 2
        %s953 = smul.addr %s952, 8
        %s954 = scalar_lea.vmem %s6, %s953
        %p955 = pneg %p221
        %p956 = pneg %p218
        %s957 = sand.u32 %s49, 1
        %s958 = scalar_lea.sflag [#allocation10], %s957
        %s959 = sand.u32 %s234, 1
        %s960 = smul.addr %s959, 2
        %s961 = scalar_lea.vmem [#allocation9], %s960
        %p962 = pneg %p247
        %p963 = pneg %p244
        %s964 = sand.u32 %s49, 1
        %s965 = scalar_lea.sflag [#allocation10], %s964
        %s966 = sand.u32 %s260, 1
        %s967 = smul.addr %s966, 2
        %s968 = scalar_lea.vmem [#allocation11], %s967
        %p969 = pneg %p273
        %p970 = pneg %p270
        %s971 = sand.u32 %s49, 1
        %s972 = scalar_lea.sflag [#allocation13], %s971
        %s973 = sand.u32 %s286, 1
        %s974 = smul.addr %s973, 1024
        %s975 = scalar_lea.vmem [#allocation12], %s974
        %p976 = pneg %p299
        %p977 = pneg %p296
        %s978 = sand.u32 %s49, 1
        %s979 = scalar_lea.sflag [#allocation13], %s978
        %s980 = sand.u32 %s312, 1
        %s981 = smul.addr %s980, 8
        %s982 = scalar_lea.vmem [#allocation14], %s981
        %p983 = pneg %p325
        %p984 = pneg %p322
        %s985 = sand.u32 %s49, 1
        %s986 = scalar_lea.sflag [#allocation16], %s985
        %s987 = sand.u32 %s338, 1
        %s988 = smul.addr %s987, 1024
        %s989 = scalar_lea.vmem [#allocation15], %s988
        %p990 = pneg %p351
        %p991 = pneg %p348
        %s992 = sand.u32 %s49, 1
        %s993 = scalar_lea.sflag [#allocation16], %s992
        %s994 = sand.u32 %s364, 1
        %s995 = smul.addr %s994, 2
        %s996 = scalar_lea.vmem [#allocation17], %s995
        %p997 = pneg %p377
        %p998 = pneg %p374
        %p999 = pneg %p398
        %p1000 = pneg %p395
        %p1001 = pneg %p419
        %p1002 = pneg %p416
        %p1003 = pneg %p440
        %p1004 = pneg %p437
        %p1005 = pneg %p461
        %p1006 = pneg %p458
        %p1007 = pneg %p482
        %p1008 = pneg %p479
        %p1009 = pneg %p503
        %p1010 = pneg %p500
        %p1011 = pneg %p524
        %p1012 = pneg %p521
        %p1013 = scmp.lt.s32.totalorder %s49, 7
        %s1014 = scalar_select %p1013, %s49, 7
        %s1015 = smul.addr %s1014, 64
        %s1016 = smul.addr %s1015, 4
        %s1017 = scalar_lea.vmem %s3, %s1016
        %p1018 = scmp.lt.s32.totalorder %s49, 7
        %s1019 = scalar_select %p1018, %s49, 7
        %s1020 = smul.addr %s1019, 64
        %s1021 = smul.addr %s1020, 8
        %s1022 = scalar_lea.vmem %s4, %s1021
        %p1023 = scmp.lt.s32.totalorder %s49, 7
        %s1024 = scalar_select %p1023, %s49, 7
        %s1025 = smul.addr %s1024, 2
        %s1026 = smul.addr %s1025, 8
        %s1027 = scalar_lea.vmem %s6, %s1026
        %p1029 = scmp.eq.s32.totalorder %s49, 0
        // Predicated region
        $region153: #{vit_encoder_forward.1} parent=95 // pred_check
          %p1030 = pneg %p1029
        $region154: #{vit_encoder_forward.1} parent=95 // pred_check_branch
          %1032 = sbr.rel (%p1030) target = $region156
        $region155: #{vit_encoder_forward.1} parent=95 // pred_region
          %v1033 = vld [vmem:[%s0] sm:$0xff]
          %v1034 = vld [vmem:[%s0 + $0x8] sm:$0xff]
          %v1035 = vld [vmem:[%s0 + $0x10] sm:$0xff]
          %v1036 = vld [vmem:[%s0 + $0x18] sm:$0xff]
          %1037 = vst [vmem:[#allocation2] sm:$0xff] %v1033
          %1038 = vst [vmem:[#allocation2 + $0x8] sm:$0xff] %v1034
          %1039 = vst [vmem:[#allocation2 + $0x10] sm:$0xff] %v1035
          %1040 = vst [vmem:[#allocation2 + $0x18] sm:$0xff] %v1036
        $region156: #{vit_encoder_forward.1} parent=95 // pred_fallthru
          _
        %v1041 = vld [vmem:[#allocation2] sm:$0xff]
        %v1042 = vld [vmem:[#allocation2 + $0x8] sm:$0xff]
        %v1043 = vld [vmem:[#allocation2 + $0x10] sm:$0xff]
        %v1044 = vld [vmem:[#allocation2 + $0x18] sm:$0xff]
        %v1045 = vld [vmem:[%s816] sm:$0x3]
        %v1046 = vld [vmem:[%s825] sm:$0x3]
        %v1047 = vadd.f32 %v1041, %v1042
        %1048 = vadd.xlane.f32.xlu0 %v1047
        %v1049 = vpop.xlane.xlu0 %1048
        %v1050 = vadd.f32 %v1043, %v1044
        %1051 = vadd.xlane.f32.xlu0 %v1050
        %v1052 = vpop.xlane.xlu0 %1051
        %v1053 = vrcp.pop 256.0
        %v1054 = vmul.f32 %v1049, %v1053
        %v1055 = vmul.f32 %v1052, %v1053
        %v1056 = vsub.f32 %v1041, %v1054
        %v1057 = vsub.f32 %v1042, %v1054
        %v1058 = vsub.f32 %v1043, %v1055
        %v1059 = vsub.f32 %v1044, %v1055
        %v1060 = vmul.f32 %v1056, %v1056
        %v1061 = vmul.f32 %v1057, %v1057
        %v1062 = vmul.f32 %v1058, %v1058
        %v1063 = vmul.f32 %v1059, %v1059
        %v1064 = vadd.f32 %v1060, %v1061
        %1065 = vadd.xlane.f32.xlu0 %v1064
        %v1066 = vpop.xlane.xlu0 %1065
        %v1067 = vadd.f32 %v1062, %v1063
        %1068 = vadd.xlane.f32.xlu0 %v1067
        %v1069 = vpop.xlane.xlu0 %1068
        %v1070 = vmul.f32 %v1066, %v1053
        %v1071 = vmul.f32 %v1069, %v1053
        %v1072 = vadd.f32 %v1070, 1e-06
        %v1073 = vadd.f32 %v1071, 1e-06
        %v1074 = vrsqrt.pop %v1072
        %v1075 = vrsqrt.pop %v1073
        %v1076 = vmul.f32 %v1056, %v1074
        %v1077 = vmul.f32 %v1057, %v1074
        %v1078 = vmul.f32 %v1058, %v1075
        %v1079 = vmul.f32 %v1059, %v1075
        %v1081 = vlaneseq
        %v1082 = vshrl.u32 %v1081, 7
        %v1083 = vsub.s32 0, %v1082
        %v1084 = vrot.slane %v1045, %v1083
        %v1085 = vlaneseq
        %v1086 = vshrl.u32 %v1085, 7
        %v1087 = vsub.s32 1, %v1086
        %v1088 = vrot.slane %v1045, %v1087
        %v1091 = vmul.f32 %v1076, %v1084
        %v1092 = vmul.f32 %v1077, %v1088
        %v1093 = vmul.f32 %v1078, %v1084
        %v1094 = vmul.f32 %v1079, %v1088
        %v1096 = vlaneseq
        %v1097 = vshrl.u32 %v1096, 7
        %v1098 = vsub.s32 0, %v1097
        %v1099 = vrot.slane %v1046, %v1098
        %v1100 = vlaneseq
        %v1101 = vshrl.u32 %v1100, 7
        %v1102 = vsub.s32 1, %v1101
        %v1103 = vrot.slane %v1046, %v1102
        %v1106 = vadd.f32 %v1091, %v1099
        %v1107 = vadd.f32 %v1092, %v1103
        %v1108 = vadd.f32 %v1093, %v1099
        %v1109 = vadd.f32 %v1094, %v1103
        %v1110 = vld [vmem:[%s1017] sm:$0xf]
        %v1111 = vld [vmem:[%s1017 + $0x4] sm:$0xf]
        %v1112 = vld [vmem:[%s1017 + $0x8] sm:$0xf]
        %v1113 = vld [vmem:[%s1017 + $0xc] sm:$0xf]
        %v1114 = vld [vmem:[%s1017 + $0x10] sm:$0xf]
        %v1115 = vld [vmem:[%s1017 + $0x14] sm:$0xf]
        %v1116 = vld [vmem:[%s1017 + $0x18] sm:$0xf]
        %v1117 = vld [vmem:[%s1017 + $0x1c] sm:$0xf]
        %v1118 = vld [vmem:[%s1017 + $0x20] sm:$0xf]
        %v1119 = vld [vmem:[%s1017 + $0x24] sm:$0xf]
        %v1120 = vld [vmem:[%s1017 + $0x28] sm:$0xf]
        %v1121 = vld [vmem:[%s1017 + $0x2c] sm:$0xf]
        %v1122 = vld [vmem:[%s1017 + $0x30] sm:$0xf]
        %v1123 = vld [vmem:[%s1017 + $0x34] sm:$0xf]
        %v1124 = vld [vmem:[%s1017 + $0x38] sm:$0xf]
        %v1125 = vld [vmem:[%s1017 + $0x3c] sm:$0xf]
        %v1126 = vld [vmem:[%s1017 + $0x40] sm:$0xf]
        %v1127 = vld [vmem:[%s1017 + $0x44] sm:$0xf]
        %v1128 = vld [vmem:[%s1017 + $0x48] sm:$0xf]
        %v1129 = vld [vmem:[%s1017 + $0x4c] sm:$0xf]
        %v1130 = vld [vmem:[%s1017 + $0x50] sm:$0xf]
        %v1131 = vld [vmem:[%s1017 + $0x54] sm:$0xf]
        %v1132 = vld [vmem:[%s1017 + $0x58] sm:$0xf]
        %v1133 = vld [vmem:[%s1017 + $0x5c] sm:$0xf]
        %v1134 = vld [vmem:[%s1017 + $0x60] sm:$0xf]
        %v1135 = vld [vmem:[%s1017 + $0x64] sm:$0xf]
        %v1136 = vld [vmem:[%s1017 + $0x68] sm:$0xf]
        %v1137 = vld [vmem:[%s1017 + $0x6c] sm:$0xf]
        %v1138 = vld [vmem:[%s1017 + $0x70] sm:$0xf]
        %v1139 = vld [vmem:[%s1017 + $0x74] sm:$0xf]
        %v1140 = vld [vmem:[%s1017 + $0x78] sm:$0xf]
        %v1141 = vld [vmem:[%s1017 + $0x7c] sm:$0xf]
        %v1142 = vld [vmem:[%s1017 + $0x80] sm:$0xf]
        %v1143 = vld [vmem:[%s1017 + $0x84] sm:$0xf]
        %v1144 = vld [vmem:[%s1017 + $0x88] sm:$0xf]
        %v1145 = vld [vmem:[%s1017 + $0x8c] sm:$0xf]
        %v1146 = vld [vmem:[%s1017 + $0x90] sm:$0xf]
        %v1147 = vld [vmem:[%s1017 + $0x94] sm:$0xf]
        %v1148 = vld [vmem:[%s1017 + $0x98] sm:$0xf]
        %v1149 = vld [vmem:[%s1017 + $0x9c] sm:$0xf]
        %v1150 = vld [vmem:[%s1017 + $0xa0] sm:$0xf]
        %v1151 = vld [vmem:[%s1017 + $0xa4] sm:$0xf]
        %v1152 = vld [vmem:[%s1017 + $0xa8] sm:$0xf]
        %v1153 = vld [vmem:[%s1017 + $0xac] sm:$0xf]
        %v1154 = vld [vmem:[%s1017 + $0xb0] sm:$0xf]
        %v1155 = vld [vmem:[%s1017 + $0xb4] sm:$0xf]
        %v1156 = vld [vmem:[%s1017 + $0xb8] sm:$0xf]
        %v1157 = vld [vmem:[%s1017 + $0xbc] sm:$0xf]
        %v1158 = vld [vmem:[%s1017 + $0xc0] sm:$0xf]
        %v1159 = vld [vmem:[%s1017 + $0xc4] sm:$0xf]
        %v1160 = vld [vmem:[%s1017 + $0xc8] sm:$0xf]
        %v1161 = vld [vmem:[%s1017 + $0xcc] sm:$0xf]
        %v1162 = vld [vmem:[%s1017 + $0xd0] sm:$0xf]
        %v1163 = vld [vmem:[%s1017 + $0xd4] sm:$0xf]
        %v1164 = vld [vmem:[%s1017 + $0xd8] sm:$0xf]
        %v1165 = vld [vmem:[%s1017 + $0xdc] sm:$0xf]
        %v1166 = vld [vmem:[%s1017 + $0xe0] sm:$0xf]
        %v1167 = vld [vmem:[%s1017 + $0xe4] sm:$0xf]
        %v1168 = vld [vmem:[%s1017 + $0xe8] sm:$0xf]
        %v1169 = vld [vmem:[%s1017 + $0xec] sm:$0xf]
        %v1170 = vld [vmem:[%s1017 + $0xf0] sm:$0xf]
        %v1171 = vld [vmem:[%s1017 + $0xf4] sm:$0xf]
        %v1172 = vld [vmem:[%s1017 + $0xf8] sm:$0xf]
        %v1173 = vld [vmem:[%s1017 + $0xfc] sm:$0xf]
        %v1174 = vpack.c.bf16 %v1108, %v1106
        %v1175 = vpack.c.bf16 %v1109, %v1107
        %v1176 = vld [vmem:[%s1022] sm:$0xff]
        %v1177 = vld [vmem:[%s1022 + $0x8] sm:$0xff]
        %v1178 = vld [vmem:[%s1022 + $0x10] sm:$0xff]
        %v1179 = vld [vmem:[%s1022 + $0x18] sm:$0xff]
        %v1180 = vld [vmem:[%s1022 + $0x20] sm:$0xff]
        %v1181 = vld [vmem:[%s1022 + $0x28] sm:$0xff]
        %v1182 = vld [vmem:[%s1022 + $0x30] sm:$0xff]
        %v1183 = vld [vmem:[%s1022 + $0x38] sm:$0xff]
        %v1184 = vld [vmem:[%s1022 + $0x40] sm:$0xff]
        %v1185 = vld [vmem:[%s1022 + $0x48] sm:$0xff]
        %v1186 = vld [vmem:[%s1022 + $0x50] sm:$0xff]
        %v1187 = vld [vmem:[%s1022 + $0x58] sm:$0xff]
        %v1188 = vld [vmem:[%s1022 + $0x60] sm:$0xff]
        %v1189 = vld [vmem:[%s1022 + $0x68] sm:$0xff]
        %v1190 = vld [vmem:[%s1022 + $0x70] sm:$0xff]
        %v1191 = vld [vmem:[%s1022 + $0x78] sm:$0xff]
        %v1192 = vld [vmem:[%s1022 + $0x80] sm:$0xff]
        %v1193 = vld [vmem:[%s1022 + $0x88] sm:$0xff]
        %v1194 = vld [vmem:[%s1022 + $0x90] sm:$0xff]
        %v1195 = vld [vmem:[%s1022 + $0x98] sm:$0xff]
        %v1196 = vld [vmem:[%s1022 + $0xa0] sm:$0xff]
        %v1197 = vld [vmem:[%s1022 + $0xa8] sm:$0xff]
        %v1198 = vld [vmem:[%s1022 + $0xb0] sm:$0xff]
        %v1199 = vld [vmem:[%s1022 + $0xb8] sm:$0xff]
        %v1200 = vld [vmem:[%s1022 + $0xc0] sm:$0xff]
        %v1201 = vld [vmem:[%s1022 + $0xc8] sm:$0xff]
        %v1202 = vld [vmem:[%s1022 + $0xd0] sm:$0xff]
        %v1203 = vld [vmem:[%s1022 + $0xd8] sm:$0xff]
        %v1204 = vld [vmem:[%s1022 + $0xe0] sm:$0xff]
        %v1205 = vld [vmem:[%s1022 + $0xe8] sm:$0xff]
        %v1206 = vld [vmem:[%s1022 + $0xf0] sm:$0xff]
        %v1207 = vld [vmem:[%s1022 + $0xf8] sm:$0xff]
        %v1208 = vld [vmem:[%s1022 + $0x100] sm:$0xff]
        %v1209 = vld [vmem:[%s1022 + $0x108] sm:$0xff]
        %v1210 = vld [vmem:[%s1022 + $0x110] sm:$0xff]
        %v1211 = vld [vmem:[%s1022 + $0x118] sm:$0xff]
        %v1212 = vld [vmem:[%s1022 + $0x120] sm:$0xff]
        %v1213 = vld [vmem:[%s1022 + $0x128] sm:$0xff]
        %v1214 = vld [vmem:[%s1022 + $0x130] sm:$0xff]
        %v1215 = vld [vmem:[%s1022 + $0x138] sm:$0xff]
        %v1216 = vld [vmem:[%s1022 + $0x140] sm:$0xff]
        %v1217 = vld [vmem:[%s1022 + $0x148] sm:$0xff]
        %v1218 = vld [vmem:[%s1022 + $0x150] sm:$0xff]
        %v1219 = vld [vmem:[%s1022 + $0x158] sm:$0xff]
        %v1220 = vld [vmem:[%s1022 + $0x160] sm:$0xff]
        %v1221 = vld [vmem:[%s1022 + $0x168] sm:$0xff]
        %v1222 = vld [vmem:[%s1022 + $0x170] sm:$0xff]
        %v1223 = vld [vmem:[%s1022 + $0x178] sm:$0xff]
        %v1224 = vld [vmem:[%s1022 + $0x180] sm:$0xff]
        %v1225 = vld [vmem:[%s1022 + $0x188] sm:$0xff]
        %v1226 = vld [vmem:[%s1022 + $0x190] sm:$0xff]
        %v1227 = vld [vmem:[%s1022 + $0x198] sm:$0xff]
        %v1228 = vld [vmem:[%s1022 + $0x1a0] sm:$0xff]
        %v1229 = vld [vmem:[%s1022 + $0x1a8] sm:$0xff]
        %v1230 = vld [vmem:[%s1022 + $0x1b0] sm:$0xff]
        %v1231 = vld [vmem:[%s1022 + $0x1b8] sm:$0xff]
        %v1232 = vld [vmem:[%s1022 + $0x1c0] sm:$0xff]
        %v1233 = vld [vmem:[%s1022 + $0x1c8] sm:$0xff]
        %v1234 = vld [vmem:[%s1022 + $0x1d0] sm:$0xff]
        %v1235 = vld [vmem:[%s1022 + $0x1d8] sm:$0xff]
        %v1236 = vld [vmem:[%s1022 + $0x1e0] sm:$0xff]
        %v1237 = vld [vmem:[%s1022 + $0x1e8] sm:$0xff]
        %v1238 = vld [vmem:[%s1022 + $0x1f0] sm:$0xff]
        %v1239 = vld [vmem:[%s1022 + $0x1f8] sm:$0xff]
        %1241 = vset.pattern.permute.xlu0 0
        %1242 = vperm.xlu0 %1241, %v1176
        %v1243 = vpop.permute.xlu0 %1242
        %1246 = vset.pattern.permute.xlu0 0
        %1247 = vperm.xlu0 %1246, %v1177
        %v1248 = vpop.permute.xlu0 %1247
        %1251 = vset.pattern.permute.xlu0 0
        %1252 = vperm.xlu0 %1251, %v1178
        %v1253 = vpop.permute.xlu0 %1252
        %1256 = vset.pattern.permute.xlu0 0
        %1257 = vperm.xlu0 %1256, %v1179
        %v1258 = vpop.permute.xlu0 %1257
        %1261 = vset.pattern.permute.xlu0 0
        %1262 = vperm.xlu0 %1261, %v1180
        %v1263 = vpop.permute.xlu0 %1262
        %1266 = vset.pattern.permute.xlu0 0
        %1267 = vperm.xlu0 %1266, %v1181
        %v1268 = vpop.permute.xlu0 %1267
        %1271 = vset.pattern.permute.xlu0 0
        %1272 = vperm.xlu0 %1271, %v1182
        %v1273 = vpop.permute.xlu0 %1272
        %1276 = vset.pattern.permute.xlu0 0
        %1277 = vperm.xlu0 %1276, %v1183
        %v1278 = vpop.permute.xlu0 %1277
        %1281 = vset.pattern.permute.xlu0 0
        %1282 = vperm.xlu0 %1281, %v1184
        %v1283 = vpop.permute.xlu0 %1282
        %1286 = vset.pattern.permute.xlu0 0
        %1287 = vperm.xlu0 %1286, %v1185
        %v1288 = vpop.permute.xlu0 %1287
        %1291 = vset.pattern.permute.xlu0 0
        %1292 = vperm.xlu0 %1291, %v1186
        %v1293 = vpop.permute.xlu0 %1292
        %1296 = vset.pattern.permute.xlu0 0
        %1297 = vperm.xlu0 %1296, %v1187
        %v1298 = vpop.permute.xlu0 %1297
        %1301 = vset.pattern.permute.xlu0 0
        %1302 = vperm.xlu0 %1301, %v1188
        %v1303 = vpop.permute.xlu0 %1302
        %1306 = vset.pattern.permute.xlu0 0
        %1307 = vperm.xlu0 %1306, %v1189
        %v1308 = vpop.permute.xlu0 %1307
        %1311 = vset.pattern.permute.xlu0 0
        %1312 = vperm.xlu0 %1311, %v1190
        %v1313 = vpop.permute.xlu0 %1312
        %1316 = vset.pattern.permute.xlu0 0
        %1317 = vperm.xlu0 %1316, %v1191
        %v1318 = vpop.permute.xlu0 %1317
        %1321 = vset.pattern.permute.xlu0 0
        %1322 = vperm.xlu0 %1321, %v1192
        %v1323 = vpop.permute.xlu0 %1322
        %1326 = vset.pattern.permute.xlu0 0
        %1327 = vperm.xlu0 %1326, %v1193
        %v1328 = vpop.permute.xlu0 %1327
        %1331 = vset.pattern.permute.xlu0 0
        %1332 = vperm.xlu0 %1331, %v1194
        %v1333 = vpop.permute.xlu0 %1332
        %1336 = vset.pattern.permute.xlu0 0
        %1337 = vperm.xlu0 %1336, %v1195
        %v1338 = vpop.permute.xlu0 %1337
        %1341 = vset.pattern.permute.xlu0 0
        %1342 = vperm.xlu0 %1341, %v1196
        %v1343 = vpop.permute.xlu0 %1342
        %1346 = vset.pattern.permute.xlu0 0
        %1347 = vperm.xlu0 %1346, %v1197
        %v1348 = vpop.permute.xlu0 %1347
        %1351 = vset.pattern.permute.xlu0 0
        %1352 = vperm.xlu0 %1351, %v1198
        %v1353 = vpop.permute.xlu0 %1352
        %1356 = vset.pattern.permute.xlu0 0
        %1357 = vperm.xlu0 %1356, %v1199
        %v1358 = vpop.permute.xlu0 %1357
        %1361 = vset.pattern.permute.xlu0 0
        %1362 = vperm.xlu0 %1361, %v1200
        %v1363 = vpop.permute.xlu0 %1362
        %1366 = vset.pattern.permute.xlu0 0
        %1367 = vperm.xlu0 %1366, %v1201
        %v1368 = vpop.permute.xlu0 %1367
        %1371 = vset.pattern.permute.xlu0 0
        %1372 = vperm.xlu0 %1371, %v1202
        %v1373 = vpop.permute.xlu0 %1372
        %1376 = vset.pattern.permute.xlu0 0
        %1377 = vperm.xlu0 %1376, %v1203
        %v1378 = vpop.permute.xlu0 %1377
        %1381 = vset.pattern.permute.xlu0 0
        %1382 = vperm.xlu0 %1381, %v1204
        %v1383 = vpop.permute.xlu0 %1382
        %1386 = vset.pattern.permute.xlu0 0
        %1387 = vperm.xlu0 %1386, %v1205
        %v1388 = vpop.permute.xlu0 %1387
        %1391 = vset.pattern.permute.xlu0 0
        %1392 = vperm.xlu0 %1391, %v1206
        %v1393 = vpop.permute.xlu0 %1392
        %1396 = vset.pattern.permute.xlu0 0
        %1397 = vperm.xlu0 %1396, %v1207
        %v1398 = vpop.permute.xlu0 %1397
        %1401 = vset.pattern.permute.xlu0 0
        %1402 = vperm.xlu0 %1401, %v1208
        %v1403 = vpop.permute.xlu0 %1402
        %1406 = vset.pattern.permute.xlu0 0
        %1407 = vperm.xlu0 %1406, %v1209
        %v1408 = vpop.permute.xlu0 %1407
        %1411 = vset.pattern.permute.xlu0 0
        %1412 = vperm.xlu0 %1411, %v1210
        %v1413 = vpop.permute.xlu0 %1412
        %1416 = vset.pattern.permute.xlu0 0
        %1417 = vperm.xlu0 %1416, %v1211
        %v1418 = vpop.permute.xlu0 %1417
        %1421 = vset.pattern.permute.xlu0 0
        %1422 = vperm.xlu0 %1421, %v1212
        %v1423 = vpop.permute.xlu0 %1422
        %1426 = vset.pattern.permute.xlu0 0
        %1427 = vperm.xlu0 %1426, %v1213
        %v1428 = vpop.permute.xlu0 %1427
        %1431 = vset.pattern.permute.xlu0 0
        %1432 = vperm.xlu0 %1431, %v1214
        %v1433 = vpop.permute.xlu0 %1432
        %1436 = vset.pattern.permute.xlu0 0
        %1437 = vperm.xlu0 %1436, %v1215
        %v1438 = vpop.permute.xlu0 %1437
        %1441 = vset.pattern.permute.xlu0 0
        %1442 = vperm.xlu0 %1441, %v1216
        %v1443 = vpop.permute.xlu0 %1442
        %1446 = vset.pattern.permute.xlu0 0
        %1447 = vperm.xlu0 %1446, %v1217
        %v1448 = vpop.permute.xlu0 %1447
        %1451 = vset.pattern.permute.xlu0 0
        %1452 = vperm.xlu0 %1451, %v1218
        %v1453 = vpop.permute.xlu0 %1452
        %1456 = vset.pattern.permute.xlu0 0
        %1457 = vperm.xlu0 %1456, %v1219
        %v1458 = vpop.permute.xlu0 %1457
        %1461 = vset.pattern.permute.xlu0 0
        %1462 = vperm.xlu0 %1461, %v1220
        %v1463 = vpop.permute.xlu0 %1462
        %1466 = vset.pattern.permute.xlu0 0
        %1467 = vperm.xlu0 %1466, %v1221
        %v1468 = vpop.permute.xlu0 %1467
        %1471 = vset.pattern.permute.xlu0 0
        %1472 = vperm.xlu0 %1471, %v1222
        %v1473 = vpop.permute.xlu0 %1472
        %1476 = vset.pattern.permute.xlu0 0
        %1477 = vperm.xlu0 %1476, %v1223
        %v1478 = vpop.permute.xlu0 %1477
        %1481 = vset.pattern.permute.xlu0 0
        %1482 = vperm.xlu0 %1481, %v1224
        %v1483 = vpop.permute.xlu0 %1482
        %1486 = vset.pattern.permute.xlu0 0
        %1487 = vperm.xlu0 %1486, %v1225
        %v1488 = vpop.permute.xlu0 %1487
        %1491 = vset.pattern.permute.xlu0 0
        %1492 = vperm.xlu0 %1491, %v1226
        %v1493 = vpop.permute.xlu0 %1492
        %1496 = vset.pattern.permute.xlu0 0
        %1497 = vperm.xlu0 %1496, %v1227
        %v1498 = vpop.permute.xlu0 %1497
        %1501 = vset.pattern.permute.xlu0 0
        %1502 = vperm.xlu0 %1501, %v1228
        %v1503 = vpop.permute.xlu0 %1502
        %1506 = vset.pattern.permute.xlu0 0
        %1507 = vperm.xlu0 %1506, %v1229
        %v1508 = vpop.permute.xlu0 %1507
        %1511 = vset.pattern.permute.xlu0 0
        %1512 = vperm.xlu0 %1511, %v1230
        %v1513 = vpop.permute.xlu0 %1512
        %1516 = vset.pattern.permute.xlu0 0
        %1517 = vperm.xlu0 %1516, %v1231
        %v1518 = vpop.permute.xlu0 %1517
        %1521 = vset.pattern.permute.xlu0 0
        %1522 = vperm.xlu0 %1521, %v1232
        %v1523 = vpop.permute.xlu0 %1522
        %1526 = vset.pattern.permute.xlu0 0
        %1527 = vperm.xlu0 %1526, %v1233
        %v1528 = vpop.permute.xlu0 %1527
        %1531 = vset.pattern.permute.xlu0 0
        %1532 = vperm.xlu0 %1531, %v1234
        %v1533 = vpop.permute.xlu0 %1532
        %1536 = vset.pattern.permute.xlu0 0
        %1537 = vperm.xlu0 %1536, %v1235
        %v1538 = vpop.permute.xlu0 %1537
        %1541 = vset.pattern.permute.xlu0 0
        %1542 = vperm.xlu0 %1541, %v1236
        %v1543 = vpop.permute.xlu0 %1542
        %1546 = vset.pattern.permute.xlu0 0
        %1547 = vperm.xlu0 %1546, %v1237
        %v1548 = vpop.permute.xlu0 %1547
        %1551 = vset.pattern.permute.xlu0 0
        %1552 = vperm.xlu0 %1551, %v1238
        %v1553 = vpop.permute.xlu0 %1552
        %1556 = vset.pattern.permute.xlu0 0
        %1557 = vperm.xlu0 %1556, %v1239
        %v1558 = vpop.permute.xlu0 %1557
        %v1624 = vunpack.c.l.b16 %v1110
        %v1625 = vunpack.c.l.b16 %v1111
        %v1626 = vunpack.c.l.b16 %v1112
        %v1627 = vunpack.c.l.b16 %v1113
        %v1628 = vunpack.c.l.b16 %v1114
        %v1629 = vunpack.c.l.b16 %v1115
        %v1630 = vunpack.c.l.b16 %v1116
        %v1631 = vunpack.c.l.b16 %v1117
        %v1632 = vunpack.c.l.b16 %v1118
        %v1633 = vunpack.c.l.b16 %v1119
        %v1634 = vunpack.c.l.b16 %v1120
        %v1635 = vunpack.c.l.b16 %v1121
        %v1636 = vunpack.c.l.b16 %v1122
        %v1637 = vunpack.c.l.b16 %v1123
        %v1638 = vunpack.c.l.b16 %v1124
        %v1639 = vunpack.c.l.b16 %v1125
        %v1640 = vunpack.c.l.b16 %v1126
        %v1641 = vunpack.c.l.b16 %v1127
        %v1642 = vunpack.c.l.b16 %v1128
        %v1643 = vunpack.c.l.b16 %v1129
        %v1644 = vunpack.c.l.b16 %v1130
        %v1645 = vunpack.c.l.b16 %v1131
        %v1646 = vunpack.c.l.b16 %v1132
        %v1647 = vunpack.c.l.b16 %v1133
        %v1648 = vunpack.c.l.b16 %v1134
        %v1649 = vunpack.c.l.b16 %v1135
        %v1650 = vunpack.c.l.b16 %v1136
        %v1651 = vunpack.c.l.b16 %v1137
        %v1652 = vunpack.c.l.b16 %v1138
        %v1653 = vunpack.c.l.b16 %v1139
        %v1654 = vunpack.c.l.b16 %v1140
        %v1655 = vunpack.c.l.b16 %v1141
        %v1656 = vunpack.c.l.b16 %v1142
        %v1657 = vunpack.c.l.b16 %v1143
        %v1658 = vunpack.c.l.b16 %v1144
        %v1659 = vunpack.c.l.b16 %v1145
        %v1660 = vunpack.c.l.b16 %v1146
        %v1661 = vunpack.c.l.b16 %v1147
        %v1662 = vunpack.c.l.b16 %v1148
        %v1663 = vunpack.c.l.b16 %v1149
        %v1664 = vunpack.c.l.b16 %v1150
        %v1665 = vunpack.c.l.b16 %v1151
        %v1666 = vunpack.c.l.b16 %v1152
        %v1667 = vunpack.c.l.b16 %v1153
        %v1668 = vunpack.c.l.b16 %v1154
        %v1669 = vunpack.c.l.b16 %v1155
        %v1670 = vunpack.c.l.b16 %v1156
        %v1671 = vunpack.c.l.b16 %v1157
        %v1672 = vunpack.c.l.b16 %v1158
        %v1673 = vunpack.c.l.b16 %v1159
        %v1674 = vunpack.c.l.b16 %v1160
        %v1675 = vunpack.c.l.b16 %v1161
        %v1676 = vunpack.c.l.b16 %v1162
        %v1677 = vunpack.c.l.b16 %v1163
        %v1678 = vunpack.c.l.b16 %v1164
        %v1679 = vunpack.c.l.b16 %v1165
        %v1680 = vunpack.c.l.b16 %v1166
        %v1681 = vunpack.c.l.b16 %v1167
        %v1682 = vunpack.c.l.b16 %v1168
        %v1683 = vunpack.c.l.b16 %v1169
        %v1684 = vunpack.c.l.b16 %v1170
        %v1685 = vunpack.c.l.b16 %v1171
        %v1686 = vunpack.c.l.b16 %v1172
        %v1687 = vunpack.c.l.b16 %v1173
        %v1688 = vpack.c.b16 %v1625, %v1624
        %v1689 = vpack.c.b16 %v1627, %v1626
        %v1690 = vpack.c.b16 %v1629, %v1628
        %v1691 = vpack.c.b16 %v1631, %v1630
        %v1692 = vpack.c.b16 %v1633, %v1632
        %v1693 = vpack.c.b16 %v1635, %v1634
        %v1694 = vpack.c.b16 %v1637, %v1636
        %v1695 = vpack.c.b16 %v1639, %v1638
        %v1696 = vpack.c.b16 %v1641, %v1640
        %v1697 = vpack.c.b16 %v1643, %v1642
        %v1698 = vpack.c.b16 %v1645, %v1644
        %v1699 = vpack.c.b16 %v1647, %v1646
        %v1700 = vpack.c.b16 %v1649, %v1648
        %v1701 = vpack.c.b16 %v1651, %v1650
        %v1702 = vpack.c.b16 %v1653, %v1652
        %v1703 = vpack.c.b16 %v1655, %v1654
        %v1704 = vpack.c.b16 %v1657, %v1656
        %v1705 = vpack.c.b16 %v1659, %v1658
        %v1706 = vpack.c.b16 %v1661, %v1660
        %v1707 = vpack.c.b16 %v1663, %v1662
        %v1708 = vpack.c.b16 %v1665, %v1664
        %v1709 = vpack.c.b16 %v1667, %v1666
        %v1710 = vpack.c.b16 %v1669, %v1668
        %v1711 = vpack.c.b16 %v1671, %v1670
        %v1712 = vpack.c.b16 %v1673, %v1672
        %v1713 = vpack.c.b16 %v1675, %v1674
        %v1714 = vpack.c.b16 %v1677, %v1676
        %v1715 = vpack.c.b16 %v1679, %v1678
        %v1716 = vpack.c.b16 %v1681, %v1680
        %v1717 = vpack.c.b16 %v1683, %v1682
        %v1718 = vpack.c.b16 %v1685, %v1684
        %v1719 = vpack.c.b16 %v1687, %v1686
        %vm1720 = vcmask 130048
        %v1722 = vsel %vm1720, %v1688, 0
        %v1725 = vsel %vm1720, %v1689, 0
        %v1728 = vsel %vm1720, %v1690, 0
        %v1731 = vsel %vm1720, %v1691, 0
        %v1734 = vsel %vm1720, %v1692, 0
        %v1737 = vsel %vm1720, %v1693, 0
        %v1740 = vsel %vm1720, %v1694, 0
        %v1743 = vsel %vm1720, %v1695, 0
        %v1746 = vsel %vm1720, %v1696, 0
        %v1749 = vsel %vm1720, %v1697, 0
        %v1752 = vsel %vm1720, %v1698, 0
        %v1755 = vsel %vm1720, %v1699, 0
        %v1758 = vsel %vm1720, %v1700, 0
        %v1761 = vsel %vm1720, %v1701, 0
        %v1764 = vsel %vm1720, %v1702, 0
        %v1767 = vsel %vm1720, %v1703, 0
        %v1770 = vsel %vm1720, %v1704, 0
        %v1773 = vsel %vm1720, %v1705, 0
        %v1776 = vsel %vm1720, %v1706, 0
        %v1779 = vsel %vm1720, %v1707, 0
        %v1782 = vsel %vm1720, %v1708, 0
        %v1785 = vsel %vm1720, %v1709, 0
        %v1788 = vsel %vm1720, %v1710, 0
        %v1791 = vsel %vm1720, %v1711, 0
        %v1794 = vsel %vm1720, %v1712, 0
        %v1797 = vsel %vm1720, %v1713, 0
        %v1800 = vsel %vm1720, %v1714, 0
        %v1803 = vsel %vm1720, %v1715, 0
        %v1806 = vsel %vm1720, %v1716, 0
        %v1809 = vsel %vm1720, %v1717, 0
        %v1812 = vsel %vm1720, %v1718, 0
        %v1815 = vsel %vm1720, %v1719, 0
        %1817 = vmatprep.subr.bf16.mxu0 %v1175
        %1818 = vmatpush1.bf16.msra.mxu0 %v1174
        %1819 = vmatprep.subr.bf16.mxu0 0
        %1820 = vmatpush1.bf16.msra.mxu0 0
        %1821 = vmatprep.subr.bf16.mxu0 0
        %1822 = vmatpush1.bf16.msra.mxu0 0
        %1823 = vmatprep.subr.bf16.mxu0 0
        %1824 = vmatpush1.bf16.msra.mxu0 0
        %1825 = vmatprep.subr.bf16.mxu0 0
        %1826 = vmatpush1.bf16.msra.mxu0 0
        %1827 = vmatprep.subr.bf16.mxu0 0
        %1828 = vmatpush1.bf16.msra.mxu0 0
        %1829 = vmatprep.subr.bf16.mxu0 0
        %1830 = vmatpush1.bf16.msra.mxu0 0
        %1831 = vmatprep.subr.bf16.mxu0 0
        %1832 = vmatpush1.bf16.msra.mxu0 0
        %1833 = vmatprep.subr.bf16.mxu0 0
        %1834 = vmatpush1.bf16.msra.mxu0 0
        %1835 = vmatprep.subr.bf16.mxu0 0
        %1836 = vmatpush1.bf16.msra.mxu0 0
        %1837 = vmatprep.subr.bf16.mxu0 0
        %1838 = vmatpush1.bf16.msra.mxu0 0
        %1839 = vmatprep.subr.bf16.mxu0 0
        %1840 = vmatpush1.bf16.msra.mxu0 0
        %1841 = vmatprep.subr.bf16.mxu0 0
        %1842 = vmatpush1.bf16.msra.mxu0 0
        %1843 = vmatprep.subr.bf16.mxu0 0
        %1844 = vmatpush1.bf16.msra.mxu0 0
        %1845 = vmatprep.subr.bf16.mxu0 0
        %1846 = vmatpush1.bf16.msra.mxu0 0
        %1847 = vmatprep.subr.bf16.mxu0 0
        %1848 = vmatpush1.bf16.msra.mxu0 0
        %1849 = vmatprep.mubr.bf16.mxu0 0
        %1850 = vmatmul.mubr.bf16.gmra.mrb[0].mxu0 %v1722
        %v1851 = vpop.f32.mrb[0].mxu0
        %v1852 = vadd.f32 %v1243, %v1851
        %v1853 = vpop.f32.mrb[0].mxu0
        %v1854 = vadd.f32 %v1243, %v1853
        %v1855 = vpop.f32.mrb[0].mxu0
        %v1856 = vadd.f32 %v1248, %v1855
        %v1857 = vpop.f32.mrb[0].mxu0
        %v1858 = vadd.f32 %v1248, %v1857
        %1859 = vmatprep.mubr.bf16.mxu0 0
        %1860 = vmatmul.mubr.bf16.gmra.mrb[0].mxu0 %v1725
        %v1861 = vpop.f32.mrb[0].mxu0
        %v1862 = vadd.f32 %v1253, %v1861
        %v1863 = vpop.f32.mrb[0].mxu0
        %v1864 = vadd.f32 %v1253, %v1863
        %v1865 = vpop.f32.mrb[0].mxu0
        %v1866 = vadd.f32 %v1258, %v1865
        %v1867 = vpop.f32.mrb[0].mxu0
        %v1868 = vadd.f32 %v1258, %v1867
        %1869 = vmatprep.mubr.bf16.mxu0 0
        %1870 = vmatmul.mubr.bf16.gmra.mrb[0].mxu0 %v1728
        %v1871 = vpop.f32.mrb[0].mxu0
        %v1872 = vadd.f32 %v1263, %v1871
        %v1873 = vpop.f32.mrb[0].mxu0
        %v1874 = vadd.f32 %v1263, %v1873
        %v1875 = vpop.f32.mrb[0].mxu0
        %v1876 = vadd.f32 %v1268, %v1875
        %v1877 = vpop.f32.mrb[0].mxu0
        %v1878 = vadd.f32 %v1268, %v1877
        %1879 = vmatprep.mubr.bf16.mxu0 0
        %1880 = vmatmul.mubr.bf16.gmra.mrb[0].mxu0 %v1731
        %v1881 = vpop.f32.mrb[0].mxu0
        %v1882 = vadd.f32 %v1273, %v1881
        %v1883 = vpop.f32.mrb[0].mxu0
        %v1884 = vadd.f32 %v1273, %v1883
        %v1885 = vpop.f32.mrb[0].mxu0
        %v1886 = vadd.f32 %v1278, %v1885
        %v1887 = vpop.f32.mrb[0].mxu0
        %v1888 = vadd.f32 %v1278, %v1887
        %1889 = vmatprep.mubr.bf16.mxu0 0
        %1890 = vmatmul.mubr.bf16.gmra.mrb[0].mxu0 %v1734
        %v1891 = vpop.f32.mrb[0].mxu0
        %v1892 = vadd.f32 %v1283, %v1891
        %v1893 = vpop.f32.mrb[0].mxu0
        %v1894 = vadd.f32 %v1283, %v1893
        %v1895 = vpop.f32.mrb[0].mxu0
        %v1896 = vadd.f32 %v1288, %v1895
        %v1897 = vpop.f32.mrb[0].mxu0
        %v1898 = vadd.f32 %v1288, %v1897
        %1899 = vmatprep.mubr.bf16.mxu0 0
        %1900 = vmatmul.mubr.bf16.gmra.mrb[0].mxu0 %v1737
        %v1901 = vpop.f32.mrb[0].mxu0
        %v1902 = vadd.f32 %v1293, %v1901
        %v1903 = vpop.f32.mrb[0].mxu0
        %v1904 = vadd.f32 %v1293, %v1903
        %v1905 = vpop.f32.mrb[0].mxu0
        %v1906 = vadd.f32 %v1298, %v1905
        %v1907 = vpop.f32.mrb[0].mxu0
        %v1908 = vadd.f32 %v1298, %v1907
        %1909 = vmatprep.mubr.bf16.mxu0 0
        %1910 = vmatmul.mubr.bf16.gmra.mrb[0].mxu0 %v1740
        %v1911 = vpop.f32.mrb[0].mxu0
        %v1912 = vadd.f32 %v1303, %v1911
        %v1913 = vpop.f32.mrb[0].mxu0
        %v1914 = vadd.f32 %v1303, %v1913
        %v1915 = vpop.f32.mrb[0].mxu0
        %v1916 = vadd.f32 %v1308, %v1915
        %v1917 = vpop.f32.mrb[0].mxu0
        %v1918 = vadd.f32 %v1308, %v1917
        %1919 = vmatprep.mubr.bf16.mxu0 0
        %1920 = vmatmul.mubr.bf16.gmra.mrb[0].mxu0 %v1743
        %v1921 = vpop.f32.mrb[0].mxu0
        %v1922 = vadd.f32 %v1313, %v1921
        %v1923 = vpop.f32.mrb[0].mxu0
        %v1924 = vadd.f32 %v1313, %v1923
        %v1925 = vpop.f32.mrb[0].mxu0
        %v1926 = vadd.f32 %v1318, %v1925
        %v1927 = vpop.f32.mrb[0].mxu0
        %v1928 = vadd.f32 %v1318, %v1927
        %1929 = vmatprep.mubr.bf16.mxu0 0
        %1930 = vmatmul.mubr.bf16.gmra.mrb[0].mxu0 %v1746
        %v1931 = vpop.f32.mrb[0].mxu0
        %v1932 = vadd.f32 %v1323, %v1931
        %v1933 = vpop.f32.mrb[0].mxu0
        %v1934 = vadd.f32 %v1323, %v1933
        %v1935 = vpop.f32.mrb[0].mxu0
        %v1936 = vadd.f32 %v1328, %v1935
        %v1937 = vpop.f32.mrb[0].mxu0
        %v1938 = vadd.f32 %v1328, %v1937
        %1939 = vmatprep.mubr.bf16.mxu0 0
        %1940 = vmatmul.mubr.bf16.gmra.mrb[0].mxu0 %v1749
        %v1941 = vpop.f32.mrb[0].mxu0
        %v1942 = vadd.f32 %v1333, %v1941
        %v1943 = vpop.f32.mrb[0].mxu0
        %v1944 = vadd.f32 %v1333, %v1943
        %v1945 = vpop.f32.mrb[0].mxu0
        %v1946 = vadd.f32 %v1338, %v1945
        %v1947 = vpop.f32.mrb[0].mxu0
        %v1948 = vadd.f32 %v1338, %v1947
        %1949 = vmatprep.mubr.bf16.mxu0 0
        %1950 = vmatmul.mubr.bf16.gmra.mrb[0].mxu0 %v1752
        %v1951 = vpop.f32.mrb[0].mxu0
        %v1952 = vadd.f32 %v1343, %v1951
        %v1953 = vpop.f32.mrb[0].mxu0
        %v1954 = vadd.f32 %v1343, %v1953
        %v1955 = vpop.f32.mrb[0].mxu0
        %v1956 = vadd.f32 %v1348, %v1955
        %v1957 = vpop.f32.mrb[0].mxu0
        %v1958 = vadd.f32 %v1348, %v1957
        %1959 = vmatprep.mubr.bf16.mxu0 0
        %1960 = vmatmul.mubr.bf16.gmra.mrb[0].mxu0 %v1755
        %v1961 = vpop.f32.mrb[0].mxu0
        %v1962 = vadd.f32 %v1353, %v1961
        %v1963 = vpop.f32.mrb[0].mxu0
        %v1964 = vadd.f32 %v1353, %v1963
        %v1965 = vpop.f32.mrb[0].mxu0
        %v1966 = vadd.f32 %v1358, %v1965
        %v1967 = vpop.f32.mrb[0].mxu0
        %v1968 = vadd.f32 %v1358, %v1967
        %1969 = vmatprep.mubr.bf16.mxu0 0
        %1970 = vmatmul.mubr.bf16.gmra.mrb[0].mxu0 %v1758
        %v1971 = vpop.f32.mrb[0].mxu0
        %v1972 = vadd.f32 %v1363, %v1971
        %v1973 = vpop.f32.mrb[0].mxu0
        %v1974 = vadd.f32 %v1363, %v1973
        %v1975 = vpop.f32.mrb[0].mxu0
        %v1976 = vadd.f32 %v1368, %v1975
        %v1977 = vpop.f32.mrb[0].mxu0
        %v1978 = vadd.f32 %v1368, %v1977
        %1979 = vmatprep.mubr.bf16.mxu0 0
        %1980 = vmatmul.mubr.bf16.gmra.mrb[0].mxu0 %v1761
        %v1981 = vpop.f32.mrb[0].mxu0
        %v1982 = vadd.f32 %v1373, %v1981
        %v1983 = vpop.f32.mrb[0].mxu0
        %v1984 = vadd.f32 %v1373, %v1983
        %v1985 = vpop.f32.mrb[0].mxu0
        %v1986 = vadd.f32 %v1378, %v1985
        %v1987 = vpop.f32.mrb[0].mxu0
        %v1988 = vadd.f32 %v1378, %v1987
        %1989 = vmatprep.mubr.bf16.mxu0 0
        %1990 = vmatmul.mubr.bf16.gmra.mrb[0].mxu0 %v1764
        %v1991 = vpop.f32.mrb[0].mxu0
        %v1992 = vadd.f32 %v1383, %v1991
        %v1993 = vpop.f32.mrb[0].mxu0
        %v1994 = vadd.f32 %v1383, %v1993
        %v1995 = vpop.f32.mrb[0].mxu0
        %v1996 = vadd.f32 %v1388, %v1995
        %v1997 = vpop.f32.mrb[0].mxu0
        %v1998 = vadd.f32 %v1388, %v1997
        %1999 = vmatprep.mubr.bf16.mxu0 0
        %2000 = vmatmul.mubr.bf16.gmra.mrb[0].mxu0 %v1767
        %v2001 = vpop.f32.mrb[0].mxu0
        %v2002 = vadd.f32 %v1393, %v2001
        %v2003 = vpop.f32.mrb[0].mxu0
        %v2004 = vadd.f32 %v1393, %v2003
        %v2005 = vpop.f32.mrb[0].mxu0
        %v2006 = vadd.f32 %v1398, %v2005
        %v2007 = vpop.f32.mrb[0].mxu0
        %v2008 = vadd.f32 %v1398, %v2007
        %2009 = vmatprep.mubr.bf16.mxu0 0
        %2010 = vmatmul.mubr.bf16.gmra.mrb[0].mxu0 %v1770
        %v2011 = vpop.f32.mrb[0].mxu0
        %v2012 = vadd.f32 %v1403, %v2011
        %v2013 = vpop.f32.mrb[0].mxu0
        %v2014 = vadd.f32 %v1403, %v2013
        %v2015 = vpop.f32.mrb[0].mxu0
        %v2016 = vadd.f32 %v1408, %v2015
        %v2017 = vpop.f32.mrb[0].mxu0
        %v2018 = vadd.f32 %v1408, %v2017
        %2019 = vmatprep.mubr.bf16.mxu0 0
        %2020 = vmatmul.mubr.bf16.gmra.mrb[0].mxu0 %v1773
        %v2021 = vpop.f32.mrb[0].mxu0
        %v2022 = vadd.f32 %v1413, %v2021
        %v2023 = vpop.f32.mrb[0].mxu0
        %v2024 = vadd.f32 %v1413, %v2023
        %v2025 = vpop.f32.mrb[0].mxu0
        %v2026 = vadd.f32 %v1418, %v2025
        %v2027 = vpop.f32.mrb[0].mxu0
        %v2028 = vadd.f32 %v1418, %v2027
        %2029 = vmatprep.mubr.bf16.mxu0 0
        %2030 = vmatmul.mubr.bf16.gmra.mrb[0].mxu0 %v1776
        %v2031 = vpop.f32.mrb[0].mxu0
        %v2032 = vadd.f32 %v1423, %v2031
        %v2033 = vpop.f32.mrb[0].mxu0
        %v2034 = vadd.f32 %v1423, %v2033
        %v2035 = vpop.f32.mrb[0].mxu0
        %v2036 = vadd.f32 %v1428, %v2035
        %v2037 = vpop.f32.mrb[0].mxu0
        %v2038 = vadd.f32 %v1428, %v2037
        %2039 = vmatprep.mubr.bf16.mxu0 0
        %2040 = vmatmul.mubr.bf16.gmra.mrb[0].mxu0 %v1779
        %v2041 = vpop.f32.mrb[0].mxu0
        %v2042 = vadd.f32 %v1433, %v2041
        %v2043 = vpop.f32.mrb[0].mxu0
        %v2044 = vadd.f32 %v1433, %v2043
        %v2045 = vpop.f32.mrb[0].mxu0
        %v2046 = vadd.f32 %v1438, %v2045
        %v2047 = vpop.f32.mrb[0].mxu0
        %v2048 = vadd.f32 %v1438, %v2047
        %2049 = vmatprep.mubr.bf16.mxu0 0
        %2050 = vmatmul.mubr.bf16.gmra.mrb[0].mxu0 %v1782
        %v2051 = vpop.f32.mrb[0].mxu0
        %v2052 = vadd.f32 %v1443, %v2051
        %v2053 = vpop.f32.mrb[0].mxu0
        %v2054 = vadd.f32 %v1443, %v2053
        %v2055 = vpop.f32.mrb[0].mxu0
        %v2056 = vadd.f32 %v1448, %v2055
        %v2057 = vpop.f32.mrb[0].mxu0
        %v2058 = vadd.f32 %v1448, %v2057
        %2059 = vmatprep.mubr.bf16.mxu0 0
        %2060 = vmatmul.mubr.bf16.gmra.mrb[0].mxu0 %v1785
        %v2061 = vpop.f32.mrb[0].mxu0
        %v2062 = vadd.f32 %v1453, %v2061
        %v2063 = vpop.f32.mrb[0].mxu0
        %v2064 = vadd.f32 %v1453, %v2063
        %v2065 = vpop.f32.mrb[0].mxu0
        %v2066 = vadd.f32 %v1458, %v2065
        %v2067 = vpop.f32.mrb[0].mxu0
        %v2068 = vadd.f32 %v1458, %v2067
        %2069 = vmatprep.mubr.bf16.mxu0 0
        %2070 = vmatmul.mubr.bf16.gmra.mrb[0].mxu0 %v1788
        %v2071 = vpop.f32.mrb[0].mxu0
        %v2072 = vadd.f32 %v1463, %v2071
        %v2073 = vpop.f32.mrb[0].mxu0
        %v2074 = vadd.f32 %v1463, %v2073
        %v2075 = vpop.f32.mrb[0].mxu0
        %v2076 = vadd.f32 %v1468, %v2075
        %v2077 = vpop.f32.mrb[0].mxu0
        %v2078 = vadd.f32 %v1468, %v2077
        %2079 = vmatprep.mubr.bf16.mxu0 0
        %2080 = vmatmul.mubr.bf16.gmra.mrb[0].mxu0 %v1791
        %v2081 = vpop.f32.mrb[0].mxu0
        %v2082 = vadd.f32 %v1473, %v2081
        %v2083 = vpop.f32.mrb[0].mxu0
        %v2084 = vadd.f32 %v1473, %v2083
        %v2085 = vpop.f32.mrb[0].mxu0
        %v2086 = vadd.f32 %v1478, %v2085
        %v2087 = vpop.f32.mrb[0].mxu0
        %v2088 = vadd.f32 %v1478, %v2087
        %2089 = vmatprep.mubr.bf16.mxu0 0
        %2090 = vmatmul.mubr.bf16.gmra.mrb[0].mxu0 %v1794
        %v2091 = vpop.f32.mrb[0].mxu0
        %v2092 = vadd.f32 %v1483, %v2091
        %v2093 = vpop.f32.mrb[0].mxu0
        %v2094 = vadd.f32 %v1483, %v2093
        %v2095 = vpop.f32.mrb[0].mxu0
        %v2096 = vadd.f32 %v1488, %v2095
        %v2097 = vpop.f32.mrb[0].mxu0
        %v2098 = vadd.f32 %v1488, %v2097
        %2099 = vmatprep.mubr.bf16.mxu0 0
        %2100 = vmatmul.mubr.bf16.gmra.mrb[0].mxu0 %v1797
        %v2101 = vpop.f32.mrb[0].mxu0
        %v2102 = vadd.f32 %v1493, %v2101
        %v2103 = vpop.f32.mrb[0].mxu0
        %v2104 = vadd.f32 %v1493, %v2103
        %v2105 = vpop.f32.mrb[0].mxu0
        %v2106 = vadd.f32 %v1498, %v2105
        %v2107 = vpop.f32.mrb[0].mxu0
        %v2108 = vadd.f32 %v1498, %v2107
        %2109 = vmatprep.mubr.bf16.mxu0 0
        %2110 = vmatmul.mubr.bf16.gmra.mrb[0].mxu0 %v1800
        %v2111 = vpop.f32.mrb[0].mxu0
        %v2112 = vadd.f32 %v1503, %v2111
        %v2113 = vpop.f32.mrb[0].mxu0
        %v2114 = vadd.f32 %v1503, %v2113
        %v2115 = vpop.f32.mrb[0].mxu0
        %v2116 = vadd.f32 %v1508, %v2115
        %v2117 = vpop.f32.mrb[0].mxu0
        %v2118 = vadd.f32 %v1508, %v2117
        %2119 = vmatprep.mubr.bf16.mxu0 0
        %2120 = vmatmul.mubr.bf16.gmra.mrb[0].mxu0 %v1803
        %v2121 = vpop.f32.mrb[0].mxu0
        %v2122 = vadd.f32 %v1513, %v2121
        %v2123 = vpop.f32.mrb[0].mxu0
        %v2124 = vadd.f32 %v1513, %v2123
        %v2125 = vpop.f32.mrb[0].mxu0
        %v2126 = vadd.f32 %v1518, %v2125
        %v2127 = vpop.f32.mrb[0].mxu0
        %v2128 = vadd.f32 %v1518, %v2127
        %2129 = vmatprep.mubr.bf16.mxu0 0
        %2130 = vmatmul.mubr.bf16.gmra.mrb[0].mxu0 %v1806
        %v2131 = vpop.f32.mrb[0].mxu0
        %v2132 = vadd.f32 %v1523, %v2131
        %v2133 = vpop.f32.mrb[0].mxu0
        %v2134 = vadd.f32 %v1523, %v2133
        %v2135 = vpop.f32.mrb[0].mxu0
        %v2136 = vadd.f32 %v1528, %v2135
        %v2137 = vpop.f32.mrb[0].mxu0
        %v2138 = vadd.f32 %v1528, %v2137
        %2139 = vmatprep.mubr.bf16.mxu0 0
        %2140 = vmatmul.mubr.bf16.gmra.mrb[0].mxu0 %v1809
        %v2141 = vpop.f32.mrb[0].mxu0
        %v2142 = vadd.f32 %v1533, %v2141
        %v2143 = vpop.f32.mrb[0].mxu0
        %v2144 = vadd.f32 %v1533, %v2143
        %v2145 = vpop.f32.mrb[0].mxu0
        %v2146 = vadd.f32 %v1538, %v2145
        %v2147 = vpop.f32.mrb[0].mxu0
        %v2148 = vadd.f32 %v1538, %v2147
        %2149 = vmatprep.mubr.bf16.mxu0 0
        %2150 = vmatmul.mubr.bf16.gmra.mrb[0].mxu0 %v1812
        %v2151 = vpop.f32.mrb[0].mxu0
        %v2152 = vadd.f32 %v1543, %v2151
        %v2153 = vpop.f32.mrb[0].mxu0
        %v2154 = vadd.f32 %v1543, %v2153
        %v2155 = vpop.f32.mrb[0].mxu0
        %v2156 = vadd.f32 %v1548, %v2155
        %v2157 = vpop.f32.mrb[0].mxu0
        %v2158 = vadd.f32 %v1548, %v2157
        %2159 = vmatprep.mubr.bf16.mxu0 0
        %2160 = vmatmul.mubr.bf16.gmra.mrb[0].mxu0 %v1815
        %v2161 = vpop.f32.mrb[0].mxu0
        %v2162 = vadd.f32 %v1553, %v2161
        %v2163 = vpop.f32.mrb[0].mxu0
        %v2164 = vadd.f32 %v1553, %v2163
        %v2165 = vpop.f32.mrb[0].mxu0
        %v2166 = vadd.f32 %v1558, %v2165
        %v2167 = vpop.f32.mrb[0].mxu0
        %v2168 = vadd.f32 %v1558, %v2167
        %2169 = vdwg.mxu0
        %v2170 = vmul.f32 %v1852, 0.5
        %v2171 = vmul.f32 %v1854, 0.5
        %v2172 = vmul.f32 %v1856, 0.5
        %v2173 = vmul.f32 %v1858, 0.5
        %v2174 = vmul.f32 %v1862, 0.5
        %v2175 = vmul.f32 %v1864, 0.5
        %v2176 = vmul.f32 %v1866, 0.5
        %v2177 = vmul.f32 %v1868, 0.5
        %v2178 = vmul.f32 %v1872, 0.5
        %v2179 = vmul.f32 %v1874, 0.5
        %v2180 = vmul.f32 %v1876, 0.5
        %v2181 = vmul.f32 %v1878, 0.5
        %v2182 = vmul.f32 %v1882, 0.5
        %v2183 = vmul.f32 %v1884, 0.5
        %v2184 = vmul.f32 %v1886, 0.5
        %v2185 = vmul.f32 %v1888, 0.5
        %v2186 = vmul.f32 %v1892, 0.5
        %v2187 = vmul.f32 %v1894, 0.5
        %v2188 = vmul.f32 %v1896, 0.5
        %v2189 = vmul.f32 %v1898, 0.5
        %v2190 = vmul.f32 %v1902, 0.5
        %v2191 = vmul.f32 %v1904, 0.5
        %v2192 = vmul.f32 %v1906, 0.5
        %v2193 = vmul.f32 %v1908, 0.5
        %v2194 = vmul.f32 %v1912, 0.5
        %v2195 = vmul.f32 %v1914, 0.5
        %v2196 = vmul.f32 %v1916, 0.5
        %v2197 = vmul.f32 %v1918, 0.5
        %v2198 = vmul.f32 %v1922, 0.5
        %v2199 = vmul.f32 %v1924, 0.5
        %v2200 = vmul.f32 %v1926, 0.5
        %v2201 = vmul.f32 %v1928, 0.5
        %v2202 = vmul.f32 %v1932, 0.5
        %v2203 = vmul.f32 %v1934, 0.5
        %v2204 = vmul.f32 %v1936, 0.5
        %v2205 = vmul.f32 %v1938, 0.5
        %v2206 = vmul.f32 %v1942, 0.5
        %v2207 = vmul.f32 %v1944, 0.5
        %v2208 = vmul.f32 %v1946, 0.5
        %v2209 = vmul.f32 %v1948, 0.5
        %v2210 = vmul.f32 %v1952, 0.5
        %v2211 = vmul.f32 %v1954, 0.5
        %v2212 = vmul.f32 %v1956, 0.5
        %v2213 = vmul.f32 %v1958, 0.5
        %v2214 = vmul.f32 %v1962, 0.5
        %v2215 = vmul.f32 %v1964, 0.5
        %v2216 = vmul.f32 %v1966, 0.5
        %v2217 = vmul.f32 %v1968, 0.5
        %v2218 = vmul.f32 %v1972, 0.5
        %v2219 = vmul.f32 %v1974, 0.5
        %v2220 = vmul.f32 %v1976, 0.5
        %v2221 = vmul.f32 %v1978, 0.5
        %v2222 = vmul.f32 %v1982, 0.5
        %v2223 = vmul.f32 %v1984, 0.5
        %v2224 = vmul.f32 %v1986, 0.5
        %v2225 = vmul.f32 %v1988, 0.5
        %v2226 = vmul.f32 %v1992, 0.5
        %v2227 = vmul.f32 %v1994, 0.5
        %v2228 = vmul.f32 %v1996, 0.5
        %v2229 = vmul.f32 %v1998, 0.5
        %v2230 = vmul.f32 %v2002, 0.5
        %v2231 = vmul.f32 %v2004, 0.5
        %v2232 = vmul.f32 %v2006, 0.5
        %v2233 = vmul.f32 %v2008, 0.5
        %v2234 = vmul.f32 %v2012, 0.5
        %v2235 = vmul.f32 %v2014, 0.5
        %v2236 = vmul.f32 %v2016, 0.5
        %v2237 = vmul.f32 %v2018, 0.5
        %v2238 = vmul.f32 %v2022, 0.5
        %v2239 = vmul.f32 %v2024, 0.5
        %v2240 = vmul.f32 %v2026, 0.5
        %v2241 = vmul.f32 %v2028, 0.5
        %v2242 = vmul.f32 %v2032, 0.5
        %v2243 = vmul.f32 %v2034, 0.5
        %v2244 = vmul.f32 %v2036, 0.5
        %v2245 = vmul.f32 %v2038, 0.5
        %v2246 = vmul.f32 %v2042, 0.5
        %v2247 = vmul.f32 %v2044, 0.5
        %v2248 = vmul.f32 %v2046, 0.5
        %v2249 = vmul.f32 %v2048, 0.5
        %v2250 = vmul.f32 %v2052, 0.5
        %v2251 = vmul.f32 %v2054, 0.5
        %v2252 = vmul.f32 %v2056, 0.5
        %v2253 = vmul.f32 %v2058, 0.5
        %v2254 = vmul.f32 %v2062, 0.5
        %v2255 = vmul.f32 %v2064, 0.5
        %v2256 = vmul.f32 %v2066, 0.5
        %v2257 = vmul.f32 %v2068, 0.5
        %v2258 = vmul.f32 %v2072, 0.5
        %v2259 = vmul.f32 %v2074, 0.5
        %v2260 = vmul.f32 %v2076, 0.5
        %v2261 = vmul.f32 %v2078, 0.5
        %v2262 = vmul.f32 %v2082, 0.5
        %v2263 = vmul.f32 %v2084, 0.5
        %v2264 = vmul.f32 %v2086, 0.5
        %v2265 = vmul.f32 %v2088, 0.5
        %v2266 = vmul.f32 %v2092, 0.5
        %v2267 = vmul.f32 %v2094, 0.5
        %v2268 = vmul.f32 %v2096, 0.5
        %v2269 = vmul.f32 %v2098, 0.5
        %v2270 = vmul.f32 %v2102, 0.5
        %v2271 = vmul.f32 %v2104, 0.5
        %v2272 = vmul.f32 %v2106, 0.5
        %v2273 = vmul.f32 %v2108, 0.5
        %v2274 = vmul.f32 %v2112, 0.5
        %v2275 = vmul.f32 %v2114, 0.5
        %v2276 = vmul.f32 %v2116, 0.5
        %v2277 = vmul.f32 %v2118, 0.5
        %v2278 = vmul.f32 %v2122, 0.5
        %v2279 = vmul.f32 %v2124, 0.5
        %v2280 = vmul.f32 %v2126, 0.5
        %v2281 = vmul.f32 %v2128, 0.5
        %v2282 = vmul.f32 %v2132, 0.5
        %v2283 = vmul.f32 %v2134, 0.5
        %v2284 = vmul.f32 %v2136, 0.5
        %v2285 = vmul.f32 %v2138, 0.5
        %v2286 = vmul.f32 %v2142, 0.5
        %v2287 = vmul.f32 %v2144, 0.5
        %v2288 = vmul.f32 %v2146, 0.5
        %v2289 = vmul.f32 %v2148, 0.5
        %v2290 = vmul.f32 %v2152, 0.5
        %v2291 = vmul.f32 %v2154, 0.5
        %v2292 = vmul.f32 %v2156, 0.5
        %v2293 = vmul.f32 %v2158, 0.5
        %v2294 = vmul.f32 %v2162, 0.5
        %v2295 = vmul.f32 %v2164, 0.5
        %v2296 = vmul.f32 %v2166, 0.5
        %v2297 = vmul.f32 %v2168, 0.5
        %v2298 = vmul.f32 %v1852, 0.70710677
        %v2299 = vmul.f32 %v1854, 0.70710677
        %v2300 = vmul.f32 %v1856, 0.70710677
        %v2301 = vmul.f32 %v1858, 0.70710677
        %v2302 = vmul.f32 %v1862, 0.70710677
        %v2303 = vmul.f32 %v1864, 0.70710677
        %v2304 = vmul.f32 %v1866, 0.70710677
        %v2305 = vmul.f32 %v1868, 0.70710677
        %v2306 = vmul.f32 %v1872, 0.70710677
        %v2307 = vmul.f32 %v1874, 0.70710677
        %v2308 = vmul.f32 %v1876, 0.70710677
        %v2309 = vmul.f32 %v1878, 0.70710677
        %v2310 = vmul.f32 %v1882, 0.70710677
        %v2311 = vmul.f32 %v1884, 0.70710677
        %v2312 = vmul.f32 %v1886, 0.70710677
        %v2313 = vmul.f32 %v1888, 0.70710677
        %v2314 = vmul.f32 %v1892, 0.70710677
        %v2315 = vmul.f32 %v1894, 0.70710677
        %v2316 = vmul.f32 %v1896, 0.70710677
        %v2317 = vmul.f32 %v1898, 0.70710677
        %v2318 = vmul.f32 %v1902, 0.70710677
        %v2319 = vmul.f32 %v1904, 0.70710677
        %v2320 = vmul.f32 %v1906, 0.70710677
        %v2321 = vmul.f32 %v1908, 0.70710677
        %v2322 = vmul.f32 %v1912, 0.70710677
        %v2323 = vmul.f32 %v1914, 0.70710677
        %v2324 = vmul.f32 %v1916, 0.70710677
        %v2325 = vmul.f32 %v1918, 0.70710677
        %v2326 = vmul.f32 %v1922, 0.70710677
        %v2327 = vmul.f32 %v1924, 0.70710677
        %v2328 = vmul.f32 %v1926, 0.70710677
        %v2329 = vmul.f32 %v1928, 0.70710677
        %v2330 = vmul.f32 %v1932, 0.70710677
        %v2331 = vmul.f32 %v1934, 0.70710677
        %v2332 = vmul.f32 %v1936, 0.70710677
        %v2333 = vmul.f32 %v1938, 0.70710677
        %v2334 = vmul.f32 %v1942, 0.70710677
        %v2335 = vmul.f32 %v1944, 0.70710677
        %v2336 = vmul.f32 %v1946, 0.70710677
        %v2337 = vmul.f32 %v1948, 0.70710677
        %v2338 = vmul.f32 %v1952, 0.70710677
        %v2339 = vmul.f32 %v1954, 0.70710677
        %v2340 = vmul.f32 %v1956, 0.70710677
        %v2341 = vmul.f32 %v1958, 0.70710677
        %v2342 = vmul.f32 %v1962, 0.70710677
        %v2343 = vmul.f32 %v1964, 0.70710677
        %v2344 = vmul.f32 %v1966, 0.70710677
        %v2345 = vmul.f32 %v1968, 0.70710677
        %v2346 = vmul.f32 %v1972, 0.70710677
        %v2347 = vmul.f32 %v1974, 0.70710677
        %v2348 = vmul.f32 %v1976, 0.70710677
        %v2349 = vmul.f32 %v1978, 0.70710677
        %v2350 = vmul.f32 %v1982, 0.70710677
        %v2351 = vmul.f32 %v1984, 0.70710677
        %v2352 = vmul.f32 %v1986, 0.70710677
        %v2353 = vmul.f32 %v1988, 0.70710677
        %v2354 = vmul.f32 %v1992, 0.70710677
        %v2355 = vmul.f32 %v1994, 0.70710677
        %v2356 = vmul.f32 %v1996, 0.70710677
        %v2357 = vmul.f32 %v1998, 0.70710677
        %v2358 = vmul.f32 %v2002, 0.70710677
        %v2359 = vmul.f32 %v2004, 0.70710677
        %v2360 = vmul.f32 %v2006, 0.70710677
        %v2361 = vmul.f32 %v2008, 0.70710677
        %v2362 = vmul.f32 %v2012, 0.70710677
        %v2363 = vmul.f32 %v2014, 0.70710677
        %v2364 = vmul.f32 %v2016, 0.70710677
        %v2365 = vmul.f32 %v2018, 0.70710677
        %v2366 = vmul.f32 %v2022, 0.70710677
        %v2367 = vmul.f32 %v2024, 0.70710677
        %v2368 = vmul.f32 %v2026, 0.70710677
        %v2369 = vmul.f32 %v2028, 0.70710677
        %v2370 = vmul.f32 %v2032, 0.70710677
        %v2371 = vmul.f32 %v2034, 0.70710677
        %v2372 = vmul.f32 %v2036, 0.70710677
        %v2373 = vmul.f32 %v2038, 0.70710677
        %v2374 = vmul.f32 %v2042, 0.70710677
        %v2375 = vmul.f32 %v2044, 0.70710677
        %v2376 = vmul.f32 %v2046, 0.70710677
        %v2377 = vmul.f32 %v2048, 0.70710677
        %v2378 = vmul.f32 %v2052, 0.70710677
        %v2379 = vmul.f32 %v2054, 0.70710677
        %v2380 = vmul.f32 %v2056, 0.70710677
        %v2381 = vmul.f32 %v2058, 0.70710677
        %v2382 = vmul.f32 %v2062, 0.70710677
        %v2383 = vmul.f32 %v2064, 0.70710677
        %v2384 = vmul.f32 %v2066, 0.70710677
        %v2385 = vmul.f32 %v2068, 0.70710677
        %v2386 = vmul.f32 %v2072, 0.70710677
        %v2387 = vmul.f32 %v2074, 0.70710677
        %v2388 = vmul.f32 %v2076, 0.70710677
        %v2389 = vmul.f32 %v2078, 0.70710677
        %v2390 = vmul.f32 %v2082, 0.70710677
        %v2391 = vmul.f32 %v2084, 0.70710677
        %v2392 = vmul.f32 %v2086, 0.70710677
        %v2393 = vmul.f32 %v2088, 0.70710677
        %v2394 = vmul.f32 %v2092, 0.70710677
        %v2395 = vmul.f32 %v2094, 0.70710677
        %v2396 = vmul.f32 %v2096, 0.70710677
        %v2397 = vmul.f32 %v2098, 0.70710677
        %v2398 = vmul.f32 %v2102, 0.70710677
        %v2399 = vmul.f32 %v2104, 0.70710677
        %v2400 = vmul.f32 %v2106, 0.70710677
        %v2401 = vmul.f32 %v2108, 0.70710677
        %v2402 = vmul.f32 %v2112, 0.70710677
        %v2403 = vmul.f32 %v2114, 0.70710677
        %v2404 = vmul.f32 %v2116, 0.70710677
        %v2405 = vmul.f32 %v2118, 0.70710677
        %v2406 = vmul.f32 %v2122, 0.70710677
        %v2407 = vmul.f32 %v2124, 0.70710677
        %v2408 = vmul.f32 %v2126, 0.70710677
        %v2409 = vmul.f32 %v2128, 0.70710677
        %v2410 = vmul.f32 %v2132, 0.70710677
        %v2411 = vmul.f32 %v2134, 0.70710677
        %v2412 = vmul.f32 %v2136, 0.70710677
        %v2413 = vmul.f32 %v2138, 0.70710677
        %v2414 = vmul.f32 %v2142, 0.70710677
        %v2415 = vmul.f32 %v2144, 0.70710677
        %v2416 = vmul.f32 %v2146, 0.70710677
        %v2417 = vmul.f32 %v2148, 0.70710677
        %v2418 = vmul.f32 %v2152, 0.70710677
        %v2419 = vmul.f32 %v2154, 0.70710677
        %v2420 = vmul.f32 %v2156, 0.70710677
        %v2421 = vmul.f32 %v2158, 0.70710677
        %v2422 = vmul.f32 %v2162, 0.70710677
        %v2423 = vmul.f32 %v2164, 0.70710677
        %v2424 = vmul.f32 %v2166, 0.70710677
        %v2425 = vmul.f32 %v2168, 0.70710677
        %vm2426 = vcmp.ge.f32.partialorder %v2298, 0.0
        %vm2427 = vcmp.ge.f32.partialorder %v2299, 0.0
        %vm2428 = vcmp.ge.f32.partialorder %v2300, 0.0
        %vm2429 = vcmp.ge.f32.partialorder %v2301, 0.0
        %vm2430 = vcmp.ge.f32.partialorder %v2302, 0.0
        %vm2431 = vcmp.ge.f32.partialorder %v2303, 0.0
        %vm2432 = vcmp.ge.f32.partialorder %v2304, 0.0
        %vm2433 = vcmp.ge.f32.partialorder %v2305, 0.0
        %vm2434 = vcmp.ge.f32.partialorder %v2306, 0.0
        %vm2435 = vcmp.ge.f32.partialorder %v2307, 0.0
        %vm2436 = vcmp.ge.f32.partialorder %v2308, 0.0
        %vm2437 = vcmp.ge.f32.partialorder %v2309, 0.0
        %vm2438 = vcmp.ge.f32.partialorder %v2310, 0.0
        %vm2439 = vcmp.ge.f32.partialorder %v2311, 0.0
        %vm2440 = vcmp.ge.f32.partialorder %v2312, 0.0
        %vm2441 = vcmp.ge.f32.partialorder %v2313, 0.0
        %vm2442 = vcmp.ge.f32.partialorder %v2314, 0.0
        %vm2443 = vcmp.ge.f32.partialorder %v2315, 0.0
        %vm2444 = vcmp.ge.f32.partialorder %v2316, 0.0
        %vm2445 = vcmp.ge.f32.partialorder %v2317, 0.0
        %vm2446 = vcmp.ge.f32.partialorder %v2318, 0.0
        %vm2447 = vcmp.ge.f32.partialorder %v2319, 0.0
        %vm2448 = vcmp.ge.f32.partialorder %v2320, 0.0
        %vm2449 = vcmp.ge.f32.partialorder %v2321, 0.0
        %vm2450 = vcmp.ge.f32.partialorder %v2322, 0.0
        %vm2451 = vcmp.ge.f32.partialorder %v2323, 0.0
        %vm2452 = vcmp.ge.f32.partialorder %v2324, 0.0
        %vm2453 = vcmp.ge.f32.partialorder %v2325, 0.0
        %vm2454 = vcmp.ge.f32.partialorder %v2326, 0.0
        %vm2455 = vcmp.ge.f32.partialorder %v2327, 0.0
        %vm2456 = vcmp.ge.f32.partialorder %v2328, 0.0
        %vm2457 = vcmp.ge.f32.partialorder %v2329, 0.0
        %vm2458 = vcmp.ge.f32.partialorder %v2330, 0.0
        %vm2459 = vcmp.ge.f32.partialorder %v2331, 0.0
        %vm2460 = vcmp.ge.f32.partialorder %v2332, 0.0
        %vm2461 = vcmp.ge.f32.partialorder %v2333, 0.0
        %vm2462 = vcmp.ge.f32.partialorder %v2334, 0.0
        %vm2463 = vcmp.ge.f32.partialorder %v2335, 0.0
        %vm2464 = vcmp.ge.f32.partialorder %v2336, 0.0
        %vm2465 = vcmp.ge.f32.partialorder %v2337, 0.0
        %vm2466 = vcmp.ge.f32.partialorder %v2338, 0.0
        %vm2467 = vcmp.ge.f32.partialorder %v2339, 0.0
        %vm2468 = vcmp.ge.f32.partialorder %v2340, 0.0
        %vm2469 = vcmp.ge.f32.partialorder %v2341, 0.0
        %vm2470 = vcmp.ge.f32.partialorder %v2342, 0.0
        %vm2471 = vcmp.ge.f32.partialorder %v2343, 0.0
        %vm2472 = vcmp.ge.f32.partialorder %v2344, 0.0
        %vm2473 = vcmp.ge.f32.partialorder %v2345, 0.0
        %vm2474 = vcmp.ge.f32.partialorder %v2346, 0.0
        %vm2475 = vcmp.ge.f32.partialorder %v2347, 0.0
        %vm2476 = vcmp.ge.f32.partialorder %v2348, 0.0
        %vm2477 = vcmp.ge.f32.partialorder %v2349, 0.0
        %vm2478 = vcmp.ge.f32.partialorder %v2350, 0.0
        %vm2479 = vcmp.ge.f32.partialorder %v2351, 0.0
        %vm2480 = vcmp.ge.f32.partialorder %v2352, 0.0
        %vm2481 = vcmp.ge.f32.partialorder %v2353, 0.0
        %vm2482 = vcmp.ge.f32.partialorder %v2354, 0.0
        %vm2483 = vcmp.ge.f32.partialorder %v2355, 0.0
        %vm2484 = vcmp.ge.f32.partialorder %v2356, 0.0
        %vm2485 = vcmp.ge.f32.partialorder %v2357, 0.0
        %vm2486 = vcmp.ge.f32.partialorder %v2358, 0.0
        %vm2487 = vcmp.ge.f32.partialorder %v2359, 0.0
        %vm2488 = vcmp.ge.f32.partialorder %v2360, 0.0
        %vm2489 = vcmp.ge.f32.partialorder %v2361, 0.0
        %vm2490 = vcmp.ge.f32.partialorder %v2362, 0.0
        %vm2491 = vcmp.ge.f32.partialorder %v2363, 0.0
        %vm2492 = vcmp.ge.f32.partialorder %v2364, 0.0
        %vm2493 = vcmp.ge.f32.partialorder %v2365, 0.0
        %vm2494 = vcmp.ge.f32.partialorder %v2366, 0.0
        %vm2495 = vcmp.ge.f32.partialorder %v2367, 0.0
        %vm2496 = vcmp.ge.f32.partialorder %v2368, 0.0
        %vm2497 = vcmp.ge.f32.partialorder %v2369, 0.0
        %vm2498 = vcmp.ge.f32.partialorder %v2370, 0.0
        %vm2499 = vcmp.ge.f32.partialorder %v2371, 0.0
        %vm2500 = vcmp.ge.f32.partialorder %v2372, 0.0
        %vm2501 = vcmp.ge.f32.partialorder %v2373, 0.0
        %vm2502 = vcmp.ge.f32.partialorder %v2374, 0.0
        %vm2503 = vcmp.ge.f32.partialorder %v2375, 0.0
        %vm2504 = vcmp.ge.f32.partialorder %v2376, 0.0
        %vm2505 = vcmp.ge.f32.partialorder %v2377, 0.0
        %vm2506 = vcmp.ge.f32.partialorder %v2378, 0.0
        %vm2507 = vcmp.ge.f32.partialorder %v2379, 0.0
        %vm2508 = vcmp.ge.f32.partialorder %v2380, 0.0
        %vm2509 = vcmp.ge.f32.partialorder %v2381, 0.0
        %vm2510 = vcmp.ge.f32.partialorder %v2382, 0.0
        %vm2511 = vcmp.ge.f32.partialorder %v2383, 0.0
        %vm2512 = vcmp.ge.f32.partialorder %v2384, 0.0
        %vm2513 = vcmp.ge.f32.partialorder %v2385, 0.0
        %vm2514 = vcmp.ge.f32.partialorder %v2386, 0.0
        %vm2515 = vcmp.ge.f32.partialorder %v2387, 0.0
        %vm2516 = vcmp.ge.f32.partialorder %v2388, 0.0
        %vm2517 = vcmp.ge.f32.partialorder %v2389, 0.0
        %vm2518 = vcmp.ge.f32.partialorder %v2390, 0.0
        %vm2519 = vcmp.ge.f32.partialorder %v2391, 0.0
        %vm2520 = vcmp.ge.f32.partialorder %v2392, 0.0
        %vm2521 = vcmp.ge.f32.partialorder %v2393, 0.0
        %vm2522 = vcmp.ge.f32.partialorder %v2394, 0.0
        %vm2523 = vcmp.ge.f32.partialorder %v2395, 0.0
        %vm2524 = vcmp.ge.f32.partialorder %v2396, 0.0
        %vm2525 = vcmp.ge.f32.partialorder %v2397, 0.0
        %vm2526 = vcmp.ge.f32.partialorder %v2398, 0.0
        %vm2527 = vcmp.ge.f32.partialorder %v2399, 0.0
        %vm2528 = vcmp.ge.f32.partialorder %v2400, 0.0
        %vm2529 = vcmp.ge.f32.partialorder %v2401, 0.0
        %vm2530 = vcmp.ge.f32.partialorder %v2402, 0.0
        %vm2531 = vcmp.ge.f32.partialorder %v2403, 0.0
        %vm2532 = vcmp.ge.f32.partialorder %v2404, 0.0
        %vm2533 = vcmp.ge.f32.partialorder %v2405, 0.0
        %vm2534 = vcmp.ge.f32.partialorder %v2406, 0.0
        %vm2535 = vcmp.ge.f32.partialorder %v2407, 0.0
        %vm2536 = vcmp.ge.f32.partialorder %v2408, 0.0
        %vm2537 = vcmp.ge.f32.partialorder %v2409, 0.0
        %vm2538 = vcmp.ge.f32.partialorder %v2410, 0.0
        %vm2539 = vcmp.ge.f32.partialorder %v2411, 0.0
        %vm2540 = vcmp.ge.f32.partialorder %v2412, 0.0
        %vm2541 = vcmp.ge.f32.partialorder %v2413, 0.0
        %vm2542 = vcmp.ge.f32.partialorder %v2414, 0.0
        %vm2543 = vcmp.ge.f32.partialorder %v2415, 0.0
        %vm2544 = vcmp.ge.f32.partialorder %v2416, 0.0
        %vm2545 = vcmp.ge.f32.partialorder %v2417, 0.0
        %vm2546 = vcmp.ge.f32.partialorder %v2418, 0.0
        %vm2547 = vcmp.ge.f32.partialorder %v2419, 0.0
        %vm2548 = vcmp.ge.f32.partialorder %v2420, 0.0
        %vm2549 = vcmp.ge.f32.partialorder %v2421, 0.0
        %vm2550 = vcmp.ge.f32.partialorder %v2422, 0.0
        %vm2551 = vcmp.ge.f32.partialorder %v2423, 0.0
        %vm2552 = vcmp.ge.f32.partialorder %v2424, 0.0
        %vm2553 = vcmp.ge.f32.partialorder %v2425, 0.0
        %v2554 = vsel %vm2426, 1.0, -1.0
        %v2555 = vsel %vm2427, 1.0, -1.0
        %v2556 = vsel %vm2428, 1.0, -1.0
        %v2557 = vsel %vm2429, 1.0, -1.0
        %v2558 = vsel %vm2430, 1.0, -1.0
        %v2559 = vsel %vm2431, 1.0, -1.0
        %v2560 = vsel %vm2432, 1.0, -1.0
        %v2561 = vsel %vm2433, 1.0, -1.0
        %v2562 = vsel %vm2434, 1.0, -1.0
        %v2563 = vsel %vm2435, 1.0, -1.0
        %v2564 = vsel %vm2436, 1.0, -1.0
        %v2565 = vsel %vm2437, 1.0, -1.0
        %v2566 = vsel %vm2438, 1.0, -1.0
        %v2567 = vsel %vm2439, 1.0, -1.0
        %v2568 = vsel %vm2440, 1.0, -1.0
        %v2569 = vsel %vm2441, 1.0, -1.0
        %v2570 = vsel %vm2442, 1.0, -1.0
        %v2571 = vsel %vm2443, 1.0, -1.0
        %v2572 = vsel %vm2444, 1.0, -1.0
        %v2573 = vsel %vm2445, 1.0, -1.0
        %v2574 = vsel %vm2446, 1.0, -1.0
        %v2575 = vsel %vm2447, 1.0, -1.0
        %v2576 = vsel %vm2448, 1.0, -1.0
        %v2577 = vsel %vm2449, 1.0, -1.0
        %v2578 = vsel %vm2450, 1.0, -1.0
        %v2579 = vsel %vm2451, 1.0, -1.0
        %v2580 = vsel %vm2452, 1.0, -1.0
        %v2581 = vsel %vm2453, 1.0, -1.0
        %v2582 = vsel %vm2454, 1.0, -1.0
        %v2583 = vsel %vm2455, 1.0, -1.0
        %v2584 = vsel %vm2456, 1.0, -1.0
        %v2585 = vsel %vm2457, 1.0, -1.0
        %v2586 = vsel %vm2458, 1.0, -1.0
        %v2587 = vsel %vm2459, 1.0, -1.0
        %v2588 = vsel %vm2460, 1.0, -1.0
        %v2589 = vsel %vm2461, 1.0, -1.0
        %v2590 = vsel %vm2462, 1.0, -1.0
        %v2591 = vsel %vm2463, 1.0, -1.0
        %v2592 = vsel %vm2464, 1.0, -1.0
        %v2593 = vsel %vm2465, 1.0, -1.0
        %v2594 = vsel %vm2466, 1.0, -1.0
        %v2595 = vsel %vm2467, 1.0, -1.0
        %v2596 = vsel %vm2468, 1.0, -1.0
        %v2597 = vsel %vm2469, 1.0, -1.0
        %v2598 = vsel %vm2470, 1.0, -1.0
        %v2599 = vsel %vm2471, 1.0, -1.0
        %v2600 = vsel %vm2472, 1.0, -1.0
        %v2601 = vsel %vm2473, 1.0, -1.0
        %v2602 = vsel %vm2474, 1.0, -1.0
        %v2603 = vsel %vm2475, 1.0, -1.0
        %v2604 = vsel %vm2476, 1.0, -1.0
        %v2605 = vsel %vm2477, 1.0, -1.0
        %v2606 = vsel %vm2478, 1.0, -1.0
        %v2607 = vsel %vm2479, 1.0, -1.0
        %v2608 = vsel %vm2480, 1.0, -1.0
        %v2609 = vsel %vm2481, 1.0, -1.0
        %v2610 = vsel %vm2482, 1.0, -1.0
        %v2611 = vsel %vm2483, 1.0, -1.0
        %v2612 = vsel %vm2484, 1.0, -1.0
        %v2613 = vsel %vm2485, 1.0, -1.0
        %v2614 = vsel %vm2486, 1.0, -1.0
        %v2615 = vsel %vm2487, 1.0, -1.0
        %v2616 = vsel %vm2488, 1.0, -1.0
        %v2617 = vsel %vm2489, 1.0, -1.0
        %v2618 = vsel %vm2490, 1.0, -1.0
        %v2619 = vsel %vm2491, 1.0, -1.0
        %v2620 = vsel %vm2492, 1.0, -1.0
        %v2621 = vsel %vm2493, 1.0, -1.0
        %v2622 = vsel %vm2494, 1.0, -1.0
        %v2623 = vsel %vm2495, 1.0, -1.0
        %v2624 = vsel %vm2496, 1.0, -1.0
        %v2625 = vsel %vm2497, 1.0, -1.0
        %v2626 = vsel %vm2498, 1.0, -1.0
        %v2627 = vsel %vm2499, 1.0, -1.0
        %v2628 = vsel %vm2500, 1.0, -1.0
        %v2629 = vsel %vm2501, 1.0, -1.0
        %v2630 = vsel %vm2502, 1.0, -1.0
        %v2631 = vsel %vm2503, 1.0, -1.0
        %v2632 = vsel %vm2504, 1.0, -1.0
        %v2633 = vsel %vm2505, 1.0, -1.0
        %v2634 = vsel %vm2506, 1.0, -1.0
        %v2635 = vsel %vm2507, 1.0, -1.0
        %v2636 = vsel %vm2508, 1.0, -1.0
        %v2637 = vsel %vm2509, 1.0, -1.0
        %v2638 = vsel %vm2510, 1.0, -1.0
        %v2639 = vsel %vm2511, 1.0, -1.0
        %v2640 = vsel %vm2512, 1.0, -1.0
        %v2641 = vsel %vm2513, 1.0, -1.0
        %v2642 = vsel %vm2514, 1.0, -1.0
        %v2643 = vsel %vm2515, 1.0, -1.0
        %v2644 = vsel %vm2516, 1.0, -1.0
        %v2645 = vsel %vm2517, 1.0, -1.0
        %v2646 = vsel %vm2518, 1.0, -1.0
        %v2647 = vsel %vm2519, 1.0, -1.0
        %v2648 = vsel %vm2520, 1.0, -1.0
        %v2649 = vsel %vm2521, 1.0, -1.0
        %v2650 = vsel %vm2522, 1.0, -1.0
        %v2651 = vsel %vm2523, 1.0, -1.0
        %v2652 = vsel %vm2524, 1.0, -1.0
        %v2653 = vsel %vm2525, 1.0, -1.0
        %v2654 = vsel %vm2526, 1.0, -1.0
        %v2655 = vsel %vm2527, 1.0, -1.0
        %v2656 = vsel %vm2528, 1.0, -1.0
        %v2657 = vsel %vm2529, 1.0, -1.0
        %v2658 = vsel %vm2530, 1.0, -1.0
        %v2659 = vsel %vm2531, 1.0, -1.0
        %v2660 = vsel %vm2532, 1.0, -1.0
        %v2661 = vsel %vm2533, 1.0, -1.0
        %v2662 = vsel %vm2534, 1.0, -1.0
        %v2663 = vsel %vm2535, 1.0, -1.0
        %v2664 = vsel %vm2536, 1.0, -1.0
        %v2665 = vsel %vm2537, 1.0, -1.0
        %v2666 = vsel %vm2538, 1.0, -1.0
        %v2667 = vsel %vm2539, 1.0, -1.0
        %v2668 = vsel %vm2540, 1.0, -1.0
        %v2669 = vsel %vm2541, 1.0, -1.0
        %v2670 = vsel %vm2542, 1.0, -1.0
        %v2671 = vsel %vm2543, 1.0, -1.0
        %v2672 = vsel %vm2544, 1.0, -1.0
        %v2673 = vsel %vm2545, 1.0, -1.0
        %v2674 = vsel %vm2546, 1.0, -1.0
        %v2675 = vsel %vm2547, 1.0, -1.0
        %v2676 = vsel %vm2548, 1.0, -1.0
        %v2677 = vsel %vm2549, 1.0, -1.0
        %v2678 = vsel %vm2550, 1.0, -1.0
        %v2679 = vsel %vm2551, 1.0, -1.0
        %v2680 = vsel %vm2552, 1.0, -1.0
        %v2681 = vsel %vm2553, 1.0, -1.0
        %v2682 = vand.u32 2147483647, %v2298
        %v2683 = vand.u32 2147483647, %v2299
        %v2684 = vand.u32 2147483647, %v2300
        %v2685 = vand.u32 2147483647, %v2301
        %v2686 = vand.u32 2147483647, %v2302
        %v2687 = vand.u32 2147483647, %v2303
        %v2688 = vand.u32 2147483647, %v2304
        %v2689 = vand.u32 2147483647, %v2305
        %v2690 = vand.u32 2147483647, %v2306
        %v2691 = vand.u32 2147483647, %v2307
        %v2692 = vand.u32 2147483647, %v2308
        %v2693 = vand.u32 2147483647, %v2309
        %v2694 = vand.u32 2147483647, %v2310
        %v2695 = vand.u32 2147483647, %v2311
        %v2696 = vand.u32 2147483647, %v2312
        %v2697 = vand.u32 2147483647, %v2313
        %v2698 = vand.u32 2147483647, %v2314
        %v2699 = vand.u32 2147483647, %v2315
        %v2700 = vand.u32 2147483647, %v2316
        %v2701 = vand.u32 2147483647, %v2317
        %v2702 = vand.u32 2147483647, %v2318
        %v2703 = vand.u32 2147483647, %v2319
        %v2704 = vand.u32 2147483647, %v2320
        %v2705 = vand.u32 2147483647, %v2321
        %v2706 = vand.u32 2147483647, %v2322
        %v2707 = vand.u32 2147483647, %v2323
        %v2708 = vand.u32 2147483647, %v2324
        %v2709 = vand.u32 2147483647, %v2325
        %v2710 = vand.u32 2147483647, %v2326
        %v2711 = vand.u32 2147483647, %v2327
        %v2712 = vand.u32 2147483647, %v2328
        %v2713 = vand.u32 2147483647, %v2329
        %v2714 = vand.u32 2147483647, %v2330
        %v2715 = vand.u32 2147483647, %v2331
        %v2716 = vand.u32 2147483647, %v2332
        %v2717 = vand.u32 2147483647, %v2333
        %v2718 = vand.u32 2147483647, %v2334
        %v2719 = vand.u32 2147483647, %v2335
        %v2720 = vand.u32 2147483647, %v2336
        %v2721 = vand.u32 2147483647, %v2337
        %v2722 = vand.u32 2147483647, %v2338
        %v2723 = vand.u32 2147483647, %v2339
        %v2724 = vand.u32 2147483647, %v2340
        %v2725 = vand.u32 2147483647, %v2341
        %v2726 = vand.u32 2147483647, %v2342
        %v2727 = vand.u32 2147483647, %v2343
        %v2728 = vand.u32 2147483647, %v2344
        %v2729 = vand.u32 2147483647, %v2345
        %v2730 = vand.u32 2147483647, %v2346
        %v2731 = vand.u32 2147483647, %v2347
        %v2732 = vand.u32 2147483647, %v2348
        %v2733 = vand.u32 2147483647, %v2349
        %v2734 = vand.u32 2147483647, %v2350
        %v2735 = vand.u32 2147483647, %v2351
        %v2736 = vand.u32 2147483647, %v2352
        %v2737 = vand.u32 2147483647, %v2353
        %v2738 = vand.u32 2147483647, %v2354
        %v2739 = vand.u32 2147483647, %v2355
        %v2740 = vand.u32 2147483647, %v2356
        %v2741 = vand.u32 2147483647, %v2357
        %v2742 = vand.u32 2147483647, %v2358
        %v2743 = vand.u32 2147483647, %v2359
        %v2744 = vand.u32 2147483647, %v2360
        %v2745 = vand.u32 2147483647, %v2361
        %v2746 = vand.u32 2147483647, %v2362
        %v2747 = vand.u32 2147483647, %v2363
        %v2748 = vand.u32 2147483647, %v2364
        %v2749 = vand.u32 2147483647, %v2365
        %v2750 = vand.u32 2147483647, %v2366
        %v2751 = vand.u32 2147483647, %v2367
        %v2752 = vand.u32 2147483647, %v2368
        %v2753 = vand.u32 2147483647, %v2369
        %v2754 = vand.u32 2147483647, %v2370
        %v2755 = vand.u32 2147483647, %v2371
        %v2756 = vand.u32 2147483647, %v2372
        %v2757 = vand.u32 2147483647, %v2373
        %v2758 = vand.u32 2147483647, %v2374
        %v2759 = vand.u32 2147483647, %v2375
        %v2760 = vand.u32 2147483647, %v2376
        %v2761 = vand.u32 2147483647, %v2377
        %v2762 = vand.u32 2147483647, %v2378
        %v2763 = vand.u32 2147483647, %v2379
        %v2764 = vand.u32 2147483647, %v2380
        %v2765 = vand.u32 2147483647, %v2381
        %v2766 = vand.u32 2147483647, %v2382
        %v2767 = vand.u32 2147483647, %v2383
        %v2768 = vand.u32 2147483647, %v2384
        %v2769 = vand.u32 2147483647, %v2385
        %v2770 = vand.u32 2147483647, %v2386
        %v2771 = vand.u32 2147483647, %v2387
        %v2772 = vand.u32 2147483647, %v2388
        %v2773 = vand.u32 2147483647, %v2389
        %v2774 = vand.u32 2147483647, %v2390
        %v2775 = vand.u32 2147483647, %v2391
        %v2776 = vand.u32 2147483647, %v2392
        %v2777 = vand.u32 2147483647, %v2393
        %v2778 = vand.u32 2147483647, %v2394
        %v2779 = vand.u32 2147483647, %v2395
        %v2780 = vand.u32 2147483647, %v2396
        %v2781 = vand.u32 2147483647, %v2397
        %v2782 = vand.u32 2147483647, %v2398
        %v2783 = vand.u32 2147483647, %v2399
        %v2784 = vand.u32 2147483647, %v2400
        %v2785 = vand.u32 2147483647, %v2401
        %v2786 = vand.u32 2147483647, %v2402
        %v2787 = vand.u32 2147483647, %v2403
        %v2788 = vand.u32 2147483647, %v2404
        %v2789 = vand.u32 2147483647, %v2405
        %v2790 = vand.u32 2147483647, %v2406
        %v2791 = vand.u32 2147483647, %v2407
        %v2792 = vand.u32 2147483647, %v2408
        %v2793 = vand.u32 2147483647, %v2409
        %v2794 = vand.u32 2147483647, %v2410
        %v2795 = vand.u32 2147483647, %v2411
        %v2796 = vand.u32 2147483647, %v2412
        %v2797 = vand.u32 2147483647, %v2413
        %v2798 = vand.u32 2147483647, %v2414
        %v2799 = vand.u32 2147483647, %v2415
        %v2800 = vand.u32 2147483647, %v2416
        %v2801 = vand.u32 2147483647, %v2417
        %v2802 = vand.u32 2147483647, %v2418
        %v2803 = vand.u32 2147483647, %v2419
        %v2804 = vand.u32 2147483647, %v2420
        %v2805 = vand.u32 2147483647, %v2421
        %v2806 = vand.u32 2147483647, %v2422
        %v2807 = vand.u32 2147483647, %v2423
        %v2808 = vand.u32 2147483647, %v2424
        %v2809 = vand.u32 2147483647, %v2425
        %v2810 = vmul.f32 %v2682, 0.3275911
        %v2811 = vmul.f32 %v2683, 0.3275911
        %v2812 = vmul.f32 %v2684, 0.3275911
        %v2813 = vmul.f32 %v2685, 0.3275911
        %v2814 = vmul.f32 %v2686, 0.3275911
        %v2815 = vmul.f32 %v2687, 0.3275911
        %v2816 = vmul.f32 %v2688, 0.3275911
        %v2817 = vmul.f32 %v2689, 0.3275911
        %v2818 = vmul.f32 %v2690, 0.3275911
        %v2819 = vmul.f32 %v2691, 0.3275911
        %v2820 = vmul.f32 %v2692, 0.3275911
        %v2821 = vmul.f32 %v2693, 0.3275911
        %v2822 = vmul.f32 %v2694, 0.3275911
        %v2823 = vmul.f32 %v2695, 0.3275911
        %v2824 = vmul.f32 %v2696, 0.3275911
        %v2825 = vmul.f32 %v2697, 0.3275911
        %v2826 = vmul.f32 %v2698, 0.3275911
        %v2827 = vmul.f32 %v2699, 0.3275911
        %v2828 = vmul.f32 %v2700, 0.3275911
        %v2829 = vmul.f32 %v2701, 0.3275911
        %v2830 = vmul.f32 %v2702, 0.3275911
        %v2831 = vmul.f32 %v2703, 0.3275911
        %v2832 = vmul.f32 %v2704, 0.3275911
        %v2833 = vmul.f32 %v2705, 0.3275911
        %v2834 = vmul.f32 %v2706, 0.3275911
        %v2835 = vmul.f32 %v2707, 0.3275911
        %v2836 = vmul.f32 %v2708, 0.3275911
        %v2837 = vmul.f32 %v2709, 0.3275911
        %v2838 = vmul.f32 %v2710, 0.3275911
        %v2839 = vmul.f32 %v2711, 0.3275911
        %v2840 = vmul.f32 %v2712, 0.3275911
        %v2841 = vmul.f32 %v2713, 0.3275911
        %v2842 = vmul.f32 %v2714, 0.3275911
        %v2843 = vmul.f32 %v2715, 0.3275911
        %v2844 = vmul.f32 %v2716, 0.3275911
        %v2845 = vmul.f32 %v2717, 0.3275911
        %v2846 = vmul.f32 %v2718, 0.3275911
        %v2847 = vmul.f32 %v2719, 0.3275911
        %v2848 = vmul.f32 %v2720, 0.3275911
        %v2849 = vmul.f32 %v2721, 0.3275911
        %v2850 = vmul.f32 %v2722, 0.3275911
        %v2851 = vmul.f32 %v2723, 0.3275911
        %v2852 = vmul.f32 %v2724, 0.3275911
        %v2853 = vmul.f32 %v2725, 0.3275911
        %v2854 = vmul.f32 %v2726, 0.3275911
        %v2855 = vmul.f32 %v2727, 0.3275911
        %v2856 = vmul.f32 %v2728, 0.3275911
        %v2857 = vmul.f32 %v2729, 0.3275911
        %v2858 = vmul.f32 %v2730, 0.3275911
        %v2859 = vmul.f32 %v2731, 0.3275911
        %v2860 = vmul.f32 %v2732, 0.3275911
        %v2861 = vmul.f32 %v2733, 0.3275911
        %v2862 = vmul.f32 %v2734, 0.3275911
        %v2863 = vmul.f32 %v2735, 0.3275911
        %v2864 = vmul.f32 %v2736, 0.3275911
        %v2865 = vmul.f32 %v2737, 0.3275911
        %v2866 = vmul.f32 %v2738, 0.3275911
        %v2867 = vmul.f32 %v2739, 0.3275911
        %v2868 = vmul.f32 %v2740, 0.3275911
        %v2869 = vmul.f32 %v2741, 0.3275911
        %v2870 = vmul.f32 %v2742, 0.3275911
        %v2871 = vmul.f32 %v2743, 0.3275911
        %v2872 = vmul.f32 %v2744, 0.3275911
        %v2873 = vmul.f32 %v2745, 0.3275911
        %v2874 = vmul.f32 %v2746, 0.3275911
        %v2875 = vmul.f32 %v2747, 0.3275911
        %v2876 = vmul.f32 %v2748, 0.3275911
        %v2877 = vmul.f32 %v2749, 0.3275911
        %v2878 = vmul.f32 %v2750, 0.3275911
        %v2879 = vmul.f32 %v2751, 0.3275911
        %v2880 = vmul.f32 %v2752, 0.3275911
        %v2881 = vmul.f32 %v2753, 0.3275911
        %v2882 = vmul.f32 %v2754, 0.3275911
        %v2883 = vmul.f32 %v2755, 0.3275911
        %v2884 = vmul.f32 %v2756, 0.3275911
        %v2885 = vmul.f32 %v2757, 0.3275911
        %v2886 = vmul.f32 %v2758, 0.3275911
        %v2887 = vmul.f32 %v2759, 0.3275911
        %v2888 = vmul.f32 %v2760, 0.3275911
        %v2889 = vmul.f32 %v2761, 0.3275911
        %v2890 = vmul.f32 %v2762, 0.3275911
        %v2891 = vmul.f32 %v2763, 0.3275911
        %v2892 = vmul.f32 %v2764, 0.3275911
        %v2893 = vmul.f32 %v2765, 0.3275911
        %v2894 = vmul.f32 %v2766, 0.3275911
        %v2895 = vmul.f32 %v2767, 0.3275911
        %v2896 = vmul.f32 %v2768, 0.3275911
        %v2897 = vmul.f32 %v2769, 0.3275911
        %v2898 = vmul.f32 %v2770, 0.3275911
        %v2899 = vmul.f32 %v2771, 0.3275911
        %v2900 = vmul.f32 %v2772, 0.3275911
        %v2901 = vmul.f32 %v2773, 0.3275911
        %v2902 = vmul.f32 %v2774, 0.3275911
        %v2903 = vmul.f32 %v2775, 0.3275911
        %v2904 = vmul.f32 %v2776, 0.3275911
        %v2905 = vmul.f32 %v2777, 0.3275911
        %v2906 = vmul.f32 %v2778, 0.3275911
        %v2907 = vmul.f32 %v2779, 0.3275911
        %v2908 = vmul.f32 %v2780, 0.3275911
        %v2909 = vmul.f32 %v2781, 0.3275911
        %v2910 = vmul.f32 %v2782, 0.3275911
        %v2911 = vmul.f32 %v2783, 0.3275911
        %v2912 = vmul.f32 %v2784, 0.3275911
        %v2913 = vmul.f32 %v2785, 0.3275911
        %v2914 = vmul.f32 %v2786, 0.3275911
        %v2915 = vmul.f32 %v2787, 0.3275911
        %v2916 = vmul.f32 %v2788, 0.3275911
        %v2917 = vmul.f32 %v2789, 0.3275911
        %v2918 = vmul.f32 %v2790, 0.3275911
        %v2919 = vmul.f32 %v2791, 0.3275911
        %v2920 = vmul.f32 %v2792, 0.3275911
        %v2921 = vmul.f32 %v2793, 0.3275911
        %v2922 = vmul.f32 %v2794, 0.3275911
        %v2923 = vmul.f32 %v2795, 0.3275911
        %v2924 = vmul.f32 %v2796, 0.3275911
        %v2925 = vmul.f32 %v2797, 0.3275911
        %v2926 = vmul.f32 %v2798, 0.3275911
        %v2927 = vmul.f32 %v2799, 0.3275911
        %v2928 = vmul.f32 %v2800, 0.3275911
        %v2929 = vmul.f32 %v2801, 0.3275911
        %v2930 = vmul.f32 %v2802, 0.3275911
        %v2931 = vmul.f32 %v2803, 0.3275911
        %v2932 = vmul.f32 %v2804, 0.3275911
        %v2933 = vmul.f32 %v2805, 0.3275911
        %v2934 = vmul.f32 %v2806, 0.3275911
        %v2935 = vmul.f32 %v2807, 0.3275911
        %v2936 = vmul.f32 %v2808, 0.3275911
        %v2937 = vmul.f32 %v2809, 0.3275911
        %v2938 = vadd.f32 %v2810, 1.0
        %v2939 = vadd.f32 %v2811, 1.0
        %v2940 = vadd.f32 %v2812, 1.0
        %v2941 = vadd.f32 %v2813, 1.0
        %v2942 = vadd.f32 %v2814, 1.0
        %v2943 = vadd.f32 %v2815, 1.0
        %v2944 = vadd.f32 %v2816, 1.0
        %v2945 = vadd.f32 %v2817, 1.0
        %v2946 = vadd.f32 %v2818, 1.0
        %v2947 = vadd.f32 %v2819, 1.0
        %v2948 = vadd.f32 %v2820, 1.0
        %v2949 = vadd.f32 %v2821, 1.0
        %v2950 = vadd.f32 %v2822, 1.0
        %v2951 = vadd.f32 %v2823, 1.0
        %v2952 = vadd.f32 %v2824, 1.0
        %v2953 = vadd.f32 %v2825, 1.0
        %v2954 = vadd.f32 %v2826, 1.0
        %v2955 = vadd.f32 %v2827, 1.0
        %v2956 = vadd.f32 %v2828, 1.0
        %v2957 = vadd.f32 %v2829, 1.0
        %v2958 = vadd.f32 %v2830, 1.0
        %v2959 = vadd.f32 %v2831, 1.0
        %v2960 = vadd.f32 %v2832, 1.0
        %v2961 = vadd.f32 %v2833, 1.0
        %v2962 = vadd.f32 %v2834, 1.0
        %v2963 = vadd.f32 %v2835, 1.0
        %v2964 = vadd.f32 %v2836, 1.0
        %v2965 = vadd.f32 %v2837, 1.0
        %v2966 = vadd.f32 %v2838, 1.0
        %v2967 = vadd.f32 %v2839, 1.0
        %v2968 = vadd.f32 %v2840, 1.0
        %v2969 = vadd.f32 %v2841, 1.0
        %v2970 = vadd.f32 %v2842, 1.0
        %v2971 = vadd.f32 %v2843, 1.0
        %v2972 = vadd.f32 %v2844, 1.0
        %v2973 = vadd.f32 %v2845, 1.0
        %v2974 = vadd.f32 %v2846, 1.0
        %v2975 = vadd.f32 %v2847, 1.0
        %v2976 = vadd.f32 %v2848, 1.0
        %v2977 = vadd.f32 %v2849, 1.0
        %v2978 = vadd.f32 %v2850, 1.0
        %v2979 = vadd.f32 %v2851, 1.0
        %v2980 = vadd.f32 %v2852, 1.0
        %v2981 = vadd.f32 %v2853, 1.0
        %v2982 = vadd.f32 %v2854, 1.0
        %v2983 = vadd.f32 %v2855, 1.0
        %v2984 = vadd.f32 %v2856, 1.0
        %v2985 = vadd.f32 %v2857, 1.0
        %v2986 = vadd.f32 %v2858, 1.0
        %v2987 = vadd.f32 %v2859, 1.0
        %v2988 = vadd.f32 %v2860, 1.0
        %v2989 = vadd.f32 %v2861, 1.0
        %v2990 = vadd.f32 %v2862, 1.0
        %v2991 = vadd.f32 %v2863, 1.0
        %v2992 = vadd.f32 %v2864, 1.0
        %v2993 = vadd.f32 %v2865, 1.0
        %v2994 = vadd.f32 %v2866, 1.0
        %v2995 = vadd.f32 %v2867, 1.0
        %v2996 = vadd.f32 %v2868, 1.0
        %v2997 = vadd.f32 %v2869, 1.0
        %v2998 = vadd.f32 %v2870, 1.0
        %v2999 = vadd.f32 %v2871, 1.0
        %v3000 = vadd.f32 %v2872, 1.0
        %v3001 = vadd.f32 %v2873, 1.0
        %v3002 = vadd.f32 %v2874, 1.0
        %v3003 = vadd.f32 %v2875, 1.0
        %v3004 = vadd.f32 %v2876, 1.0
        %v3005 = vadd.f32 %v2877, 1.0
        %v3006 = vadd.f32 %v2878, 1.0
        %v3007 = vadd.f32 %v2879, 1.0
        %v3008 = vadd.f32 %v2880, 1.0
        %v3009 = vadd.f32 %v2881, 1.0
        %v3010 = vadd.f32 %v2882, 1.0
        %v3011 = vadd.f32 %v2883, 1.0
        %v3012 = vadd.f32 %v2884, 1.0
        %v3013 = vadd.f32 %v2885, 1.0
        %v3014 = vadd.f32 %v2886, 1.0
        %v3015 = vadd.f32 %v2887, 1.0
        %v3016 = vadd.f32 %v2888, 1.0
        %v3017 = vadd.f32 %v2889, 1.0
        %v3018 = vadd.f32 %v2890, 1.0
        %v3019 = vadd.f32 %v2891, 1.0
        %v3020 = vadd.f32 %v2892, 1.0
        %v3021 = vadd.f32 %v2893, 1.0
        %v3022 = vadd.f32 %v2894, 1.0
        %v3023 = vadd.f32 %v2895, 1.0
        %v3024 = vadd.f32 %v2896, 1.0
        %v3025 = vadd.f32 %v2897, 1.0
        %v3026 = vadd.f32 %v2898, 1.0
        %v3027 = vadd.f32 %v2899, 1.0
        %v3028 = vadd.f32 %v2900, 1.0
        %v3029 = vadd.f32 %v2901, 1.0
        %v3030 = vadd.f32 %v2902, 1.0
        %v3031 = vadd.f32 %v2903, 1.0
        %v3032 = vadd.f32 %v2904, 1.0
        %v3033 = vadd.f32 %v2905, 1.0
        %v3034 = vadd.f32 %v2906, 1.0
        %v3035 = vadd.f32 %v2907, 1.0
        %v3036 = vadd.f32 %v2908, 1.0
        %v3037 = vadd.f32 %v2909, 1.0
        %v3038 = vadd.f32 %v2910, 1.0
        %v3039 = vadd.f32 %v2911, 1.0
        %v3040 = vadd.f32 %v2912, 1.0
        %v3041 = vadd.f32 %v2913, 1.0
        %v3042 = vadd.f32 %v2914, 1.0
        %v3043 = vadd.f32 %v2915, 1.0
        %v3044 = vadd.f32 %v2916, 1.0
        %v3045 = vadd.f32 %v2917, 1.0
        %v3046 = vadd.f32 %v2918, 1.0
        %v3047 = vadd.f32 %v2919, 1.0
        %v3048 = vadd.f32 %v2920, 1.0
        %v3049 = vadd.f32 %v2921, 1.0
        %v3050 = vadd.f32 %v2922, 1.0
        %v3051 = vadd.f32 %v2923, 1.0
        %v3052 = vadd.f32 %v2924, 1.0
        %v3053 = vadd.f32 %v2925, 1.0
        %v3054 = vadd.f32 %v2926, 1.0
        %v3055 = vadd.f32 %v2927, 1.0
        %v3056 = vadd.f32 %v2928, 1.0
        %v3057 = vadd.f32 %v2929, 1.0
        %v3058 = vadd.f32 %v2930, 1.0
        %v3059 = vadd.f32 %v2931, 1.0
        %v3060 = vadd.f32 %v2932, 1.0
        %v3061 = vadd.f32 %v2933, 1.0
        %v3062 = vadd.f32 %v2934, 1.0
        %v3063 = vadd.f32 %v2935, 1.0
        %v3064 = vadd.f32 %v2936, 1.0
        %v3065 = vadd.f32 %v2937, 1.0
        %v3066 = vrcp.pop %v2938
        %v3067 = vmul.f32 1.0, %v3066
        %v3068 = vrcp.pop %v2939
        %v3069 = vmul.f32 1.0, %v3068
        %v3070 = vrcp.pop %v2940
        %v3071 = vmul.f32 1.0, %v3070
        %v3072 = vrcp.pop %v2941
        %v3073 = vmul.f32 1.0, %v3072
        %v3074 = vrcp.pop %v2942
        %v3075 = vmul.f32 1.0, %v3074
        %v3076 = vrcp.pop %v2943
        %v3077 = vmul.f32 1.0, %v3076
        %v3078 = vrcp.pop %v2944
        %v3079 = vmul.f32 1.0, %v3078
        %v3080 = vrcp.pop %v2945
        %v3081 = vmul.f32 1.0, %v3080
        %v3082 = vrcp.pop %v2946
        %v3083 = vmul.f32 1.0, %v3082
        %v3084 = vrcp.pop %v2947
        %v3085 = vmul.f32 1.0, %v3084
        %v3086 = vrcp.pop %v2948
        %v3087 = vmul.f32 1.0, %v3086
        %v3088 = vrcp.pop %v2949
        %v3089 = vmul.f32 1.0, %v3088
        %v3090 = vrcp.pop %v2950
        %v3091 = vmul.f32 1.0, %v3090
        %v3092 = vrcp.pop %v2951
        %v3093 = vmul.f32 1.0, %v3092
        %v3094 = vrcp.pop %v2952
        %v3095 = vmul.f32 1.0, %v3094
        %v3096 = vrcp.pop %v2953
        %v3097 = vmul.f32 1.0, %v3096
        %v3098 = vrcp.pop %v2954
        %v3099 = vmul.f32 1.0, %v3098
        %v3100 = vrcp.pop %v2955
        %v3101 = vmul.f32 1.0, %v3100
        %v3102 = vrcp.pop %v2956
        %v3103 = vmul.f32 1.0, %v3102
        %v3104 = vrcp.pop %v2957
        %v3105 = vmul.f32 1.0, %v3104
        %v3106 = vrcp.pop %v2958
        %v3107 = vmul.f32 1.0, %v3106
        %v3108 = vrcp.pop %v2959
        %v3109 = vmul.f32 1.0, %v3108
        %v3110 = vrcp.pop %v2960
        %v3111 = vmul.f32 1.0, %v3110
        %v3112 = vrcp.pop %v2961
        %v3113 = vmul.f32 1.0, %v3112
        %v3114 = vrcp.pop %v2962
        %v3115 = vmul.f32 1.0, %v3114
        %v3116 = vrcp.pop %v2963
        %v3117 = vmul.f32 1.0, %v3116
        %v3118 = vrcp.pop %v2964
        %v3119 = vmul.f32 1.0, %v3118
        %v3120 = vrcp.pop %v2965
        %v3121 = vmul.f32 1.0, %v3120
        %v3122 = vrcp.pop %v2966
        %v3123 = vmul.f32 1.0, %v3122
        %v3124 = vrcp.pop %v2967
        %v3125 = vmul.f32 1.0, %v3124
        %v3126 = vrcp.pop %v2968
        %v3127 = vmul.f32 1.0, %v3126
        %v3128 = vrcp.pop %v2969
        %v3129 = vmul.f32 1.0, %v3128
        %v3130 = vrcp.pop %v2970
        %v3131 = vmul.f32 1.0, %v3130
        %v3132 = vrcp.pop %v2971
        %v3133 = vmul.f32 1.0, %v3132
        %v3134 = vrcp.pop %v2972
        %v3135 = vmul.f32 1.0, %v3134
        %v3136 = vrcp.pop %v2973
        %v3137 = vmul.f32 1.0, %v3136
        %v3138 = vrcp.pop %v2974
        %v3139 = vmul.f32 1.0, %v3138
        %v3140 = vrcp.pop %v2975
        %v3141 = vmul.f32 1.0, %v3140
        %v3142 = vrcp.pop %v2976
        %v3143 = vmul.f32 1.0, %v3142
        %v3144 = vrcp.pop %v2977
        %v3145 = vmul.f32 1.0, %v3144
        %v3146 = vrcp.pop %v2978
        %v3147 = vmul.f32 1.0, %v3146
        %v3148 = vrcp.pop %v2979
        %v3149 = vmul.f32 1.0, %v3148
        %v3150 = vrcp.pop %v2980
        %v3151 = vmul.f32 1.0, %v3150
        %v3152 = vrcp.pop %v2981
        %v3153 = vmul.f32 1.0, %v3152
        %v3154 = vrcp.pop %v2982
        %v3155 = vmul.f32 1.0, %v3154
        %v3156 = vrcp.pop %v2983
        %v3157 = vmul.f32 1.0, %v3156
        %v3158 = vrcp.pop %v2984
        %v3159 = vmul.f32 1.0, %v3158
        %v3160 = vrcp.pop %v2985
        %v3161 = vmul.f32 1.0, %v3160
        %v3162 = vrcp.pop %v2986
        %v3163 = vmul.f32 1.0, %v3162
        %v3164 = vrcp.pop %v2987
        %v3165 = vmul.f32 1.0, %v3164
        %v3166 = vrcp.pop %v2988
        %v3167 = vmul.f32 1.0, %v3166
        %v3168 = vrcp.pop %v2989
        %v3169 = vmul.f32 1.0, %v3168
        %v3170 = vrcp.pop %v2990
        %v3171 = vmul.f32 1.0, %v3170
        %v3172 = vrcp.pop %v2991
        %v3173 = vmul.f32 1.0, %v3172
        %v3174 = vrcp.pop %v2992
        %v3175 = vmul.f32 1.0, %v3174
        %v3176 = vrcp.pop %v2993
        %v3177 = vmul.f32 1.0, %v3176
        %v3178 = vrcp.pop %v2994
        %v3179 = vmul.f32 1.0, %v3178
        %v3180 = vrcp.pop %v2995
        %v3181 = vmul.f32 1.0, %v3180
        %v3182 = vrcp.pop %v2996
        %v3183 = vmul.f32 1.0, %v3182
        %v3184 = vrcp.pop %v2997
        %v3185 = vmul.f32 1.0, %v3184
        %v3186 = vrcp.pop %v2998
        %v3187 = vmul.f32 1.0, %v3186
        %v3188 = vrcp.pop %v2999
        %v3189 = vmul.f32 1.0, %v3188
        %v3190 = vrcp.pop %v3000
        %v3191 = vmul.f32 1.0, %v3190
        %v3192 = vrcp.pop %v3001
        %v3193 = vmul.f32 1.0, %v3192
        %v3194 = vrcp.pop %v3002
        %v3195 = vmul.f32 1.0, %v3194
        %v3196 = vrcp.pop %v3003
        %v3197 = vmul.f32 1.0, %v3196
        %v3198 = vrcp.pop %v3004
        %v3199 = vmul.f32 1.0, %v3198
        %v3200 = vrcp.pop %v3005
        %v3201 = vmul.f32 1.0, %v3200
        %v3202 = vrcp.pop %v3006
        %v3203 = vmul.f32 1.0, %v3202
        %v3204 = vrcp.pop %v3007
        %v3205 = vmul.f32 1.0, %v3204
        %v3206 = vrcp.pop %v3008
        %v3207 = vmul.f32 1.0, %v3206
        %v3208 = vrcp.pop %v3009
        %v3209 = vmul.f32 1.0, %v3208
        %v3210 = vrcp.pop %v3010
        %v3211 = vmul.f32 1.0, %v3210
        %v3212 = vrcp.pop %v3011
        %v3213 = vmul.f32 1.0, %v3212
        %v3214 = vrcp.pop %v3012
        %v3215 = vmul.f32 1.0, %v3214
        %v3216 = vrcp.pop %v3013
        %v3217 = vmul.f32 1.0, %v3216
        %v3218 = vrcp.pop %v3014
        %v3219 = vmul.f32 1.0, %v3218
        %v3220 = vrcp.pop %v3015
        %v3221 = vmul.f32 1.0, %v3220
        %v3222 = vrcp.pop %v3016
        %v3223 = vmul.f32 1.0, %v3222
        %v3224 = vrcp.pop %v3017
        %v3225 = vmul.f32 1.0, %v3224
        %v3226 = vrcp.pop %v3018
        %v3227 = vmul.f32 1.0, %v3226
        %v3228 = vrcp.pop %v3019
        %v3229 = vmul.f32 1.0, %v3228
        %v3230 = vrcp.pop %v3020
        %v3231 = vmul.f32 1.0, %v3230
        %v3232 = vrcp.pop %v3021
        %v3233 = vmul.f32 1.0, %v3232
        %v3234 = vrcp.pop %v3022
        %v3235 = vmul.f32 1.0, %v3234
        %v3236 = vrcp.pop %v3023
        %v3237 = vmul.f32 1.0, %v3236
        %v3238 = vrcp.pop %v3024
        %v3239 = vmul.f32 1.0, %v3238
        %v3240 = vrcp.pop %v3025
        %v3241 = vmul.f32 1.0, %v3240
        %v3242 = vrcp.pop %v3026
        %v3243 = vmul.f32 1.0, %v3242
        %v3244 = vrcp.pop %v3027
        %v3245 = vmul.f32 1.0, %v3244
        %v3246 = vrcp.pop %v3028
        %v3247 = vmul.f32 1.0, %v3246
        %v3248 = vrcp.pop %v3029
        %v3249 = vmul.f32 1.0, %v3248
        %v3250 = vrcp.pop %v3030
        %v3251 = vmul.f32 1.0, %v3250
        %v3252 = vrcp.pop %v3031
        %v3253 = vmul.f32 1.0, %v3252
        %v3254 = vrcp.pop %v3032
        %v3255 = vmul.f32 1.0, %v3254
        %v3256 = vrcp.pop %v3033
        %v3257 = vmul.f32 1.0, %v3256
        %v3258 = vrcp.pop %v3034
        %v3259 = vmul.f32 1.0, %v3258
        %v3260 = vrcp.pop %v3035
        %v3261 = vmul.f32 1.0, %v3260
        %v3262 = vrcp.pop %v3036
        %v3263 = vmul.f32 1.0, %v3262
        %v3264 = vrcp.pop %v3037
        %v3265 = vmul.f32 1.0, %v3264
        %v3266 = vrcp.pop %v3038
        %v3267 = vmul.f32 1.0, %v3266
        %v3268 = vrcp.pop %v3039
        %v3269 = vmul.f32 1.0, %v3268
        %v3270 = vrcp.pop %v3040
        %v3271 = vmul.f32 1.0, %v3270
        %v3272 = vrcp.pop %v3041
        %v3273 = vmul.f32 1.0, %v3272
        %v3274 = vrcp.pop %v3042
        %v3275 = vmul.f32 1.0, %v3274
        %v3276 = vrcp.pop %v3043
        %v3277 = vmul.f32 1.0, %v3276
        %v3278 = vrcp.pop %v3044
        %v3279 = vmul.f32 1.0, %v3278
        %v3280 = vrcp.pop %v3045
        %v3281 = vmul.f32 1.0, %v3280
        %v3282 = vrcp.pop %v3046
        %v3283 = vmul.f32 1.0, %v3282
        %v3284 = vrcp.pop %v3047
        %v3285 = vmul.f32 1.0, %v3284
        %v3286 = vrcp.pop %v3048
        %v3287 = vmul.f32 1.0, %v3286
        %v3288 = vrcp.pop %v3049
        %v3289 = vmul.f32 1.0, %v3288
        %v3290 = vrcp.pop %v3050
        %v3291 = vmul.f32 1.0, %v3290
        %v3292 = vrcp.pop %v3051
        %v3293 = vmul.f32 1.0, %v3292
        %v3294 = vrcp.pop %v3052
        %v3295 = vmul.f32 1.0, %v3294
        %v3296 = vrcp.pop %v3053
        %v3297 = vmul.f32 1.0, %v3296
        %v3298 = vrcp.pop %v3054
        %v3299 = vmul.f32 1.0, %v3298
        %v3300 = vrcp.pop %v3055
        %v3301 = vmul.f32 1.0, %v3300
        %v3302 = vrcp.pop %v3056
        %v3303 = vmul.f32 1.0, %v3302
        %v3304 = vrcp.pop %v3057
        %v3305 = vmul.f32 1.0, %v3304
        %v3306 = vrcp.pop %v3058
        %v3307 = vmul.f32 1.0, %v3306
        %v3308 = vrcp.pop %v3059
        %v3309 = vmul.f32 1.0, %v3308
        %v3310 = vrcp.pop %v3060
        %v3311 = vmul.f32 1.0, %v3310
        %v3312 = vrcp.pop %v3061
        %v3313 = vmul.f32 1.0, %v3312
        %v3314 = vrcp.pop %v3062
        %v3315 = vmul.f32 1.0, %v3314
        %v3316 = vrcp.pop %v3063
        %v3317 = vmul.f32 1.0, %v3316
        %v3318 = vrcp.pop %v3064
        %v3319 = vmul.f32 1.0, %v3318
        %v3320 = vrcp.pop %v3065
        %v3321 = vmul.f32 1.0, %v3320
        %v3322 = vmul.f32 %v3067, 1.0614054
        %v3323 = vmul.f32 %v3069, 1.0614054
        %v3324 = vmul.f32 %v3071, 1.0614054
        %v3325 = vmul.f32 %v3073, 1.0614054
        %v3326 = vmul.f32 %v3075, 1.0614054
        %v3327 = vmul.f32 %v3077, 1.0614054
        %v3328 = vmul.f32 %v3079, 1.0614054
        %v3329 = vmul.f32 %v3081, 1.0614054
        %v3330 = vmul.f32 %v3083, 1.0614054
        %v3331 = vmul.f32 %v3085, 1.0614054
        %v3332 = vmul.f32 %v3087, 1.0614054
        %v3333 = vmul.f32 %v3089, 1.0614054
        %v3334 = vmul.f32 %v3091, 1.0614054
        %v3335 = vmul.f32 %v3093, 1.0614054
        %v3336 = vmul.f32 %v3095, 1.0614054
        %v3337 = vmul.f32 %v3097, 1.0614054
        %v3338 = vmul.f32 %v3099, 1.0614054
        %v3339 = vmul.f32 %v3101, 1.0614054
        %v3340 = vmul.f32 %v3103, 1.0614054
        %v3341 = vmul.f32 %v3105, 1.0614054
        %v3342 = vmul.f32 %v3107, 1.0614054
        %v3343 = vmul.f32 %v3109, 1.0614054
        %v3344 = vmul.f32 %v3111, 1.0614054
        %v3345 = vmul.f32 %v3113, 1.0614054
        %v3346 = vmul.f32 %v3115, 1.0614054
        %v3347 = vmul.f32 %v3117, 1.0614054
        %v3348 = vmul.f32 %v3119, 1.0614054
        %v3349 = vmul.f32 %v3121, 1.0614054
        %v3350 = vmul.f32 %v3123, 1.0614054
        %v3351 = vmul.f32 %v3125, 1.0614054
        %v3352 = vmul.f32 %v3127, 1.0614054
        %v3353 = vmul.f32 %v3129, 1.0614054
        %v3354 = vmul.f32 %v3131, 1.0614054
        %v3355 = vmul.f32 %v3133, 1.0614054
        %v3356 = vmul.f32 %v3135, 1.0614054
        %v3357 = vmul.f32 %v3137, 1.0614054
        %v3358 = vmul.f32 %v3139, 1.0614054
        %v3359 = vmul.f32 %v3141, 1.0614054
        %v3360 = vmul.f32 %v3143, 1.0614054
        %v3361 = vmul.f32 %v3145, 1.0614054
        %v3362 = vmul.f32 %v3147, 1.0614054
        %v3363 = vmul.f32 %v3149, 1.0614054
        %v3364 = vmul.f32 %v3151, 1.0614054
        %v3365 = vmul.f32 %v3153, 1.0614054
        %v3366 = vmul.f32 %v3155, 1.0614054
        %v3367 = vmul.f32 %v3157, 1.0614054
        %v3368 = vmul.f32 %v3159, 1.0614054
        %v3369 = vmul.f32 %v3161, 1.0614054
        %v3370 = vmul.f32 %v3163, 1.0614054
        %v3371 = vmul.f32 %v3165, 1.0614054
        %v3372 = vmul.f32 %v3167, 1.0614054
        %v3373 = vmul.f32 %v3169, 1.0614054
        %v3374 = vmul.f32 %v3171, 1.0614054
        %v3375 = vmul.f32 %v3173, 1.0614054
        %v3376 = vmul.f32 %v3175, 1.0614054
        %v3377 = vmul.f32 %v3177, 1.0614054
        %v3378 = vmul.f32 %v3179, 1.0614054
        %v3379 = vmul.f32 %v3181, 1.0614054
        %v3380 = vmul.f32 %v3183, 1.0614054
        %v3381 = vmul.f32 %v3185, 1.0614054
        %v3382 = vmul.f32 %v3187, 1.0614054
        %v3383 = vmul.f32 %v3189, 1.0614054
        %v3384 = vmul.f32 %v3191, 1.0614054
        %v3385 = vmul.f32 %v3193, 1.0614054
        %v3386 = vmul.f32 %v3195, 1.0614054
        %v3387 = vmul.f32 %v3197, 1.0614054
        %v3388 = vmul.f32 %v3199, 1.0614054
        %v3389 = vmul.f32 %v3201, 1.0614054
        %v3390 = vmul.f32 %v3203, 1.0614054
        %v3391 = vmul.f32 %v3205, 1.0614054
        %v3392 = vmul.f32 %v3207, 1.0614054
        %v3393 = vmul.f32 %v3209, 1.0614054
        %v3394 = vmul.f32 %v3211, 1.0614054
        %v3395 = vmul.f32 %v3213, 1.0614054
        %v3396 = vmul.f32 %v3215, 1.0614054
        %v3397 = vmul.f32 %v3217, 1.0614054
        %v3398 = vmul.f32 %v3219, 1.0614054
        %v3399 = vmul.f32 %v3221, 1.0614054
        %v3400 = vmul.f32 %v3223, 1.0614054
        %v3401 = vmul.f32 %v3225, 1.0614054
        %v3402 = vmul.f32 %v3227, 1.0614054
        %v3403 = vmul.f32 %v3229, 1.0614054
        %v3404 = vmul.f32 %v3231, 1.0614054
        %v3405 = vmul.f32 %v3233, 1.0614054
        %v3406 = vmul.f32 %v3235, 1.0614054
        %v3407 = vmul.f32 %v3237, 1.0614054
        %v3408 = vmul.f32 %v3239, 1.0614054
        %v3409 = vmul.f32 %v3241, 1.0614054
        %v3410 = vmul.f32 %v3243, 1.0614054
        %v3411 = vmul.f32 %v3245, 1.0614054
        %v3412 = vmul.f32 %v3247, 1.0614054
        %v3413 = vmul.f32 %v3249, 1.0614054
        %v3414 = vmul.f32 %v3251, 1.0614054
        %v3415 = vmul.f32 %v3253, 1.0614054
        %v3416 = vmul.f32 %v3255, 1.0614054
        %v3417 = vmul.f32 %v3257, 1.0614054
        %v3418 = vmul.f32 %v3259, 1.0614054
        %v3419 = vmul.f32 %v3261, 1.0614054
        %v3420 = vmul.f32 %v3263, 1.0614054
        %v3421 = vmul.f32 %v3265, 1.0614054
        %v3422 = vmul.f32 %v3267, 1.0614054
        %v3423 = vmul.f32 %v3269, 1.0614054
        %v3424 = vmul.f32 %v3271, 1.0614054
        %v3425 = vmul.f32 %v3273, 1.0614054
        %v3426 = vmul.f32 %v3275, 1.0614054
        %v3427 = vmul.f32 %v3277, 1.0614054
        %v3428 = vmul.f32 %v3279, 1.0614054
        %v3429 = vmul.f32 %v3281, 1.0614054
        %v3430 = vmul.f32 %v3283, 1.0614054
        %v3431 = vmul.f32 %v3285, 1.0614054
        %v3432 = vmul.f32 %v3287, 1.0614054
        %v3433 = vmul.f32 %v3289, 1.0614054
        %v3434 = vmul.f32 %v3291, 1.0614054
        %v3435 = vmul.f32 %v3293, 1.0614054
        %v3436 = vmul.f32 %v3295, 1.0614054
        %v3437 = vmul.f32 %v3297, 1.0614054
        %v3438 = vmul.f32 %v3299, 1.0614054
        %v3439 = vmul.f32 %v3301, 1.0614054
        %v3440 = vmul.f32 %v3303, 1.0614054
        %v3441 = vmul.f32 %v3305, 1.0614054
        %v3442 = vmul.f32 %v3307, 1.0614054
        %v3443 = vmul.f32 %v3309, 1.0614054
        %v3444 = vmul.f32 %v3311, 1.0614054
        %v3445 = vmul.f32 %v3313, 1.0614054
        %v3446 = vmul.f32 %v3315, 1.0614054
        %v3447 = vmul.f32 %v3317, 1.0614054
        %v3448 = vmul.f32 %v3319, 1.0614054
        %v3449 = vmul.f32 %v3321, 1.0614054
        %v3450 = vadd.f32 %v3322, -1.4531521
        %v3451 = vadd.f32 %v3323, -1.4531521
        %v3452 = vadd.f32 %v3324, -1.4531521
        %v3453 = vadd.f32 %v3325, -1.4531521
        %v3454 = vadd.f32 %v3326, -1.4531521
        %v3455 = vadd.f32 %v3327, -1.4531521
        %v3456 = vadd.f32 %v3328, -1.4531521
        %v3457 = vadd.f32 %v3329, -1.4531521
        %v3458 = vadd.f32 %v3330, -1.4531521
        %v3459 = vadd.f32 %v3331, -1.4531521
        %v3460 = vadd.f32 %v3332, -1.4531521
        %v3461 = vadd.f32 %v3333, -1.4531521
        %v3462 = vadd.f32 %v3334, -1.4531521
        %v3463 = vadd.f32 %v3335, -1.4531521
        %v3464 = vadd.f32 %v3336, -1.4531521
        %v3465 = vadd.f32 %v3337, -1.4531521
        %v3466 = vadd.f32 %v3338, -1.4531521
        %v3467 = vadd.f32 %v3339, -1.4531521
        %v3468 = vadd.f32 %v3340, -1.4531521
        %v3469 = vadd.f32 %v3341, -1.4531521
        %v3470 = vadd.f32 %v3342, -1.4531521
        %v3471 = vadd.f32 %v3343, -1.4531521
        %v3472 = vadd.f32 %v3344, -1.4531521
        %v3473 = vadd.f32 %v3345, -1.4531521
        %v3474 = vadd.f32 %v3346, -1.4531521
        %v3475 = vadd.f32 %v3347, -1.4531521
        %v3476 = vadd.f32 %v3348, -1.4531521
        %v3477 = vadd.f32 %v3349, -1.4531521
        %v3478 = vadd.f32 %v3350, -1.4531521
        %v3479 = vadd.f32 %v3351, -1.4531521
        %v3480 = vadd.f32 %v3352, -1.4531521
        %v3481 = vadd.f32 %v3353, -1.4531521
        %v3482 = vadd.f32 %v3354, -1.4531521
        %v3483 = vadd.f32 %v3355, -1.4531521
        %v3484 = vadd.f32 %v3356, -1.4531521
        %v3485 = vadd.f32 %v3357, -1.4531521
        %v3486 = vadd.f32 %v3358, -1.4531521
        %v3487 = vadd.f32 %v3359, -1.4531521
        %v3488 = vadd.f32 %v3360, -1.4531521
        %v3489 = vadd.f32 %v3361, -1.4531521
        %v3490 = vadd.f32 %v3362, -1.4531521
        %v3491 = vadd.f32 %v3363, -1.4531521
        %v3492 = vadd.f32 %v3364, -1.4531521
        %v3493 = vadd.f32 %v3365, -1.4531521
        %v3494 = vadd.f32 %v3366, -1.4531521
        %v3495 = vadd.f32 %v3367, -1.4531521
        %v3496 = vadd.f32 %v3368, -1.4531521
        %v3497 = vadd.f32 %v3369, -1.4531521
        %v3498 = vadd.f32 %v3370, -1.4531521
        %v3499 = vadd.f32 %v3371, -1.4531521
        %v3500 = vadd.f32 %v3372, -1.4531521
        %v3501 = vadd.f32 %v3373, -1.4531521
        %v3502 = vadd.f32 %v3374, -1.4531521
        %v3503 = vadd.f32 %v3375, -1.4531521
        %v3504 = vadd.f32 %v3376, -1.4531521
        %v3505 = vadd.f32 %v3377, -1.4531521
        %v3506 = vadd.f32 %v3378, -1.4531521
        %v3507 = vadd.f32 %v3379, -1.4531521
        %v3508 = vadd.f32 %v3380, -1.4531521
        %v3509 = vadd.f32 %v3381, -1.4531521
        %v3510 = vadd.f32 %v3382, -1.4531521
        %v3511 = vadd.f32 %v3383, -1.4531521
        %v3512 = vadd.f32 %v3384, -1.4531521
        %v3513 = vadd.f32 %v3385, -1.4531521
        %v3514 = vadd.f32 %v3386, -1.4531521
        %v3515 = vadd.f32 %v3387, -1.4531521
        %v3516 = vadd.f32 %v3388, -1.4531521
        %v3517 = vadd.f32 %v3389, -1.4531521
        %v3518 = vadd.f32 %v3390, -1.4531521
        %v3519 = vadd.f32 %v3391, -1.4531521
        %v3520 = vadd.f32 %v3392, -1.4531521
        %v3521 = vadd.f32 %v3393, -1.4531521
        %v3522 = vadd.f32 %v3394, -1.4531521
        %v3523 = vadd.f32 %v3395, -1.4531521
        %v3524 = vadd.f32 %v3396, -1.4531521
        %v3525 = vadd.f32 %v3397, -1.4531521
        %v3526 = vadd.f32 %v3398, -1.4531521
        %v3527 = vadd.f32 %v3399, -1.4531521
        %v3528 = vadd.f32 %v3400, -1.4531521
        %v3529 = vadd.f32 %v3401, -1.4531521
        %v3530 = vadd.f32 %v3402, -1.4531521
        %v3531 = vadd.f32 %v3403, -1.4531521
        %v3532 = vadd.f32 %v3404, -1.4531521
        %v3533 = vadd.f32 %v3405, -1.4531521
        %v3534 = vadd.f32 %v3406, -1.4531521
        %v3535 = vadd.f32 %v3407, -1.4531521
        %v3536 = vadd.f32 %v3408, -1.4531521
        %v3537 = vadd.f32 %v3409, -1.4531521
        %v3538 = vadd.f32 %v3410, -1.4531521
        %v3539 = vadd.f32 %v3411, -1.4531521
        %v3540 = vadd.f32 %v3412, -1.4531521
        %v3541 = vadd.f32 %v3413, -1.4531521
        %v3542 = vadd.f32 %v3414, -1.4531521
        %v3543 = vadd.f32 %v3415, -1.4531521
        %v3544 = vadd.f32 %v3416, -1.4531521
        %v3545 = vadd.f32 %v3417, -1.4531521
        %v3546 = vadd.f32 %v3418, -1.4531521
        %v3547 = vadd.f32 %v3419, -1.4531521
        %v3548 = vadd.f32 %v3420, -1.4531521
        %v3549 = vadd.f32 %v3421, -1.4531521
        %v3550 = vadd.f32 %v3422, -1.4531521
        %v3551 = vadd.f32 %v3423, -1.4531521
        %v3552 = vadd.f32 %v3424, -1.4531521
        %v3553 = vadd.f32 %v3425, -1.4531521
        %v3554 = vadd.f32 %v3426, -1.4531521
        %v3555 = vadd.f32 %v3427, -1.4531521
        %v3556 = vadd.f32 %v3428, -1.4531521
        %v3557 = vadd.f32 %v3429, -1.4531521
        %v3558 = vadd.f32 %v3430, -1.4531521
        %v3559 = vadd.f32 %v3431, -1.4531521
        %v3560 = vadd.f32 %v3432, -1.4531521
        %v3561 = vadd.f32 %v3433, -1.4531521
        %v3562 = vadd.f32 %v3434, -1.4531521
        %v3563 = vadd.f32 %v3435, -1.4531521
        %v3564 = vadd.f32 %v3436, -1.4531521
        %v3565 = vadd.f32 %v3437, -1.4531521
        %v3566 = vadd.f32 %v3438, -1.4531521
        %v3567 = vadd.f32 %v3439, -1.4531521
        %v3568 = vadd.f32 %v3440, -1.4531521
        %v3569 = vadd.f32 %v3441, -1.4531521
        %v3570 = vadd.f32 %v3442, -1.4531521
        %v3571 = vadd.f32 %v3443, -1.4531521
        %v3572 = vadd.f32 %v3444, -1.4531521
        %v3573 = vadd.f32 %v3445, -1.4531521
        %v3574 = vadd.f32 %v3446, -1.4531521
        %v3575 = vadd.f32 %v3447, -1.4531521
        %v3576 = vadd.f32 %v3448, -1.4531521
        %v3577 = vadd.f32 %v3449, -1.4531521
        %v3578 = vmul.f32 %v3450, %v3067
        %v3579 = vmul.f32 %v3451, %v3069
        %v3580 = vmul.f32 %v3452, %v3071
        %v3581 = vmul.f32 %v3453, %v3073
        %v3582 = vmul.f32 %v3454, %v3075
        %v3583 = vmul.f32 %v3455, %v3077
        %v3584 = vmul.f32 %v3456, %v3079
        %v3585 = vmul.f32 %v3457, %v3081
        %v3586 = vmul.f32 %v3458, %v3083
        %v3587 = vmul.f32 %v3459, %v3085
        %v3588 = vmul.f32 %v3460, %v3087
        %v3589 = vmul.f32 %v3461, %v3089
        %v3590 = vmul.f32 %v3462, %v3091
        %v3591 = vmul.f32 %v3463, %v3093
        %v3592 = vmul.f32 %v3464, %v3095
        %v3593 = vmul.f32 %v3465, %v3097
        %v3594 = vmul.f32 %v3466, %v3099
        %v3595 = vmul.f32 %v3467, %v3101
        %v3596 = vmul.f32 %v3468, %v3103
        %v3597 = vmul.f32 %v3469, %v3105
        %v3598 = vmul.f32 %v3470, %v3107
        %v3599 = vmul.f32 %v3471, %v3109
        %v3600 = vmul.f32 %v3472, %v3111
        %v3601 = vmul.f32 %v3473, %v3113
        %v3602 = vmul.f32 %v3474, %v3115
        %v3603 = vmul.f32 %v3475, %v3117
        %v3604 = vmul.f32 %v3476, %v3119
        %v3605 = vmul.f32 %v3477, %v3121
        %v3606 = vmul.f32 %v3478, %v3123
        %v3607 = vmul.f32 %v3479, %v3125
        %v3608 = vmul.f32 %v3480, %v3127
        %v3609 = vmul.f32 %v3481, %v3129
        %v3610 = vmul.f32 %v3482, %v3131
        %v3611 = vmul.f32 %v3483, %v3133
        %v3612 = vmul.f32 %v3484, %v3135
        %v3613 = vmul.f32 %v3485, %v3137
        %v3614 = vmul.f32 %v3486, %v3139
        %v3615 = vmul.f32 %v3487, %v3141
        %v3616 = vmul.f32 %v3488, %v3143
        %v3617 = vmul.f32 %v3489, %v3145
        %v3618 = vmul.f32 %v3490, %v3147
        %v3619 = vmul.f32 %v3491, %v3149
        %v3620 = vmul.f32 %v3492, %v3151
        %v3621 = vmul.f32 %v3493, %v3153
        %v3622 = vmul.f32 %v3494, %v3155
        %v3623 = vmul.f32 %v3495, %v3157
        %v3624 = vmul.f32 %v3496, %v3159
        %v3625 = vmul.f32 %v3497, %v3161
        %v3626 = vmul.f32 %v3498, %v3163
        %v3627 = vmul.f32 %v3499, %v3165
        %v3628 = vmul.f32 %v3500, %v3167
        %v3629 = vmul.f32 %v3501, %v3169
        %v3630 = vmul.f32 %v3502, %v3171
        %v3631 = vmul.f32 %v3503, %v3173
        %v3632 = vmul.f32 %v3504, %v3175
        %v3633 = vmul.f32 %v3505, %v3177
        %v3634 = vmul.f32 %v3506, %v3179
        %v3635 = vmul.f32 %v3507, %v3181
        %v3636 = vmul.f32 %v3508, %v3183
        %v3637 = vmul.f32 %v3509, %v3185
        %v3638 = vmul.f32 %v3510, %v3187
        %v3639 = vmul.f32 %v3511, %v3189
        %v3640 = vmul.f32 %v3512, %v3191
        %v3641 = vmul.f32 %v3513, %v3193
        %v3642 = vmul.f32 %v3514, %v3195
        %v3643 = vmul.f32 %v3515, %v3197
        %v3644 = vmul.f32 %v3516, %v3199
        %v3645 = vmul.f32 %v3517, %v3201
        %v3646 = vmul.f32 %v3518, %v3203
        %v3647 = vmul.f32 %v3519, %v3205
        %v3648 = vmul.f32 %v3520, %v3207
        %v3649 = vmul.f32 %v3521, %v3209
        %v3650 = vmul.f32 %v3522, %v3211
        %v3651 = vmul.f32 %v3523, %v3213
        %v3652 = vmul.f32 %v3524, %v3215
        %v3653 = vmul.f32 %v3525, %v3217
        %v3654 = vmul.f32 %v3526, %v3219
        %v3655 = vmul.f32 %v3527, %v3221
        %v3656 = vmul.f32 %v3528, %v3223
        %v3657 = vmul.f32 %v3529, %v3225
        %v3658 = vmul.f32 %v3530, %v3227
        %v3659 = vmul.f32 %v3531, %v3229
        %v3660 = vmul.f32 %v3532, %v3231
        %v3661 = vmul.f32 %v3533, %v3233
        %v3662 = vmul.f32 %v3534, %v3235
        %v3663 = vmul.f32 %v3535, %v3237
        %v3664 = vmul.f32 %v3536, %v3239
        %v3665 = vmul.f32 %v3537, %v3241
        %v3666 = vmul.f32 %v3538, %v3243
        %v3667 = vmul.f32 %v3539, %v3245
        %v3668 = vmul.f32 %v3540, %v3247
        %v3669 = vmul.f32 %v3541, %v3249
        %v3670 = vmul.f32 %v3542, %v3251
        %v3671 = vmul.f32 %v3543, %v3253
        %v3672 = vmul.f32 %v3544, %v3255
        %v3673 = vmul.f32 %v3545, %v3257
        %v3674 = vmul.f32 %v3546, %v3259
        %v3675 = vmul.f32 %v3547, %v3261
        %v3676 = vmul.f32 %v3548, %v3263
        %v3677 = vmul.f32 %v3549, %v3265
        %v3678 = vmul.f32 %v3550, %v3267
        %v3679 = vmul.f32 %v3551, %v3269
        %v3680 = vmul.f32 %v3552, %v3271
        %v3681 = vmul.f32 %v3553, %v3273
        %v3682 = vmul.f32 %v3554, %v3275
        %v3683 = vmul.f32 %v3555, %v3277
        %v3684 = vmul.f32 %v3556, %v3279
        %v3685 = vmul.f32 %v3557, %v3281
        %v3686 = vmul.f32 %v3558, %v3283
        %v3687 = vmul.f32 %v3559, %v3285
        %v3688 = vmul.f32 %v3560, %v3287
        %v3689 = vmul.f32 %v3561, %v3289
        %v3690 = vmul.f32 %v3562, %v3291
        %v3691 = vmul.f32 %v3563, %v3293
        %v3692 = vmul.f32 %v3564, %v3295
        %v3693 = vmul.f32 %v3565, %v3297
        %v3694 = vmul.f32 %v3566, %v3299
        %v3695 = vmul.f32 %v3567, %v3301
        %v3696 = vmul.f32 %v3568, %v3303
        %v3697 = vmul.f32 %v3569, %v3305
        %v3698 = vmul.f32 %v3570, %v3307
        %v3699 = vmul.f32 %v3571, %v3309
        %v3700 = vmul.f32 %v3572, %v3311
        %v3701 = vmul.f32 %v3573, %v3313
        %v3702 = vmul.f32 %v3574, %v3315
        %v3703 = vmul.f32 %v3575, %v3317
        %v3704 = vmul.f32 %v3576, %v3319
        %v3705 = vmul.f32 %v3577, %v3321
        %v3706 = vadd.f32 %v3578, 1.4214138
        %v3707 = vadd.f32 %v3579, 1.4214138
        %v3708 = vadd.f32 %v3580, 1.4214138
        %v3709 = vadd.f32 %v3581, 1.4214138
        %v3710 = vadd.f32 %v3582, 1.4214138
        %v3711 = vadd.f32 %v3583, 1.4214138
        %v3712 = vadd.f32 %v3584, 1.4214138
        %v3713 = vadd.f32 %v3585, 1.4214138
        %v3714 = vadd.f32 %v3586, 1.4214138
        %v3715 = vadd.f32 %v3587, 1.4214138
        %v3716 = vadd.f32 %v3588, 1.4214138
        %v3717 = vadd.f32 %v3589, 1.4214138
        %v3718 = vadd.f32 %v3590, 1.4214138
        %v3719 = vadd.f32 %v3591, 1.4214138
        %v3720 = vadd.f32 %v3592, 1.4214138
        %v3721 = vadd.f32 %v3593, 1.4214138
        %v3722 = vadd.f32 %v3594, 1.4214138
        %v3723 = vadd.f32 %v3595, 1.4214138
        %v3724 = vadd.f32 %v3596, 1.4214138
        %v3725 = vadd.f32 %v3597, 1.4214138
        %v3726 = vadd.f32 %v3598, 1.4214138
        %v3727 = vadd.f32 %v3599, 1.4214138
        %v3728 = vadd.f32 %v3600, 1.4214138
        %v3729 = vadd.f32 %v3601, 1.4214138
        %v3730 = vadd.f32 %v3602, 1.4214138
        %v3731 = vadd.f32 %v3603, 1.4214138
        %v3732 = vadd.f32 %v3604, 1.4214138
        %v3733 = vadd.f32 %v3605, 1.4214138
        %v3734 = vadd.f32 %v3606, 1.4214138
        %v3735 = vadd.f32 %v3607, 1.4214138
        %v3736 = vadd.f32 %v3608, 1.4214138
        %v3737 = vadd.f32 %v3609, 1.4214138
        %v3738 = vadd.f32 %v3610, 1.4214138
        %v3739 = vadd.f32 %v3611, 1.4214138
        %v3740 = vadd.f32 %v3612, 1.4214138
        %v3741 = vadd.f32 %v3613, 1.4214138
        %v3742 = vadd.f32 %v3614, 1.4214138
        %v3743 = vadd.f32 %v3615, 1.4214138
        %v3744 = vadd.f32 %v3616, 1.4214138
        %v3745 = vadd.f32 %v3617, 1.4214138
        %v3746 = vadd.f32 %v3618, 1.4214138
        %v3747 = vadd.f32 %v3619, 1.4214138
        %v3748 = vadd.f32 %v3620, 1.4214138
        %v3749 = vadd.f32 %v3621, 1.4214138
        %v3750 = vadd.f32 %v3622, 1.4214138
        %v3751 = vadd.f32 %v3623, 1.4214138
        %v3752 = vadd.f32 %v3624, 1.4214138
        %v3753 = vadd.f32 %v3625, 1.4214138
        %v3754 = vadd.f32 %v3626, 1.4214138
        %v3755 = vadd.f32 %v3627, 1.4214138
        %v3756 = vadd.f32 %v3628, 1.4214138
        %v3757 = vadd.f32 %v3629, 1.4214138
        %v3758 = vadd.f32 %v3630, 1.4214138
        %v3759 = vadd.f32 %v3631, 1.4214138
        %v3760 = vadd.f32 %v3632, 1.4214138
        %v3761 = vadd.f32 %v3633, 1.4214138
        %v3762 = vadd.f32 %v3634, 1.4214138
        %v3763 = vadd.f32 %v3635, 1.4214138
        %v3764 = vadd.f32 %v3636, 1.4214138
        %v3765 = vadd.f32 %v3637, 1.4214138
        %v3766 = vadd.f32 %v3638, 1.4214138
        %v3767 = vadd.f32 %v3639, 1.4214138
        %v3768 = vadd.f32 %v3640, 1.4214138
        %v3769 = vadd.f32 %v3641, 1.4214138
        %v3770 = vadd.f32 %v3642, 1.4214138
        %v3771 = vadd.f32 %v3643, 1.4214138
        %v3772 = vadd.f32 %v3644, 1.4214138
        %v3773 = vadd.f32 %v3645, 1.4214138
        %v3774 = vadd.f32 %v3646, 1.4214138
        %v3775 = vadd.f32 %v3647, 1.4214138
        %v3776 = vadd.f32 %v3648, 1.4214138
        %v3777 = vadd.f32 %v3649, 1.4214138
        %v3778 = vadd.f32 %v3650, 1.4214138
        %v3779 = vadd.f32 %v3651, 1.4214138
        %v3780 = vadd.f32 %v3652, 1.4214138
        %v3781 = vadd.f32 %v3653, 1.4214138
        %v3782 = vadd.f32 %v3654, 1.4214138
        %v3783 = vadd.f32 %v3655, 1.4214138
        %v3784 = vadd.f32 %v3656, 1.4214138
        %v3785 = vadd.f32 %v3657, 1.4214138
        %v3786 = vadd.f32 %v3658, 1.4214138
        %v3787 = vadd.f32 %v3659, 1.4214138
        %v3788 = vadd.f32 %v3660, 1.4214138
        %v3789 = vadd.f32 %v3661, 1.4214138
        %v3790 = vadd.f32 %v3662, 1.4214138
        %v3791 = vadd.f32 %v3663, 1.4214138
        %v3792 = vadd.f32 %v3664, 1.4214138
        %v3793 = vadd.f32 %v3665, 1.4214138
        %v3794 = vadd.f32 %v3666, 1.4214138
        %v3795 = vadd.f32 %v3667, 1.4214138
        %v3796 = vadd.f32 %v3668, 1.4214138
        %v3797 = vadd.f32 %v3669, 1.4214138
        %v3798 = vadd.f32 %v3670, 1.4214138
        %v3799 = vadd.f32 %v3671, 1.4214138
        %v3800 = vadd.f32 %v3672, 1.4214138
        %v3801 = vadd.f32 %v3673, 1.4214138
        %v3802 = vadd.f32 %v3674, 1.4214138
        %v3803 = vadd.f32 %v3675, 1.4214138
        %v3804 = vadd.f32 %v3676, 1.4214138
        %v3805 = vadd.f32 %v3677, 1.4214138
        %v3806 = vadd.f32 %v3678, 1.4214138
        %v3807 = vadd.f32 %v3679, 1.4214138
        %v3808 = vadd.f32 %v3680, 1.4214138
        %v3809 = vadd.f32 %v3681, 1.4214138
        %v3810 = vadd.f32 %v3682, 1.4214138
        %v3811 = vadd.f32 %v3683, 1.4214138
        %v3812 = vadd.f32 %v3684, 1.4214138
        %v3813 = vadd.f32 %v3685, 1.4214138
        %v3814 = vadd.f32 %v3686, 1.4214138
        %v3815 = vadd.f32 %v3687, 1.4214138
        %v3816 = vadd.f32 %v3688, 1.4214138
        %v3817 = vadd.f32 %v3689, 1.4214138
        %v3818 = vadd.f32 %v3690, 1.4214138
        %v3819 = vadd.f32 %v3691, 1.4214138
        %v3820 = vadd.f32 %v3692, 1.4214138
        %v3821 = vadd.f32 %v3693, 1.4214138
        %v3822 = vadd.f32 %v3694, 1.4214138
        %v3823 = vadd.f32 %v3695, 1.4214138
        %v3824 = vadd.f32 %v3696, 1.4214138
        %v3825 = vadd.f32 %v3697, 1.4214138
        %v3826 = vadd.f32 %v3698, 1.4214138
        %v3827 = vadd.f32 %v3699, 1.4214138
        %v3828 = vadd.f32 %v3700, 1.4214138
        %v3829 = vadd.f32 %v3701, 1.4214138
        %v3830 = vadd.f32 %v3702, 1.4214138
        %v3831 = vadd.f32 %v3703, 1.4214138
        %v3832 = vadd.f32 %v3704, 1.4214138
        %v3833 = vadd.f32 %v3705, 1.4214138
        %v3834 = vmul.f32 %v3706, %v3067
        %v3835 = vmul.f32 %v3707, %v3069
        %v3836 = vmul.f32 %v3708, %v3071
        %v3837 = vmul.f32 %v3709, %v3073
        %v3838 = vmul.f32 %v3710, %v3075
        %v3839 = vmul.f32 %v3711, %v3077
        %v3840 = vmul.f32 %v3712, %v3079
        %v3841 = vmul.f32 %v3713, %v3081
        %v3842 = vmul.f32 %v3714, %v3083
        %v3843 = vmul.f32 %v3715, %v3085
        %v3844 = vmul.f32 %v3716, %v3087
        %v3845 = vmul.f32 %v3717, %v3089
        %v3846 = vmul.f32 %v3718, %v3091
        %v3847 = vmul.f32 %v3719, %v3093
        %v3848 = vmul.f32 %v3720, %v3095
        %v3849 = vmul.f32 %v3721, %v3097
        %v3850 = vmul.f32 %v3722, %v3099
        %v3851 = vmul.f32 %v3723, %v3101
        %v3852 = vmul.f32 %v3724, %v3103
        %v3853 = vmul.f32 %v3725, %v3105
        %v3854 = vmul.f32 %v3726, %v3107
        %v3855 = vmul.f32 %v3727, %v3109
        %v3856 = vmul.f32 %v3728, %v3111
        %v3857 = vmul.f32 %v3729, %v3113
        %v3858 = vmul.f32 %v3730, %v3115
        %v3859 = vmul.f32 %v3731, %v3117
        %v3860 = vmul.f32 %v3732, %v3119
        %v3861 = vmul.f32 %v3733, %v3121
        %v3862 = vmul.f32 %v3734, %v3123
        %v3863 = vmul.f32 %v3735, %v3125
        %v3864 = vmul.f32 %v3736, %v3127
        %v3865 = vmul.f32 %v3737, %v3129
        %v3866 = vmul.f32 %v3738, %v3131
        %v3867 = vmul.f32 %v3739, %v3133
        %v3868 = vmul.f32 %v3740, %v3135
        %v3869 = vmul.f32 %v3741, %v3137
        %v3870 = vmul.f32 %v3742, %v3139
        %v3871 = vmul.f32 %v3743, %v3141
        %v3872 = vmul.f32 %v3744, %v3143
        %v3873 = vmul.f32 %v3745, %v3145
        %v3874 = vmul.f32 %v3746, %v3147
        %v3875 = vmul.f32 %v3747, %v3149
        %v3876 = vmul.f32 %v3748, %v3151
        %v3877 = vmul.f32 %v3749, %v3153
        %v3878 = vmul.f32 %v3750, %v3155
        %v3879 = vmul.f32 %v3751, %v3157
        %v3880 = vmul.f32 %v3752, %v3159
        %v3881 = vmul.f32 %v3753, %v3161
        %v3882 = vmul.f32 %v3754, %v3163
        %v3883 = vmul.f32 %v3755, %v3165
        %v3884 = vmul.f32 %v3756, %v3167
        %v3885 = vmul.f32 %v3757, %v3169
        %v3886 = vmul.f32 %v3758, %v3171
        %v3887 = vmul.f32 %v3759, %v3173
        %v3888 = vmul.f32 %v3760, %v3175
        %v3889 = vmul.f32 %v3761, %v3177
        %v3890 = vmul.f32 %v3762, %v3179
        %v3891 = vmul.f32 %v3763, %v3181
        %v3892 = vmul.f32 %v3764, %v3183
        %v3893 = vmul.f32 %v3765, %v3185
        %v3894 = vmul.f32 %v3766, %v3187
        %v3895 = vmul.f32 %v3767, %v3189
        %v3896 = vmul.f32 %v3768, %v3191
        %v3897 = vmul.f32 %v3769, %v3193
        %v3898 = vmul.f32 %v3770, %v3195
        %v3899 = vmul.f32 %v3771, %v3197
        %v3900 = vmul.f32 %v3772, %v3199
        %v3901 = vmul.f32 %v3773, %v3201
        %v3902 = vmul.f32 %v3774, %v3203
        %v3903 = vmul.f32 %v3775, %v3205
        %v3904 = vmul.f32 %v3776, %v3207
        %v3905 = vmul.f32 %v3777, %v3209
        %v3906 = vmul.f32 %v3778, %v3211
        %v3907 = vmul.f32 %v3779, %v3213
        %v3908 = vmul.f32 %v3780, %v3215
        %v3909 = vmul.f32 %v3781, %v3217
        %v3910 = vmul.f32 %v3782, %v3219
        %v3911 = vmul.f32 %v3783, %v3221
        %v3912 = vmul.f32 %v3784, %v3223
        %v3913 = vmul.f32 %v3785, %v3225
        %v3914 = vmul.f32 %v3786, %v3227
        %v3915 = vmul.f32 %v3787, %v3229
        %v3916 = vmul.f32 %v3788, %v3231
        %v3917 = vmul.f32 %v3789, %v3233
        %v3918 = vmul.f32 %v3790, %v3235
        %v3919 = vmul.f32 %v3791, %v3237
        %v3920 = vmul.f32 %v3792, %v3239
        %v3921 = vmul.f32 %v3793, %v3241
        %v3922 = vmul.f32 %v3794, %v3243
        %v3923 = vmul.f32 %v3795, %v3245
        %v3924 = vmul.f32 %v3796, %v3247
        %v3925 = vmul.f32 %v3797, %v3249
        %v3926 = vmul.f32 %v3798, %v3251
        %v3927 = vmul.f32 %v3799, %v3253
        %v3928 = vmul.f32 %v3800, %v3255
        %v3929 = vmul.f32 %v3801, %v3257
        %v3930 = vmul.f32 %v3802, %v3259
        %v3931 = vmul.f32 %v3803, %v3261
        %v3932 = vmul.f32 %v3804, %v3263
        %v3933 = vmul.f32 %v3805, %v3265
        %v3934 = vmul.f32 %v3806, %v3267
        %v3935 = vmul.f32 %v3807, %v3269
        %v3936 = vmul.f32 %v3808, %v3271
        %v3937 = vmul.f32 %v3809, %v3273
        %v3938 = vmul.f32 %v3810, %v3275
        %v3939 = vmul.f32 %v3811, %v3277
        %v3940 = vmul.f32 %v3812, %v3279
        %v3941 = vmul.f32 %v3813, %v3281
        %v3942 = vmul.f32 %v3814, %v3283
        %v3943 = vmul.f32 %v3815, %v3285
        %v3944 = vmul.f32 %v3816, %v3287
        %v3945 = vmul.f32 %v3817, %v3289
        %v3946 = vmul.f32 %v3818, %v3291
        %v3947 = vmul.f32 %v3819, %v3293
        %v3948 = vmul.f32 %v3820, %v3295
        %v3949 = vmul.f32 %v3821, %v3297
        %v3950 = vmul.f32 %v3822, %v3299
        %v3951 = vmul.f32 %v3823, %v3301
        %v3952 = vmul.f32 %v3824, %v3303
        %v3953 = vmul.f32 %v3825, %v3305
        %v3954 = vmul.f32 %v3826, %v3307
        %v3955 = vmul.f32 %v3827, %v3309
        %v3956 = vmul.f32 %v3828, %v3311
        %v3957 = vmul.f32 %v3829, %v3313
        %v3958 = vmul.f32 %v3830, %v3315
        %v3959 = vmul.f32 %v3831, %v3317
        %v3960 = vmul.f32 %v3832, %v3319
        %v3961 = vmul.f32 %v3833, %v3321
        %v3962 = vadd.f32 %v3834, -0.28449672
        %v3963 = vadd.f32 %v3835, -0.28449672
        %v3964 = vadd.f32 %v3836, -0.28449672
        %v3965 = vadd.f32 %v3837, -0.28449672
        %v3966 = vadd.f32 %v3838, -0.28449672
        %v3967 = vadd.f32 %v3839, -0.28449672
        %v3968 = vadd.f32 %v3840, -0.28449672
        %v3969 = vadd.f32 %v3841, -0.28449672
        %v3970 = vadd.f32 %v3842, -0.28449672
        %v3971 = vadd.f32 %v3843, -0.28449672
        %v3972 = vadd.f32 %v3844, -0.28449672
        %v3973 = vadd.f32 %v3845, -0.28449672
        %v3974 = vadd.f32 %v3846, -0.28449672
        %v3975 = vadd.f32 %v3847, -0.28449672
        %v3976 = vadd.f32 %v3848, -0.28449672
        %v3977 = vadd.f32 %v3849, -0.28449672
        %v3978 = vadd.f32 %v3850, -0.28449672
        %v3979 = vadd.f32 %v3851, -0.28449672
        %v3980 = vadd.f32 %v3852, -0.28449672
        %v3981 = vadd.f32 %v3853, -0.28449672
        %v3982 = vadd.f32 %v3854, -0.28449672
        %v3983 = vadd.f32 %v3855, -0.28449672
        %v3984 = vadd.f32 %v3856, -0.28449672
        %v3985 = vadd.f32 %v3857, -0.28449672
        %v3986 = vadd.f32 %v3858, -0.28449672
        %v3987 = vadd.f32 %v3859, -0.28449672
        %v3988 = vadd.f32 %v3860, -0.28449672
        %v3989 = vadd.f32 %v3861, -0.28449672
        %v3990 = vadd.f32 %v3862, -0.28449672
        %v3991 = vadd.f32 %v3863, -0.28449672
        %v3992 = vadd.f32 %v3864, -0.28449672
        %v3993 = vadd.f32 %v3865, -0.28449672
        %v3994 = vadd.f32 %v3866, -0.28449672
        %v3995 = vadd.f32 %v3867, -0.28449672
        %v3996 = vadd.f32 %v3868, -0.28449672
        %v3997 = vadd.f32 %v3869, -0.28449672
        %v3998 = vadd.f32 %v3870, -0.28449672
        %v3999 = vadd.f32 %v3871, -0.28449672
        %v4000 = vadd.f32 %v3872, -0.28449672
        %v4001 = vadd.f32 %v3873, -0.28449672
        %v4002 = vadd.f32 %v3874, -0.28449672
        %v4003 = vadd.f32 %v3875, -0.28449672
        %v4004 = vadd.f32 %v3876, -0.28449672
        %v4005 = vadd.f32 %v3877, -0.28449672
        %v4006 = vadd.f32 %v3878, -0.28449672
        %v4007 = vadd.f32 %v3879, -0.28449672
        %v4008 = vadd.f32 %v3880, -0.28449672
        %v4009 = vadd.f32 %v3881, -0.28449672
        %v4010 = vadd.f32 %v3882, -0.28449672
        %v4011 = vadd.f32 %v3883, -0.28449672
        %v4012 = vadd.f32 %v3884, -0.28449672
        %v4013 = vadd.f32 %v3885, -0.28449672
        %v4014 = vadd.f32 %v3886, -0.28449672
        %v4015 = vadd.f32 %v3887, -0.28449672
        %v4016 = vadd.f32 %v3888, -0.28449672
        %v4017 = vadd.f32 %v3889, -0.28449672
        %v4018 = vadd.f32 %v3890, -0.28449672
        %v4019 = vadd.f32 %v3891, -0.28449672
        %v4020 = vadd.f32 %v3892, -0.28449672
        %v4021 = vadd.f32 %v3893, -0.28449672
        %v4022 = vadd.f32 %v3894, -0.28449672
        %v4023 = vadd.f32 %v3895, -0.28449672
        %v4024 = vadd.f32 %v3896, -0.28449672
        %v4025 = vadd.f32 %v3897, -0.28449672
        %v4026 = vadd.f32 %v3898, -0.28449672
        %v4027 = vadd.f32 %v3899, -0.28449672
        %v4028 = vadd.f32 %v3900, -0.28449672
        %v4029 = vadd.f32 %v3901, -0.28449672
        %v4030 = vadd.f32 %v3902, -0.28449672
        %v4031 = vadd.f32 %v3903, -0.28449672
        %v4032 = vadd.f32 %v3904, -0.28449672
        %v4033 = vadd.f32 %v3905, -0.28449672
        %v4034 = vadd.f32 %v3906, -0.28449672
        %v4035 = vadd.f32 %v3907, -0.28449672
        %v4036 = vadd.f32 %v3908, -0.28449672
        %v4037 = vadd.f32 %v3909, -0.28449672
        %v4038 = vadd.f32 %v3910, -0.28449672
        %v4039 = vadd.f32 %v3911, -0.28449672
        %v4040 = vadd.f32 %v3912, -0.28449672
        %v4041 = vadd.f32 %v3913, -0.28449672
        %v4042 = vadd.f32 %v3914, -0.28449672
        %v4043 = vadd.f32 %v3915, -0.28449672
        %v4044 = vadd.f32 %v3916, -0.28449672
        %v4045 = vadd.f32 %v3917, -0.28449672
        %v4046 = vadd.f32 %v3918, -0.28449672
        %v4047 = vadd.f32 %v3919, -0.28449672
        %v4048 = vadd.f32 %v3920, -0.28449672
        %v4049 = vadd.f32 %v3921, -0.28449672
        %v4050 = vadd.f32 %v3922, -0.28449672
        %v4051 = vadd.f32 %v3923, -0.28449672
        %v4052 = vadd.f32 %v3924, -0.28449672
        %v4053 = vadd.f32 %v3925, -0.28449672
        %v4054 = vadd.f32 %v3926, -0.28449672
        %v4055 = vadd.f32 %v3927, -0.28449672
        %v4056 = vadd.f32 %v3928, -0.28449672
        %v4057 = vadd.f32 %v3929, -0.28449672
        %v4058 = vadd.f32 %v3930, -0.28449672
        %v4059 = vadd.f32 %v3931, -0.28449672
        %v4060 = vadd.f32 %v3932, -0.28449672
        %v4061 = vadd.f32 %v3933, -0.28449672
        %v4062 = vadd.f32 %v3934, -0.28449672
        %v4063 = vadd.f32 %v3935, -0.28449672
        %v4064 = vadd.f32 %v3936, -0.28449672
        %v4065 = vadd.f32 %v3937, -0.28449672
        %v4066 = vadd.f32 %v3938, -0.28449672
        %v4067 = vadd.f32 %v3939, -0.28449672
        %v4068 = vadd.f32 %v3940, -0.28449672
        %v4069 = vadd.f32 %v3941, -0.28449672
        %v4070 = vadd.f32 %v3942, -0.28449672
        %v4071 = vadd.f32 %v3943, -0.28449672
        %v4072 = vadd.f32 %v3944, -0.28449672
        %v4073 = vadd.f32 %v3945, -0.28449672
        %v4074 = vadd.f32 %v3946, -0.28449672
        %v4075 = vadd.f32 %v3947, -0.28449672
        %v4076 = vadd.f32 %v3948, -0.28449672
        %v4077 = vadd.f32 %v3949, -0.28449672
        %v4078 = vadd.f32 %v3950, -0.28449672
        %v4079 = vadd.f32 %v3951, -0.28449672
        %v4080 = vadd.f32 %v3952, -0.28449672
        %v4081 = vadd.f32 %v3953, -0.28449672
        %v4082 = vadd.f32 %v3954, -0.28449672
        %v4083 = vadd.f32 %v3955, -0.28449672
        %v4084 = vadd.f32 %v3956, -0.28449672
        %v4085 = vadd.f32 %v3957, -0.28449672
        %v4086 = vadd.f32 %v3958, -0.28449672
        %v4087 = vadd.f32 %v3959, -0.28449672
        %v4088 = vadd.f32 %v3960, -0.28449672
        %v4089 = vadd.f32 %v3961, -0.28449672
        %v4090 = vmul.f32 %v3962, %v3067
        %v4091 = vmul.f32 %v3963, %v3069
        %v4092 = vmul.f32 %v3964, %v3071
        %v4093 = vmul.f32 %v3965, %v3073
        %v4094 = vmul.f32 %v3966, %v3075
        %v4095 = vmul.f32 %v3967, %v3077
        %v4096 = vmul.f32 %v3968, %v3079
        %v4097 = vmul.f32 %v3969, %v3081
        %v4098 = vmul.f32 %v3970, %v3083
        %v4099 = vmul.f32 %v3971, %v3085
        %v4100 = vmul.f32 %v3972, %v3087
        %v4101 = vmul.f32 %v3973, %v3089
        %v4102 = vmul.f32 %v3974, %v3091
        %v4103 = vmul.f32 %v3975, %v3093
        %v4104 = vmul.f32 %v3976, %v3095
        %v4105 = vmul.f32 %v3977, %v3097
        %v4106 = vmul.f32 %v3978, %v3099
        %v4107 = vmul.f32 %v3979, %v3101
        %v4108 = vmul.f32 %v3980, %v3103
        %v4109 = vmul.f32 %v3981, %v3105
        %v4110 = vmul.f32 %v3982, %v3107
        %v4111 = vmul.f32 %v3983, %v3109
        %v4112 = vmul.f32 %v3984, %v3111
        %v4113 = vmul.f32 %v3985, %v3113
        %v4114 = vmul.f32 %v3986, %v3115
        %v4115 = vmul.f32 %v3987, %v3117
        %v4116 = vmul.f32 %v3988, %v3119
        %v4117 = vmul.f32 %v3989, %v3121
        %v4118 = vmul.f32 %v3990, %v3123
        %v4119 = vmul.f32 %v3991, %v3125
        %v4120 = vmul.f32 %v3992, %v3127
        %v4121 = vmul.f32 %v3993, %v3129
        %v4122 = vmul.f32 %v3994, %v3131
        %v4123 = vmul.f32 %v3995, %v3133
        %v4124 = vmul.f32 %v3996, %v3135
        %v4125 = vmul.f32 %v3997, %v3137
        %v4126 = vmul.f32 %v3998, %v3139
        %v4127 = vmul.f32 %v3999, %v3141
        %v4128 = vmul.f32 %v4000, %v3143
        %v4129 = vmul.f32 %v4001, %v3145
        %v4130 = vmul.f32 %v4002, %v3147
        %v4131 = vmul.f32 %v4003, %v3149
        %v4132 = vmul.f32 %v4004, %v3151
        %v4133 = vmul.f32 %v4005, %v3153
        %v4134 = vmul.f32 %v4006, %v3155
        %v4135 = vmul.f32 %v4007, %v3157
        %v4136 = vmul.f32 %v4008, %v3159
        %v4137 = vmul.f32 %v4009, %v3161
        %v4138 = vmul.f32 %v4010, %v3163
        %v4139 = vmul.f32 %v4011, %v3165
        %v4140 = vmul.f32 %v4012, %v3167
        %v4141 = vmul.f32 %v4013, %v3169
        %v4142 = vmul.f32 %v4014, %v3171
        %v4143 = vmul.f32 %v4015, %v3173
        %v4144 = vmul.f32 %v4016, %v3175
        %v4145 = vmul.f32 %v4017, %v3177
        %v4146 = vmul.f32 %v4018, %v3179
        %v4147 = vmul.f32 %v4019, %v3181
        %v4148 = vmul.f32 %v4020, %v3183
        %v4149 = vmul.f32 %v4021, %v3185
        %v4150 = vmul.f32 %v4022, %v3187
        %v4151 = vmul.f32 %v4023, %v3189
        %v4152 = vmul.f32 %v4024, %v3191
        %v4153 = vmul.f32 %v4025, %v3193
        %v4154 = vmul.f32 %v4026, %v3195
        %v4155 = vmul.f32 %v4027, %v3197
        %v4156 = vmul.f32 %v4028, %v3199
        %v4157 = vmul.f32 %v4029, %v3201
        %v4158 = vmul.f32 %v4030, %v3203
        %v4159 = vmul.f32 %v4031, %v3205
        %v4160 = vmul.f32 %v4032, %v3207
        %v4161 = vmul.f32 %v4033, %v3209
        %v4162 = vmul.f32 %v4034, %v3211
        %v4163 = vmul.f32 %v4035, %v3213
        %v4164 = vmul.f32 %v4036, %v3215
        %v4165 = vmul.f32 %v4037, %v3217
        %v4166 = vmul.f32 %v4038, %v3219
        %v4167 = vmul.f32 %v4039, %v3221
        %v4168 = vmul.f32 %v4040, %v3223
        %v4169 = vmul.f32 %v4041, %v3225
        %v4170 = vmul.f32 %v4042, %v3227
        %v4171 = vmul.f32 %v4043, %v3229
        %v4172 = vmul.f32 %v4044, %v3231
        %v4173 = vmul.f32 %v4045, %v3233
        %v4174 = vmul.f32 %v4046, %v3235
        %v4175 = vmul.f32 %v4047, %v3237
        %v4176 = vmul.f32 %v4048, %v3239
        %v4177 = vmul.f32 %v4049, %v3241
        %v4178 = vmul.f32 %v4050, %v3243
        %v4179 = vmul.f32 %v4051, %v3245
        %v4180 = vmul.f32 %v4052, %v3247
        %v4181 = vmul.f32 %v4053, %v3249
        %v4182 = vmul.f32 %v4054, %v3251
        %v4183 = vmul.f32 %v4055, %v3253
        %v4184 = vmul.f32 %v4056, %v3255
        %v4185 = vmul.f32 %v4057, %v3257
        %v4186 = vmul.f32 %v4058, %v3259
        %v4187 = vmul.f32 %v4059, %v3261
        %v4188 = vmul.f32 %v4060, %v3263
        %v4189 = vmul.f32 %v4061, %v3265
        %v4190 = vmul.f32 %v4062, %v3267
        %v4191 = vmul.f32 %v4063, %v3269
        %v4192 = vmul.f32 %v4064, %v3271
        %v4193 = vmul.f32 %v4065, %v3273
        %v4194 = vmul.f32 %v4066, %v3275
        %v4195 = vmul.f32 %v4067, %v3277
        %v4196 = vmul.f32 %v4068, %v3279
        %v4197 = vmul.f32 %v4069, %v3281
        %v4198 = vmul.f32 %v4070, %v3283
        %v4199 = vmul.f32 %v4071, %v3285
        %v4200 = vmul.f32 %v4072, %v3287
        %v4201 = vmul.f32 %v4073, %v3289
        %v4202 = vmul.f32 %v4074, %v3291
        %v4203 = vmul.f32 %v4075, %v3293
        %v4204 = vmul.f32 %v4076, %v3295
        %v4205 = vmul.f32 %v4077, %v3297
        %v4206 = vmul.f32 %v4078, %v3299
        %v4207 = vmul.f32 %v4079, %v3301
        %v4208 = vmul.f32 %v4080, %v3303
        %v4209 = vmul.f32 %v4081, %v3305
        %v4210 = vmul.f32 %v4082, %v3307
        %v4211 = vmul.f32 %v4083, %v3309
        %v4212 = vmul.f32 %v4084, %v3311
        %v4213 = vmul.f32 %v4085, %v3313
        %v4214 = vmul.f32 %v4086, %v3315
        %v4215 = vmul.f32 %v4087, %v3317
        %v4216 = vmul.f32 %v4088, %v3319
        %v4217 = vmul.f32 %v4089, %v3321
        %v4218 = vadd.f32 %v4090, 0.2548296
        %v4219 = vadd.f32 %v4091, 0.2548296
        %v4220 = vadd.f32 %v4092, 0.2548296
        %v4221 = vadd.f32 %v4093, 0.2548296
        %v4222 = vadd.f32 %v4094, 0.2548296
        %v4223 = vadd.f32 %v4095, 0.2548296
        %v4224 = vadd.f32 %v4096, 0.2548296
        %v4225 = vadd.f32 %v4097, 0.2548296
        %v4226 = vadd.f32 %v4098, 0.2548296
        %v4227 = vadd.f32 %v4099, 0.2548296
        %v4228 = vadd.f32 %v4100, 0.2548296
        %v4229 = vadd.f32 %v4101, 0.2548296
        %v4230 = vadd.f32 %v4102, 0.2548296
        %v4231 = vadd.f32 %v4103, 0.2548296
        %v4232 = vadd.f32 %v4104, 0.2548296
        %v4233 = vadd.f32 %v4105, 0.2548296
        %v4234 = vadd.f32 %v4106, 0.2548296
        %v4235 = vadd.f32 %v4107, 0.2548296
        %v4236 = vadd.f32 %v4108, 0.2548296
        %v4237 = vadd.f32 %v4109, 0.2548296
        %v4238 = vadd.f32 %v4110, 0.2548296
        %v4239 = vadd.f32 %v4111, 0.2548296
        %v4240 = vadd.f32 %v4112, 0.2548296
        %v4241 = vadd.f32 %v4113, 0.2548296
        %v4242 = vadd.f32 %v4114, 0.2548296
        %v4243 = vadd.f32 %v4115, 0.2548296
        %v4244 = vadd.f32 %v4116, 0.2548296
        %v4245 = vadd.f32 %v4117, 0.2548296
        %v4246 = vadd.f32 %v4118, 0.2548296
        %v4247 = vadd.f32 %v4119, 0.2548296
        %v4248 = vadd.f32 %v4120, 0.2548296
        %v4249 = vadd.f32 %v4121, 0.2548296
        %v4250 = vadd.f32 %v4122, 0.2548296
        %v4251 = vadd.f32 %v4123, 0.2548296
        %v4252 = vadd.f32 %v4124, 0.2548296
        %v4253 = vadd.f32 %v4125, 0.2548296
        %v4254 = vadd.f32 %v4126, 0.2548296
        %v4255 = vadd.f32 %v4127, 0.2548296
        %v4256 = vadd.f32 %v4128, 0.2548296
        %v4257 = vadd.f32 %v4129, 0.2548296
        %v4258 = vadd.f32 %v4130, 0.2548296
        %v4259 = vadd.f32 %v4131, 0.2548296
        %v4260 = vadd.f32 %v4132, 0.2548296
        %v4261 = vadd.f32 %v4133, 0.2548296
        %v4262 = vadd.f32 %v4134, 0.2548296
        %v4263 = vadd.f32 %v4135, 0.2548296
        %v4264 = vadd.f32 %v4136, 0.2548296
        %v4265 = vadd.f32 %v4137, 0.2548296
        %v4266 = vadd.f32 %v4138, 0.2548296
        %v4267 = vadd.f32 %v4139, 0.2548296
        %v4268 = vadd.f32 %v4140, 0.2548296
        %v4269 = vadd.f32 %v4141, 0.2548296
        %v4270 = vadd.f32 %v4142, 0.2548296
        %v4271 = vadd.f32 %v4143, 0.2548296
        %v4272 = vadd.f32 %v4144, 0.2548296
        %v4273 = vadd.f32 %v4145, 0.2548296
        %v4274 = vadd.f32 %v4146, 0.2548296
        %v4275 = vadd.f32 %v4147, 0.2548296
        %v4276 = vadd.f32 %v4148, 0.2548296
        %v4277 = vadd.f32 %v4149, 0.2548296
        %v4278 = vadd.f32 %v4150, 0.2548296
        %v4279 = vadd.f32 %v4151, 0.2548296
        %v4280 = vadd.f32 %v4152, 0.2548296
        %v4281 = vadd.f32 %v4153, 0.2548296
        %v4282 = vadd.f32 %v4154, 0.2548296
        %v4283 = vadd.f32 %v4155, 0.2548296
        %v4284 = vadd.f32 %v4156, 0.2548296
        %v4285 = vadd.f32 %v4157, 0.2548296
        %v4286 = vadd.f32 %v4158, 0.2548296
        %v4287 = vadd.f32 %v4159, 0.2548296
        %v4288 = vadd.f32 %v4160, 0.2548296
        %v4289 = vadd.f32 %v4161, 0.2548296
        %v4290 = vadd.f32 %v4162, 0.2548296
        %v4291 = vadd.f32 %v4163, 0.2548296
        %v4292 = vadd.f32 %v4164, 0.2548296
        %v4293 = vadd.f32 %v4165, 0.2548296
        %v4294 = vadd.f32 %v4166, 0.2548296
        %v4295 = vadd.f32 %v4167, 0.2548296
        %v4296 = vadd.f32 %v4168, 0.2548296
        %v4297 = vadd.f32 %v4169, 0.2548296
        %v4298 = vadd.f32 %v4170, 0.2548296
        %v4299 = vadd.f32 %v4171, 0.2548296
        %v4300 = vadd.f32 %v4172, 0.2548296
        %v4301 = vadd.f32 %v4173, 0.2548296
        %v4302 = vadd.f32 %v4174, 0.2548296
        %v4303 = vadd.f32 %v4175, 0.2548296
        %v4304 = vadd.f32 %v4176, 0.2548296
        %v4305 = vadd.f32 %v4177, 0.2548296
        %v4306 = vadd.f32 %v4178, 0.2548296
        %v4307 = vadd.f32 %v4179, 0.2548296
        %v4308 = vadd.f32 %v4180, 0.2548296
        %v4309 = vadd.f32 %v4181, 0.2548296
        %v4310 = vadd.f32 %v4182, 0.2548296
        %v4311 = vadd.f32 %v4183, 0.2548296
        %v4312 = vadd.f32 %v4184, 0.2548296
        %v4313 = vadd.f32 %v4185, 0.2548296
        %v4314 = vadd.f32 %v4186, 0.2548296
        %v4315 = vadd.f32 %v4187, 0.2548296
        %v4316 = vadd.f32 %v4188, 0.2548296
        %v4317 = vadd.f32 %v4189, 0.2548296
        %v4318 = vadd.f32 %v4190, 0.2548296
        %v4319 = vadd.f32 %v4191, 0.2548296
        %v4320 = vadd.f32 %v4192, 0.2548296
        %v4321 = vadd.f32 %v4193, 0.2548296
        %v4322 = vadd.f32 %v4194, 0.2548296
        %v4323 = vadd.f32 %v4195, 0.2548296
        %v4324 = vadd.f32 %v4196, 0.2548296
        %v4325 = vadd.f32 %v4197, 0.2548296
        %v4326 = vadd.f32 %v4198, 0.2548296
        %v4327 = vadd.f32 %v4199, 0.2548296
        %v4328 = vadd.f32 %v4200, 0.2548296
        %v4329 = vadd.f32 %v4201, 0.2548296
        %v4330 = vadd.f32 %v4202, 0.2548296
        %v4331 = vadd.f32 %v4203, 0.2548296
        %v4332 = vadd.f32 %v4204, 0.2548296
        %v4333 = vadd.f32 %v4205, 0.2548296
        %v4334 = vadd.f32 %v4206, 0.2548296
        %v4335 = vadd.f32 %v4207, 0.2548296
        %v4336 = vadd.f32 %v4208, 0.2548296
        %v4337 = vadd.f32 %v4209, 0.2548296
        %v4338 = vadd.f32 %v4210, 0.2548296
        %v4339 = vadd.f32 %v4211, 0.2548296
        %v4340 = vadd.f32 %v4212, 0.2548296
        %v4341 = vadd.f32 %v4213, 0.2548296
        %v4342 = vadd.f32 %v4214, 0.2548296
        %v4343 = vadd.f32 %v4215, 0.2548296
        %v4344 = vadd.f32 %v4216, 0.2548296
        %v4345 = vadd.f32 %v4217, 0.2548296
        %v4346 = vmul.f32 %v4218, %v3067
        %v4347 = vmul.f32 %v4219, %v3069
        %v4348 = vmul.f32 %v4220, %v3071
        %v4349 = vmul.f32 %v4221, %v3073
        %v4350 = vmul.f32 %v4222, %v3075
        %v4351 = vmul.f32 %v4223, %v3077
        %v4352 = vmul.f32 %v4224, %v3079
        %v4353 = vmul.f32 %v4225, %v3081
        %v4354 = vmul.f32 %v4226, %v3083
        %v4355 = vmul.f32 %v4227, %v3085
        %v4356 = vmul.f32 %v4228, %v3087
        %v4357 = vmul.f32 %v4229, %v3089
        %v4358 = vmul.f32 %v4230, %v3091
        %v4359 = vmul.f32 %v4231, %v3093
        %v4360 = vmul.f32 %v4232, %v3095
        %v4361 = vmul.f32 %v4233, %v3097
        %v4362 = vmul.f32 %v4234, %v3099
        %v4363 = vmul.f32 %v4235, %v3101
        %v4364 = vmul.f32 %v4236, %v3103
        %v4365 = vmul.f32 %v4237, %v3105
        %v4366 = vmul.f32 %v4238, %v3107
        %v4367 = vmul.f32 %v4239, %v3109
        %v4368 = vmul.f32 %v4240, %v3111
        %v4369 = vmul.f32 %v4241, %v3113
        %v4370 = vmul.f32 %v4242, %v3115
        %v4371 = vmul.f32 %v4243, %v3117
        %v4372 = vmul.f32 %v4244, %v3119
        %v4373 = vmul.f32 %v4245, %v3121
        %v4374 = vmul.f32 %v4246, %v3123
        %v4375 = vmul.f32 %v4247, %v3125
        %v4376 = vmul.f32 %v4248, %v3127
        %v4377 = vmul.f32 %v4249, %v3129
        %v4378 = vmul.f32 %v4250, %v3131
        %v4379 = vmul.f32 %v4251, %v3133
        %v4380 = vmul.f32 %v4252, %v3135
        %v4381 = vmul.f32 %v4253, %v3137
        %v4382 = vmul.f32 %v4254, %v3139
        %v4383 = vmul.f32 %v4255, %v3141
        %v4384 = vmul.f32 %v4256, %v3143
        %v4385 = vmul.f32 %v4257, %v3145
        %v4386 = vmul.f32 %v4258, %v3147
        %v4387 = vmul.f32 %v4259, %v3149
        %v4388 = vmul.f32 %v4260, %v3151
        %v4389 = vmul.f32 %v4261, %v3153
        %v4390 = vmul.f32 %v4262, %v3155
        %v4391 = vmul.f32 %v4263, %v3157
        %v4392 = vmul.f32 %v4264, %v3159
        %v4393 = vmul.f32 %v4265, %v3161
        %v4394 = vmul.f32 %v4266, %v3163
        %v4395 = vmul.f32 %v4267, %v3165
        %v4396 = vmul.f32 %v4268, %v3167
        %v4397 = vmul.f32 %v4269, %v3169
        %v4398 = vmul.f32 %v4270, %v3171
        %v4399 = vmul.f32 %v4271, %v3173
        %v4400 = vmul.f32 %v4272, %v3175
        %v4401 = vmul.f32 %v4273, %v3177
        %v4402 = vmul.f32 %v4274, %v3179
        %v4403 = vmul.f32 %v4275, %v3181
        %v4404 = vmul.f32 %v4276, %v3183
        %v4405 = vmul.f32 %v4277, %v3185
        %v4406 = vmul.f32 %v4278, %v3187
        %v4407 = vmul.f32 %v4279, %v3189
        %v4408 = vmul.f32 %v4280, %v3191
        %v4409 = vmul.f32 %v4281, %v3193
        %v4410 = vmul.f32 %v4282, %v3195
        %v4411 = vmul.f32 %v4283, %v3197
        %v4412 = vmul.f32 %v4284, %v3199
        %v4413 = vmul.f32 %v4285, %v3201
        %v4414 = vmul.f32 %v4286, %v3203
        %v4415 = vmul.f32 %v4287, %v3205
        %v4416 = vmul.f32 %v4288, %v3207
        %v4417 = vmul.f32 %v4289, %v3209
        %v4418 = vmul.f32 %v4290, %v3211
        %v4419 = vmul.f32 %v4291, %v3213
        %v4420 = vmul.f32 %v4292, %v3215
        %v4421 = vmul.f32 %v4293, %v3217
        %v4422 = vmul.f32 %v4294, %v3219
        %v4423 = vmul.f32 %v4295, %v3221
        %v4424 = vmul.f32 %v4296, %v3223
        %v4425 = vmul.f32 %v4297, %v3225
        %v4426 = vmul.f32 %v4298, %v3227
        %v4427 = vmul.f32 %v4299, %v3229
        %v4428 = vmul.f32 %v4300, %v3231
        %v4429 = vmul.f32 %v4301, %v3233
        %v4430 = vmul.f32 %v4302, %v3235
        %v4431 = vmul.f32 %v4303, %v3237
        %v4432 = vmul.f32 %v4304, %v3239
        %v4433 = vmul.f32 %v4305, %v3241
        %v4434 = vmul.f32 %v4306, %v3243
        %v4435 = vmul.f32 %v4307, %v3245
        %v4436 = vmul.f32 %v4308, %v3247
        %v4437 = vmul.f32 %v4309, %v3249
        %v4438 = vmul.f32 %v4310, %v3251
        %v4439 = vmul.f32 %v4311, %v3253
        %v4440 = vmul.f32 %v4312, %v3255
        %v4441 = vmul.f32 %v4313, %v3257
        %v4442 = vmul.f32 %v4314, %v3259
        %v4443 = vmul.f32 %v4315, %v3261
        %v4444 = vmul.f32 %v4316, %v3263
        %v4445 = vmul.f32 %v4317, %v3265
        %v4446 = vmul.f32 %v4318, %v3267
        %v4447 = vmul.f32 %v4319, %v3269
        %v4448 = vmul.f32 %v4320, %v3271
        %v4449 = vmul.f32 %v4321, %v3273
        %v4450 = vmul.f32 %v4322, %v3275
        %v4451 = vmul.f32 %v4323, %v3277
        %v4452 = vmul.f32 %v4324, %v3279
        %v4453 = vmul.f32 %v4325, %v3281
        %v4454 = vmul.f32 %v4326, %v3283
        %v4455 = vmul.f32 %v4327, %v3285
        %v4456 = vmul.f32 %v4328, %v3287
        %v4457 = vmul.f32 %v4329, %v3289
        %v4458 = vmul.f32 %v4330, %v3291
        %v4459 = vmul.f32 %v4331, %v3293
        %v4460 = vmul.f32 %v4332, %v3295
        %v4461 = vmul.f32 %v4333, %v3297
        %v4462 = vmul.f32 %v4334, %v3299
        %v4463 = vmul.f32 %v4335, %v3301
        %v4464 = vmul.f32 %v4336, %v3303
        %v4465 = vmul.f32 %v4337, %v3305
        %v4466 = vmul.f32 %v4338, %v3307
        %v4467 = vmul.f32 %v4339, %v3309
        %v4468 = vmul.f32 %v4340, %v3311
        %v4469 = vmul.f32 %v4341, %v3313
        %v4470 = vmul.f32 %v4342, %v3315
        %v4471 = vmul.f32 %v4343, %v3317
        %v4472 = vmul.f32 %v4344, %v3319
        %v4473 = vmul.f32 %v4345, %v3321
        %v4474 = vsub.f32 0.0, %v2682
        %v4475 = vsub.f32 0.0, %v2683
        %v4476 = vsub.f32 0.0, %v2684
        %v4477 = vsub.f32 0.0, %v2685
        %v4478 = vsub.f32 0.0, %v2686
        %v4479 = vsub.f32 0.0, %v2687
        %v4480 = vsub.f32 0.0, %v2688
        %v4481 = vsub.f32 0.0, %v2689
        %v4482 = vsub.f32 0.0, %v2690
        %v4483 = vsub.f32 0.0, %v2691
        %v4484 = vsub.f32 0.0, %v2692
        %v4485 = vsub.f32 0.0, %v2693
        %v4486 = vsub.f32 0.0, %v2694
        %v4487 = vsub.f32 0.0, %v2695
        %v4488 = vsub.f32 0.0, %v2696
        %v4489 = vsub.f32 0.0, %v2697
        %v4490 = vsub.f32 0.0, %v2698
        %v4491 = vsub.f32 0.0, %v2699
        %v4492 = vsub.f32 0.0, %v2700
        %v4493 = vsub.f32 0.0, %v2701
        %v4494 = vsub.f32 0.0, %v2702
        %v4495 = vsub.f32 0.0, %v2703
        %v4496 = vsub.f32 0.0, %v2704
        %v4497 = vsub.f32 0.0, %v2705
        %v4498 = vsub.f32 0.0, %v2706
        %v4499 = vsub.f32 0.0, %v2707
        %v4500 = vsub.f32 0.0, %v2708
        %v4501 = vsub.f32 0.0, %v2709
        %v4502 = vsub.f32 0.0, %v2710
        %v4503 = vsub.f32 0.0, %v2711
        %v4504 = vsub.f32 0.0, %v2712
        %v4505 = vsub.f32 0.0, %v2713
        %v4506 = vsub.f32 0.0, %v2714
        %v4507 = vsub.f32 0.0, %v2715
        %v4508 = vsub.f32 0.0, %v2716
        %v4509 = vsub.f32 0.0, %v2717
        %v4510 = vsub.f32 0.0, %v2718
        %v4511 = vsub.f32 0.0, %v2719
        %v4512 = vsub.f32 0.0, %v2720
        %v4513 = vsub.f32 0.0, %v2721
        %v4514 = vsub.f32 0.0, %v2722
        %v4515 = vsub.f32 0.0, %v2723
        %v4516 = vsub.f32 0.0, %v2724
        %v4517 = vsub.f32 0.0, %v2725
        %v4518 = vsub.f32 0.0, %v2726
        %v4519 = vsub.f32 0.0, %v2727
        %v4520 = vsub.f32 0.0, %v2728
        %v4521 = vsub.f32 0.0, %v2729
        %v4522 = vsub.f32 0.0, %v2730
        %v4523 = vsub.f32 0.0, %v2731
        %v4524 = vsub.f32 0.0, %v2732
        %v4525 = vsub.f32 0.0, %v2733
        %v4526 = vsub.f32 0.0, %v2734
        %v4527 = vsub.f32 0.0, %v2735
        %v4528 = vsub.f32 0.0, %v2736
        %v4529 = vsub.f32 0.0, %v2737
        %v4530 = vsub.f32 0.0, %v2738
        %v4531 = vsub.f32 0.0, %v2739
        %v4532 = vsub.f32 0.0, %v2740
        %v4533 = vsub.f32 0.0, %v2741
        %v4534 = vsub.f32 0.0, %v2742
        %v4535 = vsub.f32 0.0, %v2743
        %v4536 = vsub.f32 0.0, %v2744
        %v4537 = vsub.f32 0.0, %v2745
        %v4538 = vsub.f32 0.0, %v2746
        %v4539 = vsub.f32 0.0, %v2747
        %v4540 = vsub.f32 0.0, %v2748
        %v4541 = vsub.f32 0.0, %v2749
        %v4542 = vsub.f32 0.0, %v2750
        %v4543 = vsub.f32 0.0, %v2751
        %v4544 = vsub.f32 0.0, %v2752
        %v4545 = vsub.f32 0.0, %v2753
        %v4546 = vsub.f32 0.0, %v2754
        %v4547 = vsub.f32 0.0, %v2755
        %v4548 = vsub.f32 0.0, %v2756
        %v4549 = vsub.f32 0.0, %v2757
        %v4550 = vsub.f32 0.0, %v2758
        %v4551 = vsub.f32 0.0, %v2759
        %v4552 = vsub.f32 0.0, %v2760
        %v4553 = vsub.f32 0.0, %v2761
        %v4554 = vsub.f32 0.0, %v2762
        %v4555 = vsub.f32 0.0, %v2763
        %v4556 = vsub.f32 0.0, %v2764
        %v4557 = vsub.f32 0.0, %v2765
        %v4558 = vsub.f32 0.0, %v2766
        %v4559 = vsub.f32 0.0, %v2767
        %v4560 = vsub.f32 0.0, %v2768
        %v4561 = vsub.f32 0.0, %v2769
        %v4562 = vsub.f32 0.0, %v2770
        %v4563 = vsub.f32 0.0, %v2771
        %v4564 = vsub.f32 0.0, %v2772
        %v4565 = vsub.f32 0.0, %v2773
        %v4566 = vsub.f32 0.0, %v2774
        %v4567 = vsub.f32 0.0, %v2775
        %v4568 = vsub.f32 0.0, %v2776
        %v4569 = vsub.f32 0.0, %v2777
        %v4570 = vsub.f32 0.0, %v2778
        %v4571 = vsub.f32 0.0, %v2779
        %v4572 = vsub.f32 0.0, %v2780
        %v4573 = vsub.f32 0.0, %v2781
        %v4574 = vsub.f32 0.0, %v2782
        %v4575 = vsub.f32 0.0, %v2783
        %v4576 = vsub.f32 0.0, %v2784
        %v4577 = vsub.f32 0.0, %v2785
        %v4578 = vsub.f32 0.0, %v2786
        %v4579 = vsub.f32 0.0, %v2787
        %v4580 = vsub.f32 0.0, %v2788
        %v4581 = vsub.f32 0.0, %v2789
        %v4582 = vsub.f32 0.0, %v2790
        %v4583 = vsub.f32 0.0, %v2791
        %v4584 = vsub.f32 0.0, %v2792
        %v4585 = vsub.f32 0.0, %v2793
        %v4586 = vsub.f32 0.0, %v2794
        %v4587 = vsub.f32 0.0, %v2795
        %v4588 = vsub.f32 0.0, %v2796
        %v4589 = vsub.f32 0.0, %v2797
        %v4590 = vsub.f32 0.0, %v2798
        %v4591 = vsub.f32 0.0, %v2799
        %v4592 = vsub.f32 0.0, %v2800
        %v4593 = vsub.f32 0.0, %v2801
        %v4594 = vsub.f32 0.0, %v2802
        %v4595 = vsub.f32 0.0, %v2803
        %v4596 = vsub.f32 0.0, %v2804
        %v4597 = vsub.f32 0.0, %v2805
        %v4598 = vsub.f32 0.0, %v2806
        %v4599 = vsub.f32 0.0, %v2807
        %v4600 = vsub.f32 0.0, %v2808
        %v4601 = vsub.f32 0.0, %v2809
        %v4602 = vmul.f32 %v4474, %v2682
        %v4603 = vmul.f32 %v4475, %v2683
        %v4604 = vmul.f32 %v4476, %v2684
        %v4605 = vmul.f32 %v4477, %v2685
        %v4606 = vmul.f32 %v4478, %v2686
        %v4607 = vmul.f32 %v4479, %v2687
        %v4608 = vmul.f32 %v4480, %v2688
        %v4609 = vmul.f32 %v4481, %v2689
        %v4610 = vmul.f32 %v4482, %v2690
        %v4611 = vmul.f32 %v4483, %v2691
        %v4612 = vmul.f32 %v4484, %v2692
        %v4613 = vmul.f32 %v4485, %v2693
        %v4614 = vmul.f32 %v4486, %v2694
        %v4615 = vmul.f32 %v4487, %v2695
        %v4616 = vmul.f32 %v4488, %v2696
        %v4617 = vmul.f32 %v4489, %v2697
        %v4618 = vmul.f32 %v4490, %v2698
        %v4619 = vmul.f32 %v4491, %v2699
        %v4620 = vmul.f32 %v4492, %v2700
        %v4621 = vmul.f32 %v4493, %v2701
        %v4622 = vmul.f32 %v4494, %v2702
        %v4623 = vmul.f32 %v4495, %v2703
        %v4624 = vmul.f32 %v4496, %v2704
        %v4625 = vmul.f32 %v4497, %v2705
        %v4626 = vmul.f32 %v4498, %v2706
        %v4627 = vmul.f32 %v4499, %v2707
        %v4628 = vmul.f32 %v4500, %v2708
        %v4629 = vmul.f32 %v4501, %v2709
        %v4630 = vmul.f32 %v4502, %v2710
        %v4631 = vmul.f32 %v4503, %v2711
        %v4632 = vmul.f32 %v4504, %v2712
        %v4633 = vmul.f32 %v4505, %v2713
        %v4634 = vmul.f32 %v4506, %v2714
        %v4635 = vmul.f32 %v4507, %v2715
        %v4636 = vmul.f32 %v4508, %v2716
        %v4637 = vmul.f32 %v4509, %v2717
        %v4638 = vmul.f32 %v4510, %v2718
        %v4639 = vmul.f32 %v4511, %v2719
        %v4640 = vmul.f32 %v4512, %v2720
        %v4641 = vmul.f32 %v4513, %v2721
        %v4642 = vmul.f32 %v4514, %v2722
        %v4643 = vmul.f32 %v4515, %v2723
        %v4644 = vmul.f32 %v4516, %v2724
        %v4645 = vmul.f32 %v4517, %v2725
        %v4646 = vmul.f32 %v4518, %v2726
        %v4647 = vmul.f32 %v4519, %v2727
        %v4648 = vmul.f32 %v4520, %v2728
        %v4649 = vmul.f32 %v4521, %v2729
        %v4650 = vmul.f32 %v4522, %v2730
        %v4651 = vmul.f32 %v4523, %v2731
        %v4652 = vmul.f32 %v4524, %v2732
        %v4653 = vmul.f32 %v4525, %v2733
        %v4654 = vmul.f32 %v4526, %v2734
        %v4655 = vmul.f32 %v4527, %v2735
        %v4656 = vmul.f32 %v4528, %v2736
        %v4657 = vmul.f32 %v4529, %v2737
        %v4658 = vmul.f32 %v4530, %v2738
        %v4659 = vmul.f32 %v4531, %v2739
        %v4660 = vmul.f32 %v4532, %v2740
        %v4661 = vmul.f32 %v4533, %v2741
        %v4662 = vmul.f32 %v4534, %v2742
        %v4663 = vmul.f32 %v4535, %v2743
        %v4664 = vmul.f32 %v4536, %v2744
        %v4665 = vmul.f32 %v4537, %v2745
        %v4666 = vmul.f32 %v4538, %v2746
        %v4667 = vmul.f32 %v4539, %v2747
        %v4668 = vmul.f32 %v4540, %v2748
        %v4669 = vmul.f32 %v4541, %v2749
        %v4670 = vmul.f32 %v4542, %v2750
        %v4671 = vmul.f32 %v4543, %v2751
        %v4672 = vmul.f32 %v4544, %v2752
        %v4673 = vmul.f32 %v4545, %v2753
        %v4674 = vmul.f32 %v4546, %v2754
        %v4675 = vmul.f32 %v4547, %v2755
        %v4676 = vmul.f32 %v4548, %v2756
        %v4677 = vmul.f32 %v4549, %v2757
        %v4678 = vmul.f32 %v4550, %v2758
        %v4679 = vmul.f32 %v4551, %v2759
        %v4680 = vmul.f32 %v4552, %v2760
        %v4681 = vmul.f32 %v4553, %v2761
        %v4682 = vmul.f32 %v4554, %v2762
        %v4683 = vmul.f32 %v4555, %v2763
        %v4684 = vmul.f32 %v4556, %v2764
        %v4685 = vmul.f32 %v4557, %v2765
        %v4686 = vmul.f32 %v4558, %v2766
        %v4687 = vmul.f32 %v4559, %v2767
        %v4688 = vmul.f32 %v4560, %v2768
        %v4689 = vmul.f32 %v4561, %v2769
        %v4690 = vmul.f32 %v4562, %v2770
        %v4691 = vmul.f32 %v4563, %v2771
        %v4692 = vmul.f32 %v4564, %v2772
        %v4693 = vmul.f32 %v4565, %v2773
        %v4694 = vmul.f32 %v4566, %v2774
        %v4695 = vmul.f32 %v4567, %v2775
        %v4696 = vmul.f32 %v4568, %v2776
        %v4697 = vmul.f32 %v4569, %v2777
        %v4698 = vmul.f32 %v4570, %v2778
        %v4699 = vmul.f32 %v4571, %v2779
        %v4700 = vmul.f32 %v4572, %v2780
        %v4701 = vmul.f32 %v4573, %v2781
        %v4702 = vmul.f32 %v4574, %v2782
        %v4703 = vmul.f32 %v4575, %v2783
        %v4704 = vmul.f32 %v4576, %v2784
        %v4705 = vmul.f32 %v4577, %v2785
        %v4706 = vmul.f32 %v4578, %v2786
        %v4707 = vmul.f32 %v4579, %v2787
        %v4708 = vmul.f32 %v4580, %v2788
        %v4709 = vmul.f32 %v4581, %v2789
        %v4710 = vmul.f32 %v4582, %v2790
        %v4711 = vmul.f32 %v4583, %v2791
        %v4712 = vmul.f32 %v4584, %v2792
        %v4713 = vmul.f32 %v4585, %v2793
        %v4714 = vmul.f32 %v4586, %v2794
        %v4715 = vmul.f32 %v4587, %v2795
        %v4716 = vmul.f32 %v4588, %v2796
        %v4717 = vmul.f32 %v4589, %v2797
        %v4718 = vmul.f32 %v4590, %v2798
        %v4719 = vmul.f32 %v4591, %v2799
        %v4720 = vmul.f32 %v4592, %v2800
        %v4721 = vmul.f32 %v4593, %v2801
        %v4722 = vmul.f32 %v4594, %v2802
        %v4723 = vmul.f32 %v4595, %v2803
        %v4724 = vmul.f32 %v4596, %v2804
        %v4725 = vmul.f32 %v4597, %v2805
        %v4726 = vmul.f32 %v4598, %v2806
        %v4727 = vmul.f32 %v4599, %v2807
        %v4728 = vmul.f32 %v4600, %v2808
        %v4729 = vmul.f32 %v4601, %v2809
        %v4730 = vmul.f32 %v4602, 1.442695
        %v4731 = vpow.pop %v4730
        %v4732 = vmul.f32 %v4603, 1.442695
        %v4733 = vpow.pop %v4732
        %v4734 = vmul.f32 %v4604, 1.442695
        %v4735 = vpow.pop %v4734
        %v4736 = vmul.f32 %v4605, 1.442695
        %v4737 = vpow.pop %v4736
        %v4738 = vmul.f32 %v4606, 1.442695
        %v4739 = vpow.pop %v4738
        %v4740 = vmul.f32 %v4607, 1.442695
        %v4741 = vpow.pop %v4740
        %v4742 = vmul.f32 %v4608, 1.442695
        %v4743 = vpow.pop %v4742
        %v4744 = vmul.f32 %v4609, 1.442695
        %v4745 = vpow.pop %v4744
        %v4746 = vmul.f32 %v4610, 1.442695
        %v4747 = vpow.pop %v4746
        %v4748 = vmul.f32 %v4611, 1.442695
        %v4749 = vpow.pop %v4748
        %v4750 = vmul.f32 %v4612, 1.442695
        %v4751 = vpow.pop %v4750
        %v4752 = vmul.f32 %v4613, 1.442695
        %v4753 = vpow.pop %v4752
        %v4754 = vmul.f32 %v4614, 1.442695
        %v4755 = vpow.pop %v4754
        %v4756 = vmul.f32 %v4615, 1.442695
        %v4757 = vpow.pop %v4756
        %v4758 = vmul.f32 %v4616, 1.442695
        %v4759 = vpow.pop %v4758
        %v4760 = vmul.f32 %v4617, 1.442695
        %v4761 = vpow.pop %v4760
        %v4762 = vmul.f32 %v4618, 1.442695
        %v4763 = vpow.pop %v4762
        %v4764 = vmul.f32 %v4619, 1.442695
        %v4765 = vpow.pop %v4764
        %v4766 = vmul.f32 %v4620, 1.442695
        %v4767 = vpow.pop %v4766
        %v4768 = vmul.f32 %v4621, 1.442695
        %v4769 = vpow.pop %v4768
        %v4770 = vmul.f32 %v4622, 1.442695
        %v4771 = vpow.pop %v4770
        %v4772 = vmul.f32 %v4623, 1.442695
        %v4773 = vpow.pop %v4772
        %v4774 = vmul.f32 %v4624, 1.442695
        %v4775 = vpow.pop %v4774
        %v4776 = vmul.f32 %v4625, 1.442695
        %v4777 = vpow.pop %v4776
        %v4778 = vmul.f32 %v4626, 1.442695
        %v4779 = vpow.pop %v4778
        %v4780 = vmul.f32 %v4627, 1.442695
        %v4781 = vpow.pop %v4780
        %v4782 = vmul.f32 %v4628, 1.442695
        %v4783 = vpow.pop %v4782
        %v4784 = vmul.f32 %v4629, 1.442695
        %v4785 = vpow.pop %v4784
        %v4786 = vmul.f32 %v4630, 1.442695
        %v4787 = vpow.pop %v4786
        %v4788 = vmul.f32 %v4631, 1.442695
        %v4789 = vpow.pop %v4788
        %v4790 = vmul.f32 %v4632, 1.442695
        %v4791 = vpow.pop %v4790
        %v4792 = vmul.f32 %v4633, 1.442695
        %v4793 = vpow.pop %v4792
        %v4794 = vmul.f32 %v4634, 1.442695
        %v4795 = vpow.pop %v4794
        %v4796 = vmul.f32 %v4635, 1.442695
        %v4797 = vpow.pop %v4796
        %v4798 = vmul.f32 %v4636, 1.442695
        %v4799 = vpow.pop %v4798
        %v4800 = vmul.f32 %v4637, 1.442695
        %v4801 = vpow.pop %v4800
        %v4802 = vmul.f32 %v4638, 1.442695
        %v4803 = vpow.pop %v4802
        %v4804 = vmul.f32 %v4639, 1.442695
        %v4805 = vpow.pop %v4804
        %v4806 = vmul.f32 %v4640, 1.442695
        %v4807 = vpow.pop %v4806
        %v4808 = vmul.f32 %v4641, 1.442695
        %v4809 = vpow.pop %v4808
        %v4810 = vmul.f32 %v4642, 1.442695
        %v4811 = vpow.pop %v4810
        %v4812 = vmul.f32 %v4643, 1.442695
        %v4813 = vpow.pop %v4812
        %v4814 = vmul.f32 %v4644, 1.442695
        %v4815 = vpow.pop %v4814
        %v4816 = vmul.f32 %v4645, 1.442695
        %v4817 = vpow.pop %v4816
        %v4818 = vmul.f32 %v4646, 1.442695
        %v4819 = vpow.pop %v4818
        %v4820 = vmul.f32 %v4647, 1.442695
        %v4821 = vpow.pop %v4820
        %v4822 = vmul.f32 %v4648, 1.442695
        %v4823 = vpow.pop %v4822
        %v4824 = vmul.f32 %v4649, 1.442695
        %v4825 = vpow.pop %v4824
        %v4826 = vmul.f32 %v4650, 1.442695
        %v4827 = vpow.pop %v4826
        %v4828 = vmul.f32 %v4651, 1.442695
        %v4829 = vpow.pop %v4828
        %v4830 = vmul.f32 %v4652, 1.442695
        %v4831 = vpow.pop %v4830
        %v4832 = vmul.f32 %v4653, 1.442695
        %v4833 = vpow.pop %v4832
        %v4834 = vmul.f32 %v4654, 1.442695
        %v4835 = vpow.pop %v4834
        %v4836 = vmul.f32 %v4655, 1.442695
        %v4837 = vpow.pop %v4836
        %v4838 = vmul.f32 %v4656, 1.442695
        %v4839 = vpow.pop %v4838
        %v4840 = vmul.f32 %v4657, 1.442695
        %v4841 = vpow.pop %v4840
        %v4842 = vmul.f32 %v4658, 1.442695
        %v4843 = vpow.pop %v4842
        %v4844 = vmul.f32 %v4659, 1.442695
        %v4845 = vpow.pop %v4844
        %v4846 = vmul.f32 %v4660, 1.442695
        %v4847 = vpow.pop %v4846
        %v4848 = vmul.f32 %v4661, 1.442695
        %v4849 = vpow.pop %v4848
        %v4850 = vmul.f32 %v4662, 1.442695
        %v4851 = vpow.pop %v4850
        %v4852 = vmul.f32 %v4663, 1.442695
        %v4853 = vpow.pop %v4852
        %v4854 = vmul.f32 %v4664, 1.442695
        %v4855 = vpow.pop %v4854
        %v4856 = vmul.f32 %v4665, 1.442695
        %v4857 = vpow.pop %v4856
        %v4858 = vmul.f32 %v4666, 1.442695
        %v4859 = vpow.pop %v4858
        %v4860 = vmul.f32 %v4667, 1.442695
        %v4861 = vpow.pop %v4860
        %v4862 = vmul.f32 %v4668, 1.442695
        %v4863 = vpow.pop %v4862
        %v4864 = vmul.f32 %v4669, 1.442695
        %v4865 = vpow.pop %v4864
        %v4866 = vmul.f32 %v4670, 1.442695
        %v4867 = vpow.pop %v4866
        %v4868 = vmul.f32 %v4671, 1.442695
        %v4869 = vpow.pop %v4868
        %v4870 = vmul.f32 %v4672, 1.442695
        %v4871 = vpow.pop %v4870
        %v4872 = vmul.f32 %v4673, 1.442695
        %v4873 = vpow.pop %v4872
        %v4874 = vmul.f32 %v4674, 1.442695
        %v4875 = vpow.pop %v4874
        %v4876 = vmul.f32 %v4675, 1.442695
        %v4877 = vpow.pop %v4876
        %v4878 = vmul.f32 %v4676, 1.442695
        %v4879 = vpow.pop %v4878
        %v4880 = vmul.f32 %v4677, 1.442695
        %v4881 = vpow.pop %v4880
        %v4882 = vmul.f32 %v4678, 1.442695
        %v4883 = vpow.pop %v4882
        %v4884 = vmul.f32 %v4679, 1.442695
        %v4885 = vpow.pop %v4884
        %v4886 = vmul.f32 %v4680, 1.442695
        %v4887 = vpow.pop %v4886
        %v4888 = vmul.f32 %v4681, 1.442695
        %v4889 = vpow.pop %v4888
        %v4890 = vmul.f32 %v4682, 1.442695
        %v4891 = vpow.pop %v4890
        %v4892 = vmul.f32 %v4683, 1.442695
        %v4893 = vpow.pop %v4892
        %v4894 = vmul.f32 %v4684, 1.442695
        %v4895 = vpow.pop %v4894
        %v4896 = vmul.f32 %v4685, 1.442695
        %v4897 = vpow.pop %v4896
        %v4898 = vmul.f32 %v4686, 1.442695
        %v4899 = vpow.pop %v4898
        %v4900 = vmul.f32 %v4687, 1.442695
        %v4901 = vpow.pop %v4900
        %v4902 = vmul.f32 %v4688, 1.442695
        %v4903 = vpow.pop %v4902
        %v4904 = vmul.f32 %v4689, 1.442695
        %v4905 = vpow.pop %v4904
        %v4906 = vmul.f32 %v4690, 1.442695
        %v4907 = vpow.pop %v4906
        %v4908 = vmul.f32 %v4691, 1.442695
        %v4909 = vpow.pop %v4908
        %v4910 = vmul.f32 %v4692, 1.442695
        %v4911 = vpow.pop %v4910
        %v4912 = vmul.f32 %v4693, 1.442695
        %v4913 = vpow.pop %v4912
        %v4914 = vmul.f32 %v4694, 1.442695
        %v4915 = vpow.pop %v4914
        %v4916 = vmul.f32 %v4695, 1.442695
        %v4917 = vpow.pop %v4916
        %v4918 = vmul.f32 %v4696, 1.442695
        %v4919 = vpow.pop %v4918
        %v4920 = vmul.f32 %v4697, 1.442695
        %v4921 = vpow.pop %v4920
        %v4922 = vmul.f32 %v4698, 1.442695
        %v4923 = vpow.pop %v4922
        %v4924 = vmul.f32 %v4699, 1.442695
        %v4925 = vpow.pop %v4924
        %v4926 = vmul.f32 %v4700, 1.442695
        %v4927 = vpow.pop %v4926
        %v4928 = vmul.f32 %v4701, 1.442695
        %v4929 = vpow.pop %v4928
        %v4930 = vmul.f32 %v4702, 1.442695
        %v4931 = vpow.pop %v4930
        %v4932 = vmul.f32 %v4703, 1.442695
        %v4933 = vpow.pop %v4932
        %v4934 = vmul.f32 %v4704, 1.442695
        %v4935 = vpow.pop %v4934
        %v4936 = vmul.f32 %v4705, 1.442695
        %v4937 = vpow.pop %v4936
        %v4938 = vmul.f32 %v4706, 1.442695
        %v4939 = vpow.pop %v4938
        %v4940 = vmul.f32 %v4707, 1.442695
        %v4941 = vpow.pop %v4940
        %v4942 = vmul.f32 %v4708, 1.442695
        %v4943 = vpow.pop %v4942
        %v4944 = vmul.f32 %v4709, 1.442695
        %v4945 = vpow.pop %v4944
        %v4946 = vmul.f32 %v4710, 1.442695
        %v4947 = vpow.pop %v4946
        %v4948 = vmul.f32 %v4711, 1.442695
        %v4949 = vpow.pop %v4948
        %v4950 = vmul.f32 %v4712, 1.442695
        %v4951 = vpow.pop %v4950
        %v4952 = vmul.f32 %v4713, 1.442695
        %v4953 = vpow.pop %v4952
        %v4954 = vmul.f32 %v4714, 1.442695
        %v4955 = vpow.pop %v4954
        %v4956 = vmul.f32 %v4715, 1.442695
        %v4957 = vpow.pop %v4956
        %v4958 = vmul.f32 %v4716, 1.442695
        %v4959 = vpow.pop %v4958
        %v4960 = vmul.f32 %v4717, 1.442695
        %v4961 = vpow.pop %v4960
        %v4962 = vmul.f32 %v4718, 1.442695
        %v4963 = vpow.pop %v4962
        %v4964 = vmul.f32 %v4719, 1.442695
        %v4965 = vpow.pop %v4964
        %v4966 = vmul.f32 %v4720, 1.442695
        %v4967 = vpow.pop %v4966
        %v4968 = vmul.f32 %v4721, 1.442695
        %v4969 = vpow.pop %v4968
        %v4970 = vmul.f32 %v4722, 1.442695
        %v4971 = vpow.pop %v4970
        %v4972 = vmul.f32 %v4723, 1.442695
        %v4973 = vpow.pop %v4972
        %v4974 = vmul.f32 %v4724, 1.442695
        %v4975 = vpow.pop %v4974
        %v4976 = vmul.f32 %v4725, 1.442695
        %v4977 = vpow.pop %v4976
        %v4978 = vmul.f32 %v4726, 1.442695
        %v4979 = vpow.pop %v4978
        %v4980 = vmul.f32 %v4727, 1.442695
        %v4981 = vpow.pop %v4980
        %v4982 = vmul.f32 %v4728, 1.442695
        %v4983 = vpow.pop %v4982
        %v4984 = vmul.f32 %v4729, 1.442695
        %v4985 = vpow.pop %v4984
        %v4986 = vmul.f32 %v4346, %v4731
        %v4987 = vmul.f32 %v4347, %v4733
        %v4988 = vmul.f32 %v4348, %v4735
        %v4989 = vmul.f32 %v4349, %v4737
        %v4990 = vmul.f32 %v4350, %v4739
        %v4991 = vmul.f32 %v4351, %v4741
        %v4992 = vmul.f32 %v4352, %v4743
        %v4993 = vmul.f32 %v4353, %v4745
        %v4994 = vmul.f32 %v4354, %v4747
        %v4995 = vmul.f32 %v4355, %v4749
        %v4996 = vmul.f32 %v4356, %v4751
        %v4997 = vmul.f32 %v4357, %v4753
        %v4998 = vmul.f32 %v4358, %v4755
        %v4999 = vmul.f32 %v4359, %v4757
        %v5000 = vmul.f32 %v4360, %v4759
        %v5001 = vmul.f32 %v4361, %v4761
        %v5002 = vmul.f32 %v4362, %v4763
        %v5003 = vmul.f32 %v4363, %v4765
        %v5004 = vmul.f32 %v4364, %v4767
        %v5005 = vmul.f32 %v4365, %v4769
        %v5006 = vmul.f32 %v4366, %v4771
        %v5007 = vmul.f32 %v4367, %v4773
        %v5008 = vmul.f32 %v4368, %v4775
        %v5009 = vmul.f32 %v4369, %v4777
        %v5010 = vmul.f32 %v4370, %v4779
        %v5011 = vmul.f32 %v4371, %v4781
        %v5012 = vmul.f32 %v4372, %v4783
        %v5013 = vmul.f32 %v4373, %v4785
        %v5014 = vmul.f32 %v4374, %v4787
        %v5015 = vmul.f32 %v4375, %v4789
        %v5016 = vmul.f32 %v4376, %v4791
        %v5017 = vmul.f32 %v4377, %v4793
        %v5018 = vmul.f32 %v4378, %v4795
        %v5019 = vmul.f32 %v4379, %v4797
        %v5020 = vmul.f32 %v4380, %v4799
        %v5021 = vmul.f32 %v4381, %v4801
        %v5022 = vmul.f32 %v4382, %v4803
        %v5023 = vmul.f32 %v4383, %v4805
        %v5024 = vmul.f32 %v4384, %v4807
        %v5025 = vmul.f32 %v4385, %v4809
        %v5026 = vmul.f32 %v4386, %v4811
        %v5027 = vmul.f32 %v4387, %v4813
        %v5028 = vmul.f32 %v4388, %v4815
        %v5029 = vmul.f32 %v4389, %v4817
        %v5030 = vmul.f32 %v4390, %v4819
        %v5031 = vmul.f32 %v4391, %v4821
        %v5032 = vmul.f32 %v4392, %v4823
        %v5033 = vmul.f32 %v4393, %v4825
        %v5034 = vmul.f32 %v4394, %v4827
        %v5035 = vmul.f32 %v4395, %v4829
        %v5036 = vmul.f32 %v4396, %v4831
        %v5037 = vmul.f32 %v4397, %v4833
        %v5038 = vmul.f32 %v4398, %v4835
        %v5039 = vmul.f32 %v4399, %v4837
        %v5040 = vmul.f32 %v4400, %v4839
        %v5041 = vmul.f32 %v4401, %v4841
        %v5042 = vmul.f32 %v4402, %v4843
        %v5043 = vmul.f32 %v4403, %v4845
        %v5044 = vmul.f32 %v4404, %v4847
        %v5045 = vmul.f32 %v4405, %v4849
        %v5046 = vmul.f32 %v4406, %v4851
        %v5047 = vmul.f32 %v4407, %v4853
        %v5048 = vmul.f32 %v4408, %v4855
        %v5049 = vmul.f32 %v4409, %v4857
        %v5050 = vmul.f32 %v4410, %v4859
        %v5051 = vmul.f32 %v4411, %v4861
        %v5052 = vmul.f32 %v4412, %v4863
        %v5053 = vmul.f32 %v4413, %v4865
        %v5054 = vmul.f32 %v4414, %v4867
        %v5055 = vmul.f32 %v4415, %v4869
        %v5056 = vmul.f32 %v4416, %v4871
        %v5057 = vmul.f32 %v4417, %v4873
        %v5058 = vmul.f32 %v4418, %v4875
        %v5059 = vmul.f32 %v4419, %v4877
        %v5060 = vmul.f32 %v4420, %v4879
        %v5061 = vmul.f32 %v4421, %v4881
        %v5062 = vmul.f32 %v4422, %v4883
        %v5063 = vmul.f32 %v4423, %v4885
        %v5064 = vmul.f32 %v4424, %v4887
        %v5065 = vmul.f32 %v4425, %v4889
        %v5066 = vmul.f32 %v4426, %v4891
        %v5067 = vmul.f32 %v4427, %v4893
        %v5068 = vmul.f32 %v4428, %v4895
        %v5069 = vmul.f32 %v4429, %v4897
        %v5070 = vmul.f32 %v4430, %v4899
        %v5071 = vmul.f32 %v4431, %v4901
        %v5072 = vmul.f32 %v4432, %v4903
        %v5073 = vmul.f32 %v4433, %v4905
        %v5074 = vmul.f32 %v4434, %v4907
        %v5075 = vmul.f32 %v4435, %v4909
        %v5076 = vmul.f32 %v4436, %v4911
        %v5077 = vmul.f32 %v4437, %v4913
        %v5078 = vmul.f32 %v4438, %v4915
        %v5079 = vmul.f32 %v4439, %v4917
        %v5080 = vmul.f32 %v4440, %v4919
        %v5081 = vmul.f32 %v4441, %v4921
        %v5082 = vmul.f32 %v4442, %v4923
        %v5083 = vmul.f32 %v4443, %v4925
        %v5084 = vmul.f32 %v4444, %v4927
        %v5085 = vmul.f32 %v4445, %v4929
        %v5086 = vmul.f32 %v4446, %v4931
        %v5087 = vmul.f32 %v4447, %v4933
        %v5088 = vmul.f32 %v4448, %v4935
        %v5089 = vmul.f32 %v4449, %v4937
        %v5090 = vmul.f32 %v4450, %v4939
        %v5091 = vmul.f32 %v4451, %v4941
        %v5092 = vmul.f32 %v4452, %v4943
        %v5093 = vmul.f32 %v4453, %v4945
        %v5094 = vmul.f32 %v4454, %v4947
        %v5095 = vmul.f32 %v4455, %v4949
        %v5096 = vmul.f32 %v4456, %v4951
        %v5097 = vmul.f32 %v4457, %v4953
        %v5098 = vmul.f32 %v4458, %v4955
        %v5099 = vmul.f32 %v4459, %v4957
        %v5100 = vmul.f32 %v4460, %v4959
        %v5101 = vmul.f32 %v4461, %v4961
        %v5102 = vmul.f32 %v4462, %v4963
        %v5103 = vmul.f32 %v4463, %v4965
        %v5104 = vmul.f32 %v4464, %v4967
        %v5105 = vmul.f32 %v4465, %v4969
        %v5106 = vmul.f32 %v4466, %v4971
        %v5107 = vmul.f32 %v4467, %v4973
        %v5108 = vmul.f32 %v4468, %v4975
        %v5109 = vmul.f32 %v4469, %v4977
        %v5110 = vmul.f32 %v4470, %v4979
        %v5111 = vmul.f32 %v4471, %v4981
        %v5112 = vmul.f32 %v4472, %v4983
        %v5113 = vmul.f32 %v4473, %v4985
        %v5114 = vsub.f32 1.0, %v4986
        %v5115 = vsub.f32 1.0, %v4987
        %v5116 = vsub.f32 1.0, %v4988
        %v5117 = vsub.f32 1.0, %v4989
        %v5118 = vsub.f32 1.0, %v4990
        %v5119 = vsub.f32 1.0, %v4991
        %v5120 = vsub.f32 1.0, %v4992
        %v5121 = vsub.f32 1.0, %v4993
        %v5122 = vsub.f32 1.0, %v4994
        %v5123 = vsub.f32 1.0, %v4995
        %v5124 = vsub.f32 1.0, %v4996
        %v5125 = vsub.f32 1.0, %v4997
        %v5126 = vsub.f32 1.0, %v4998
        %v5127 = vsub.f32 1.0, %v4999
        %v5128 = vsub.f32 1.0, %v5000
        %v5129 = vsub.f32 1.0, %v5001
        %v5130 = vsub.f32 1.0, %v5002
        %v5131 = vsub.f32 1.0, %v5003
        %v5132 = vsub.f32 1.0, %v5004
        %v5133 = vsub.f32 1.0, %v5005
        %v5134 = vsub.f32 1.0, %v5006
        %v5135 = vsub.f32 1.0, %v5007
        %v5136 = vsub.f32 1.0, %v5008
        %v5137 = vsub.f32 1.0, %v5009
        %v5138 = vsub.f32 1.0, %v5010
        %v5139 = vsub.f32 1.0, %v5011
        %v5140 = vsub.f32 1.0, %v5012
        %v5141 = vsub.f32 1.0, %v5013
        %v5142 = vsub.f32 1.0, %v5014
        %v5143 = vsub.f32 1.0, %v5015
        %v5144 = vsub.f32 1.0, %v5016
        %v5145 = vsub.f32 1.0, %v5017
        %v5146 = vsub.f32 1.0, %v5018
        %v5147 = vsub.f32 1.0, %v5019
        %v5148 = vsub.f32 1.0, %v5020
        %v5149 = vsub.f32 1.0, %v5021
        %v5150 = vsub.f32 1.0, %v5022
        %v5151 = vsub.f32 1.0, %v5023
        %v5152 = vsub.f32 1.0, %v5024
        %v5153 = vsub.f32 1.0, %v5025
        %v5154 = vsub.f32 1.0, %v5026
        %v5155 = vsub.f32 1.0, %v5027
        %v5156 = vsub.f32 1.0, %v5028
        %v5157 = vsub.f32 1.0, %v5029
        %v5158 = vsub.f32 1.0, %v5030
        %v5159 = vsub.f32 1.0, %v5031
        %v5160 = vsub.f32 1.0, %v5032
        %v5161 = vsub.f32 1.0, %v5033
        %v5162 = vsub.f32 1.0, %v5034
        %v5163 = vsub.f32 1.0, %v5035
        %v5164 = vsub.f32 1.0, %v5036
        %v5165 = vsub.f32 1.0, %v5037
        %v5166 = vsub.f32 1.0, %v5038
        %v5167 = vsub.f32 1.0, %v5039
        %v5168 = vsub.f32 1.0, %v5040
        %v5169 = vsub.f32 1.0, %v5041
        %v5170 = vsub.f32 1.0, %v5042
        %v5171 = vsub.f32 1.0, %v5043
        %v5172 = vsub.f32 1.0, %v5044
        %v5173 = vsub.f32 1.0, %v5045
        %v5174 = vsub.f32 1.0, %v5046
        %v5175 = vsub.f32 1.0, %v5047
        %v5176 = vsub.f32 1.0, %v5048
        %v5177 = vsub.f32 1.0, %v5049
        %v5178 = vsub.f32 1.0, %v5050
        %v5179 = vsub.f32 1.0, %v5051
        %v5180 = vsub.f32 1.0, %v5052
        %v5181 = vsub.f32 1.0, %v5053
        %v5182 = vsub.f32 1.0, %v5054
        %v5183 = vsub.f32 1.0, %v5055
        %v5184 = vsub.f32 1.0, %v5056
        %v5185 = vsub.f32 1.0, %v5057
        %v5186 = vsub.f32 1.0, %v5058
        %v5187 = vsub.f32 1.0, %v5059
        %v5188 = vsub.f32 1.0, %v5060
        %v5189 = vsub.f32 1.0, %v5061
        %v5190 = vsub.f32 1.0, %v5062
        %v5191 = vsub.f32 1.0, %v5063
        %v5192 = vsub.f32 1.0, %v5064
        %v5193 = vsub.f32 1.0, %v5065
        %v5194 = vsub.f32 1.0, %v5066
        %v5195 = vsub.f32 1.0, %v5067
        %v5196 = vsub.f32 1.0, %v5068
        %v5197 = vsub.f32 1.0, %v5069
        %v5198 = vsub.f32 1.0, %v5070
        %v5199 = vsub.f32 1.0, %v5071
        %v5200 = vsub.f32 1.0, %v5072
        %v5201 = vsub.f32 1.0, %v5073
        %v5202 = vsub.f32 1.0, %v5074
        %v5203 = vsub.f32 1.0, %v5075
        %v5204 = vsub.f32 1.0, %v5076
        %v5205 = vsub.f32 1.0, %v5077
        %v5206 = vsub.f32 1.0, %v5078
        %v5207 = vsub.f32 1.0, %v5079
        %v5208 = vsub.f32 1.0, %v5080
        %v5209 = vsub.f32 1.0, %v5081
        %v5210 = vsub.f32 1.0, %v5082
        %v5211 = vsub.f32 1.0, %v5083
        %v5212 = vsub.f32 1.0, %v5084
        %v5213 = vsub.f32 1.0, %v5085
        %v5214 = vsub.f32 1.0, %v5086
        %v5215 = vsub.f32 1.0, %v5087
        %v5216 = vsub.f32 1.0, %v5088
        %v5217 = vsub.f32 1.0, %v5089
        %v5218 = vsub.f32 1.0, %v5090
        %v5219 = vsub.f32 1.0, %v5091
        %v5220 = vsub.f32 1.0, %v5092
        %v5221 = vsub.f32 1.0, %v5093
        %v5222 = vsub.f32 1.0, %v5094
        %v5223 = vsub.f32 1.0, %v5095
        %v5224 = vsub.f32 1.0, %v5096
        %v5225 = vsub.f32 1.0, %v5097
        %v5226 = vsub.f32 1.0, %v5098
        %v5227 = vsub.f32 1.0, %v5099
        %v5228 = vsub.f32 1.0, %v5100
        %v5229 = vsub.f32 1.0, %v5101
        %v5230 = vsub.f32 1.0, %v5102
        %v5231 = vsub.f32 1.0, %v5103
        %v5232 = vsub.f32 1.0, %v5104
        %v5233 = vsub.f32 1.0, %v5105
        %v5234 = vsub.f32 1.0, %v5106
        %v5235 = vsub.f32 1.0, %v5107
        %v5236 = vsub.f32 1.0, %v5108
        %v5237 = vsub.f32 1.0, %v5109
        %v5238 = vsub.f32 1.0, %v5110
        %v5239 = vsub.f32 1.0, %v5111
        %v5240 = vsub.f32 1.0, %v5112
        %v5241 = vsub.f32 1.0, %v5113
        %v5242 = vmul.f32 %v2554, %v5114
        %v5243 = vmul.f32 %v2555, %v5115
        %v5244 = vmul.f32 %v2556, %v5116
        %v5245 = vmul.f32 %v2557, %v5117
        %v5246 = vmul.f32 %v2558, %v5118
        %v5247 = vmul.f32 %v2559, %v5119
        %v5248 = vmul.f32 %v2560, %v5120
        %v5249 = vmul.f32 %v2561, %v5121
        %v5250 = vmul.f32 %v2562, %v5122
        %v5251 = vmul.f32 %v2563, %v5123
        %v5252 = vmul.f32 %v2564, %v5124
        %v5253 = vmul.f32 %v2565, %v5125
        %v5254 = vmul.f32 %v2566, %v5126
        %v5255 = vmul.f32 %v2567, %v5127
        %v5256 = vmul.f32 %v2568, %v5128
        %v5257 = vmul.f32 %v2569, %v5129
        %v5258 = vmul.f32 %v2570, %v5130
        %v5259 = vmul.f32 %v2571, %v5131
        %v5260 = vmul.f32 %v2572, %v5132
        %v5261 = vmul.f32 %v2573, %v5133
        %v5262 = vmul.f32 %v2574, %v5134
        %v5263 = vmul.f32 %v2575, %v5135
        %v5264 = vmul.f32 %v2576, %v5136
        %v5265 = vmul.f32 %v2577, %v5137
        %v5266 = vmul.f32 %v2578, %v5138
        %v5267 = vmul.f32 %v2579, %v5139
        %v5268 = vmul.f32 %v2580, %v5140
        %v5269 = vmul.f32 %v2581, %v5141
        %v5270 = vmul.f32 %v2582, %v5142
        %v5271 = vmul.f32 %v2583, %v5143
        %v5272 = vmul.f32 %v2584, %v5144
        %v5273 = vmul.f32 %v2585, %v5145
        %v5274 = vmul.f32 %v2586, %v5146
        %v5275 = vmul.f32 %v2587, %v5147
        %v5276 = vmul.f32 %v2588, %v5148
        %v5277 = vmul.f32 %v2589, %v5149
        %v5278 = vmul.f32 %v2590, %v5150
        %v5279 = vmul.f32 %v2591, %v5151
        %v5280 = vmul.f32 %v2592, %v5152
        %v5281 = vmul.f32 %v2593, %v5153
        %v5282 = vmul.f32 %v2594, %v5154
        %v5283 = vmul.f32 %v2595, %v5155
        %v5284 = vmul.f32 %v2596, %v5156
        %v5285 = vmul.f32 %v2597, %v5157
        %v5286 = vmul.f32 %v2598, %v5158
        %v5287 = vmul.f32 %v2599, %v5159
        %v5288 = vmul.f32 %v2600, %v5160
        %v5289 = vmul.f32 %v2601, %v5161
        %v5290 = vmul.f32 %v2602, %v5162
        %v5291 = vmul.f32 %v2603, %v5163
        %v5292 = vmul.f32 %v2604, %v5164
        %v5293 = vmul.f32 %v2605, %v5165
        %v5294 = vmul.f32 %v2606, %v5166
        %v5295 = vmul.f32 %v2607, %v5167
        %v5296 = vmul.f32 %v2608, %v5168
        %v5297 = vmul.f32 %v2609, %v5169
        %v5298 = vmul.f32 %v2610, %v5170
        %v5299 = vmul.f32 %v2611, %v5171
        %v5300 = vmul.f32 %v2612, %v5172
        %v5301 = vmul.f32 %v2613, %v5173
        %v5302 = vmul.f32 %v2614, %v5174
        %v5303 = vmul.f32 %v2615, %v5175
        %v5304 = vmul.f32 %v2616, %v5176
        %v5305 = vmul.f32 %v2617, %v5177
        %v5306 = vmul.f32 %v2618, %v5178
        %v5307 = vmul.f32 %v2619, %v5179
        %v5308 = vmul.f32 %v2620, %v5180
        %v5309 = vmul.f32 %v2621, %v5181
        %v5310 = vmul.f32 %v2622, %v5182
        %v5311 = vmul.f32 %v2623, %v5183
        %v5312 = vmul.f32 %v2624, %v5184
        %v5313 = vmul.f32 %v2625, %v5185
        %v5314 = vmul.f32 %v2626, %v5186
        %v5315 = vmul.f32 %v2627, %v5187
        %v5316 = vmul.f32 %v2628, %v5188
        %v5317 = vmul.f32 %v2629, %v5189
        %v5318 = vmul.f32 %v2630, %v5190
        %v5319 = vmul.f32 %v2631, %v5191
        %v5320 = vmul.f32 %v2632, %v5192
        %v5321 = vmul.f32 %v2633, %v5193
        %v5322 = vmul.f32 %v2634, %v5194
        %v5323 = vmul.f32 %v2635, %v5195
        %v5324 = vmul.f32 %v2636, %v5196
        %v5325 = vmul.f32 %v2637, %v5197
        %v5326 = vmul.f32 %v2638, %v5198
        %v5327 = vmul.f32 %v2639, %v5199
        %v5328 = vmul.f32 %v2640, %v5200
        %v5329 = vmul.f32 %v2641, %v5201
        %v5330 = vmul.f32 %v2642, %v5202
        %v5331 = vmul.f32 %v2643, %v5203
        %v5332 = vmul.f32 %v2644, %v5204
        %v5333 = vmul.f32 %v2645, %v5205
        %v5334 = vmul.f32 %v2646, %v5206
        %v5335 = vmul.f32 %v2647, %v5207
        %v5336 = vmul.f32 %v2648, %v5208
        %v5337 = vmul.f32 %v2649, %v5209
        %v5338 = vmul.f32 %v2650, %v5210
        %v5339 = vmul.f32 %v2651, %v5211
        %v5340 = vmul.f32 %v2652, %v5212
        %v5341 = vmul.f32 %v2653, %v5213
        %v5342 = vmul.f32 %v2654, %v5214
        %v5343 = vmul.f32 %v2655, %v5215
        %v5344 = vmul.f32 %v2656, %v5216
        %v5345 = vmul.f32 %v2657, %v5217
        %v5346 = vmul.f32 %v2658, %v5218
        %v5347 = vmul.f32 %v2659, %v5219
        %v5348 = vmul.f32 %v2660, %v5220
        %v5349 = vmul.f32 %v2661, %v5221
        %v5350 = vmul.f32 %v2662, %v5222
        %v5351 = vmul.f32 %v2663, %v5223
        %v5352 = vmul.f32 %v2664, %v5224
        %v5353 = vmul.f32 %v2665, %v5225
        %v5354 = vmul.f32 %v2666, %v5226
        %v5355 = vmul.f32 %v2667, %v5227
        %v5356 = vmul.f32 %v2668, %v5228
        %v5357 = vmul.f32 %v2669, %v5229
        %v5358 = vmul.f32 %v2670, %v5230
        %v5359 = vmul.f32 %v2671, %v5231
        %v5360 = vmul.f32 %v2672, %v5232
        %v5361 = vmul.f32 %v2673, %v5233
        %v5362 = vmul.f32 %v2674, %v5234
        %v5363 = vmul.f32 %v2675, %v5235
        %v5364 = vmul.f32 %v2676, %v5236
        %v5365 = vmul.f32 %v2677, %v5237
        %v5366 = vmul.f32 %v2678, %v5238
        %v5367 = vmul.f32 %v2679, %v5239
        %v5368 = vmul.f32 %v2680, %v5240
        %v5369 = vmul.f32 %v2681, %v5241
        %v5370 = vadd.f32 %v5242, 1.0
        %v5371 = vadd.f32 %v5243, 1.0
        %v5372 = vadd.f32 %v5244, 1.0
        %v5373 = vadd.f32 %v5245, 1.0
        %v5374 = vadd.f32 %v5246, 1.0
        %v5375 = vadd.f32 %v5247, 1.0
        %v5376 = vadd.f32 %v5248, 1.0
        %v5377 = vadd.f32 %v5249, 1.0
        %v5378 = vadd.f32 %v5250, 1.0
        %v5379 = vadd.f32 %v5251, 1.0
        %v5380 = vadd.f32 %v5252, 1.0
        %v5381 = vadd.f32 %v5253, 1.0
        %v5382 = vadd.f32 %v5254, 1.0
        %v5383 = vadd.f32 %v5255, 1.0
        %v5384 = vadd.f32 %v5256, 1.0
        %v5385 = vadd.f32 %v5257, 1.0
        %v5386 = vadd.f32 %v5258, 1.0
        %v5387 = vadd.f32 %v5259, 1.0
        %v5388 = vadd.f32 %v5260, 1.0
        %v5389 = vadd.f32 %v5261, 1.0
        %v5390 = vadd.f32 %v5262, 1.0
        %v5391 = vadd.f32 %v5263, 1.0
        %v5392 = vadd.f32 %v5264, 1.0
        %v5393 = vadd.f32 %v5265, 1.0
        %v5394 = vadd.f32 %v5266, 1.0
        %v5395 = vadd.f32 %v5267, 1.0
        %v5396 = vadd.f32 %v5268, 1.0
        %v5397 = vadd.f32 %v5269, 1.0
        %v5398 = vadd.f32 %v5270, 1.0
        %v5399 = vadd.f32 %v5271, 1.0
        %v5400 = vadd.f32 %v5272, 1.0
        %v5401 = vadd.f32 %v5273, 1.0
        %v5402 = vadd.f32 %v5274, 1.0
        %v5403 = vadd.f32 %v5275, 1.0
        %v5404 = vadd.f32 %v5276, 1.0
        %v5405 = vadd.f32 %v5277, 1.0
        %v5406 = vadd.f32 %v5278, 1.0
        %v5407 = vadd.f32 %v5279, 1.0
        %v5408 = vadd.f32 %v5280, 1.0
        %v5409 = vadd.f32 %v5281, 1.0
        %v5410 = vadd.f32 %v5282, 1.0
        %v5411 = vadd.f32 %v5283, 1.0
        %v5412 = vadd.f32 %v5284, 1.0
        %v5413 = vadd.f32 %v5285, 1.0
        %v5414 = vadd.f32 %v5286, 1.0
        %v5415 = vadd.f32 %v5287, 1.0
        %v5416 = vadd.f32 %v5288, 1.0
        %v5417 = vadd.f32 %v5289, 1.0
        %v5418 = vadd.f32 %v5290, 1.0
        %v5419 = vadd.f32 %v5291, 1.0
        %v5420 = vadd.f32 %v5292, 1.0
        %v5421 = vadd.f32 %v5293, 1.0
        %v5422 = vadd.f32 %v5294, 1.0
        %v5423 = vadd.f32 %v5295, 1.0
        %v5424 = vadd.f32 %v5296, 1.0
        %v5425 = vadd.f32 %v5297, 1.0
        %v5426 = vadd.f32 %v5298, 1.0
        %v5427 = vadd.f32 %v5299, 1.0
        %v5428 = vadd.f32 %v5300, 1.0
        %v5429 = vadd.f32 %v5301, 1.0
        %v5430 = vadd.f32 %v5302, 1.0
        %v5431 = vadd.f32 %v5303, 1.0
        %v5432 = vadd.f32 %v5304, 1.0
        %v5433 = vadd.f32 %v5305, 1.0
        %v5434 = vadd.f32 %v5306, 1.0
        %v5435 = vadd.f32 %v5307, 1.0
        %v5436 = vadd.f32 %v5308, 1.0
        %v5437 = vadd.f32 %v5309, 1.0
        %v5438 = vadd.f32 %v5310, 1.0
        %v5439 = vadd.f32 %v5311, 1.0
        %v5440 = vadd.f32 %v5312, 1.0
        %v5441 = vadd.f32 %v5313, 1.0
        %v5442 = vadd.f32 %v5314, 1.0
        %v5443 = vadd.f32 %v5315, 1.0
        %v5444 = vadd.f32 %v5316, 1.0
        %v5445 = vadd.f32 %v5317, 1.0
        %v5446 = vadd.f32 %v5318, 1.0
        %v5447 = vadd.f32 %v5319, 1.0
        %v5448 = vadd.f32 %v5320, 1.0
        %v5449 = vadd.f32 %v5321, 1.0
        %v5450 = vadd.f32 %v5322, 1.0
        %v5451 = vadd.f32 %v5323, 1.0
        %v5452 = vadd.f32 %v5324, 1.0
        %v5453 = vadd.f32 %v5325, 1.0
        %v5454 = vadd.f32 %v5326, 1.0
        %v5455 = vadd.f32 %v5327, 1.0
        %v5456 = vadd.f32 %v5328, 1.0
        %v5457 = vadd.f32 %v5329, 1.0
        %v5458 = vadd.f32 %v5330, 1.0
        %v5459 = vadd.f32 %v5331, 1.0
        %v5460 = vadd.f32 %v5332, 1.0
        %v5461 = vadd.f32 %v5333, 1.0
        %v5462 = vadd.f32 %v5334, 1.0
        %v5463 = vadd.f32 %v5335, 1.0
        %v5464 = vadd.f32 %v5336, 1.0
        %v5465 = vadd.f32 %v5337, 1.0
        %v5466 = vadd.f32 %v5338, 1.0
        %v5467 = vadd.f32 %v5339, 1.0
        %v5468 = vadd.f32 %v5340, 1.0
        %v5469 = vadd.f32 %v5341, 1.0
        %v5470 = vadd.f32 %v5342, 1.0
        %v5471 = vadd.f32 %v5343, 1.0
        %v5472 = vadd.f32 %v5344, 1.0
        %v5473 = vadd.f32 %v5345, 1.0
        %v5474 = vadd.f32 %v5346, 1.0
        %v5475 = vadd.f32 %v5347, 1.0
        %v5476 = vadd.f32 %v5348, 1.0
        %v5477 = vadd.f32 %v5349, 1.0
        %v5478 = vadd.f32 %v5350, 1.0
        %v5479 = vadd.f32 %v5351, 1.0
        %v5480 = vadd.f32 %v5352, 1.0
        %v5481 = vadd.f32 %v5353, 1.0
        %v5482 = vadd.f32 %v5354, 1.0
        %v5483 = vadd.f32 %v5355, 1.0
        %v5484 = vadd.f32 %v5356, 1.0
        %v5485 = vadd.f32 %v5357, 1.0
        %v5486 = vadd.f32 %v5358, 1.0
        %v5487 = vadd.f32 %v5359, 1.0
        %v5488 = vadd.f32 %v5360, 1.0
        %v5489 = vadd.f32 %v5361, 1.0
        %v5490 = vadd.f32 %v5362, 1.0
        %v5491 = vadd.f32 %v5363, 1.0
        %v5492 = vadd.f32 %v5364, 1.0
        %v5493 = vadd.f32 %v5365, 1.0
        %v5494 = vadd.f32 %v5366, 1.0
        %v5495 = vadd.f32 %v5367, 1.0
        %v5496 = vadd.f32 %v5368, 1.0
        %v5497 = vadd.f32 %v5369, 1.0
        %v5498 = vmul.f32 %v2170, %v5370
        %v5499 = vmul.f32 %v2171, %v5371
        %v5500 = vmul.f32 %v2172, %v5372
        %v5501 = vmul.f32 %v2173, %v5373
        %v5502 = vmul.f32 %v2174, %v5374
        %v5503 = vmul.f32 %v2175, %v5375
        %v5504 = vmul.f32 %v2176, %v5376
        %v5505 = vmul.f32 %v2177, %v5377
        %v5506 = vmul.f32 %v2178, %v5378
        %v5507 = vmul.f32 %v2179, %v5379
        %v5508 = vmul.f32 %v2180, %v5380
        %v5509 = vmul.f32 %v2181, %v5381
        %v5510 = vmul.f32 %v2182, %v5382
        %v5511 = vmul.f32 %v2183, %v5383
        %v5512 = vmul.f32 %v2184, %v5384
        %v5513 = vmul.f32 %v2185, %v5385
        %v5514 = vmul.f32 %v2186, %v5386
        %v5515 = vmul.f32 %v2187, %v5387
        %v5516 = vmul.f32 %v2188, %v5388
        %v5517 = vmul.f32 %v2189, %v5389
        %v5518 = vmul.f32 %v2190, %v5390
        %v5519 = vmul.f32 %v2191, %v5391
        %v5520 = vmul.f32 %v2192, %v5392
        %v5521 = vmul.f32 %v2193, %v5393
        %v5522 = vmul.f32 %v2194, %v5394
        %v5523 = vmul.f32 %v2195, %v5395
        %v5524 = vmul.f32 %v2196, %v5396
        %v5525 = vmul.f32 %v2197, %v5397
        %v5526 = vmul.f32 %v2198, %v5398
        %v5527 = vmul.f32 %v2199, %v5399
        %v5528 = vmul.f32 %v2200, %v5400
        %v5529 = vmul.f32 %v2201, %v5401
        %v5530 = vmul.f32 %v2202, %v5402
        %v5531 = vmul.f32 %v2203, %v5403
        %v5532 = vmul.f32 %v2204, %v5404
        %v5533 = vmul.f32 %v2205, %v5405
        %v5534 = vmul.f32 %v2206, %v5406
        %v5535 = vmul.f32 %v2207, %v5407
        %v5536 = vmul.f32 %v2208, %v5408
        %v5537 = vmul.f32 %v2209, %v5409
        %v5538 = vmul.f32 %v2210, %v5410
        %v5539 = vmul.f32 %v2211, %v5411
        %v5540 = vmul.f32 %v2212, %v5412
        %v5541 = vmul.f32 %v2213, %v5413
        %v5542 = vmul.f32 %v2214, %v5414
        %v5543 = vmul.f32 %v2215, %v5415
        %v5544 = vmul.f32 %v2216, %v5416
        %v5545 = vmul.f32 %v2217, %v5417
        %v5546 = vmul.f32 %v2218, %v5418
        %v5547 = vmul.f32 %v2219, %v5419
        %v5548 = vmul.f32 %v2220, %v5420
        %v5549 = vmul.f32 %v2221, %v5421
        %v5550 = vmul.f32 %v2222, %v5422
        %v5551 = vmul.f32 %v2223, %v5423
        %v5552 = vmul.f32 %v2224, %v5424
        %v5553 = vmul.f32 %v2225, %v5425
        %v5554 = vmul.f32 %v2226, %v5426
        %v5555 = vmul.f32 %v2227, %v5427
        %v5556 = vmul.f32 %v2228, %v5428
        %v5557 = vmul.f32 %v2229, %v5429
        %v5558 = vmul.f32 %v2230, %v5430
        %v5559 = vmul.f32 %v2231, %v5431
        %v5560 = vmul.f32 %v2232, %v5432
        %v5561 = vmul.f32 %v2233, %v5433
        %v5562 = vmul.f32 %v2234, %v5434
        %v5563 = vmul.f32 %v2235, %v5435
        %v5564 = vmul.f32 %v2236, %v5436
        %v5565 = vmul.f32 %v2237, %v5437
        %v5566 = vmul.f32 %v2238, %v5438
        %v5567 = vmul.f32 %v2239, %v5439
        %v5568 = vmul.f32 %v2240, %v5440
        %v5569 = vmul.f32 %v2241, %v5441
        %v5570 = vmul.f32 %v2242, %v5442
        %v5571 = vmul.f32 %v2243, %v5443
        %v5572 = vmul.f32 %v2244, %v5444
        %v5573 = vmul.f32 %v2245, %v5445
        %v5574 = vmul.f32 %v2246, %v5446
        %v5575 = vmul.f32 %v2247, %v5447
        %v5576 = vmul.f32 %v2248, %v5448
        %v5577 = vmul.f32 %v2249, %v5449
        %v5578 = vmul.f32 %v2250, %v5450
        %v5579 = vmul.f32 %v2251, %v5451
        %v5580 = vmul.f32 %v2252, %v5452
        %v5581 = vmul.f32 %v2253, %v5453
        %v5582 = vmul.f32 %v2254, %v5454
        %v5583 = vmul.f32 %v2255, %v5455
        %v5584 = vmul.f32 %v2256, %v5456
        %v5585 = vmul.f32 %v2257, %v5457
        %v5586 = vmul.f32 %v2258, %v5458
        %v5587 = vmul.f32 %v2259, %v5459
        %v5588 = vmul.f32 %v2260, %v5460
        %v5589 = vmul.f32 %v2261, %v5461
        %v5590 = vmul.f32 %v2262, %v5462
        %v5591 = vmul.f32 %v2263, %v5463
        %v5592 = vmul.f32 %v2264, %v5464
        %v5593 = vmul.f32 %v2265, %v5465
        %v5594 = vmul.f32 %v2266, %v5466
        %v5595 = vmul.f32 %v2267, %v5467
        %v5596 = vmul.f32 %v2268, %v5468
        %v5597 = vmul.f32 %v2269, %v5469
        %v5598 = vmul.f32 %v2270, %v5470
        %v5599 = vmul.f32 %v2271, %v5471
        %v5600 = vmul.f32 %v2272, %v5472
        %v5601 = vmul.f32 %v2273, %v5473
        %v5602 = vmul.f32 %v2274, %v5474
        %v5603 = vmul.f32 %v2275, %v5475
        %v5604 = vmul.f32 %v2276, %v5476
        %v5605 = vmul.f32 %v2277, %v5477
        %v5606 = vmul.f32 %v2278, %v5478
        %v5607 = vmul.f32 %v2279, %v5479
        %v5608 = vmul.f32 %v2280, %v5480
        %v5609 = vmul.f32 %v2281, %v5481
        %v5610 = vmul.f32 %v2282, %v5482
        %v5611 = vmul.f32 %v2283, %v5483
        %v5612 = vmul.f32 %v2284, %v5484
        %v5613 = vmul.f32 %v2285, %v5485
        %v5614 = vmul.f32 %v2286, %v5486
        %v5615 = vmul.f32 %v2287, %v5487
        %v5616 = vmul.f32 %v2288, %v5488
        %v5617 = vmul.f32 %v2289, %v5489
        %v5618 = vmul.f32 %v2290, %v5490
        %v5619 = vmul.f32 %v2291, %v5491
        %v5620 = vmul.f32 %v2292, %v5492
        %v5621 = vmul.f32 %v2293, %v5493
        %v5622 = vmul.f32 %v2294, %v5494
        %v5623 = vmul.f32 %v2295, %v5495
        %v5624 = vmul.f32 %v2296, %v5496
        %v5625 = vmul.f32 %v2297, %v5497
        %v5626 = vld [vmem:[%s834] sm:$0xff]
        %v5627 = vld [vmem:[%s834 + $0x8] sm:$0xff]
        %v5628 = vld [vmem:[%s834 + $0x10] sm:$0xff]
        %v5629 = vld [vmem:[%s834 + $0x18] sm:$0xff]
        %v5630 = vpack.c.bf16 %v5500, %v5498
        %v5631 = vpack.c.bf16 %v5501, %v5499
        %v5632 = vpack.c.bf16 %v5504, %v5502
        %v5633 = vpack.c.bf16 %v5505, %v5503
        %v5634 = vpack.c.bf16 %v5508, %v5506
        %v5635 = vpack.c.bf16 %v5509, %v5507
        %v5636 = vpack.c.bf16 %v5512, %v5510
        %v5637 = vpack.c.bf16 %v5513, %v5511
        %v5638 = vpack.c.bf16 %v5516, %v5514
        %v5639 = vpack.c.bf16 %v5517, %v5515
        %v5640 = vpack.c.bf16 %v5520, %v5518
        %v5641 = vpack.c.bf16 %v5521, %v5519
        %v5642 = vpack.c.bf16 %v5524, %v5522
        %v5643 = vpack.c.bf16 %v5525, %v5523
        %v5644 = vpack.c.bf16 %v5528, %v5526
        %v5645 = vpack.c.bf16 %v5529, %v5527
        %v5646 = vpack.c.bf16 %v5532, %v5530
        %v5647 = vpack.c.bf16 %v5533, %v5531
        %v5648 = vpack.c.bf16 %v5536, %v5534
        %v5649 = vpack.c.bf16 %v5537, %v5535
        %v5650 = vpack.c.bf16 %v5540, %v5538
        %v5651 = vpack.c.bf16 %v5541, %v5539
        %v5652 = vpack.c.bf16 %v5544, %v5542
        %v5653 = vpack.c.bf16 %v5545, %v5543
        %v5654 = vpack.c.bf16 %v5548, %v5546
        %v5655 = vpack.c.bf16 %v5549, %v5547
        %v5656 = vpack.c.bf16 %v5552, %v5550
        %v5657 = vpack.c.bf16 %v5553, %v5551
        %v5658 = vpack.c.bf16 %v5556, %v5554
        %v5659 = vpack.c.bf16 %v5557, %v5555
        %v5660 = vpack.c.bf16 %v5560, %v5558
        %v5661 = vpack.c.bf16 %v5561, %v5559
        %v5662 = vpack.c.bf16 %v5564, %v5562
        %v5663 = vpack.c.bf16 %v5565, %v5563
        %v5664 = vpack.c.bf16 %v5568, %v5566
        %v5665 = vpack.c.bf16 %v5569, %v5567
        %v5666 = vpack.c.bf16 %v5572, %v5570
        %v5667 = vpack.c.bf16 %v5573, %v5571
        %v5668 = vpack.c.bf16 %v5576, %v5574
        %v5669 = vpack.c.bf16 %v5577, %v5575
        %v5670 = vpack.c.bf16 %v5580, %v5578
        %v5671 = vpack.c.bf16 %v5581, %v5579
        %v5672 = vpack.c.bf16 %v5584, %v5582
        %v5673 = vpack.c.bf16 %v5585, %v5583
        %v5674 = vpack.c.bf16 %v5588, %v5586
        %v5675 = vpack.c.bf16 %v5589, %v5587
        %v5676 = vpack.c.bf16 %v5592, %v5590
        %v5677 = vpack.c.bf16 %v5593, %v5591
        %v5678 = vpack.c.bf16 %v5596, %v5594
        %v5679 = vpack.c.bf16 %v5597, %v5595
        %v5680 = vpack.c.bf16 %v5600, %v5598
        %v5681 = vpack.c.bf16 %v5601, %v5599
        %v5682 = vpack.c.bf16 %v5604, %v5602
        %v5683 = vpack.c.bf16 %v5605, %v5603
        %v5684 = vpack.c.bf16 %v5608, %v5606
        %v5685 = vpack.c.bf16 %v5609, %v5607
        %v5686 = vpack.c.bf16 %v5612, %v5610
        %v5687 = vpack.c.bf16 %v5613, %v5611
        %v5688 = vpack.c.bf16 %v5616, %v5614
        %v5689 = vpack.c.bf16 %v5617, %v5615
        %v5690 = vpack.c.bf16 %v5620, %v5618
        %v5691 = vpack.c.bf16 %v5621, %v5619
        %v5692 = vpack.c.bf16 %v5624, %v5622
        %v5693 = vpack.c.bf16 %v5625, %v5623
        %v5694 = vld [vmem:[%s1027] sm:$0xff]
        %v5695 = vld [vmem:[%s1027 + $0x8] sm:$0xff]
        %5697 = vset.pattern.permute.xlu0 0
        %5698 = vperm.xlu0 %5697, %v5694
        %v5699 = vpop.permute.xlu0 %5698
        %5702 = vset.pattern.permute.xlu0 0
        %5703 = vperm.xlu0 %5702, %v5695
        %v5704 = vpop.permute.xlu0 %5703
        %v5710 = vunpack.c.l.b16 %v5626
        %v5711 = vunpack.c.h.b16 %v5626
        %v5712 = vunpack.c.l.b16 %v5627
        %v5713 = vunpack.c.h.b16 %v5627
        %v5714 = vunpack.c.l.b16 %v5628
        %v5715 = vunpack.c.h.b16 %v5628
        %v5716 = vunpack.c.l.b16 %v5629
        %v5717 = vunpack.c.h.b16 %v5629
        %v5718 = vpack.c.b16 %v5714, %v5710
        %v5719 = vpack.c.b16 %v5715, %v5711
        %v5720 = vpack.c.b16 %v5716, %v5712
        %v5721 = vpack.c.b16 %v5717, %v5713
        %5726 = vmatprep.subr.bf16.mxu0 %v5631
        %5727 = vmatpush1.bf16.msra.mxu0 %v5630
        %5728 = vmatprep.subr.bf16.mxu0 %v5633
        %5729 = vmatpush1.bf16.msra.mxu0 %v5632
        %5730 = vmatprep.subr.bf16.mxu0 %v5635
        %5731 = vmatpush1.bf16.msra.mxu0 %v5634
        %5732 = vmatprep.subr.bf16.mxu0 %v5637
        %5733 = vmatpush1.bf16.msra.mxu0 %v5636
        %5734 = vmatprep.subr.bf16.mxu0 %v5639
        %5735 = vmatpush1.bf16.msra.mxu0 %v5638
        %5736 = vmatprep.subr.bf16.mxu0 %v5641
        %5737 = vmatpush1.bf16.msra.mxu0 %v5640
        %5738 = vmatprep.subr.bf16.mxu0 %v5643
        %5739 = vmatpush1.bf16.msra.mxu0 %v5642
        %5740 = vmatprep.subr.bf16.mxu0 %v5645
        %5741 = vmatpush1.bf16.msra.mxu0 %v5644
        %5742 = vmatprep.subr.bf16.mxu0 %v5647
        %5743 = vmatpush1.bf16.msra.mxu0 %v5646
        %5744 = vmatprep.subr.bf16.mxu0 %v5649
        %5745 = vmatpush1.bf16.msra.mxu0 %v5648
        %5746 = vmatprep.subr.bf16.mxu0 %v5651
        %5747 = vmatpush1.bf16.msra.mxu0 %v5650
        %5748 = vmatprep.subr.bf16.mxu0 %v5653
        %5749 = vmatpush1.bf16.msra.mxu0 %v5652
        %5750 = vmatprep.subr.bf16.mxu0 %v5655
        %5751 = vmatpush1.bf16.msra.mxu0 %v5654
        %5752 = vmatprep.subr.bf16.mxu0 %v5657
        %5753 = vmatpush1.bf16.msra.mxu0 %v5656
        %5754 = vmatprep.subr.bf16.mxu0 %v5659
        %5755 = vmatpush1.bf16.msra.mxu0 %v5658
        %5756 = vmatprep.subr.bf16.mxu0 %v5661
        %5757 = vmatpush1.bf16.msra.mxu0 %v5660
        %5758 = vmatprep.mubr.bf16.mxu0 %v5719
        %5759 = vmatmul.mubr.bf16.gmra.mrb[0].mxu0 %v5718
        %v5760 = vpop.f32.mrb[0].mxu0
        %v5761 = vadd.f32 %v5699, %v5760
        %v5762 = vpop.f32.mrb[0].mxu0
        %v5763 = vadd.f32 %v5699, %v5762
        %v5764 = vpop.f32.mrb[0].mxu0
        %v5765 = vadd.f32 %v5704, %v5764
        %v5766 = vpop.f32.mrb[0].mxu0
        %v5767 = vadd.f32 %v5704, %v5766
        %5768 = vdwg.mxu0
        %5769 = vmatprep.subr.bf16.mxu0 %v5663
        %5770 = vmatpush1.bf16.msra.mxu0 %v5662
        %5771 = vmatprep.subr.bf16.mxu0 %v5665
        %5772 = vmatpush1.bf16.msra.mxu0 %v5664
        %5773 = vmatprep.subr.bf16.mxu0 %v5667
        %5774 = vmatpush1.bf16.msra.mxu0 %v5666
        %5775 = vmatprep.subr.bf16.mxu0 %v5669
        %5776 = vmatpush1.bf16.msra.mxu0 %v5668
        %5777 = vmatprep.subr.bf16.mxu0 %v5671
        %5778 = vmatpush1.bf16.msra.mxu0 %v5670
        %5779 = vmatprep.subr.bf16.mxu0 %v5673
        %5780 = vmatpush1.bf16.msra.mxu0 %v5672
        %5781 = vmatprep.subr.bf16.mxu0 %v5675
        %5782 = vmatpush1.bf16.msra.mxu0 %v5674
        %5783 = vmatprep.subr.bf16.mxu0 %v5677
        %5784 = vmatpush1.bf16.msra.mxu0 %v5676
        %5785 = vmatprep.subr.bf16.mxu0 %v5679
        %5786 = vmatpush1.bf16.msra.mxu0 %v5678
        %5787 = vmatprep.subr.bf16.mxu0 %v5681
        %5788 = vmatpush1.bf16.msra.mxu0 %v5680
        %5789 = vmatprep.subr.bf16.mxu0 %v5683
        %5790 = vmatpush1.bf16.msra.mxu0 %v5682
        %5791 = vmatprep.subr.bf16.mxu0 %v5685
        %5792 = vmatpush1.bf16.msra.mxu0 %v5684
        %5793 = vmatprep.subr.bf16.mxu0 %v5687
        %5794 = vmatpush1.bf16.msra.mxu0 %v5686
        %5795 = vmatprep.subr.bf16.mxu0 %v5689
        %5796 = vmatpush1.bf16.msra.mxu0 %v5688
        %5797 = vmatprep.subr.bf16.mxu0 %v5691
        %5798 = vmatpush1.bf16.msra.mxu0 %v5690
        %5799 = vmatprep.subr.bf16.mxu0 %v5693
        %5800 = vmatpush1.bf16.msra.mxu0 %v5692
        %5801 = vmatprep.mubr.bf16.mxu0 %v5721
        %5802 = vmatmul.mubr.bf16.gmra.mrb[0].mxu0 %v5720
        %v5803 = vpop.f32.mrb[0].mxu0
        %v5804 = vadd.f32 %v5761, %v5803
        %v5805 = vpop.f32.mrb[0].mxu0
        %v5806 = vadd.f32 %v5763, %v5805
        %v5807 = vpop.f32.mrb[0].mxu0
        %v5808 = vadd.f32 %v5765, %v5807
        %v5809 = vpop.f32.mrb[0].mxu0
        %v5810 = vadd.f32 %v5767, %v5809
        %5811 = vdwg.mxu0
        %v5812 = vadd.f32 %v1041, %v5804
        %v5813 = vadd.f32 %v1042, %v5806
        %v5814 = vadd.f32 %v1043, %v5808
        %v5815 = vadd.f32 %v1044, %v5810
        %v5816 = vld [vmem:[%s843] sm:$0x3]
        %v5817 = vld [vmem:[%s852] sm:$0x3]
        %v5818 = vadd.f32 %v5812, %v5813
        %5819 = vadd.xlane.f32.xlu0 %v5818
        %v5820 = vpop.xlane.xlu0 %5819
        %v5821 = vadd.f32 %v5814, %v5815
        %5822 = vadd.xlane.f32.xlu0 %v5821
        %v5823 = vpop.xlane.xlu0 %5822
        %v5824 = vmul.f32 %v5820, %v1053
        %v5825 = vmul.f32 %v5823, %v1053
        %v5826 = vsub.f32 %v5812, %v5824
        %v5827 = vsub.f32 %v5813, %v5824
        %v5828 = vsub.f32 %v5814, %v5825
        %v5829 = vsub.f32 %v5815, %v5825
        %v5830 = vmul.f32 %v5826, %v5826
        %v5831 = vmul.f32 %v5827, %v5827
        %v5832 = vmul.f32 %v5828, %v5828
        %v5833 = vmul.f32 %v5829, %v5829
        %v5834 = vadd.f32 %v5830, %v5831
        %5835 = vadd.xlane.f32.xlu0 %v5834
        %v5836 = vpop.xlane.xlu0 %5835
        %v5837 = vadd.f32 %v5832, %v5833
        %5838 = vadd.xlane.f32.xlu0 %v5837
        %v5839 = vpop.xlane.xlu0 %5838
        %v5840 = vmul.f32 %v5836, %v1053
        %v5841 = vmul.f32 %v5839, %v1053
        %v5842 = vadd.f32 %v5840, 1e-06
        %v5843 = vadd.f32 %v5841, 1e-06
        %v5844 = vrsqrt.pop %v5842
        %v5845 = vrsqrt.pop %v5843
        %v5846 = vmul.f32 %v5826, %v5844
        %v5847 = vmul.f32 %v5827, %v5844
        %v5848 = vmul.f32 %v5828, %v5845
        %v5849 = vmul.f32 %v5829, %v5845
        %v5851 = vlaneseq
        %v5852 = vshrl.u32 %v5851, 7
        %v5853 = vsub.s32 0, %v5852
        %v5854 = vrot.slane %v5816, %v5853
        %v5855 = vlaneseq
        %v5856 = vshrl.u32 %v5855, 7
        %v5857 = vsub.s32 1, %v5856
        %v5858 = vrot.slane %v5816, %v5857
        %v5861 = vmul.f32 %v5846, %v5854
        %v5862 = vmul.f32 %v5847, %v5858
        %v5863 = vmul.f32 %v5848, %v5854
        %v5864 = vmul.f32 %v5849, %v5858
        %v5866 = vlaneseq
        %v5867 = vshrl.u32 %v5866, 7
        %v5868 = vsub.s32 0, %v5867
        %v5869 = vrot.slane %v5817, %v5868
        %v5870 = vlaneseq
        %v5871 = vshrl.u32 %v5870, 7
        %v5872 = vsub.s32 1, %v5871
        %v5873 = vrot.slane %v5817, %v5872
        %v5876 = vadd.f32 %v5861, %v5869
        %v5877 = vadd.f32 %v5862, %v5873
        %v5878 = vadd.f32 %v5863, %v5869
        %v5879 = vadd.f32 %v5864, %v5873
        %v5880 = vpack.c.bf16 %v5878, %v5876
        %v5881 = vpack.c.bf16 %v5879, %v5877
        %v5882 = vld [vmem:[%s861] sm:$0xff]
        %v5883 = vld [vmem:[%s861 + $0x8] sm:$0xff]
        %v5884 = vld [vmem:[%s861 + $0x10] sm:$0xff]
        %v5885 = vld [vmem:[%s861 + $0x18] sm:$0xff]
        %v5886 = vld [vmem:[%s861 + $0x20] sm:$0xff]
        %v5887 = vld [vmem:[%s861 + $0x28] sm:$0xff]
        %v5888 = vld [vmem:[%s861 + $0x30] sm:$0xff]
        %v5889 = vld [vmem:[%s861 + $0x38] sm:$0xff]
        %v5890 = vld [vmem:[%s861 + $0x40] sm:$0xff]
        %v5891 = vld [vmem:[%s861 + $0x48] sm:$0xff]
        %v5892 = vld [vmem:[%s861 + $0x50] sm:$0xff]
        %v5893 = vld [vmem:[%s861 + $0x58] sm:$0xff]
        %v5894 = vld [vmem:[%s861 + $0x60] sm:$0xff]
        %v5895 = vld [vmem:[%s861 + $0x68] sm:$0xff]
        %v5896 = vld [vmem:[%s861 + $0x70] sm:$0xff]
        %v5897 = vld [vmem:[%s861 + $0x78] sm:$0xff]
        %v5898 = vld [vmem:[%s861 + $0x80] sm:$0xff]
        %v5899 = vld [vmem:[%s861 + $0x88] sm:$0xff]
        %v5900 = vld [vmem:[%s861 + $0x90] sm:$0xff]
        %v5901 = vld [vmem:[%s861 + $0x98] sm:$0xff]
        %v5902 = vld [vmem:[%s861 + $0xa0] sm:$0xff]
        %v5903 = vld [vmem:[%s861 + $0xa8] sm:$0xff]
        %v5904 = vld [vmem:[%s861 + $0xb0] sm:$0xff]
        %v5905 = vld [vmem:[%s861 + $0xb8] sm:$0xff]
        %v5906 = vld [vmem:[%s861 + $0xc0] sm:$0xff]
        %v5907 = vld [vmem:[%s861 + $0xc8] sm:$0xff]
        %v5908 = vld [vmem:[%s861 + $0xd0] sm:$0xff]
        %v5909 = vld [vmem:[%s861 + $0xd8] sm:$0xff]
        %v5910 = vld [vmem:[%s861 + $0xe0] sm:$0xff]
        %v5911 = vld [vmem:[%s861 + $0xe8] sm:$0xff]
        %v5912 = vld [vmem:[%s861 + $0xf0] sm:$0xff]
        %v5913 = vld [vmem:[%s861 + $0xf8] sm:$0xff]
        %v5914 = vld [vmem:[%s861 + $0x100] sm:$0xff]
        %v5915 = vld [vmem:[%s861 + $0x108] sm:$0xff]
        %v5916 = vld [vmem:[%s861 + $0x110] sm:$0xff]
        %v5917 = vld [vmem:[%s861 + $0x118] sm:$0xff]
        %v5918 = vld [vmem:[%s861 + $0x120] sm:$0xff]
        %v5919 = vld [vmem:[%s861 + $0x128] sm:$0xff]
        %v5920 = vld [vmem:[%s861 + $0x130] sm:$0xff]
        %v5921 = vld [vmem:[%s861 + $0x138] sm:$0xff]
        %v5922 = vld [vmem:[%s861 + $0x140] sm:$0xff]
        %v5923 = vld [vmem:[%s861 + $0x148] sm:$0xff]
        %v5924 = vld [vmem:[%s861 + $0x150] sm:$0xff]
        %v5925 = vld [vmem:[%s861 + $0x158] sm:$0xff]
        %v5926 = vld [vmem:[%s861 + $0x160] sm:$0xff]
        %v5927 = vld [vmem:[%s861 + $0x168] sm:$0xff]
        %v5928 = vld [vmem:[%s861 + $0x170] sm:$0xff]
        %v5929 = vld [vmem:[%s861 + $0x178] sm:$0xff]
        %v5930 = vld [vmem:[%s861 + $0x180] sm:$0xff]
        %v5931 = vld [vmem:[%s861 + $0x188] sm:$0xff]
        %v5932 = vld [vmem:[%s861 + $0x190] sm:$0xff]
        %v5933 = vld [vmem:[%s861 + $0x198] sm:$0xff]
        %v5934 = vld [vmem:[%s861 + $0x1a0] sm:$0xff]
        %v5935 = vld [vmem:[%s861 + $0x1a8] sm:$0xff]
        %v5936 = vld [vmem:[%s861 + $0x1b0] sm:$0xff]
        %v5937 = vld [vmem:[%s861 + $0x1b8] sm:$0xff]
        %v5938 = vld [vmem:[%s861 + $0x1c0] sm:$0xff]
        %v5939 = vld [vmem:[%s861 + $0x1c8] sm:$0xff]
        %v5940 = vld [vmem:[%s861 + $0x1d0] sm:$0xff]
        %v5941 = vld [vmem:[%s861 + $0x1d8] sm:$0xff]
        %v5942 = vld [vmem:[%s861 + $0x1e0] sm:$0xff]
        %v5943 = vld [vmem:[%s861 + $0x1e8] sm:$0xff]
        %v5944 = vld [vmem:[%s861 + $0x1f0] sm:$0xff]
        %v5945 = vld [vmem:[%s861 + $0x1f8] sm:$0xff]
        %v5946 = vld [vmem:[%s861 + $0x200] sm:$0xff]
        %v5947 = vld [vmem:[%s861 + $0x208] sm:$0xff]
        %v5948 = vld [vmem:[%s861 + $0x210] sm:$0xff]
        %v5949 = vld [vmem:[%s861 + $0x218] sm:$0xff]
        %v5950 = vld [vmem:[%s861 + $0x220] sm:$0xff]
        %v5951 = vld [vmem:[%s861 + $0x228] sm:$0xff]
        %v5952 = vld [vmem:[%s861 + $0x230] sm:$0xff]
        %v5953 = vld [vmem:[%s861 + $0x238] sm:$0xff]
        %v5954 = vld [vmem:[%s861 + $0x240] sm:$0xff]
        %v5955 = vld [vmem:[%s861 + $0x248] sm:$0xff]
        %v5956 = vld [vmem:[%s861 + $0x250] sm:$0xff]
        %v5957 = vld [vmem:[%s861 + $0x258] sm:$0xff]
        %v5958 = vld [vmem:[%s861 + $0x260] sm:$0xff]
        %v5959 = vld [vmem:[%s861 + $0x268] sm:$0xff]
        %v5960 = vld [vmem:[%s861 + $0x270] sm:$0xff]
        %v5961 = vld [vmem:[%s861 + $0x278] sm:$0xff]
        %v5962 = vld [vmem:[%s861 + $0x280] sm:$0xff]
        %v5963 = vld [vmem:[%s861 + $0x288] sm:$0xff]
        %v5964 = vld [vmem:[%s861 + $0x290] sm:$0xff]
        %v5965 = vld [vmem:[%s861 + $0x298] sm:$0xff]
        %v5966 = vld [vmem:[%s861 + $0x2a0] sm:$0xff]
        %v5967 = vld [vmem:[%s861 + $0x2a8] sm:$0xff]
        %v5968 = vld [vmem:[%s861 + $0x2b0] sm:$0xff]
        %v5969 = vld [vmem:[%s861 + $0x2b8] sm:$0xff]
        %v5970 = vld [vmem:[%s861 + $0x2c0] sm:$0xff]
        %v5971 = vld [vmem:[%s861 + $0x2c8] sm:$0xff]
        %v5972 = vld [vmem:[%s861 + $0x2d0] sm:$0xff]
        %v5973 = vld [vmem:[%s861 + $0x2d8] sm:$0xff]
        %v5974 = vld [vmem:[%s861 + $0x2e0] sm:$0xff]
        %v5975 = vld [vmem:[%s861 + $0x2e8] sm:$0xff]
        %v5976 = vld [vmem:[%s861 + $0x2f0] sm:$0xff]
        %v5977 = vld [vmem:[%s861 + $0x2f8] sm:$0xff]
        %v5978 = vld [vmem:[%s861 + $0x300] sm:$0xff]
        %v5979 = vld [vmem:[%s861 + $0x308] sm:$0xff]
        %v5980 = vld [vmem:[%s861 + $0x310] sm:$0xff]
        %v5981 = vld [vmem:[%s861 + $0x318] sm:$0xff]
        %v5982 = vld [vmem:[%s861 + $0x320] sm:$0xff]
        %v5983 = vld [vmem:[%s861 + $0x328] sm:$0xff]
        %v5984 = vld [vmem:[%s861 + $0x330] sm:$0xff]
        %v5985 = vld [vmem:[%s861 + $0x338] sm:$0xff]
        %v5986 = vld [vmem:[%s861 + $0x340] sm:$0xff]
        %v5987 = vld [vmem:[%s861 + $0x348] sm:$0xff]
        %v5988 = vld [vmem:[%s861 + $0x350] sm:$0xff]
        %v5989 = vld [vmem:[%s861 + $0x358] sm:$0xff]
        %v5990 = vld [vmem:[%s861 + $0x360] sm:$0xff]
        %v5991 = vld [vmem:[%s861 + $0x368] sm:$0xff]
        %v5992 = vld [vmem:[%s861 + $0x370] sm:$0xff]
        %v5993 = vld [vmem:[%s861 + $0x378] sm:$0xff]
        %v5994 = vld [vmem:[%s861 + $0x380] sm:$0xff]
        %v5995 = vld [vmem:[%s861 + $0x388] sm:$0xff]
        %v5996 = vld [vmem:[%s861 + $0x390] sm:$0xff]
        %v5997 = vld [vmem:[%s861 + $0x398] sm:$0xff]
        %v5998 = vld [vmem:[%s861 + $0x3a0] sm:$0xff]
        %v5999 = vld [vmem:[%s861 + $0x3a8] sm:$0xff]
        %v6000 = vld [vmem:[%s861 + $0x3b0] sm:$0xff]
        %v6001 = vld [vmem:[%s861 + $0x3b8] sm:$0xff]
        %v6002 = vld [vmem:[%s861 + $0x3c0] sm:$0xff]
        %v6003 = vld [vmem:[%s861 + $0x3c8] sm:$0xff]
        %v6004 = vld [vmem:[%s861 + $0x3d0] sm:$0xff]
        %v6005 = vld [vmem:[%s861 + $0x3d8] sm:$0xff]
        %v6006 = vld [vmem:[%s861 + $0x3e0] sm:$0xff]
        %v6007 = vld [vmem:[%s861 + $0x3e8] sm:$0xff]
        %v6008 = vld [vmem:[%s861 + $0x3f0] sm:$0xff]
        %v6009 = vld [vmem:[%s861 + $0x3f8] sm:$0xff]
        %v6010 = vld [vmem:[%s870] sm:$0xff]
        %v6012 = vlaneseq
        %v6013 = vshrl.u32 %v6012, 7
        %v6014 = vsub.s32 0, %v6013
        %v6015 = vrot.slane %v6010, %v6014
        %v6016 = vlaneseq
        %v6017 = vshrl.u32 %v6016, 7
        %v6018 = vsub.s32 1, %v6017
        %v6019 = vrot.slane %v6010, %v6018
        %v6020 = vlaneseq
        %v6021 = vshrl.u32 %v6020, 7
        %v6022 = vsub.s32 2, %v6021
        %v6023 = vrot.slane %v6010, %v6022
        %v6024 = vlaneseq
        %v6025 = vshrl.u32 %v6024, 7
        %v6026 = vsub.s32 3, %v6025
        %v6027 = vrot.slane %v6010, %v6026
        %v6028 = vlaneseq
        %v6029 = vshrl.u32 %v6028, 7
        %v6030 = vsub.s32 4, %v6029
        %v6031 = vrot.slane %v6010, %v6030
        %v6032 = vlaneseq
        %v6033 = vshrl.u32 %v6032, 7
        %v6034 = vsub.s32 5, %v6033
        %v6035 = vrot.slane %v6010, %v6034
        %v6036 = vlaneseq
        %v6037 = vshrl.u32 %v6036, 7
        %v6038 = vsub.s32 6, %v6037
        %v6039 = vrot.slane %v6010, %v6038
        %v6040 = vlaneseq
        %v6041 = vshrl.u32 %v6040, 7
        %v6042 = vsub.s32 7, %v6041
        %v6043 = vrot.slane %v6010, %v6042
        %v6180 = vunpack.c.l.b16 %v5882
        %v6181 = vunpack.c.h.b16 %v5882
        %v6182 = vunpack.c.l.b16 %v5883
        %v6183 = vunpack.c.h.b16 %v5883
        %v6184 = vunpack.c.l.b16 %v5884
        %v6185 = vunpack.c.h.b16 %v5884
        %v6186 = vunpack.c.l.b16 %v5885
        %v6187 = vunpack.c.h.b16 %v5885
        %v6188 = vunpack.c.l.b16 %v5886
        %v6189 = vunpack.c.h.b16 %v5886
        %v6190 = vunpack.c.l.b16 %v5887
        %v6191 = vunpack.c.h.b16 %v5887
        %v6192 = vunpack.c.l.b16 %v5888
        %v6193 = vunpack.c.h.b16 %v5888
        %v6194 = vunpack.c.l.b16 %v5889
        %v6195 = vunpack.c.h.b16 %v5889
        %v6196 = vunpack.c.l.b16 %v5890
        %v6197 = vunpack.c.h.b16 %v5890
        %v6198 = vunpack.c.l.b16 %v5891
        %v6199 = vunpack.c.h.b16 %v5891
        %v6200 = vunpack.c.l.b16 %v5892
        %v6201 = vunpack.c.h.b16 %v5892
        %v6202 = vunpack.c.l.b16 %v5893
        %v6203 = vunpack.c.h.b16 %v5893
        %v6204 = vunpack.c.l.b16 %v5894
        %v6205 = vunpack.c.h.b16 %v5894
        %v6206 = vunpack.c.l.b16 %v5895
        %v6207 = vunpack.c.h.b16 %v5895
        %v6208 = vunpack.c.l.b16 %v5896
        %v6209 = vunpack.c.h.b16 %v5896
        %v6210 = vunpack.c.l.b16 %v5897
        %v6211 = vunpack.c.h.b16 %v5897
        %v6212 = vunpack.c.l.b16 %v5898
        %v6213 = vunpack.c.h.b16 %v5898
        %v6214 = vunpack.c.l.b16 %v5899
        %v6215 = vunpack.c.h.b16 %v5899
        %v6216 = vunpack.c.l.b16 %v5900
        %v6217 = vunpack.c.h.b16 %v5900
        %v6218 = vunpack.c.l.b16 %v5901
        %v6219 = vunpack.c.h.b16 %v5901
        %v6220 = vunpack.c.l.b16 %v5902
        %v6221 = vunpack.c.h.b16 %v5902
        %v6222 = vunpack.c.l.b16 %v5903
        %v6223 = vunpack.c.h.b16 %v5903
        %v6224 = vunpack.c.l.b16 %v5904
        %v6225 = vunpack.c.h.b16 %v5904
        %v6226 = vunpack.c.l.b16 %v5905
        %v6227 = vunpack.c.h.b16 %v5905
        %v6228 = vunpack.c.l.b16 %v5906
        %v6229 = vunpack.c.h.b16 %v5906
        %v6230 = vunpack.c.l.b16 %v5907
        %v6231 = vunpack.c.h.b16 %v5907
        %v6232 = vunpack.c.l.b16 %v5908
        %v6233 = vunpack.c.h.b16 %v5908
        %v6234 = vunpack.c.l.b16 %v5909
        %v6235 = vunpack.c.h.b16 %v5909
        %v6236 = vunpack.c.l.b16 %v5910
        %v6237 = vunpack.c.h.b16 %v5910
        %v6238 = vunpack.c.l.b16 %v5911
        %v6239 = vunpack.c.h.b16 %v5911
        %v6240 = vunpack.c.l.b16 %v5912
        %v6241 = vunpack.c.h.b16 %v5912
        %v6242 = vunpack.c.l.b16 %v5913
        %v6243 = vunpack.c.h.b16 %v5913
        %v6244 = vunpack.c.l.b16 %v5914
        %v6245 = vunpack.c.h.b16 %v5914
        %v6246 = vunpack.c.l.b16 %v5915
        %v6247 = vunpack.c.h.b16 %v5915
        %v6248 = vunpack.c.l.b16 %v5916
        %v6249 = vunpack.c.h.b16 %v5916
        %v6250 = vunpack.c.l.b16 %v5917
        %v6251 = vunpack.c.h.b16 %v5917
        %v6252 = vunpack.c.l.b16 %v5918
        %v6253 = vunpack.c.h.b16 %v5918
        %v6254 = vunpack.c.l.b16 %v5919
        %v6255 = vunpack.c.h.b16 %v5919
        %v6256 = vunpack.c.l.b16 %v5920
        %v6257 = vunpack.c.h.b16 %v5920
        %v6258 = vunpack.c.l.b16 %v5921
        %v6259 = vunpack.c.h.b16 %v5921
        %v6260 = vunpack.c.l.b16 %v5922
        %v6261 = vunpack.c.h.b16 %v5922
        %v6262 = vunpack.c.l.b16 %v5923
        %v6263 = vunpack.c.h.b16 %v5923
        %v6264 = vunpack.c.l.b16 %v5924
        %v6265 = vunpack.c.h.b16 %v5924
        %v6266 = vunpack.c.l.b16 %v5925
        %v6267 = vunpack.c.h.b16 %v5925
        %v6268 = vunpack.c.l.b16 %v5926
        %v6269 = vunpack.c.h.b16 %v5926
        %v6270 = vunpack.c.l.b16 %v5927
        %v6271 = vunpack.c.h.b16 %v5927
        %v6272 = vunpack.c.l.b16 %v5928
        %v6273 = vunpack.c.h.b16 %v5928
        %v6274 = vunpack.c.l.b16 %v5929
        %v6275 = vunpack.c.h.b16 %v5929
        %v6276 = vunpack.c.l.b16 %v5930
        %v6277 = vunpack.c.h.b16 %v5930
        %v6278 = vunpack.c.l.b16 %v5931
        %v6279 = vunpack.c.h.b16 %v5931
        %v6280 = vunpack.c.l.b16 %v5932
        %v6281 = vunpack.c.h.b16 %v5932
        %v6282 = vunpack.c.l.b16 %v5933
        %v6283 = vunpack.c.h.b16 %v5933
        %v6284 = vunpack.c.l.b16 %v5934
        %v6285 = vunpack.c.h.b16 %v5934
        %v6286 = vunpack.c.l.b16 %v5935
        %v6287 = vunpack.c.h.b16 %v5935
        %v6288 = vunpack.c.l.b16 %v5936
        %v6289 = vunpack.c.h.b16 %v5936
        %v6290 = vunpack.c.l.b16 %v5937
        %v6291 = vunpack.c.h.b16 %v5937
        %v6292 = vunpack.c.l.b16 %v5938
        %v6293 = vunpack.c.h.b16 %v5938
        %v6294 = vunpack.c.l.b16 %v5939
        %v6295 = vunpack.c.h.b16 %v5939
        %v6296 = vunpack.c.l.b16 %v5940
        %v6297 = vunpack.c.h.b16 %v5940
        %v6298 = vunpack.c.l.b16 %v5941
        %v6299 = vunpack.c.h.b16 %v5941
        %v6300 = vunpack.c.l.b16 %v5942
        %v6301 = vunpack.c.h.b16 %v5942
        %v6302 = vunpack.c.l.b16 %v5943
        %v6303 = vunpack.c.h.b16 %v5943
        %v6304 = vunpack.c.l.b16 %v5944
        %v6305 = vunpack.c.h.b16 %v5944
        %v6306 = vunpack.c.l.b16 %v5945
        %v6307 = vunpack.c.h.b16 %v5945
        %v6308 = vunpack.c.l.b16 %v5946
        %v6309 = vunpack.c.h.b16 %v5946
        %v6310 = vunpack.c.l.b16 %v5947
        %v6311 = vunpack.c.h.b16 %v5947
        %v6312 = vunpack.c.l.b16 %v5948
        %v6313 = vunpack.c.h.b16 %v5948
        %v6314 = vunpack.c.l.b16 %v5949
        %v6315 = vunpack.c.h.b16 %v5949
        %v6316 = vunpack.c.l.b16 %v5950
        %v6317 = vunpack.c.h.b16 %v5950
        %v6318 = vunpack.c.l.b16 %v5951
        %v6319 = vunpack.c.h.b16 %v5951
        %v6320 = vunpack.c.l.b16 %v5952
        %v6321 = vunpack.c.h.b16 %v5952
        %v6322 = vunpack.c.l.b16 %v5953
        %v6323 = vunpack.c.h.b16 %v5953
        %v6324 = vunpack.c.l.b16 %v5954
        %v6325 = vunpack.c.h.b16 %v5954
        %v6326 = vunpack.c.l.b16 %v5955
        %v6327 = vunpack.c.h.b16 %v5955
        %v6328 = vunpack.c.l.b16 %v5956
        %v6329 = vunpack.c.h.b16 %v5956
        %v6330 = vunpack.c.l.b16 %v5957
        %v6331 = vunpack.c.h.b16 %v5957
        %v6332 = vunpack.c.l.b16 %v5958
        %v6333 = vunpack.c.h.b16 %v5958
        %v6334 = vunpack.c.l.b16 %v5959
        %v6335 = vunpack.c.h.b16 %v5959
        %v6336 = vunpack.c.l.b16 %v5960
        %v6337 = vunpack.c.h.b16 %v5960
        %v6338 = vunpack.c.l.b16 %v5961
        %v6339 = vunpack.c.h.b16 %v5961
        %v6340 = vunpack.c.l.b16 %v5962
        %v6341 = vunpack.c.h.b16 %v5962
        %v6342 = vunpack.c.l.b16 %v5963
        %v6343 = vunpack.c.h.b16 %v5963
        %v6344 = vunpack.c.l.b16 %v5964
        %v6345 = vunpack.c.h.b16 %v5964
        %v6346 = vunpack.c.l.b16 %v5965
        %v6347 = vunpack.c.h.b16 %v5965
        %v6348 = vunpack.c.l.b16 %v5966
        %v6349 = vunpack.c.h.b16 %v5966
        %v6350 = vunpack.c.l.b16 %v5967
        %v6351 = vunpack.c.h.b16 %v5967
        %v6352 = vunpack.c.l.b16 %v5968
        %v6353 = vunpack.c.h.b16 %v5968
        %v6354 = vunpack.c.l.b16 %v5969
        %v6355 = vunpack.c.h.b16 %v5969
        %v6356 = vunpack.c.l.b16 %v5970
        %v6357 = vunpack.c.h.b16 %v5970
        %v6358 = vunpack.c.l.b16 %v5971
        %v6359 = vunpack.c.h.b16 %v5971
        %v6360 = vunpack.c.l.b16 %v5972
        %v6361 = vunpack.c.h.b16 %v5972
        %v6362 = vunpack.c.l.b16 %v5973
        %v6363 = vunpack.c.h.b16 %v5973
        %v6364 = vunpack.c.l.b16 %v5974
        %v6365 = vunpack.c.h.b16 %v5974
        %v6366 = vunpack.c.l.b16 %v5975
        %v6367 = vunpack.c.h.b16 %v5975
        %v6368 = vunpack.c.l.b16 %v5976
        %v6369 = vunpack.c.h.b16 %v5976
        %v6370 = vunpack.c.l.b16 %v5977
        %v6371 = vunpack.c.h.b16 %v5977
        %v6372 = vunpack.c.l.b16 %v5978
        %v6373 = vunpack.c.h.b16 %v5978
        %v6374 = vunpack.c.l.b16 %v5979
        %v6375 = vunpack.c.h.b16 %v5979
        %v6376 = vunpack.c.l.b16 %v5980
        %v6377 = vunpack.c.h.b16 %v5980
        %v6378 = vunpack.c.l.b16 %v5981
        %v6379 = vunpack.c.h.b16 %v5981
        %v6380 = vunpack.c.l.b16 %v5982
        %v6381 = vunpack.c.h.b16 %v5982
        %v6382 = vunpack.c.l.b16 %v5983
        %v6383 = vunpack.c.h.b16 %v5983
        %v6384 = vunpack.c.l.b16 %v5984
        %v6385 = vunpack.c.h.b16 %v5984
        %v6386 = vunpack.c.l.b16 %v5985
        %v6387 = vunpack.c.h.b16 %v5985
        %v6388 = vunpack.c.l.b16 %v5986
        %v6389 = vunpack.c.h.b16 %v5986
        %v6390 = vunpack.c.l.b16 %v5987
        %v6391 = vunpack.c.h.b16 %v5987
        %v6392 = vunpack.c.l.b16 %v5988
        %v6393 = vunpack.c.h.b16 %v5988
        %v6394 = vunpack.c.l.b16 %v5989
        %v6395 = vunpack.c.h.b16 %v5989
        %v6396 = vunpack.c.l.b16 %v5990
        %v6397 = vunpack.c.h.b16 %v5990
        %v6398 = vunpack.c.l.b16 %v5991
        %v6399 = vunpack.c.h.b16 %v5991
        %v6400 = vunpack.c.l.b16 %v5992
        %v6401 = vunpack.c.h.b16 %v5992
        %v6402 = vunpack.c.l.b16 %v5993
        %v6403 = vunpack.c.h.b16 %v5993
        %v6404 = vunpack.c.l.b16 %v5994
        %v6405 = vunpack.c.h.b16 %v5994
        %v6406 = vunpack.c.l.b16 %v5995
        %v6407 = vunpack.c.h.b16 %v5995
        %v6408 = vunpack.c.l.b16 %v5996
        %v6409 = vunpack.c.h.b16 %v5996
        %v6410 = vunpack.c.l.b16 %v5997
        %v6411 = vunpack.c.h.b16 %v5997
        %v6412 = vunpack.c.l.b16 %v5998
        %v6413 = vunpack.c.h.b16 %v5998
        %v6414 = vunpack.c.l.b16 %v5999
        %v6415 = vunpack.c.h.b16 %v5999
        %v6416 = vunpack.c.l.b16 %v6000
        %v6417 = vunpack.c.h.b16 %v6000
        %v6418 = vunpack.c.l.b16 %v6001
        %v6419 = vunpack.c.h.b16 %v6001
        %v6420 = vunpack.c.l.b16 %v6002
        %v6421 = vunpack.c.h.b16 %v6002
        %v6422 = vunpack.c.l.b16 %v6003
        %v6423 = vunpack.c.h.b16 %v6003
        %v6424 = vunpack.c.l.b16 %v6004
        %v6425 = vunpack.c.h.b16 %v6004
        %v6426 = vunpack.c.l.b16 %v6005
        %v6427 = vunpack.c.h.b16 %v6005
        %v6428 = vunpack.c.l.b16 %v6006
        %v6429 = vunpack.c.h.b16 %v6006
        %v6430 = vunpack.c.l.b16 %v6007
        %v6431 = vunpack.c.h.b16 %v6007
        %v6432 = vunpack.c.l.b16 %v6008
        %v6433 = vunpack.c.h.b16 %v6008
        %v6434 = vunpack.c.l.b16 %v6009
        %v6435 = vunpack.c.h.b16 %v6009
        %v6436 = vpack.c.b16 %v6188, %v6180
        %v6437 = vpack.c.b16 %v6189, %v6181
        %v6438 = vpack.c.b16 %v6190, %v6182
        %v6439 = vpack.c.b16 %v6191, %v6183
        %v6440 = vpack.c.b16 %v6192, %v6184
        %v6441 = vpack.c.b16 %v6193, %v6185
        %v6442 = vpack.c.b16 %v6194, %v6186
        %v6443 = vpack.c.b16 %v6195, %v6187
        %v6444 = vpack.c.b16 %v6204, %v6196
        %v6445 = vpack.c.b16 %v6205, %v6197
        %v6446 = vpack.c.b16 %v6206, %v6198
        %v6447 = vpack.c.b16 %v6207, %v6199
        %v6448 = vpack.c.b16 %v6208, %v6200
        %v6449 = vpack.c.b16 %v6209, %v6201
        %v6450 = vpack.c.b16 %v6210, %v6202
        %v6451 = vpack.c.b16 %v6211, %v6203
        %v6452 = vpack.c.b16 %v6220, %v6212
        %v6453 = vpack.c.b16 %v6221, %v6213
        %v6454 = vpack.c.b16 %v6222, %v6214
        %v6455 = vpack.c.b16 %v6223, %v6215
        %v6456 = vpack.c.b16 %v6224, %v6216
        %v6457 = vpack.c.b16 %v6225, %v6217
        %v6458 = vpack.c.b16 %v6226, %v6218
        %v6459 = vpack.c.b16 %v6227, %v6219
        %v6460 = vpack.c.b16 %v6236, %v6228
        %v6461 = vpack.c.b16 %v6237, %v6229
        %v6462 = vpack.c.b16 %v6238, %v6230
        %v6463 = vpack.c.b16 %v6239, %v6231
        %v6464 = vpack.c.b16 %v6240, %v6232
        %v6465 = vpack.c.b16 %v6241, %v6233
        %v6466 = vpack.c.b16 %v6242, %v6234
        %v6467 = vpack.c.b16 %v6243, %v6235
        %v6468 = vpack.c.b16 %v6252, %v6244
        %v6469 = vpack.c.b16 %v6253, %v6245
        %v6470 = vpack.c.b16 %v6254, %v6246
        %v6471 = vpack.c.b16 %v6255, %v6247
        %v6472 = vpack.c.b16 %v6256, %v6248
        %v6473 = vpack.c.b16 %v6257, %v6249
        %v6474 = vpack.c.b16 %v6258, %v6250
        %v6475 = vpack.c.b16 %v6259, %v6251
        %v6476 = vpack.c.b16 %v6268, %v6260
        %v6477 = vpack.c.b16 %v6269, %v6261
        %v6478 = vpack.c.b16 %v6270, %v6262
        %v6479 = vpack.c.b16 %v6271, %v6263
        %v6480 = vpack.c.b16 %v6272, %v6264
        %v6481 = vpack.c.b16 %v6273, %v6265
        %v6482 = vpack.c.b16 %v6274, %v6266
        %v6483 = vpack.c.b16 %v6275, %v6267
        %v6484 = vpack.c.b16 %v6284, %v6276
        %v6485 = vpack.c.b16 %v6285, %v6277
        %v6486 = vpack.c.b16 %v6286, %v6278
        %v6487 = vpack.c.b16 %v6287, %v6279
        %v6488 = vpack.c.b16 %v6288, %v6280
        %v6489 = vpack.c.b16 %v6289, %v6281
        %v6490 = vpack.c.b16 %v6290, %v6282
        %v6491 = vpack.c.b16 %v6291, %v6283
        %v6492 = vpack.c.b16 %v6300, %v6292
        %v6493 = vpack.c.b16 %v6301, %v6293
        %v6494 = vpack.c.b16 %v6302, %v6294
        %v6495 = vpack.c.b16 %v6303, %v6295
        %v6496 = vpack.c.b16 %v6304, %v6296
        %v6497 = vpack.c.b16 %v6305, %v6297
        %v6498 = vpack.c.b16 %v6306, %v6298
        %v6499 = vpack.c.b16 %v6307, %v6299
        %v6500 = vpack.c.b16 %v6316, %v6308
        %v6501 = vpack.c.b16 %v6317, %v6309
        %v6502 = vpack.c.b16 %v6318, %v6310
        %v6503 = vpack.c.b16 %v6319, %v6311
        %v6504 = vpack.c.b16 %v6320, %v6312
        %v6505 = vpack.c.b16 %v6321, %v6313
        %v6506 = vpack.c.b16 %v6322, %v6314
        %v6507 = vpack.c.b16 %v6323, %v6315
        %v6508 = vpack.c.b16 %v6332, %v6324
        %v6509 = vpack.c.b16 %v6333, %v6325
        %v6510 = vpack.c.b16 %v6334, %v6326
        %v6511 = vpack.c.b16 %v6335, %v6327
        %v6512 = vpack.c.b16 %v6336, %v6328
        %v6513 = vpack.c.b16 %v6337, %v6329
        %v6514 = vpack.c.b16 %v6338, %v6330
        %v6515 = vpack.c.b16 %v6339, %v6331
        %v6516 = vpack.c.b16 %v6348, %v6340
        %v6517 = vpack.c.b16 %v6349, %v6341
        %v6518 = vpack.c.b16 %v6350, %v6342
        %v6519 = vpack.c.b16 %v6351, %v6343
        %v6520 = vpack.c.b16 %v6352, %v6344
        %v6521 = vpack.c.b16 %v6353, %v6345
        %v6522 = vpack.c.b16 %v6354, %v6346
        %v6523 = vpack.c.b16 %v6355, %v6347
        %v6524 = vpack.c.b16 %v6364, %v6356
        %v6525 = vpack.c.b16 %v6365, %v6357
        %v6526 = vpack.c.b16 %v6366, %v6358
        %v6527 = vpack.c.b16 %v6367, %v6359
        %v6528 = vpack.c.b16 %v6368, %v6360
        %v6529 = vpack.c.b16 %v6369, %v6361
        %v6530 = vpack.c.b16 %v6370, %v6362
        %v6531 = vpack.c.b16 %v6371, %v6363
        %v6532 = vpack.c.b16 %v6380, %v6372
        %v6533 = vpack.c.b16 %v6381, %v6373
        %v6534 = vpack.c.b16 %v6382, %v6374
        %v6535 = vpack.c.b16 %v6383, %v6375
        %v6536 = vpack.c.b16 %v6384, %v6376
        %v6537 = vpack.c.b16 %v6385, %v6377
        %v6538 = vpack.c.b16 %v6386, %v6378
        %v6539 = vpack.c.b16 %v6387, %v6379
        %v6540 = vpack.c.b16 %v6396, %v6388
        %v6541 = vpack.c.b16 %v6397, %v6389
        %v6542 = vpack.c.b16 %v6398, %v6390
        %v6543 = vpack.c.b16 %v6399, %v6391
        %v6544 = vpack.c.b16 %v6400, %v6392
        %v6545 = vpack.c.b16 %v6401, %v6393
        %v6546 = vpack.c.b16 %v6402, %v6394
        %v6547 = vpack.c.b16 %v6403, %v6395
        %v6548 = vpack.c.b16 %v6412, %v6404
        %v6549 = vpack.c.b16 %v6413, %v6405
        %v6550 = vpack.c.b16 %v6414, %v6406
        %v6551 = vpack.c.b16 %v6415, %v6407
        %v6552 = vpack.c.b16 %v6416, %v6408
        %v6553 = vpack.c.b16 %v6417, %v6409
        %v6554 = vpack.c.b16 %v6418, %v6410
        %v6555 = vpack.c.b16 %v6419, %v6411
        %v6556 = vpack.c.b16 %v6428, %v6420
        %v6557 = vpack.c.b16 %v6429, %v6421
        %v6558 = vpack.c.b16 %v6430, %v6422
        %v6559 = vpack.c.b16 %v6431, %v6423
        %v6560 = vpack.c.b16 %v6432, %v6424
        %v6561 = vpack.c.b16 %v6433, %v6425
        %v6562 = vpack.c.b16 %v6434, %v6426
        %v6563 = vpack.c.b16 %v6435, %v6427
        %6692 = vmatprep.subr.bf16.mxu0 %v6437
        %6693 = vmatpush1.bf16.msra.mxu0 %v6436
        %6694 = vmatprep.subr.bf16.mxu0 %v6445
        %6695 = vmatpush1.bf16.msra.mxu0 %v6444
        %6696 = vmatprep.subr.bf16.mxu0 %v6453
        %6697 = vmatpush1.bf16.msra.mxu0 %v6452
        %6698 = vmatprep.subr.bf16.mxu0 %v6461
        %6699 = vmatpush1.bf16.msra.mxu0 %v6460
        %6700 = vmatprep.subr.bf16.mxu0 %v6469
        %6701 = vmatpush1.bf16.msra.mxu0 %v6468
        %6702 = vmatprep.subr.bf16.mxu0 %v6477
        %6703 = vmatpush1.bf16.msra.mxu0 %v6476
        %6704 = vmatprep.subr.bf16.mxu0 %v6485
        %6705 = vmatpush1.bf16.msra.mxu0 %v6484
        %6706 = vmatprep.subr.bf16.mxu0 %v6493
        %6707 = vmatpush1.bf16.msra.mxu0 %v6492
        %6708 = vmatprep.subr.bf16.mxu0 %v6501
        %6709 = vmatpush1.bf16.msra.mxu0 %v6500
        %6710 = vmatprep.subr.bf16.mxu0 %v6509
        %6711 = vmatpush1.bf16.msra.mxu0 %v6508
        %6712 = vmatprep.subr.bf16.mxu0 %v6517
        %6713 = vmatpush1.bf16.msra.mxu0 %v6516
        %6714 = vmatprep.subr.bf16.mxu0 %v6525
        %6715 = vmatpush1.bf16.msra.mxu0 %v6524
        %6716 = vmatprep.subr.bf16.mxu0 %v6533
        %6717 = vmatpush1.bf16.msra.mxu0 %v6532
        %6718 = vmatprep.subr.bf16.mxu0 %v6541
        %6719 = vmatpush1.bf16.msra.mxu0 %v6540
        %6720 = vmatprep.subr.bf16.mxu0 %v6549
        %6721 = vmatpush1.bf16.msra.mxu0 %v6548
        %6722 = vmatprep.subr.bf16.mxu0 %v6557
        %6723 = vmatpush1.bf16.msra.mxu0 %v6556
        %6724 = vmatprep.mubr.bf16.mxu0 %v5881
        %6725 = vmatmul.mubr.bf16.gmra.mrb[0].mxu0 %v5880
        %v6726 = vpop.f32.mrb[0].mxu0
        %v6727 = vadd.f32 %v6015, %v6726
        %v6728 = vpop.f32.mrb[0].mxu0
        %v6729 = vadd.f32 %v6019, %v6728
        %v6730 = vpop.f32.mrb[0].mxu0
        %v6731 = vadd.f32 %v6015, %v6730
        %v6732 = vpop.f32.mrb[0].mxu0
        %v6733 = vadd.f32 %v6019, %v6732
        %6734 = vdwg.mxu0
        %6735 = vmatprep.subr.bf16.mxu0 %v6439
        %6736 = vmatpush1.bf16.msra.mxu0 %v6438
        %6737 = vmatprep.subr.bf16.mxu0 %v6447
        %6738 = vmatpush1.bf16.msra.mxu0 %v6446
        %6739 = vmatprep.subr.bf16.mxu0 %v6455
        %6740 = vmatpush1.bf16.msra.mxu0 %v6454
        %6741 = vmatprep.subr.bf16.mxu0 %v6463
        %6742 = vmatpush1.bf16.msra.mxu0 %v6462
        %6743 = vmatprep.subr.bf16.mxu0 %v6471
        %6744 = vmatpush1.bf16.msra.mxu0 %v6470
        %6745 = vmatprep.subr.bf16.mxu0 %v6479
        %6746 = vmatpush1.bf16.msra.mxu0 %v6478
        %6747 = vmatprep.subr.bf16.mxu0 %v6487
        %6748 = vmatpush1.bf16.msra.mxu0 %v6486
        %6749 = vmatprep.subr.bf16.mxu0 %v6495
        %6750 = vmatpush1.bf16.msra.mxu0 %v6494
        %6751 = vmatprep.subr.bf16.mxu0 %v6503
        %6752 = vmatpush1.bf16.msra.mxu0 %v6502
        %6753 = vmatprep.subr.bf16.mxu0 %v6511
        %6754 = vmatpush1.bf16.msra.mxu0 %v6510
        %6755 = vmatprep.subr.bf16.mxu0 %v6519
        %6756 = vmatpush1.bf16.msra.mxu0 %v6518
        %6757 = vmatprep.subr.bf16.mxu0 %v6527
        %6758 = vmatpush1.bf16.msra.mxu0 %v6526
        %6759 = vmatprep.subr.bf16.mxu0 %v6535
        %6760 = vmatpush1.bf16.msra.mxu0 %v6534
        %6761 = vmatprep.subr.bf16.mxu0 %v6543
        %6762 = vmatpush1.bf16.msra.mxu0 %v6542
        %6763 = vmatprep.subr.bf16.mxu0 %v6551
        %6764 = vmatpush1.bf16.msra.mxu0 %v6550
        %6765 = vmatprep.subr.bf16.mxu0 %v6559
        %6766 = vmatpush1.bf16.msra.mxu0 %v6558
        %6767 = vmatprep.mubr.bf16.mxu0 %v5881
        %6768 = vmatmul.mubr.bf16.gmra.mrb[0].mxu0 %v5880
        %v6769 = vpop.f32.mrb[0].mxu0
        %v6770 = vadd.f32 %v6023, %v6769
        %v6771 = vpop.f32.mrb[0].mxu0
        %v6772 = vadd.f32 %v6027, %v6771
        %v6773 = vpop.f32.mrb[0].mxu0
        %v6774 = vadd.f32 %v6023, %v6773
        %v6775 = vpop.f32.mrb[0].mxu0
        %v6776 = vadd.f32 %v6027, %v6775
        %6777 = vdwg.mxu0
        %6778 = vmatprep.subr.bf16.mxu0 %v6441
        %6779 = vmatpush1.bf16.msra.mxu0 %v6440
        %6780 = vmatprep.subr.bf16.mxu0 %v6449
        %6781 = vmatpush1.bf16.msra.mxu0 %v6448
        %6782 = vmatprep.subr.bf16.mxu0 %v6457
        %6783 = vmatpush1.bf16.msra.mxu0 %v6456
        %6784 = vmatprep.subr.bf16.mxu0 %v6465
        %6785 = vmatpush1.bf16.msra.mxu0 %v6464
        %6786 = vmatprep.subr.bf16.mxu0 %v6473
        %6787 = vmatpush1.bf16.msra.mxu0 %v6472
        %6788 = vmatprep.subr.bf16.mxu0 %v6481
        %6789 = vmatpush1.bf16.msra.mxu0 %v6480
        %6790 = vmatprep.subr.bf16.mxu0 %v6489
        %6791 = vmatpush1.bf16.msra.mxu0 %v6488
        %6792 = vmatprep.subr.bf16.mxu0 %v6497
        %6793 = vmatpush1.bf16.msra.mxu0 %v6496
        %6794 = vmatprep.subr.bf16.mxu0 %v6505
        %6795 = vmatpush1.bf16.msra.mxu0 %v6504
        %6796 = vmatprep.subr.bf16.mxu0 %v6513
        %6797 = vmatpush1.bf16.msra.mxu0 %v6512
        %6798 = vmatprep.subr.bf16.mxu0 %v6521
        %6799 = vmatpush1.bf16.msra.mxu0 %v6520
        %6800 = vmatprep.subr.bf16.mxu0 %v6529
        %6801 = vmatpush1.bf16.msra.mxu0 %v6528
        %6802 = vmatprep.subr.bf16.mxu0 %v6537
        %6803 = vmatpush1.bf16.msra.mxu0 %v6536
        %6804 = vmatprep.subr.bf16.mxu0 %v6545
        %6805 = vmatpush1.bf16.msra.mxu0 %v6544
        %6806 = vmatprep.subr.bf16.mxu0 %v6553
        %6807 = vmatpush1.bf16.msra.mxu0 %v6552
        %6808 = vmatprep.subr.bf16.mxu0 %v6561
        %6809 = vmatpush1.bf16.msra.mxu0 %v6560
        %6810 = vmatprep.mubr.bf16.mxu0 %v5881
        %6811 = vmatmul.mubr.bf16.gmra.mrb[0].mxu0 %v5880
        %v6812 = vpop.f32.mrb[0].mxu0
        %v6813 = vadd.f32 %v6031, %v6812
        %v6814 = vpop.f32.mrb[0].mxu0
        %v6815 = vadd.f32 %v6035, %v6814
        %v6816 = vpop.f32.mrb[0].mxu0
        %v6817 = vadd.f32 %v6031, %v6816
        %v6818 = vpop.f32.mrb[0].mxu0
        %v6819 = vadd.f32 %v6035, %v6818
        %6820 = vdwg.mxu0
        %6821 = vmatprep.subr.bf16.mxu0 %v6443
        %6822 = vmatpush1.bf16.msra.mxu0 %v6442
        %6823 = vmatprep.subr.bf16.mxu0 %v6451
        %6824 = vmatpush1.bf16.msra.mxu0 %v6450
        %6825 = vmatprep.subr.bf16.mxu0 %v6459
        %6826 = vmatpush1.bf16.msra.mxu0 %v6458
        %6827 = vmatprep.subr.bf16.mxu0 %v6467
        %6828 = vmatpush1.bf16.msra.mxu0 %v6466
        %6829 = vmatprep.subr.bf16.mxu0 %v6475
        %6830 = vmatpush1.bf16.msra.mxu0 %v6474
        %6831 = vmatprep.subr.bf16.mxu0 %v6483
        %6832 = vmatpush1.bf16.msra.mxu0 %v6482
        %6833 = vmatprep.subr.bf16.mxu0 %v6491
        %6834 = vmatpush1.bf16.msra.mxu0 %v6490
        %6835 = vmatprep.subr.bf16.mxu0 %v6499
        %6836 = vmatpush1.bf16.msra.mxu0 %v6498
        %6837 = vmatprep.subr.bf16.mxu0 %v6507
        %6838 = vmatpush1.bf16.msra.mxu0 %v6506
        %6839 = vmatprep.subr.bf16.mxu0 %v6515
        %6840 = vmatpush1.bf16.msra.mxu0 %v6514
        %6841 = vmatprep.subr.bf16.mxu0 %v6523
        %6842 = vmatpush1.bf16.msra.mxu0 %v6522
        %6843 = vmatprep.subr.bf16.mxu0 %v6531
        %6844 = vmatpush1.bf16.msra.mxu0 %v6530
        %6845 = vmatprep.subr.bf16.mxu0 %v6539
        %6846 = vmatpush1.bf16.msra.mxu0 %v6538
        %6847 = vmatprep.subr.bf16.mxu0 %v6547
        %6848 = vmatpush1.bf16.msra.mxu0 %v6546
        %6849 = vmatprep.subr.bf16.mxu0 %v6555
        %6850 = vmatpush1.bf16.msra.mxu0 %v6554
        %6851 = vmatprep.subr.bf16.mxu0 %v6563
        %6852 = vmatpush1.bf16.msra.mxu0 %v6562
        %6853 = vmatprep.mubr.bf16.mxu0 %v5881
        %6854 = vmatmul.mubr.bf16.gmra.mrb[0].mxu0 %v5880
        %v6855 = vpop.f32.mrb[0].mxu0
        %v6856 = vadd.f32 %v6039, %v6855
        %v6857 = vpop.f32.mrb[0].mxu0
        %v6858 = vadd.f32 %v6043, %v6857
        %v6859 = vpop.f32.mrb[0].mxu0
        %v6860 = vadd.f32 %v6039, %v6859
        %v6861 = vpop.f32.mrb[0].mxu0
        %v6862 = vadd.f32 %v6043, %v6861
        %6863 = vdwg.mxu0
        %v6864 = vmul.f32 %v6727, 0.5
        %v6865 = vmul.f32 %v6729, 0.5
        %v6866 = vmul.f32 %v6770, 0.5
        %v6867 = vmul.f32 %v6772, 0.5
        %v6868 = vmul.f32 %v6813, 0.5
        %v6869 = vmul.f32 %v6815, 0.5
        %v6870 = vmul.f32 %v6856, 0.5
        %v6871 = vmul.f32 %v6858, 0.5
        %v6872 = vmul.f32 %v6731, 0.5
        %v6873 = vmul.f32 %v6733, 0.5
        %v6874 = vmul.f32 %v6774, 0.5
        %v6875 = vmul.f32 %v6776, 0.5
        %v6876 = vmul.f32 %v6817, 0.5
        %v6877 = vmul.f32 %v6819, 0.5
        %v6878 = vmul.f32 %v6860, 0.5
        %v6879 = vmul.f32 %v6862, 0.5
        %v6880 = vmul.f32 %v6727, 0.70710677
        %v6881 = vmul.f32 %v6729, 0.70710677
        %v6882 = vmul.f32 %v6770, 0.70710677
        %v6883 = vmul.f32 %v6772, 0.70710677
        %v6884 = vmul.f32 %v6813, 0.70710677
        %v6885 = vmul.f32 %v6815, 0.70710677
        %v6886 = vmul.f32 %v6856, 0.70710677
        %v6887 = vmul.f32 %v6858, 0.70710677
        %v6888 = vmul.f32 %v6731, 0.70710677
        %v6889 = vmul.f32 %v6733, 0.70710677
        %v6890 = vmul.f32 %v6774, 0.70710677
        %v6891 = vmul.f32 %v6776, 0.70710677
        %v6892 = vmul.f32 %v6817, 0.70710677
        %v6893 = vmul.f32 %v6819, 0.70710677
        %v6894 = vmul.f32 %v6860, 0.70710677
        %v6895 = vmul.f32 %v6862, 0.70710677
        %vm6896 = vcmp.ge.f32.partialorder %v6880, 0.0
        %vm6897 = vcmp.ge.f32.partialorder %v6881, 0.0
        %vm6898 = vcmp.ge.f32.partialorder %v6882, 0.0
        %vm6899 = vcmp.ge.f32.partialorder %v6883, 0.0
        %vm6900 = vcmp.ge.f32.partialorder %v6884, 0.0
        %vm6901 = vcmp.ge.f32.partialorder %v6885, 0.0
        %vm6902 = vcmp.ge.f32.partialorder %v6886, 0.0
        %vm6903 = vcmp.ge.f32.partialorder %v6887, 0.0
        %vm6904 = vcmp.ge.f32.partialorder %v6888, 0.0
        %vm6905 = vcmp.ge.f32.partialorder %v6889, 0.0
        %vm6906 = vcmp.ge.f32.partialorder %v6890, 0.0
        %vm6907 = vcmp.ge.f32.partialorder %v6891, 0.0
        %vm6908 = vcmp.ge.f32.partialorder %v6892, 0.0
        %vm6909 = vcmp.ge.f32.partialorder %v6893, 0.0
        %vm6910 = vcmp.ge.f32.partialorder %v6894, 0.0
        %vm6911 = vcmp.ge.f32.partialorder %v6895, 0.0
        %v6912 = vsel %vm6896, 1.0, -1.0
        %v6913 = vsel %vm6897, 1.0, -1.0
        %v6914 = vsel %vm6898, 1.0, -1.0
        %v6915 = vsel %vm6899, 1.0, -1.0
        %v6916 = vsel %vm6900, 1.0, -1.0
        %v6917 = vsel %vm6901, 1.0, -1.0
        %v6918 = vsel %vm6902, 1.0, -1.0
        %v6919 = vsel %vm6903, 1.0, -1.0
        %v6920 = vsel %vm6904, 1.0, -1.0
        %v6921 = vsel %vm6905, 1.0, -1.0
        %v6922 = vsel %vm6906, 1.0, -1.0
        %v6923 = vsel %vm6907, 1.0, -1.0
        %v6924 = vsel %vm6908, 1.0, -1.0
        %v6925 = vsel %vm6909, 1.0, -1.0
        %v6926 = vsel %vm6910, 1.0, -1.0
        %v6927 = vsel %vm6911, 1.0, -1.0
        %v6928 = vand.u32 2147483647, %v6880
        %v6929 = vand.u32 2147483647, %v6881
        %v6930 = vand.u32 2147483647, %v6882
        %v6931 = vand.u32 2147483647, %v6883
        %v6932 = vand.u32 2147483647, %v6884
        %v6933 = vand.u32 2147483647, %v6885
        %v6934 = vand.u32 2147483647, %v6886
        %v6935 = vand.u32 2147483647, %v6887
        %v6936 = vand.u32 2147483647, %v6888
        %v6937 = vand.u32 2147483647, %v6889
        %v6938 = vand.u32 2147483647, %v6890
        %v6939 = vand.u32 2147483647, %v6891
        %v6940 = vand.u32 2147483647, %v6892
        %v6941 = vand.u32 2147483647, %v6893
        %v6942 = vand.u32 2147483647, %v6894
        %v6943 = vand.u32 2147483647, %v6895
        %v6944 = vmul.f32 %v6928, 0.3275911
        %v6945 = vmul.f32 %v6929, 0.3275911
        %v6946 = vmul.f32 %v6930, 0.3275911
        %v6947 = vmul.f32 %v6931, 0.3275911
        %v6948 = vmul.f32 %v6932, 0.3275911
        %v6949 = vmul.f32 %v6933, 0.3275911
        %v6950 = vmul.f32 %v6934, 0.3275911
        %v6951 = vmul.f32 %v6935, 0.3275911
        %v6952 = vmul.f32 %v6936, 0.3275911
        %v6953 = vmul.f32 %v6937, 0.3275911
        %v6954 = vmul.f32 %v6938, 0.3275911
        %v6955 = vmul.f32 %v6939, 0.3275911
        %v6956 = vmul.f32 %v6940, 0.3275911
        %v6957 = vmul.f32 %v6941, 0.3275911
        %v6958 = vmul.f32 %v6942, 0.3275911
        %v6959 = vmul.f32 %v6943, 0.3275911
        %v6960 = vadd.f32 %v6944, 1.0
        %v6961 = vadd.f32 %v6945, 1.0
        %v6962 = vadd.f32 %v6946, 1.0
        %v6963 = vadd.f32 %v6947, 1.0
        %v6964 = vadd.f32 %v6948, 1.0
        %v6965 = vadd.f32 %v6949, 1.0
        %v6966 = vadd.f32 %v6950, 1.0
        %v6967 = vadd.f32 %v6951, 1.0
        %v6968 = vadd.f32 %v6952, 1.0
        %v6969 = vadd.f32 %v6953, 1.0
        %v6970 = vadd.f32 %v6954, 1.0
        %v6971 = vadd.f32 %v6955, 1.0
        %v6972 = vadd.f32 %v6956, 1.0
        %v6973 = vadd.f32 %v6957, 1.0
        %v6974 = vadd.f32 %v6958, 1.0
        %v6975 = vadd.f32 %v6959, 1.0
        %v6976 = vrcp.pop %v6960
        %v6977 = vmul.f32 1.0, %v6976
        %v6978 = vrcp.pop %v6961
        %v6979 = vmul.f32 1.0, %v6978
        %v6980 = vrcp.pop %v6962
        %v6981 = vmul.f32 1.0, %v6980
        %v6982 = vrcp.pop %v6963
        %v6983 = vmul.f32 1.0, %v6982
        %v6984 = vrcp.pop %v6964
        %v6985 = vmul.f32 1.0, %v6984
        %v6986 = vrcp.pop %v6965
        %v6987 = vmul.f32 1.0, %v6986
        %v6988 = vrcp.pop %v6966
        %v6989 = vmul.f32 1.0, %v6988
        %v6990 = vrcp.pop %v6967
        %v6991 = vmul.f32 1.0, %v6990
        %v6992 = vrcp.pop %v6968
        %v6993 = vmul.f32 1.0, %v6992
        %v6994 = vrcp.pop %v6969
        %v6995 = vmul.f32 1.0, %v6994
        %v6996 = vrcp.pop %v6970
        %v6997 = vmul.f32 1.0, %v6996
        %v6998 = vrcp.pop %v6971
        %v6999 = vmul.f32 1.0, %v6998
        %v7000 = vrcp.pop %v6972
        %v7001 = vmul.f32 1.0, %v7000
        %v7002 = vrcp.pop %v6973
        %v7003 = vmul.f32 1.0, %v7002
        %v7004 = vrcp.pop %v6974
        %v7005 = vmul.f32 1.0, %v7004
        %v7006 = vrcp.pop %v6975
        %v7007 = vmul.f32 1.0, %v7006
        %v7008 = vmul.f32 %v6977, 1.0614054
        %v7009 = vmul.f32 %v6979, 1.0614054
        %v7010 = vmul.f32 %v6981, 1.0614054
        %v7011 = vmul.f32 %v6983, 1.0614054
        %v7012 = vmul.f32 %v6985, 1.0614054
        %v7013 = vmul.f32 %v6987, 1.0614054
        %v7014 = vmul.f32 %v6989, 1.0614054
        %v7015 = vmul.f32 %v6991, 1.0614054
        %v7016 = vmul.f32 %v6993, 1.0614054
        %v7017 = vmul.f32 %v6995, 1.0614054
        %v7018 = vmul.f32 %v6997, 1.0614054
        %v7019 = vmul.f32 %v6999, 1.0614054
        %v7020 = vmul.f32 %v7001, 1.0614054
        %v7021 = vmul.f32 %v7003, 1.0614054
        %v7022 = vmul.f32 %v7005, 1.0614054
        %v7023 = vmul.f32 %v7007, 1.0614054
        %v7024 = vadd.f32 %v7008, -1.4531521
        %v7025 = vadd.f32 %v7009, -1.4531521
        %v7026 = vadd.f32 %v7010, -1.4531521
        %v7027 = vadd.f32 %v7011, -1.4531521
        %v7028 = vadd.f32 %v7012, -1.4531521
        %v7029 = vadd.f32 %v7013, -1.4531521
        %v7030 = vadd.f32 %v7014, -1.4531521
        %v7031 = vadd.f32 %v7015, -1.4531521
        %v7032 = vadd.f32 %v7016, -1.4531521
        %v7033 = vadd.f32 %v7017, -1.4531521
        %v7034 = vadd.f32 %v7018, -1.4531521
        %v7035 = vadd.f32 %v7019, -1.4531521
        %v7036 = vadd.f32 %v7020, -1.4531521
        %v7037 = vadd.f32 %v7021, -1.4531521
        %v7038 = vadd.f32 %v7022, -1.4531521
        %v7039 = vadd.f32 %v7023, -1.4531521
        %v7040 = vmul.f32 %v7024, %v6977
        %v7041 = vmul.f32 %v7025, %v6979
        %v7042 = vmul.f32 %v7026, %v6981
        %v7043 = vmul.f32 %v7027, %v6983
        %v7044 = vmul.f32 %v7028, %v6985
        %v7045 = vmul.f32 %v7029, %v6987
        %v7046 = vmul.f32 %v7030, %v6989
        %v7047 = vmul.f32 %v7031, %v6991
        %v7048 = vmul.f32 %v7032, %v6993
        %v7049 = vmul.f32 %v7033, %v6995
        %v7050 = vmul.f32 %v7034, %v6997
        %v7051 = vmul.f32 %v7035, %v6999
        %v7052 = vmul.f32 %v7036, %v7001
        %v7053 = vmul.f32 %v7037, %v7003
        %v7054 = vmul.f32 %v7038, %v7005
        %v7055 = vmul.f32 %v7039, %v7007
        %v7056 = vadd.f32 %v7040, 1.4214138
        %v7057 = vadd.f32 %v7041, 1.4214138
        %v7058 = vadd.f32 %v7042, 1.4214138
        %v7059 = vadd.f32 %v7043, 1.4214138
        %v7060 = vadd.f32 %v7044, 1.4214138
        %v7061 = vadd.f32 %v7045, 1.4214138
        %v7062 = vadd.f32 %v7046, 1.4214138
        %v7063 = vadd.f32 %v7047, 1.4214138
        %v7064 = vadd.f32 %v7048, 1.4214138
        %v7065 = vadd.f32 %v7049, 1.4214138
        %v7066 = vadd.f32 %v7050, 1.4214138
        %v7067 = vadd.f32 %v7051, 1.4214138
        %v7068 = vadd.f32 %v7052, 1.4214138
        %v7069 = vadd.f32 %v7053, 1.4214138
        %v7070 = vadd.f32 %v7054, 1.4214138
        %v7071 = vadd.f32 %v7055, 1.4214138
        %v7072 = vmul.f32 %v7056, %v6977
        %v7073 = vmul.f32 %v7057, %v6979
        %v7074 = vmul.f32 %v7058, %v6981
        %v7075 = vmul.f32 %v7059, %v6983
        %v7076 = vmul.f32 %v7060, %v6985
        %v7077 = vmul.f32 %v7061, %v6987
        %v7078 = vmul.f32 %v7062, %v6989
        %v7079 = vmul.f32 %v7063, %v6991
        %v7080 = vmul.f32 %v7064, %v6993
        %v7081 = vmul.f32 %v7065, %v6995
        %v7082 = vmul.f32 %v7066, %v6997
        %v7083 = vmul.f32 %v7067, %v6999
        %v7084 = vmul.f32 %v7068, %v7001
        %v7085 = vmul.f32 %v7069, %v7003
        %v7086 = vmul.f32 %v7070, %v7005
        %v7087 = vmul.f32 %v7071, %v7007
        %v7088 = vadd.f32 %v7072, -0.28449672
        %v7089 = vadd.f32 %v7073, -0.28449672
        %v7090 = vadd.f32 %v7074, -0.28449672
        %v7091 = vadd.f32 %v7075, -0.28449672
        %v7092 = vadd.f32 %v7076, -0.28449672
        %v7093 = vadd.f32 %v7077, -0.28449672
        %v7094 = vadd.f32 %v7078, -0.28449672
        %v7095 = vadd.f32 %v7079, -0.28449672
        %v7096 = vadd.f32 %v7080, -0.28449672
        %v7097 = vadd.f32 %v7081, -0.28449672
        %v7098 = vadd.f32 %v7082, -0.28449672
        %v7099 = vadd.f32 %v7083, -0.28449672
        %v7100 = vadd.f32 %v7084, -0.28449672
        %v7101 = vadd.f32 %v7085, -0.28449672
        %v7102 = vadd.f32 %v7086, -0.28449672
        %v7103 = vadd.f32 %v7087, -0.28449672
        %v7104 = vmul.f32 %v7088, %v6977
        %v7105 = vmul.f32 %v7089, %v6979
        %v7106 = vmul.f32 %v7090, %v6981
        %v7107 = vmul.f32 %v7091, %v6983
        %v7108 = vmul.f32 %v7092, %v6985
        %v7109 = vmul.f32 %v7093, %v6987
        %v7110 = vmul.f32 %v7094, %v6989
        %v7111 = vmul.f32 %v7095, %v6991
        %v7112 = vmul.f32 %v7096, %v6993
        %v7113 = vmul.f32 %v7097, %v6995
        %v7114 = vmul.f32 %v7098, %v6997
        %v7115 = vmul.f32 %v7099, %v6999
        %v7116 = vmul.f32 %v7100, %v7001
        %v7117 = vmul.f32 %v7101, %v7003
        %v7118 = vmul.f32 %v7102, %v7005
        %v7119 = vmul.f32 %v7103, %v7007
        %v7120 = vadd.f32 %v7104, 0.2548296
        %v7121 = vadd.f32 %v7105, 0.2548296
        %v7122 = vadd.f32 %v7106, 0.2548296
        %v7123 = vadd.f32 %v7107, 0.2548296
        %v7124 = vadd.f32 %v7108, 0.2548296
        %v7125 = vadd.f32 %v7109, 0.2548296
        %v7126 = vadd.f32 %v7110, 0.2548296
        %v7127 = vadd.f32 %v7111, 0.2548296
        %v7128 = vadd.f32 %v7112, 0.2548296
        %v7129 = vadd.f32 %v7113, 0.2548296
        %v7130 = vadd.f32 %v7114, 0.2548296
        %v7131 = vadd.f32 %v7115, 0.2548296
        %v7132 = vadd.f32 %v7116, 0.2548296
        %v7133 = vadd.f32 %v7117, 0.2548296
        %v7134 = vadd.f32 %v7118, 0.2548296
        %v7135 = vadd.f32 %v7119, 0.2548296
        %v7136 = vmul.f32 %v7120, %v6977
        %v7137 = vmul.f32 %v7121, %v6979
        %v7138 = vmul.f32 %v7122, %v6981
        %v7139 = vmul.f32 %v7123, %v6983
        %v7140 = vmul.f32 %v7124, %v6985
        %v7141 = vmul.f32 %v7125, %v6987
        %v7142 = vmul.f32 %v7126, %v6989
        %v7143 = vmul.f32 %v7127, %v6991
        %v7144 = vmul.f32 %v7128, %v6993
        %v7145 = vmul.f32 %v7129, %v6995
        %v7146 = vmul.f32 %v7130, %v6997
        %v7147 = vmul.f32 %v7131, %v6999
        %v7148 = vmul.f32 %v7132, %v7001
        %v7149 = vmul.f32 %v7133, %v7003
        %v7150 = vmul.f32 %v7134, %v7005
        %v7151 = vmul.f32 %v7135, %v7007
        %v7152 = vsub.f32 0.0, %v6928
        %v7153 = vsub.f32 0.0, %v6929
        %v7154 = vsub.f32 0.0, %v6930
        %v7155 = vsub.f32 0.0, %v6931
        %v7156 = vsub.f32 0.0, %v6932
        %v7157 = vsub.f32 0.0, %v6933
        %v7158 = vsub.f32 0.0, %v6934
        %v7159 = vsub.f32 0.0, %v6935
        %v7160 = vsub.f32 0.0, %v6936
        %v7161 = vsub.f32 0.0, %v6937
        %v7162 = vsub.f32 0.0, %v6938
        %v7163 = vsub.f32 0.0, %v6939
        %v7164 = vsub.f32 0.0, %v6940
        %v7165 = vsub.f32 0.0, %v6941
        %v7166 = vsub.f32 0.0, %v6942
        %v7167 = vsub.f32 0.0, %v6943
        %v7168 = vmul.f32 %v7152, %v6928
        %v7169 = vmul.f32 %v7153, %v6929
        %v7170 = vmul.f32 %v7154, %v6930
        %v7171 = vmul.f32 %v7155, %v6931
        %v7172 = vmul.f32 %v7156, %v6932
        %v7173 = vmul.f32 %v7157, %v6933
        %v7174 = vmul.f32 %v7158, %v6934
        %v7175 = vmul.f32 %v7159, %v6935
        %v7176 = vmul.f32 %v7160, %v6936
        %v7177 = vmul.f32 %v7161, %v6937
        %v7178 = vmul.f32 %v7162, %v6938
        %v7179 = vmul.f32 %v7163, %v6939
        %v7180 = vmul.f32 %v7164, %v6940
        %v7181 = vmul.f32 %v7165, %v6941
        %v7182 = vmul.f32 %v7166, %v6942
        %v7183 = vmul.f32 %v7167, %v6943
        %v7184 = vmul.f32 %v7168, 1.442695
        %v7185 = vpow.pop %v7184
        %v7186 = vmul.f32 %v7169, 1.442695
        %v7187 = vpow.pop %v7186
        %v7188 = vmul.f32 %v7170, 1.442695
        %v7189 = vpow.pop %v7188
        %v7190 = vmul.f32 %v7171, 1.442695
        %v7191 = vpow.pop %v7190
        %v7192 = vmul.f32 %v7172, 1.442695
        %v7193 = vpow.pop %v7192
        %v7194 = vmul.f32 %v7173, 1.442695
        %v7195 = vpow.pop %v7194
        %v7196 = vmul.f32 %v7174, 1.442695
        %v7197 = vpow.pop %v7196
        %v7198 = vmul.f32 %v7175, 1.442695
        %v7199 = vpow.pop %v7198
        %v7200 = vmul.f32 %v7176, 1.442695
        %v7201 = vpow.pop %v7200
        %v7202 = vmul.f32 %v7177, 1.442695
        %v7203 = vpow.pop %v7202
        %v7204 = vmul.f32 %v7178, 1.442695
        %v7205 = vpow.pop %v7204
        %v7206 = vmul.f32 %v7179, 1.442695
        %v7207 = vpow.pop %v7206
        %v7208 = vmul.f32 %v7180, 1.442695
        %v7209 = vpow.pop %v7208
        %v7210 = vmul.f32 %v7181, 1.442695
        %v7211 = vpow.pop %v7210
        %v7212 = vmul.f32 %v7182, 1.442695
        %v7213 = vpow.pop %v7212
        %v7214 = vmul.f32 %v7183, 1.442695
        %v7215 = vpow.pop %v7214
        %v7216 = vmul.f32 %v7136, %v7185
        %v7217 = vmul.f32 %v7137, %v7187
        %v7218 = vmul.f32 %v7138, %v7189
        %v7219 = vmul.f32 %v7139, %v7191
        %v7220 = vmul.f32 %v7140, %v7193
        %v7221 = vmul.f32 %v7141, %v7195
        %v7222 = vmul.f32 %v7142, %v7197
        %v7223 = vmul.f32 %v7143, %v7199
        %v7224 = vmul.f32 %v7144, %v7201
        %v7225 = vmul.f32 %v7145, %v7203
        %v7226 = vmul.f32 %v7146, %v7205
        %v7227 = vmul.f32 %v7147, %v7207
        %v7228 = vmul.f32 %v7148, %v7209
        %v7229 = vmul.f32 %v7149, %v7211
        %v7230 = vmul.f32 %v7150, %v7213
        %v7231 = vmul.f32 %v7151, %v7215
        %v7232 = vsub.f32 1.0, %v7216
        %v7233 = vsub.f32 1.0, %v7217
        %v7234 = vsub.f32 1.0, %v7218
        %v7235 = vsub.f32 1.0, %v7219
        %v7236 = vsub.f32 1.0, %v7220
        %v7237 = vsub.f32 1.0, %v7221
        %v7238 = vsub.f32 1.0, %v7222
        %v7239 = vsub.f32 1.0, %v7223
        %v7240 = vsub.f32 1.0, %v7224
        %v7241 = vsub.f32 1.0, %v7225
        %v7242 = vsub.f32 1.0, %v7226
        %v7243 = vsub.f32 1.0, %v7227
        %v7244 = vsub.f32 1.0, %v7228
        %v7245 = vsub.f32 1.0, %v7229
        %v7246 = vsub.f32 1.0, %v7230
        %v7247 = vsub.f32 1.0, %v7231
        %v7248 = vmul.f32 %v6912, %v7232
        %v7249 = vmul.f32 %v6913, %v7233
        %v7250 = vmul.f32 %v6914, %v7234
        %v7251 = vmul.f32 %v6915, %v7235
        %v7252 = vmul.f32 %v6916, %v7236
        %v7253 = vmul.f32 %v6917, %v7237
        %v7254 = vmul.f32 %v6918, %v7238
        %v7255 = vmul.f32 %v6919, %v7239
        %v7256 = vmul.f32 %v6920, %v7240
        %v7257 = vmul.f32 %v6921, %v7241
        %v7258 = vmul.f32 %v6922, %v7242
        %v7259 = vmul.f32 %v6923, %v7243
        %v7260 = vmul.f32 %v6924, %v7244
        %v7261 = vmul.f32 %v6925, %v7245
        %v7262 = vmul.f32 %v6926, %v7246
        %v7263 = vmul.f32 %v6927, %v7247
        %v7264 = vadd.f32 %v7248, 1.0
        %v7265 = vadd.f32 %v7249, 1.0
        %v7266 = vadd.f32 %v7250, 1.0
        %v7267 = vadd.f32 %v7251, 1.0
        %v7268 = vadd.f32 %v7252, 1.0
        %v7269 = vadd.f32 %v7253, 1.0
        %v7270 = vadd.f32 %v7254, 1.0
        %v7271 = vadd.f32 %v7255, 1.0
        %v7272 = vadd.f32 %v7256, 1.0
        %v7273 = vadd.f32 %v7257, 1.0
        %v7274 = vadd.f32 %v7258, 1.0
        %v7275 = vadd.f32 %v7259, 1.0
        %v7276 = vadd.f32 %v7260, 1.0
        %v7277 = vadd.f32 %v7261, 1.0
        %v7278 = vadd.f32 %v7262, 1.0
        %v7279 = vadd.f32 %v7263, 1.0
        %v7280 = vmul.f32 %v6864, %v7264
        %v7281 = vmul.f32 %v6865, %v7265
        %v7282 = vmul.f32 %v6866, %v7266
        %v7283 = vmul.f32 %v6867, %v7267
        %v7284 = vmul.f32 %v6868, %v7268
        %v7285 = vmul.f32 %v6869, %v7269
        %v7286 = vmul.f32 %v6870, %v7270
        %v7287 = vmul.f32 %v6871, %v7271
        %v7288 = vmul.f32 %v6872, %v7272
        %v7289 = vmul.f32 %v6873, %v7273
        %v7290 = vmul.f32 %v6874, %v7274
        %v7291 = vmul.f32 %v6875, %v7275
        %v7292 = vmul.f32 %v6876, %v7276
        %v7293 = vmul.f32 %v6877, %v7277
        %v7294 = vmul.f32 %v6878, %v7278
        %v7295 = vmul.f32 %v6879, %v7279
        %v7296 = vpack.c.bf16 %v7288, %v7280
        %v7297 = vpack.c.bf16 %v7289, %v7281
        %v7298 = vpack.c.bf16 %v7290, %v7282
        %v7299 = vpack.c.bf16 %v7291, %v7283
        %v7300 = vpack.c.bf16 %v7292, %v7284
        %v7301 = vpack.c.bf16 %v7293, %v7285
        %v7302 = vpack.c.bf16 %v7294, %v7286
        %v7303 = vpack.c.bf16 %v7295, %v7287
        %v7304 = vld [vmem:[%s879] sm:$0xff]
        %v7305 = vld [vmem:[%s879 + $0x8] sm:$0xff]
        %v7306 = vld [vmem:[%s879 + $0x10] sm:$0xff]
        %v7307 = vld [vmem:[%s879 + $0x18] sm:$0xff]
        %v7308 = vld [vmem:[%s879 + $0x20] sm:$0xff]
        %v7309 = vld [vmem:[%s879 + $0x28] sm:$0xff]
        %v7310 = vld [vmem:[%s879 + $0x30] sm:$0xff]
        %v7311 = vld [vmem:[%s879 + $0x38] sm:$0xff]
        %v7312 = vld [vmem:[%s879 + $0x40] sm:$0xff]
        %v7313 = vld [vmem:[%s879 + $0x48] sm:$0xff]
        %v7314 = vld [vmem:[%s879 + $0x50] sm:$0xff]
        %v7315 = vld [vmem:[%s879 + $0x58] sm:$0xff]
        %v7316 = vld [vmem:[%s879 + $0x60] sm:$0xff]
        %v7317 = vld [vmem:[%s879 + $0x68] sm:$0xff]
        %v7318 = vld [vmem:[%s879 + $0x70] sm:$0xff]
        %v7319 = vld [vmem:[%s879 + $0x78] sm:$0xff]
        %v7320 = vld [vmem:[%s879 + $0x80] sm:$0xff]
        %v7321 = vld [vmem:[%s879 + $0x88] sm:$0xff]
        %v7322 = vld [vmem:[%s879 + $0x90] sm:$0xff]
        %v7323 = vld [vmem:[%s879 + $0x98] sm:$0xff]
        %v7324 = vld [vmem:[%s879 + $0xa0] sm:$0xff]
        %v7325 = vld [vmem:[%s879 + $0xa8] sm:$0xff]
        %v7326 = vld [vmem:[%s879 + $0xb0] sm:$0xff]
        %v7327 = vld [vmem:[%s879 + $0xb8] sm:$0xff]
        %v7328 = vld [vmem:[%s879 + $0xc0] sm:$0xff]
        %v7329 = vld [vmem:[%s879 + $0xc8] sm:$0xff]
        %v7330 = vld [vmem:[%s879 + $0xd0] sm:$0xff]
        %v7331 = vld [vmem:[%s879 + $0xd8] sm:$0xff]
        %v7332 = vld [vmem:[%s879 + $0xe0] sm:$0xff]
        %v7333 = vld [vmem:[%s879 + $0xe8] sm:$0xff]
        %v7334 = vld [vmem:[%s879 + $0xf0] sm:$0xff]
        %v7335 = vld [vmem:[%s879 + $0xf8] sm:$0xff]
        %v7336 = vld [vmem:[%s879 + $0x100] sm:$0xff]
        %v7337 = vld [vmem:[%s879 + $0x108] sm:$0xff]
        %v7338 = vld [vmem:[%s879 + $0x110] sm:$0xff]
        %v7339 = vld [vmem:[%s879 + $0x118] sm:$0xff]
        %v7340 = vld [vmem:[%s879 + $0x120] sm:$0xff]
        %v7341 = vld [vmem:[%s879 + $0x128] sm:$0xff]
        %v7342 = vld [vmem:[%s879 + $0x130] sm:$0xff]
        %v7343 = vld [vmem:[%s879 + $0x138] sm:$0xff]
        %v7344 = vld [vmem:[%s879 + $0x140] sm:$0xff]
        %v7345 = vld [vmem:[%s879 + $0x148] sm:$0xff]
        %v7346 = vld [vmem:[%s879 + $0x150] sm:$0xff]
        %v7347 = vld [vmem:[%s879 + $0x158] sm:$0xff]
        %v7348 = vld [vmem:[%s879 + $0x160] sm:$0xff]
        %v7349 = vld [vmem:[%s879 + $0x168] sm:$0xff]
        %v7350 = vld [vmem:[%s879 + $0x170] sm:$0xff]
        %v7351 = vld [vmem:[%s879 + $0x178] sm:$0xff]
        %v7352 = vld [vmem:[%s879 + $0x180] sm:$0xff]
        %v7353 = vld [vmem:[%s879 + $0x188] sm:$0xff]
        %v7354 = vld [vmem:[%s879 + $0x190] sm:$0xff]
        %v7355 = vld [vmem:[%s879 + $0x198] sm:$0xff]
        %v7356 = vld [vmem:[%s879 + $0x1a0] sm:$0xff]
        %v7357 = vld [vmem:[%s879 + $0x1a8] sm:$0xff]
        %v7358 = vld [vmem:[%s879 + $0x1b0] sm:$0xff]
        %v7359 = vld [vmem:[%s879 + $0x1b8] sm:$0xff]
        %v7360 = vld [vmem:[%s879 + $0x1c0] sm:$0xff]
        %v7361 = vld [vmem:[%s879 + $0x1c8] sm:$0xff]
        %v7362 = vld [vmem:[%s879 + $0x1d0] sm:$0xff]
        %v7363 = vld [vmem:[%s879 + $0x1d8] sm:$0xff]
        %v7364 = vld [vmem:[%s879 + $0x1e0] sm:$0xff]
        %v7365 = vld [vmem:[%s879 + $0x1e8] sm:$0xff]
        %v7366 = vld [vmem:[%s879 + $0x1f0] sm:$0xff]
        %v7367 = vld [vmem:[%s879 + $0x1f8] sm:$0xff]
        %v7368 = vld [vmem:[%s879 + $0x200] sm:$0xff]
        %v7369 = vld [vmem:[%s879 + $0x208] sm:$0xff]
        %v7370 = vld [vmem:[%s879 + $0x210] sm:$0xff]
        %v7371 = vld [vmem:[%s879 + $0x218] sm:$0xff]
        %v7372 = vld [vmem:[%s879 + $0x220] sm:$0xff]
        %v7373 = vld [vmem:[%s879 + $0x228] sm:$0xff]
        %v7374 = vld [vmem:[%s879 + $0x230] sm:$0xff]
        %v7375 = vld [vmem:[%s879 + $0x238] sm:$0xff]
        %v7376 = vld [vmem:[%s879 + $0x240] sm:$0xff]
        %v7377 = vld [vmem:[%s879 + $0x248] sm:$0xff]
        %v7378 = vld [vmem:[%s879 + $0x250] sm:$0xff]
        %v7379 = vld [vmem:[%s879 + $0x258] sm:$0xff]
        %v7380 = vld [vmem:[%s879 + $0x260] sm:$0xff]
        %v7381 = vld [vmem:[%s879 + $0x268] sm:$0xff]
        %v7382 = vld [vmem:[%s879 + $0x270] sm:$0xff]
        %v7383 = vld [vmem:[%s879 + $0x278] sm:$0xff]
        %v7384 = vld [vmem:[%s879 + $0x280] sm:$0xff]
        %v7385 = vld [vmem:[%s879 + $0x288] sm:$0xff]
        %v7386 = vld [vmem:[%s879 + $0x290] sm:$0xff]
        %v7387 = vld [vmem:[%s879 + $0x298] sm:$0xff]
        %v7388 = vld [vmem:[%s879 + $0x2a0] sm:$0xff]
        %v7389 = vld [vmem:[%s879 + $0x2a8] sm:$0xff]
        %v7390 = vld [vmem:[%s879 + $0x2b0] sm:$0xff]
        %v7391 = vld [vmem:[%s879 + $0x2b8] sm:$0xff]
        %v7392 = vld [vmem:[%s879 + $0x2c0] sm:$0xff]
        %v7393 = vld [vmem:[%s879 + $0x2c8] sm:$0xff]
        %v7394 = vld [vmem:[%s879 + $0x2d0] sm:$0xff]
        %v7395 = vld [vmem:[%s879 + $0x2d8] sm:$0xff]
        %v7396 = vld [vmem:[%s879 + $0x2e0] sm:$0xff]
        %v7397 = vld [vmem:[%s879 + $0x2e8] sm:$0xff]
        %v7398 = vld [vmem:[%s879 + $0x2f0] sm:$0xff]
        %v7399 = vld [vmem:[%s879 + $0x2f8] sm:$0xff]
        %v7400 = vld [vmem:[%s879 + $0x300] sm:$0xff]
        %v7401 = vld [vmem:[%s879 + $0x308] sm:$0xff]
        %v7402 = vld [vmem:[%s879 + $0x310] sm:$0xff]
        %v7403 = vld [vmem:[%s879 + $0x318] sm:$0xff]
        %v7404 = vld [vmem:[%s879 + $0x320] sm:$0xff]
        %v7405 = vld [vmem:[%s879 + $0x328] sm:$0xff]
        %v7406 = vld [vmem:[%s879 + $0x330] sm:$0xff]
        %v7407 = vld [vmem:[%s879 + $0x338] sm:$0xff]
        %v7408 = vld [vmem:[%s879 + $0x340] sm:$0xff]
        %v7409 = vld [vmem:[%s879 + $0x348] sm:$0xff]
        %v7410 = vld [vmem:[%s879 + $0x350] sm:$0xff]
        %v7411 = vld [vmem:[%s879 + $0x358] sm:$0xff]
        %v7412 = vld [vmem:[%s879 + $0x360] sm:$0xff]
        %v7413 = vld [vmem:[%s879 + $0x368] sm:$0xff]
        %v7414 = vld [vmem:[%s879 + $0x370] sm:$0xff]
        %v7415 = vld [vmem:[%s879 + $0x378] sm:$0xff]
        %v7416 = vld [vmem:[%s879 + $0x380] sm:$0xff]
        %v7417 = vld [vmem:[%s879 + $0x388] sm:$0xff]
        %v7418 = vld [vmem:[%s879 + $0x390] sm:$0xff]
        %v7419 = vld [vmem:[%s879 + $0x398] sm:$0xff]
        %v7420 = vld [vmem:[%s879 + $0x3a0] sm:$0xff]
        %v7421 = vld [vmem:[%s879 + $0x3a8] sm:$0xff]
        %v7422 = vld [vmem:[%s879 + $0x3b0] sm:$0xff]
        %v7423 = vld [vmem:[%s879 + $0x3b8] sm:$0xff]
        %v7424 = vld [vmem:[%s879 + $0x3c0] sm:$0xff]
        %v7425 = vld [vmem:[%s879 + $0x3c8] sm:$0xff]
        %v7426 = vld [vmem:[%s879 + $0x3d0] sm:$0xff]
        %v7427 = vld [vmem:[%s879 + $0x3d8] sm:$0xff]
        %v7428 = vld [vmem:[%s879 + $0x3e0] sm:$0xff]
        %v7429 = vld [vmem:[%s879 + $0x3e8] sm:$0xff]
        %v7430 = vld [vmem:[%s879 + $0x3f0] sm:$0xff]
        %v7431 = vld [vmem:[%s879 + $0x3f8] sm:$0xff]
        %v7432 = vld [vmem:[%s888] sm:$0x3]
        %v7434 = vlaneseq
        %v7435 = vshrl.u32 %v7434, 7
        %v7436 = vsub.s32 0, %v7435
        %v7437 = vrot.slane %v7432, %v7436
        %v7438 = vlaneseq
        %v7439 = vshrl.u32 %v7438, 7
        %v7440 = vsub.s32 1, %v7439
        %v7441 = vrot.slane %v7432, %v7440
        %v7572 = vunpack.c.l.b16 %v7304
        %v7573 = vunpack.c.h.b16 %v7304
        %v7574 = vunpack.c.l.b16 %v7305
        %v7575 = vunpack.c.h.b16 %v7305
        %v7576 = vunpack.c.l.b16 %v7306
        %v7577 = vunpack.c.h.b16 %v7306
        %v7578 = vunpack.c.l.b16 %v7307
        %v7579 = vunpack.c.h.b16 %v7307
        %v7580 = vunpack.c.l.b16 %v7308
        %v7581 = vunpack.c.h.b16 %v7308
        %v7582 = vunpack.c.l.b16 %v7309
        %v7583 = vunpack.c.h.b16 %v7309
        %v7584 = vunpack.c.l.b16 %v7310
        %v7585 = vunpack.c.h.b16 %v7310
        %v7586 = vunpack.c.l.b16 %v7311
        %v7587 = vunpack.c.h.b16 %v7311
        %v7588 = vunpack.c.l.b16 %v7312
        %v7589 = vunpack.c.h.b16 %v7312
        %v7590 = vunpack.c.l.b16 %v7313
        %v7591 = vunpack.c.h.b16 %v7313
        %v7592 = vunpack.c.l.b16 %v7314
        %v7593 = vunpack.c.h.b16 %v7314
        %v7594 = vunpack.c.l.b16 %v7315
        %v7595 = vunpack.c.h.b16 %v7315
        %v7596 = vunpack.c.l.b16 %v7316
        %v7597 = vunpack.c.h.b16 %v7316
        %v7598 = vunpack.c.l.b16 %v7317
        %v7599 = vunpack.c.h.b16 %v7317
        %v7600 = vunpack.c.l.b16 %v7318
        %v7601 = vunpack.c.h.b16 %v7318
        %v7602 = vunpack.c.l.b16 %v7319
        %v7603 = vunpack.c.h.b16 %v7319
        %v7604 = vunpack.c.l.b16 %v7320
        %v7605 = vunpack.c.h.b16 %v7320
        %v7606 = vunpack.c.l.b16 %v7321
        %v7607 = vunpack.c.h.b16 %v7321
        %v7608 = vunpack.c.l.b16 %v7322
        %v7609 = vunpack.c.h.b16 %v7322
        %v7610 = vunpack.c.l.b16 %v7323
        %v7611 = vunpack.c.h.b16 %v7323
        %v7612 = vunpack.c.l.b16 %v7324
        %v7613 = vunpack.c.h.b16 %v7324
        %v7614 = vunpack.c.l.b16 %v7325
        %v7615 = vunpack.c.h.b16 %v7325
        %v7616 = vunpack.c.l.b16 %v7326
        %v7617 = vunpack.c.h.b16 %v7326
        %v7618 = vunpack.c.l.b16 %v7327
        %v7619 = vunpack.c.h.b16 %v7327
        %v7620 = vunpack.c.l.b16 %v7328
        %v7621 = vunpack.c.h.b16 %v7328
        %v7622 = vunpack.c.l.b16 %v7329
        %v7623 = vunpack.c.h.b16 %v7329
        %v7624 = vunpack.c.l.b16 %v7330
        %v7625 = vunpack.c.h.b16 %v7330
        %v7626 = vunpack.c.l.b16 %v7331
        %v7627 = vunpack.c.h.b16 %v7331
        %v7628 = vunpack.c.l.b16 %v7332
        %v7629 = vunpack.c.h.b16 %v7332
        %v7630 = vunpack.c.l.b16 %v7333
        %v7631 = vunpack.c.h.b16 %v7333
        %v7632 = vunpack.c.l.b16 %v7334
        %v7633 = vunpack.c.h.b16 %v7334
        %v7634 = vunpack.c.l.b16 %v7335
        %v7635 = vunpack.c.h.b16 %v7335
        %v7636 = vunpack.c.l.b16 %v7336
        %v7637 = vunpack.c.h.b16 %v7336
        %v7638 = vunpack.c.l.b16 %v7337
        %v7639 = vunpack.c.h.b16 %v7337
        %v7640 = vunpack.c.l.b16 %v7338
        %v7641 = vunpack.c.h.b16 %v7338
        %v7642 = vunpack.c.l.b16 %v7339
        %v7643 = vunpack.c.h.b16 %v7339
        %v7644 = vunpack.c.l.b16 %v7340
        %v7645 = vunpack.c.h.b16 %v7340
        %v7646 = vunpack.c.l.b16 %v7341
        %v7647 = vunpack.c.h.b16 %v7341
        %v7648 = vunpack.c.l.b16 %v7342
        %v7649 = vunpack.c.h.b16 %v7342
        %v7650 = vunpack.c.l.b16 %v7343
        %v7651 = vunpack.c.h.b16 %v7343
        %v7652 = vunpack.c.l.b16 %v7344
        %v7653 = vunpack.c.h.b16 %v7344
        %v7654 = vunpack.c.l.b16 %v7345
        %v7655 = vunpack.c.h.b16 %v7345
        %v7656 = vunpack.c.l.b16 %v7346
        %v7657 = vunpack.c.h.b16 %v7346
        %v7658 = vunpack.c.l.b16 %v7347
        %v7659 = vunpack.c.h.b16 %v7347
        %v7660 = vunpack.c.l.b16 %v7348
        %v7661 = vunpack.c.h.b16 %v7348
        %v7662 = vunpack.c.l.b16 %v7349
        %v7663 = vunpack.c.h.b16 %v7349
        %v7664 = vunpack.c.l.b16 %v7350
        %v7665 = vunpack.c.h.b16 %v7350
        %v7666 = vunpack.c.l.b16 %v7351
        %v7667 = vunpack.c.h.b16 %v7351
        %v7668 = vunpack.c.l.b16 %v7352
        %v7669 = vunpack.c.h.b16 %v7352
        %v7670 = vunpack.c.l.b16 %v7353
        %v7671 = vunpack.c.h.b16 %v7353
        %v7672 = vunpack.c.l.b16 %v7354
        %v7673 = vunpack.c.h.b16 %v7354
        %v7674 = vunpack.c.l.b16 %v7355
        %v7675 = vunpack.c.h.b16 %v7355
        %v7676 = vunpack.c.l.b16 %v7356
        %v7677 = vunpack.c.h.b16 %v7356
        %v7678 = vunpack.c.l.b16 %v7357
        %v7679 = vunpack.c.h.b16 %v7357
        %v7680 = vunpack.c.l.b16 %v7358
        %v7681 = vunpack.c.h.b16 %v7358
        %v7682 = vunpack.c.l.b16 %v7359
        %v7683 = vunpack.c.h.b16 %v7359
        %v7684 = vunpack.c.l.b16 %v7360
        %v7685 = vunpack.c.h.b16 %v7360
        %v7686 = vunpack.c.l.b16 %v7361
        %v7687 = vunpack.c.h.b16 %v7361
        %v7688 = vunpack.c.l.b16 %v7362
        %v7689 = vunpack.c.h.b16 %v7362
        %v7690 = vunpack.c.l.b16 %v7363
        %v7691 = vunpack.c.h.b16 %v7363
        %v7692 = vunpack.c.l.b16 %v7364
        %v7693 = vunpack.c.h.b16 %v7364
        %v7694 = vunpack.c.l.b16 %v7365
        %v7695 = vunpack.c.h.b16 %v7365
        %v7696 = vunpack.c.l.b16 %v7366
        %v7697 = vunpack.c.h.b16 %v7366
        %v7698 = vunpack.c.l.b16 %v7367
        %v7699 = vunpack.c.h.b16 %v7367
        %v7700 = vunpack.c.l.b16 %v7368
        %v7701 = vunpack.c.h.b16 %v7368
        %v7702 = vunpack.c.l.b16 %v7369
        %v7703 = vunpack.c.h.b16 %v7369
        %v7704 = vunpack.c.l.b16 %v7370
        %v7705 = vunpack.c.h.b16 %v7370
        %v7706 = vunpack.c.l.b16 %v7371
        %v7707 = vunpack.c.h.b16 %v7371
        %v7708 = vunpack.c.l.b16 %v7372
        %v7709 = vunpack.c.h.b16 %v7372
        %v7710 = vunpack.c.l.b16 %v7373
        %v7711 = vunpack.c.h.b16 %v7373
        %v7712 = vunpack.c.l.b16 %v7374
        %v7713 = vunpack.c.h.b16 %v7374
        %v7714 = vunpack.c.l.b16 %v7375
        %v7715 = vunpack.c.h.b16 %v7375
        %v7716 = vunpack.c.l.b16 %v7376
        %v7717 = vunpack.c.h.b16 %v7376
        %v7718 = vunpack.c.l.b16 %v7377
        %v7719 = vunpack.c.h.b16 %v7377
        %v7720 = vunpack.c.l.b16 %v7378
        %v7721 = vunpack.c.h.b16 %v7378
        %v7722 = vunpack.c.l.b16 %v7379
        %v7723 = vunpack.c.h.b16 %v7379
        %v7724 = vunpack.c.l.b16 %v7380
        %v7725 = vunpack.c.h.b16 %v7380
        %v7726 = vunpack.c.l.b16 %v7381
        %v7727 = vunpack.c.h.b16 %v7381
        %v7728 = vunpack.c.l.b16 %v7382
        %v7729 = vunpack.c.h.b16 %v7382
        %v7730 = vunpack.c.l.b16 %v7383
        %v7731 = vunpack.c.h.b16 %v7383
        %v7732 = vunpack.c.l.b16 %v7384
        %v7733 = vunpack.c.h.b16 %v7384
        %v7734 = vunpack.c.l.b16 %v7385
        %v7735 = vunpack.c.h.b16 %v7385
        %v7736 = vunpack.c.l.b16 %v7386
        %v7737 = vunpack.c.h.b16 %v7386
        %v7738 = vunpack.c.l.b16 %v7387
        %v7739 = vunpack.c.h.b16 %v7387
        %v7740 = vunpack.c.l.b16 %v7388
        %v7741 = vunpack.c.h.b16 %v7388
        %v7742 = vunpack.c.l.b16 %v7389
        %v7743 = vunpack.c.h.b16 %v7389
        %v7744 = vunpack.c.l.b16 %v7390
        %v7745 = vunpack.c.h.b16 %v7390
        %v7746 = vunpack.c.l.b16 %v7391
        %v7747 = vunpack.c.h.b16 %v7391
        %v7748 = vunpack.c.l.b16 %v7392
        %v7749 = vunpack.c.h.b16 %v7392
        %v7750 = vunpack.c.l.b16 %v7393
        %v7751 = vunpack.c.h.b16 %v7393
        %v7752 = vunpack.c.l.b16 %v7394
        %v7753 = vunpack.c.h.b16 %v7394
        %v7754 = vunpack.c.l.b16 %v7395
        %v7755 = vunpack.c.h.b16 %v7395
        %v7756 = vunpack.c.l.b16 %v7396
        %v7757 = vunpack.c.h.b16 %v7396
        %v7758 = vunpack.c.l.b16 %v7397
        %v7759 = vunpack.c.h.b16 %v7397
        %v7760 = vunpack.c.l.b16 %v7398
        %v7761 = vunpack.c.h.b16 %v7398
        %v7762 = vunpack.c.l.b16 %v7399
        %v7763 = vunpack.c.h.b16 %v7399
        %v7764 = vunpack.c.l.b16 %v7400
        %v7765 = vunpack.c.h.b16 %v7400
        %v7766 = vunpack.c.l.b16 %v7401
        %v7767 = vunpack.c.h.b16 %v7401
        %v7768 = vunpack.c.l.b16 %v7402
        %v7769 = vunpack.c.h.b16 %v7402
        %v7770 = vunpack.c.l.b16 %v7403
        %v7771 = vunpack.c.h.b16 %v7403
        %v7772 = vunpack.c.l.b16 %v7404
        %v7773 = vunpack.c.h.b16 %v7404
        %v7774 = vunpack.c.l.b16 %v7405
        %v7775 = vunpack.c.h.b16 %v7405
        %v7776 = vunpack.c.l.b16 %v7406
        %v7777 = vunpack.c.h.b16 %v7406
        %v7778 = vunpack.c.l.b16 %v7407
        %v7779 = vunpack.c.h.b16 %v7407
        %v7780 = vunpack.c.l.b16 %v7408
        %v7781 = vunpack.c.h.b16 %v7408
        %v7782 = vunpack.c.l.b16 %v7409
        %v7783 = vunpack.c.h.b16 %v7409
        %v7784 = vunpack.c.l.b16 %v7410
        %v7785 = vunpack.c.h.b16 %v7410
        %v7786 = vunpack.c.l.b16 %v7411
        %v7787 = vunpack.c.h.b16 %v7411
        %v7788 = vunpack.c.l.b16 %v7412
        %v7789 = vunpack.c.h.b16 %v7412
        %v7790 = vunpack.c.l.b16 %v7413
        %v7791 = vunpack.c.h.b16 %v7413
        %v7792 = vunpack.c.l.b16 %v7414
        %v7793 = vunpack.c.h.b16 %v7414
        %v7794 = vunpack.c.l.b16 %v7415
        %v7795 = vunpack.c.h.b16 %v7415
        %v7796 = vunpack.c.l.b16 %v7416
        %v7797 = vunpack.c.h.b16 %v7416
        %v7798 = vunpack.c.l.b16 %v7417
        %v7799 = vunpack.c.h.b16 %v7417
        %v7800 = vunpack.c.l.b16 %v7418
        %v7801 = vunpack.c.h.b16 %v7418
        %v7802 = vunpack.c.l.b16 %v7419
        %v7803 = vunpack.c.h.b16 %v7419
        %v7804 = vunpack.c.l.b16 %v7420
        %v7805 = vunpack.c.h.b16 %v7420
        %v7806 = vunpack.c.l.b16 %v7421
        %v7807 = vunpack.c.h.b16 %v7421
        %v7808 = vunpack.c.l.b16 %v7422
        %v7809 = vunpack.c.h.b16 %v7422
        %v7810 = vunpack.c.l.b16 %v7423
        %v7811 = vunpack.c.h.b16 %v7423
        %v7812 = vunpack.c.l.b16 %v7424
        %v7813 = vunpack.c.h.b16 %v7424
        %v7814 = vunpack.c.l.b16 %v7425
        %v7815 = vunpack.c.h.b16 %v7425
        %v7816 = vunpack.c.l.b16 %v7426
        %v7817 = vunpack.c.h.b16 %v7426
        %v7818 = vunpack.c.l.b16 %v7427
        %v7819 = vunpack.c.h.b16 %v7427
        %v7820 = vunpack.c.l.b16 %v7428
        %v7821 = vunpack.c.h.b16 %v7428
        %v7822 = vunpack.c.l.b16 %v7429
        %v7823 = vunpack.c.h.b16 %v7429
        %v7824 = vunpack.c.l.b16 %v7430
        %v7825 = vunpack.c.h.b16 %v7430
        %v7826 = vunpack.c.l.b16 %v7431
        %v7827 = vunpack.c.h.b16 %v7431
        %v7828 = vpack.c.b16 %v7574, %v7572
        %v7829 = vpack.c.b16 %v7575, %v7573
        %v7830 = vpack.c.b16 %v7578, %v7576
        %v7831 = vpack.c.b16 %v7579, %v7577
        %v7832 = vpack.c.b16 %v7582, %v7580
        %v7833 = vpack.c.b16 %v7583, %v7581
        %v7834 = vpack.c.b16 %v7586, %v7584
        %v7835 = vpack.c.b16 %v7587, %v7585
        %v7836 = vpack.c.b16 %v7590, %v7588
        %v7837 = vpack.c.b16 %v7591, %v7589
        %v7838 = vpack.c.b16 %v7594, %v7592
        %v7839 = vpack.c.b16 %v7595, %v7593
        %v7840 = vpack.c.b16 %v7598, %v7596
        %v7841 = vpack.c.b16 %v7599, %v7597
        %v7842 = vpack.c.b16 %v7602, %v7600
        %v7843 = vpack.c.b16 %v7603, %v7601
        %v7844 = vpack.c.b16 %v7606, %v7604
        %v7845 = vpack.c.b16 %v7607, %v7605
        %v7846 = vpack.c.b16 %v7610, %v7608
        %v7847 = vpack.c.b16 %v7611, %v7609
        %v7848 = vpack.c.b16 %v7614, %v7612
        %v7849 = vpack.c.b16 %v7615, %v7613
        %v7850 = vpack.c.b16 %v7618, %v7616
        %v7851 = vpack.c.b16 %v7619, %v7617
        %v7852 = vpack.c.b16 %v7622, %v7620
        %v7853 = vpack.c.b16 %v7623, %v7621
        %v7854 = vpack.c.b16 %v7626, %v7624
        %v7855 = vpack.c.b16 %v7627, %v7625
        %v7856 = vpack.c.b16 %v7630, %v7628
        %v7857 = vpack.c.b16 %v7631, %v7629
        %v7858 = vpack.c.b16 %v7634, %v7632
        %v7859 = vpack.c.b16 %v7635, %v7633
        %v7860 = vpack.c.b16 %v7638, %v7636
        %v7861 = vpack.c.b16 %v7639, %v7637
        %v7862 = vpack.c.b16 %v7642, %v7640
        %v7863 = vpack.c.b16 %v7643, %v7641
        %v7864 = vpack.c.b16 %v7646, %v7644
        %v7865 = vpack.c.b16 %v7647, %v7645
        %v7866 = vpack.c.b16 %v7650, %v7648
        %v7867 = vpack.c.b16 %v7651, %v7649
        %v7868 = vpack.c.b16 %v7654, %v7652
        %v7869 = vpack.c.b16 %v7655, %v7653
        %v7870 = vpack.c.b16 %v7658, %v7656
        %v7871 = vpack.c.b16 %v7659, %v7657
        %v7872 = vpack.c.b16 %v7662, %v7660
        %v7873 = vpack.c.b16 %v7663, %v7661
        %v7874 = vpack.c.b16 %v7666, %v7664
        %v7875 = vpack.c.b16 %v7667, %v7665
        %v7876 = vpack.c.b16 %v7670, %v7668
        %v7877 = vpack.c.b16 %v7671, %v7669
        %v7878 = vpack.c.b16 %v7674, %v7672
        %v7879 = vpack.c.b16 %v7675, %v7673
        %v7880 = vpack.c.b16 %v7678, %v7676
        %v7881 = vpack.c.b16 %v7679, %v7677
        %v7882 = vpack.c.b16 %v7682, %v7680
        %v7883 = vpack.c.b16 %v7683, %v7681
        %v7884 = vpack.c.b16 %v7686, %v7684
        %v7885 = vpack.c.b16 %v7687, %v7685
        %v7886 = vpack.c.b16 %v7690, %v7688
        %v7887 = vpack.c.b16 %v7691, %v7689
        %v7888 = vpack.c.b16 %v7694, %v7692
        %v7889 = vpack.c.b16 %v7695, %v7693
        %v7890 = vpack.c.b16 %v7698, %v7696
        %v7891 = vpack.c.b16 %v7699, %v7697
        %v7892 = vpack.c.b16 %v7702, %v7700
        %v7893 = vpack.c.b16 %v7703, %v7701
        %v7894 = vpack.c.b16 %v7706, %v7704
        %v7895 = vpack.c.b16 %v7707, %v7705
        %v7896 = vpack.c.b16 %v7710, %v7708
        %v7897 = vpack.c.b16 %v7711, %v7709
        %v7898 = vpack.c.b16 %v7714, %v7712
        %v7899 = vpack.c.b16 %v7715, %v7713
        %v7900 = vpack.c.b16 %v7718, %v7716
        %v7901 = vpack.c.b16 %v7719, %v7717
        %v7902 = vpack.c.b16 %v7722, %v7720
        %v7903 = vpack.c.b16 %v7723, %v7721
        %v7904 = vpack.c.b16 %v7726, %v7724
        %v7905 = vpack.c.b16 %v7727, %v7725
        %v7906 = vpack.c.b16 %v7730, %v7728
        %v7907 = vpack.c.b16 %v7731, %v7729
        %v7908 = vpack.c.b16 %v7734, %v7732
        %v7909 = vpack.c.b16 %v7735, %v7733
        %v7910 = vpack.c.b16 %v7738, %v7736
        %v7911 = vpack.c.b16 %v7739, %v7737
        %v7912 = vpack.c.b16 %v7742, %v7740
        %v7913 = vpack.c.b16 %v7743, %v7741
        %v7914 = vpack.c.b16 %v7746, %v7744
        %v7915 = vpack.c.b16 %v7747, %v7745
        %v7916 = vpack.c.b16 %v7750, %v7748
        %v7917 = vpack.c.b16 %v7751, %v7749
        %v7918 = vpack.c.b16 %v7754, %v7752
        %v7919 = vpack.c.b16 %v7755, %v7753
        %v7920 = vpack.c.b16 %v7758, %v7756
        %v7921 = vpack.c.b16 %v7759, %v7757
        %v7922 = vpack.c.b16 %v7762, %v7760
        %v7923 = vpack.c.b16 %v7763, %v7761
        %v7924 = vpack.c.b16 %v7766, %v7764
        %v7925 = vpack.c.b16 %v7767, %v7765
        %v7926 = vpack.c.b16 %v7770, %v7768
        %v7927 = vpack.c.b16 %v7771, %v7769
        %v7928 = vpack.c.b16 %v7774, %v7772
        %v7929 = vpack.c.b16 %v7775, %v7773
        %v7930 = vpack.c.b16 %v7778, %v7776
        %v7931 = vpack.c.b16 %v7779, %v7777
        %v7932 = vpack.c.b16 %v7782, %v7780
        %v7933 = vpack.c.b16 %v7783, %v7781
        %v7934 = vpack.c.b16 %v7786, %v7784
        %v7935 = vpack.c.b16 %v7787, %v7785
        %v7936 = vpack.c.b16 %v7790, %v7788
        %v7937 = vpack.c.b16 %v7791, %v7789
        %v7938 = vpack.c.b16 %v7794, %v7792
        %v7939 = vpack.c.b16 %v7795, %v7793
        %v7940 = vpack.c.b16 %v7798, %v7796
        %v7941 = vpack.c.b16 %v7799, %v7797
        %v7942 = vpack.c.b16 %v7802, %v7800
        %v7943 = vpack.c.b16 %v7803, %v7801
        %v7944 = vpack.c.b16 %v7806, %v7804
        %v7945 = vpack.c.b16 %v7807, %v7805
        %v7946 = vpack.c.b16 %v7810, %v7808
        %v7947 = vpack.c.b16 %v7811, %v7809
        %v7948 = vpack.c.b16 %v7814, %v7812
        %v7949 = vpack.c.b16 %v7815, %v7813
        %v7950 = vpack.c.b16 %v7818, %v7816
        %v7951 = vpack.c.b16 %v7819, %v7817
        %v7952 = vpack.c.b16 %v7822, %v7820
        %v7953 = vpack.c.b16 %v7823, %v7821
        %v7954 = vpack.c.b16 %v7826, %v7824
        %v7955 = vpack.c.b16 %v7827, %v7825
        %8084 = vmatprep.subr.bf16.mxu0 %v7829
        %8085 = vmatpush1.bf16.msra.mxu0 %v7828
        %8086 = vmatprep.subr.bf16.mxu0 %v7831
        %8087 = vmatpush1.bf16.msra.mxu0 %v7830
        %8088 = vmatprep.subr.bf16.mxu0 %v7833
        %8089 = vmatpush1.bf16.msra.mxu0 %v7832
        %8090 = vmatprep.subr.bf16.mxu0 %v7835
        %8091 = vmatpush1.bf16.msra.mxu0 %v7834
        %8092 = vmatprep.subr.bf16.mxu0 %v7837
        %8093 = vmatpush1.bf16.msra.mxu0 %v7836
        %8094 = vmatprep.subr.bf16.mxu0 %v7839
        %8095 = vmatpush1.bf16.msra.mxu0 %v7838
        %8096 = vmatprep.subr.bf16.mxu0 %v7841
        %8097 = vmatpush1.bf16.msra.mxu0 %v7840
        %8098 = vmatprep.subr.bf16.mxu0 %v7843
        %8099 = vmatpush1.bf16.msra.mxu0 %v7842
        %8100 = vmatprep.subr.bf16.mxu0 %v7845
        %8101 = vmatpush1.bf16.msra.mxu0 %v7844
        %8102 = vmatprep.subr.bf16.mxu0 %v7847
        %8103 = vmatpush1.bf16.msra.mxu0 %v7846
        %8104 = vmatprep.subr.bf16.mxu0 %v7849
        %8105 = vmatpush1.bf16.msra.mxu0 %v7848
        %8106 = vmatprep.subr.bf16.mxu0 %v7851
        %8107 = vmatpush1.bf16.msra.mxu0 %v7850
        %8108 = vmatprep.subr.bf16.mxu0 %v7853
        %8109 = vmatpush1.bf16.msra.mxu0 %v7852
        %8110 = vmatprep.subr.bf16.mxu0 %v7855
        %8111 = vmatpush1.bf16.msra.mxu0 %v7854
        %8112 = vmatprep.subr.bf16.mxu0 %v7857
        %8113 = vmatpush1.bf16.msra.mxu0 %v7856
        %8114 = vmatprep.subr.bf16.mxu0 %v7859
        %8115 = vmatpush1.bf16.msra.mxu0 %v7858
        %8116 = vmatprep.mubr.bf16.mxu0 %v7297
        %8117 = vmatmul.mubr.bf16.gmra.mrb[0].mxu0 %v7296
        %v8118 = vpop.f32.mrb[0].mxu0
        %v8119 = vadd.f32 %v7437, %v8118
        %v8120 = vpop.f32.mrb[0].mxu0
        %v8121 = vadd.f32 %v7441, %v8120
        %v8122 = vpop.f32.mrb[0].mxu0
        %v8123 = vadd.f32 %v7437, %v8122
        %v8124 = vpop.f32.mrb[0].mxu0
        %v8125 = vadd.f32 %v7441, %v8124
        %8126 = vdwg.mxu0
        %8127 = vmatprep.subr.bf16.mxu0 %v7861
        %8128 = vmatpush1.bf16.msra.mxu0 %v7860
        %8129 = vmatprep.subr.bf16.mxu0 %v7863
        %8130 = vmatpush1.bf16.msra.mxu0 %v7862
        %8131 = vmatprep.subr.bf16.mxu0 %v7865
        %8132 = vmatpush1.bf16.msra.mxu0 %v7864
        %8133 = vmatprep.subr.bf16.mxu0 %v7867
        %8134 = vmatpush1.bf16.msra.mxu0 %v7866
        %8135 = vmatprep.subr.bf16.mxu0 %v7869
        %8136 = vmatpush1.bf16.msra.mxu0 %v7868
        %8137 = vmatprep.subr.bf16.mxu0 %v7871
        %8138 = vmatpush1.bf16.msra.mxu0 %v7870
        %8139 = vmatprep.subr.bf16.mxu0 %v7873
        %8140 = vmatpush1.bf16.msra.mxu0 %v7872
        %8141 = vmatprep.subr.bf16.mxu0 %v7875
        %8142 = vmatpush1.bf16.msra.mxu0 %v7874
        %8143 = vmatprep.subr.bf16.mxu0 %v7877
        %8144 = vmatpush1.bf16.msra.mxu0 %v7876
        %8145 = vmatprep.subr.bf16.mxu0 %v7879
        %8146 = vmatpush1.bf16.msra.mxu0 %v7878
        %8147 = vmatprep.subr.bf16.mxu0 %v7881
        %8148 = vmatpush1.bf16.msra.mxu0 %v7880
        %8149 = vmatprep.subr.bf16.mxu0 %v7883
        %8150 = vmatpush1.bf16.msra.mxu0 %v7882
        %8151 = vmatprep.subr.bf16.mxu0 %v7885
        %8152 = vmatpush1.bf16.msra.mxu0 %v7884
        %8153 = vmatprep.subr.bf16.mxu0 %v7887
        %8154 = vmatpush1.bf16.msra.mxu0 %v7886
        %8155 = vmatprep.subr.bf16.mxu0 %v7889
        %8156 = vmatpush1.bf16.msra.mxu0 %v7888
        %8157 = vmatprep.subr.bf16.mxu0 %v7891
        %8158 = vmatpush1.bf16.msra.mxu0 %v7890
        %8159 = vmatprep.mubr.bf16.mxu0 %v7299
        %8160 = vmatmul.mubr.bf16.gmra.mrb[0].mxu0 %v7298
        %v8161 = vpop.f32.mrb[0].mxu0
        %v8162 = vadd.f32 %v8119, %v8161
        %v8163 = vpop.f32.mrb[0].mxu0
        %v8164 = vadd.f32 %v8121, %v8163
        %v8165 = vpop.f32.mrb[0].mxu0
        %v8166 = vadd.f32 %v8123, %v8165
        %v8167 = vpop.f32.mrb[0].mxu0
        %v8168 = vadd.f32 %v8125, %v8167
        %8169 = vdwg.mxu0
        %8170 = vmatprep.subr.bf16.mxu0 %v7893
        %8171 = vmatpush1.bf16.msra.mxu0 %v7892
        %8172 = vmatprep.subr.bf16.mxu0 %v7895
        %8173 = vmatpush1.bf16.msra.mxu0 %v7894
        %8174 = vmatprep.subr.bf16.mxu0 %v7897
        %8175 = vmatpush1.bf16.msra.mxu0 %v7896
        %8176 = vmatprep.subr.bf16.mxu0 %v7899
        %8177 = vmatpush1.bf16.msra.mxu0 %v7898
        %8178 = vmatprep.subr.bf16.mxu0 %v7901
        %8179 = vmatpush1.bf16.msra.mxu0 %v7900
        %8180 = vmatprep.subr.bf16.mxu0 %v7903
        %8181 = vmatpush1.bf16.msra.mxu0 %v7902
        %8182 = vmatprep.subr.bf16.mxu0 %v7905
        %8183 = vmatpush1.bf16.msra.mxu0 %v7904
        %8184 = vmatprep.subr.bf16.mxu0 %v7907
        %8185 = vmatpush1.bf16.msra.mxu0 %v7906
        %8186 = vmatprep.subr.bf16.mxu0 %v7909
        %8187 = vmatpush1.bf16.msra.mxu0 %v7908
        %8188 = vmatprep.subr.bf16.mxu0 %v7911
        %8189 = vmatpush1.bf16.msra.mxu0 %v7910
        %8190 = vmatprep.subr.bf16.mxu0 %v7913
        %8191 = vmatpush1.bf16.msra.mxu0 %v7912
        %8192 = vmatprep.subr.bf16.mxu0 %v7915
        %8193 = vmatpush1.bf16.msra.mxu0 %v7914
        %8194 = vmatprep.subr.bf16.mxu0 %v7917
        %8195 = vmatpush1.bf16.msra.mxu0 %v7916
        %8196 = vmatprep.subr.bf16.mxu0 %v7919
        %8197 = vmatpush1.bf16.msra.mxu0 %v7918
        %8198 = vmatprep.subr.bf16.mxu0 %v7921
        %8199 = vmatpush1.bf16.msra.mxu0 %v7920
        %8200 = vmatprep.subr.bf16.mxu0 %v7923
        %8201 = vmatpush1.bf16.msra.mxu0 %v7922
        %8202 = vmatprep.mubr.bf16.mxu0 %v7301
        %8203 = vmatmul.mubr.bf16.gmra.mrb[0].mxu0 %v7300
        %v8204 = vpop.f32.mrb[0].mxu0
        %v8205 = vadd.f32 %v8162, %v8204
        %v8206 = vpop.f32.mrb[0].mxu0
        %v8207 = vadd.f32 %v8164, %v8206
        %v8208 = vpop.f32.mrb[0].mxu0
        %v8209 = vadd.f32 %v8166, %v8208
        %v8210 = vpop.f32.mrb[0].mxu0
        %v8211 = vadd.f32 %v8168, %v8210
        %8212 = vdwg.mxu0
        %8213 = vmatprep.subr.bf16.mxu0 %v7925
        %8214 = vmatpush1.bf16.msra.mxu0 %v7924
        %8215 = vmatprep.subr.bf16.mxu0 %v7927
        %8216 = vmatpush1.bf16.msra.mxu0 %v7926
        %8217 = vmatprep.subr.bf16.mxu0 %v7929
        %8218 = vmatpush1.bf16.msra.mxu0 %v7928
        %8219 = vmatprep.subr.bf16.mxu0 %v7931
        %8220 = vmatpush1.bf16.msra.mxu0 %v7930
        %8221 = vmatprep.subr.bf16.mxu0 %v7933
        %8222 = vmatpush1.bf16.msra.mxu0 %v7932
        %8223 = vmatprep.subr.bf16.mxu0 %v7935
        %8224 = vmatpush1.bf16.msra.mxu0 %v7934
        %8225 = vmatprep.subr.bf16.mxu0 %v7937
        %8226 = vmatpush1.bf16.msra.mxu0 %v7936
        %8227 = vmatprep.subr.bf16.mxu0 %v7939
        %8228 = vmatpush1.bf16.msra.mxu0 %v7938
        %8229 = vmatprep.subr.bf16.mxu0 %v7941
        %8230 = vmatpush1.bf16.msra.mxu0 %v7940
        %8231 = vmatprep.subr.bf16.mxu0 %v7943
        %8232 = vmatpush1.bf16.msra.mxu0 %v7942
        %8233 = vmatprep.subr.bf16.mxu0 %v7945
        %8234 = vmatpush1.bf16.msra.mxu0 %v7944
        %8235 = vmatprep.subr.bf16.mxu0 %v7947
        %8236 = vmatpush1.bf16.msra.mxu0 %v7946
        %8237 = vmatprep.subr.bf16.mxu0 %v7949
        %8238 = vmatpush1.bf16.msra.mxu0 %v7948
        %8239 = vmatprep.subr.bf16.mxu0 %v7951
        %8240 = vmatpush1.bf16.msra.mxu0 %v7950
        %8241 = vmatprep.subr.bf16.mxu0 %v7953
        %8242 = vmatpush1.bf16.msra.mxu0 %v7952
        %8243 = vmatprep.subr.bf16.mxu0 %v7955
        %8244 = vmatpush1.bf16.msra.mxu0 %v7954
        %8245 = vmatprep.mubr.bf16.mxu0 %v7303
        %8246 = vmatmul.mubr.bf16.gmra.mrb[0].mxu0 %v7302
        %v8247 = vpop.f32.mrb[0].mxu0
        %v8248 = vadd.f32 %v8205, %v8247
        %v8249 = vpop.f32.mrb[0].mxu0
        %v8250 = vadd.f32 %v8207, %v8249
        %v8251 = vpop.f32.mrb[0].mxu0
        %v8252 = vadd.f32 %v8209, %v8251
        %v8253 = vpop.f32.mrb[0].mxu0
        %v8254 = vadd.f32 %v8211, %v8253
        %8255 = vdwg.mxu0
        %v8256 = vadd.f32 %v5812, %v8248
        %v8257 = vadd.f32 %v5813, %v8250
        %v8258 = vadd.f32 %v5814, %v8252
        %v8259 = vadd.f32 %v5815, %v8254
        %8260 = vst [vmem:[#allocation2] sm:$0xff] %v8256
        %8261 = vst [vmem:[#allocation2 + $0x8] sm:$0xff] %v8257
        %8262 = vst [vmem:[#allocation2 + $0x10] sm:$0xff] %v8258
        %8263 = vst [vmem:[#allocation2 + $0x18] sm:$0xff] %v8259
        %p8264 = scmp.eq.s32.totalorder %s49, 7
        // Predicated region
        $region157: #{vit_encoder_forward.1} parent=95 // pred_check
          %p8265 = pneg %p8264
        $region158: #{vit_encoder_forward.1} parent=95 // pred_check_branch
          %8267 = sbr.rel (%p8265) target = $region160
        $region159: #{vit_encoder_forward.1} parent=95 // pred_region
          %v8268 = vld [vmem:[#allocation18] sm:$0x3]
          %v8269 = vld [vmem:[#allocation20] sm:$0x3]
          %v8270 = vadd.f32 %v8256, %v8257
          %8271 = vadd.xlane.f32.xlu0 %v8270
          %v8272 = vpop.xlane.xlu0 %8271
          %v8273 = vadd.f32 %v8258, %v8259
          %8274 = vadd.xlane.f32.xlu0 %v8273
          %v8275 = vpop.xlane.xlu0 %8274
          %v8276 = vmul.f32 %v8272, %v1053
          %v8277 = vmul.f32 %v8275, %v1053
          %v8278 = vsub.f32 %v8256, %v8276
          %v8279 = vsub.f32 %v8257, %v8276
          %v8280 = vsub.f32 %v8258, %v8277
          %v8281 = vsub.f32 %v8259, %v8277
          %v8282 = vmul.f32 %v8278, %v8278
          %v8283 = vmul.f32 %v8279, %v8279
          %v8284 = vmul.f32 %v8280, %v8280
          %v8285 = vmul.f32 %v8281, %v8281
          %v8286 = vadd.f32 %v8282, %v8283
          %8287 = vadd.xlane.f32.xlu0 %v8286
          %v8288 = vpop.xlane.xlu0 %8287
          %v8289 = vadd.f32 %v8284, %v8285
          %8290 = vadd.xlane.f32.xlu0 %v8289
          %v8291 = vpop.xlane.xlu0 %8290
          %v8292 = vmul.f32 %v8288, %v1053
          %v8293 = vmul.f32 %v8291, %v1053
          %v8294 = vadd.f32 %v8292, 1e-06
          %v8295 = vadd.f32 %v8293, 1e-06
          %v8296 = vrsqrt.pop %v8294
          %v8297 = vrsqrt.pop %v8295
          %v8298 = vmul.f32 %v8278, %v8296
          %v8299 = vmul.f32 %v8279, %v8296
          %v8300 = vmul.f32 %v8280, %v8297
          %v8301 = vmul.f32 %v8281, %v8297
          %v8303 = vlaneseq
          %v8304 = vshrl.u32 %v8303, 7
          %v8305 = vsub.s32 0, %v8304
          %v8306 = vrot.slane %v8268, %v8305
          %v8307 = vlaneseq
          %v8308 = vshrl.u32 %v8307, 7
          %v8309 = vsub.s32 1, %v8308
          %v8310 = vrot.slane %v8268, %v8309
          %v8313 = vmul.f32 %v8298, %v8306
          %v8314 = vmul.f32 %v8299, %v8310
          %v8315 = vmul.f32 %v8300, %v8306
          %v8316 = vmul.f32 %v8301, %v8310
          %v8318 = vlaneseq
          %v8319 = vshrl.u32 %v8318, 7
          %v8320 = vsub.s32 0, %v8319
          %v8321 = vrot.slane %v8269, %v8320
          %v8322 = vlaneseq
          %v8323 = vshrl.u32 %v8322, 7
          %v8324 = vsub.s32 1, %v8323
          %v8325 = vrot.slane %v8269, %v8324
          %v8328 = vadd.f32 %v8313, %v8321
          %v8329 = vadd.f32 %v8314, %v8325
          %v8330 = vadd.f32 %v8315, %v8321
          %v8331 = vadd.f32 %v8316, %v8325
          %v8332 = vld [vmem:[%s15] sm:$0xff]
          %v8333 = vld [vmem:[%s15 + $0x8] sm:$0xff]
          %v8334 = vld [vmem:[%s15 + $0x10] sm:$0xff]
          %v8335 = vld [vmem:[%s15 + $0x18] sm:$0xff]
          %v8336 = vld [vmem:[%s15 + $0x20] sm:$0xff]
          %v8337 = vld [vmem:[%s15 + $0x28] sm:$0xff]
          %v8338 = vld [vmem:[%s15 + $0x30] sm:$0xff]
          %v8339 = vld [vmem:[%s15 + $0x38] sm:$0xff]
          %v8340 = vld [vmem:[%s15 + $0x40] sm:$0xff]
          %v8341 = vld [vmem:[%s15 + $0x48] sm:$0xff]
          %v8342 = vld [vmem:[%s15 + $0x50] sm:$0xff]
          %v8343 = vld [vmem:[%s15 + $0x58] sm:$0xff]
          %v8344 = vld [vmem:[%s15 + $0x60] sm:$0xff]
          %v8345 = vld [vmem:[%s15 + $0x68] sm:$0xff]
          %v8346 = vld [vmem:[%s15 + $0x70] sm:$0xff]
          %v8347 = vld [vmem:[%s15 + $0x78] sm:$0xff]
          %v8348 = vld [vmem:[%s15 + $0x80] sm:$0xff]
          %v8349 = vld [vmem:[%s15 + $0x88] sm:$0xff]
          %v8350 = vld [vmem:[%s15 + $0x90] sm:$0xff]
          %v8351 = vld [vmem:[%s15 + $0x98] sm:$0xff]
          %v8352 = vld [vmem:[%s15 + $0xa0] sm:$0xff]
          %v8353 = vld [vmem:[%s15 + $0xa8] sm:$0xff]
          %v8354 = vld [vmem:[%s15 + $0xb0] sm:$0xff]
          %v8355 = vld [vmem:[%s15 + $0xb8] sm:$0xff]
          %v8356 = vld [vmem:[%s15 + $0xc0] sm:$0xff]
          %v8357 = vld [vmem:[%s15 + $0xc8] sm:$0xff]
          %v8358 = vld [vmem:[%s15 + $0xd0] sm:$0xff]
          %v8359 = vld [vmem:[%s15 + $0xd8] sm:$0xff]
          %v8360 = vld [vmem:[%s15 + $0xe0] sm:$0xff]
          %v8361 = vld [vmem:[%s15 + $0xe8] sm:$0xff]
          %v8362 = vld [vmem:[%s15 + $0xf0] sm:$0xff]
          %v8363 = vld [vmem:[%s15 + $0xf8] sm:$0xff]
          %s8364 = scalar_lea.vmem %s15, 256
          %v8365 = vld [vmem:[%s8364] sm:$0xff]
          %v8366 = vld [vmem:[%s8364 + $0x8] sm:$0xff]
          %v8367 = vld [vmem:[%s8364 + $0x10] sm:$0xff]
          %v8368 = vld [vmem:[%s8364 + $0x18] sm:$0xff]
          %v8369 = vld [vmem:[%s8364 + $0x20] sm:$0xff]
          %v8370 = vld [vmem:[%s8364 + $0x28] sm:$0xff]
          %v8371 = vld [vmem:[%s8364 + $0x30] sm:$0xff]
          %v8372 = vld [vmem:[%s8364 + $0x38] sm:$0xff]
          %v8373 = vld [vmem:[%s8364 + $0x40] sm:$0xff]
          %v8374 = vld [vmem:[%s8364 + $0x48] sm:$0xff]
          %v8375 = vld [vmem:[%s8364 + $0x50] sm:$0xff]
          %v8376 = vld [vmem:[%s8364 + $0x58] sm:$0xff]
          %v8377 = vld [vmem:[%s8364 + $0x60] sm:$0xff]
          %v8378 = vld [vmem:[%s8364 + $0x68] sm:$0xff]
          %v8379 = vld [vmem:[%s8364 + $0x70] sm:$0xff]
          %v8380 = vld [vmem:[%s8364 + $0x78] sm:$0xff]
          %v8381 = vld [vmem:[%s8364 + $0x80] sm:$0xff]
          %v8382 = vld [vmem:[%s8364 + $0x88] sm:$0xff]
          %v8383 = vld [vmem:[%s8364 + $0x90] sm:$0xff]
          %v8384 = vld [vmem:[%s8364 + $0x98] sm:$0xff]
          %v8385 = vld [vmem:[%s8364 + $0xa0] sm:$0xff]
          %v8386 = vld [vmem:[%s8364 + $0xa8] sm:$0xff]
          %v8387 = vld [vmem:[%s8364 + $0xb0] sm:$0xff]
          %v8388 = vld [vmem:[%s8364 + $0xb8] sm:$0xff]
          %v8389 = vld [vmem:[%s8364 + $0xc0] sm:$0xff]
          %v8390 = vld [vmem:[%s8364 + $0xc8] sm:$0xff]
          %v8391 = vld [vmem:[%s8364 + $0xd0] sm:$0xff]
          %v8392 = vld [vmem:[%s8364 + $0xd8] sm:$0xff]
          %v8393 = vld [vmem:[%s8364 + $0xe0] sm:$0xff]
          %v8394 = vld [vmem:[%s8364 + $0xe8] sm:$0xff]
          %v8395 = vld [vmem:[%s8364 + $0xf0] sm:$0xff]
          %v8396 = vld [vmem:[%s8364 + $0xf8] sm:$0xff]
          %v8399 = vrot.slane %v8328, 4
          %v8400 = vrot.slane %v8329, 4
          %8403 = vmatprep.subr.mxu0 0.0
          %8404 = vmatpush1.msra.mxu0 %v8365
          %8405 = vmatprep.subr.mxu0 0.0
          %8406 = vmatpush1.msra.mxu0 %v8366
          %8407 = vmatprep.subr.mxu0 0.0
          %8408 = vmatpush1.msra.mxu0 %v8367
          %8409 = vmatprep.subr.mxu0 0.0
          %8410 = vmatpush1.msra.mxu0 %v8368
          %8411 = vmatprep.subr.mxu0 0.0
          %8412 = vmatpush1.msra.mxu0 %v8369
          %8413 = vmatprep.subr.mxu0 0.0
          %8414 = vmatpush1.msra.mxu0 %v8370
          %8415 = vmatprep.subr.mxu0 0.0
          %8416 = vmatpush1.msra.mxu0 %v8371
          %8417 = vmatprep.subr.mxu0 0.0
          %8418 = vmatpush1.msra.mxu0 %v8372
          %8419 = vmatprep.subr.mxu0 0.0
          %8420 = vmatpush1.msra.mxu0 %v8373
          %8421 = vmatprep.subr.mxu0 0.0
          %8422 = vmatpush1.msra.mxu0 %v8374
          %8423 = vmatprep.subr.mxu0 0.0
          %8424 = vmatpush1.msra.mxu0 %v8375
          %8425 = vmatprep.subr.mxu0 0.0
          %8426 = vmatpush1.msra.mxu0 %v8376
          %8427 = vmatprep.subr.mxu0 0.0
          %8428 = vmatpush1.msra.mxu0 %v8377
          %8429 = vmatprep.subr.mxu0 0.0
          %8430 = vmatpush1.msra.mxu0 %v8378
          %8431 = vmatprep.subr.mxu0 0.0
          %8432 = vmatpush1.msra.mxu0 %v8379
          %8433 = vmatprep.subr.mxu0 0.0
          %8434 = vmatpush1.msra.mxu0 %v8380
          %8435 = vmatprep.subr.mxu0 0.0
          %8436 = vmatpush1.msra.mxu0 %v8381
          %8437 = vmatprep.subr.mxu0 0.0
          %8438 = vmatpush1.msra.mxu0 %v8382
          %8439 = vmatprep.subr.mxu0 0.0
          %8440 = vmatpush1.msra.mxu0 %v8383
          %8441 = vmatprep.subr.mxu0 0.0
          %8442 = vmatpush1.msra.mxu0 %v8384
          %8443 = vmatprep.subr.mxu0 0.0
          %8444 = vmatpush1.msra.mxu0 %v8385
          %8445 = vmatprep.subr.mxu0 0.0
          %8446 = vmatpush1.msra.mxu0 %v8386
          %8447 = vmatprep.subr.mxu0 0.0
          %8448 = vmatpush1.msra.mxu0 %v8387
          %8449 = vmatprep.subr.mxu0 0.0
          %8450 = vmatpush1.msra.mxu0 %v8388
          %8451 = vmatprep.subr.mxu0 0.0
          %8452 = vmatpush1.msra.mxu0 %v8389
          %8453 = vmatprep.subr.mxu0 0.0
          %8454 = vmatpush1.msra.mxu0 %v8390
          %8455 = vmatprep.subr.mxu0 0.0
          %8456 = vmatpush1.msra.mxu0 %v8391
          %8457 = vmatprep.subr.mxu0 0.0
          %8458 = vmatpush1.msra.mxu0 %v8392
          %8459 = vmatprep.subr.mxu0 0.0
          %8460 = vmatpush1.msra.mxu0 %v8393
          %8461 = vmatprep.subr.mxu0 0.0
          %8462 = vmatpush1.msra.mxu0 %v8394
          %8463 = vmatprep.subr.mxu0 0.0
          %8464 = vmatpush1.msra.mxu0 %v8395
          %8465 = vmatprep.subr.mxu0 0.0
          %8466 = vmatpush1.msra.mxu0 %v8396
          %8467 = vmatprep.mubr.f32.mxu0 %v8400
          %8468 = vmatmul.mubr.f32.gmra.mrb[0].mxu0 %v8399
          %v8469 = vpop.f32.mrb[0].mxu0
          %v8470 = vadd.f32 0.0, %v8469
          %v8471 = vpop.f32.mrb[0].mxu0
          %8472 = vdwg.mxu0
          %8473 = vmatprep.subr.mxu0 0.0
          %8474 = vmatpush1.msra.mxu0 %v8332
          %8475 = vmatprep.subr.mxu0 0.0
          %8476 = vmatpush1.msra.mxu0 %v8333
          %8477 = vmatprep.subr.mxu0 0.0
          %8478 = vmatpush1.msra.mxu0 %v8334
          %8479 = vmatprep.subr.mxu0 0.0
          %8480 = vmatpush1.msra.mxu0 %v8335
          %8481 = vmatprep.subr.mxu0 0.0
          %8482 = vmatpush1.msra.mxu0 %v8336
          %8483 = vmatprep.subr.mxu0 0.0
          %8484 = vmatpush1.msra.mxu0 %v8337
          %8485 = vmatprep.subr.mxu0 0.0
          %8486 = vmatpush1.msra.mxu0 %v8338
          %8487 = vmatprep.subr.mxu0 0.0
          %8488 = vmatpush1.msra.mxu0 %v8339
          %8489 = vmatprep.subr.mxu0 0.0
          %8490 = vmatpush1.msra.mxu0 %v8340
          %8491 = vmatprep.subr.mxu0 0.0
          %8492 = vmatpush1.msra.mxu0 %v8341
          %8493 = vmatprep.subr.mxu0 0.0
          %8494 = vmatpush1.msra.mxu0 %v8342
          %8495 = vmatprep.subr.mxu0 0.0
          %8496 = vmatpush1.msra.mxu0 %v8343
          %8497 = vmatprep.subr.mxu0 0.0
          %8498 = vmatpush1.msra.mxu0 %v8344
          %8499 = vmatprep.subr.mxu0 0.0
          %8500 = vmatpush1.msra.mxu0 %v8345
          %8501 = vmatprep.subr.mxu0 0.0
          %8502 = vmatpush1.msra.mxu0 %v8346
          %8503 = vmatprep.subr.mxu0 0.0
          %8504 = vmatpush1.msra.mxu0 %v8347
          %8505 = vmatprep.subr.mxu0 0.0
          %8506 = vmatpush1.msra.mxu0 %v8348
          %8507 = vmatprep.subr.mxu0 0.0
          %8508 = vmatpush1.msra.mxu0 %v8349
          %8509 = vmatprep.subr.mxu0 0.0
          %8510 = vmatpush1.msra.mxu0 %v8350
          %8511 = vmatprep.subr.mxu0 0.0
          %8512 = vmatpush1.msra.mxu0 %v8351
          %8513 = vmatprep.subr.mxu0 0.0
          %8514 = vmatpush1.msra.mxu0 %v8352
          %8515 = vmatprep.subr.mxu0 0.0
          %8516 = vmatpush1.msra.mxu0 %v8353
          %8517 = vmatprep.subr.mxu0 0.0
          %8518 = vmatpush1.msra.mxu0 %v8354
          %8519 = vmatprep.subr.mxu0 0.0
          %8520 = vmatpush1.msra.mxu0 %v8355
          %8521 = vmatprep.subr.mxu0 0.0
          %8522 = vmatpush1.msra.mxu0 %v8356
          %8523 = vmatprep.subr.mxu0 0.0
          %8524 = vmatpush1.msra.mxu0 %v8357
          %8525 = vmatprep.subr.mxu0 0.0
          %8526 = vmatpush1.msra.mxu0 %v8358
          %8527 = vmatprep.subr.mxu0 0.0
          %8528 = vmatpush1.msra.mxu0 %v8359
          %8529 = vmatprep.subr.mxu0 0.0
          %8530 = vmatpush1.msra.mxu0 %v8360
          %8531 = vmatprep.subr.mxu0 0.0
          %8532 = vmatpush1.msra.mxu0 %v8361
          %8533 = vmatprep.subr.mxu0 0.0
          %8534 = vmatpush1.msra.mxu0 %v8362
          %8535 = vmatprep.subr.mxu0 0.0
          %8536 = vmatpush1.msra.mxu0 %v8363
          %8537 = vmatprep.mubr.f32.mxu0 %v8329
          %8538 = vmatmul.mubr.f32.gmra.mrb[0].mxu0 %v8328
          %v8539 = vpop.f32.mrb[0].mxu0
          %v8540 = vadd.f32 %v8470, %v8539
          %v8541 = vpop.f32.mrb[0].mxu0
          %8542 = vdwg.mxu0
          %s8543 = scalar_lea.vmem %s15, 512
          %v8544 = vld [vmem:[%s8543] sm:$0xff]
          %v8545 = vld [vmem:[%s8543 + $0x8] sm:$0xff]
          %v8546 = vld [vmem:[%s8543 + $0x10] sm:$0xff]
          %v8547 = vld [vmem:[%s8543 + $0x18] sm:$0xff]
          %v8548 = vld [vmem:[%s8543 + $0x20] sm:$0xff]
          %v8549 = vld [vmem:[%s8543 + $0x28] sm:$0xff]
          %v8550 = vld [vmem:[%s8543 + $0x30] sm:$0xff]
          %v8551 = vld [vmem:[%s8543 + $0x38] sm:$0xff]
          %v8552 = vld [vmem:[%s8543 + $0x40] sm:$0xff]
          %v8553 = vld [vmem:[%s8543 + $0x48] sm:$0xff]
          %v8554 = vld [vmem:[%s8543 + $0x50] sm:$0xff]
          %v8555 = vld [vmem:[%s8543 + $0x58] sm:$0xff]
          %v8556 = vld [vmem:[%s8543 + $0x60] sm:$0xff]
          %v8557 = vld [vmem:[%s8543 + $0x68] sm:$0xff]
          %v8558 = vld [vmem:[%s8543 + $0x70] sm:$0xff]
          %v8559 = vld [vmem:[%s8543 + $0x78] sm:$0xff]
          %v8560 = vld [vmem:[%s8543 + $0x80] sm:$0xff]
          %v8561 = vld [vmem:[%s8543 + $0x88] sm:$0xff]
          %v8562 = vld [vmem:[%s8543 + $0x90] sm:$0xff]
          %v8563 = vld [vmem:[%s8543 + $0x98] sm:$0xff]
          %v8564 = vld [vmem:[%s8543 + $0xa0] sm:$0xff]
          %v8565 = vld [vmem:[%s8543 + $0xa8] sm:$0xff]
          %v8566 = vld [vmem:[%s8543 + $0xb0] sm:$0xff]
          %v8567 = vld [vmem:[%s8543 + $0xb8] sm:$0xff]
          %v8568 = vld [vmem:[%s8543 + $0xc0] sm:$0xff]
          %v8569 = vld [vmem:[%s8543 + $0xc8] sm:$0xff]
          %v8570 = vld [vmem:[%s8543 + $0xd0] sm:$0xff]
          %v8571 = vld [vmem:[%s8543 + $0xd8] sm:$0xff]
          %v8572 = vld [vmem:[%s8543 + $0xe0] sm:$0xff]
          %v8573 = vld [vmem:[%s8543 + $0xe8] sm:$0xff]
          %v8574 = vld [vmem:[%s8543 + $0xf0] sm:$0xff]
          %v8575 = vld [vmem:[%s8543 + $0xf8] sm:$0xff]
          %8576 = vmatprep.subr.mxu0 0.0
          %8577 = vmatpush1.msra.mxu0 %v8544
          %8578 = vmatprep.subr.mxu0 0.0
          %8579 = vmatpush1.msra.mxu0 %v8545
          %8580 = vmatprep.subr.mxu0 0.0
          %8581 = vmatpush1.msra.mxu0 %v8546
          %8582 = vmatprep.subr.mxu0 0.0
          %8583 = vmatpush1.msra.mxu0 %v8547
          %8584 = vmatprep.subr.mxu0 0.0
          %8585 = vmatpush1.msra.mxu0 %v8548
          %8586 = vmatprep.subr.mxu0 0.0
          %8587 = vmatpush1.msra.mxu0 %v8549
          %8588 = vmatprep.subr.mxu0 0.0
          %8589 = vmatpush1.msra.mxu0 %v8550
          %8590 = vmatprep.subr.mxu0 0.0
          %8591 = vmatpush1.msra.mxu0 %v8551
          %8592 = vmatprep.subr.mxu0 0.0
          %8593 = vmatpush1.msra.mxu0 %v8552
          %8594 = vmatprep.subr.mxu0 0.0
          %8595 = vmatpush1.msra.mxu0 %v8553
          %8596 = vmatprep.subr.mxu0 0.0
          %8597 = vmatpush1.msra.mxu0 %v8554
          %8598 = vmatprep.subr.mxu0 0.0
          %8599 = vmatpush1.msra.mxu0 %v8555
          %8600 = vmatprep.subr.mxu0 0.0
          %8601 = vmatpush1.msra.mxu0 %v8556
          %8602 = vmatprep.subr.mxu0 0.0
          %8603 = vmatpush1.msra.mxu0 %v8557
          %8604 = vmatprep.subr.mxu0 0.0
          %8605 = vmatpush1.msra.mxu0 %v8558
          %8606 = vmatprep.subr.mxu0 0.0
          %8607 = vmatpush1.msra.mxu0 %v8559
          %8608 = vmatprep.subr.mxu0 0.0
          %8609 = vmatpush1.msra.mxu0 %v8560
          %8610 = vmatprep.subr.mxu0 0.0
          %8611 = vmatpush1.msra.mxu0 %v8561
          %8612 = vmatprep.subr.mxu0 0.0
          %8613 = vmatpush1.msra.mxu0 %v8562
          %8614 = vmatprep.subr.mxu0 0.0
          %8615 = vmatpush1.msra.mxu0 %v8563
          %8616 = vmatprep.subr.mxu0 0.0
          %8617 = vmatpush1.msra.mxu0 %v8564
          %8618 = vmatprep.subr.mxu0 0.0
          %8619 = vmatpush1.msra.mxu0 %v8565
          %8620 = vmatprep.subr.mxu0 0.0
          %8621 = vmatpush1.msra.mxu0 %v8566
          %8622 = vmatprep.subr.mxu0 0.0
          %8623 = vmatpush1.msra.mxu0 %v8567
          %8624 = vmatprep.subr.mxu0 0.0
          %8625 = vmatpush1.msra.mxu0 %v8568
          %8626 = vmatprep.subr.mxu0 0.0
          %8627 = vmatpush1.msra.mxu0 %v8569
          %8628 = vmatprep.subr.mxu0 0.0
          %8629 = vmatpush1.msra.mxu0 %v8570
          %8630 = vmatprep.subr.mxu0 0.0
          %8631 = vmatpush1.msra.mxu0 %v8571
          %8632 = vmatprep.subr.mxu0 0.0
          %8633 = vmatpush1.msra.mxu0 %v8572
          %8634 = vmatprep.subr.mxu0 0.0
          %8635 = vmatpush1.msra.mxu0 %v8573
          %8636 = vmatprep.subr.mxu0 0.0
          %8637 = vmatpush1.msra.mxu0 %v8574
          %8638 = vmatprep.subr.mxu0 0.0
          %8639 = vmatpush1.msra.mxu0 %v8575
          %8640 = vmatprep.mubr.f32.mxu0 %v8331
          %8641 = vmatmul.mubr.f32.gmra.mrb[0].mxu0 %v8330
          %v8642 = vpop.f32.mrb[0].mxu0
          %v8643 = vadd.f32 0.0, %v8642
          %v8644 = vpop.f32.mrb[0].mxu0
          %8645 = vdwg.mxu0
          %v8646 = vadd.f32 %v8540, %v8643
          %s8647 = scalar_lea.vmem %s15, 768
          %v8648 = vld [vmem:[%s8647] sm:$0xff]
          %v8649 = vld [vmem:[%s8647 + $0x8] sm:$0xff]
          %v8650 = vld [vmem:[%s8647 + $0x10] sm:$0xff]
          %v8651 = vld [vmem:[%s8647 + $0x18] sm:$0xff]
          %v8652 = vld [vmem:[%s8647 + $0x20] sm:$0xff]
          %v8653 = vld [vmem:[%s8647 + $0x28] sm:$0xff]
          %v8654 = vld [vmem:[%s8647 + $0x30] sm:$0xff]
          %v8655 = vld [vmem:[%s8647 + $0x38] sm:$0xff]
          %v8656 = vld [vmem:[%s8647 + $0x40] sm:$0xff]
          %v8657 = vld [vmem:[%s8647 + $0x48] sm:$0xff]
          %v8658 = vld [vmem:[%s8647 + $0x50] sm:$0xff]
          %v8659 = vld [vmem:[%s8647 + $0x58] sm:$0xff]
          %v8660 = vld [vmem:[%s8647 + $0x60] sm:$0xff]
          %v8661 = vld [vmem:[%s8647 + $0x68] sm:$0xff]
          %v8662 = vld [vmem:[%s8647 + $0x70] sm:$0xff]
          %v8663 = vld [vmem:[%s8647 + $0x78] sm:$0xff]
          %v8664 = vld [vmem:[%s8647 + $0x80] sm:$0xff]
          %v8665 = vld [vmem:[%s8647 + $0x88] sm:$0xff]
          %v8666 = vld [vmem:[%s8647 + $0x90] sm:$0xff]
          %v8667 = vld [vmem:[%s8647 + $0x98] sm:$0xff]
          %v8668 = vld [vmem:[%s8647 + $0xa0] sm:$0xff]
          %v8669 = vld [vmem:[%s8647 + $0xa8] sm:$0xff]
          %v8670 = vld [vmem:[%s8647 + $0xb0] sm:$0xff]
          %v8671 = vld [vmem:[%s8647 + $0xb8] sm:$0xff]
          %v8672 = vld [vmem:[%s8647 + $0xc0] sm:$0xff]
          %v8673 = vld [vmem:[%s8647 + $0xc8] sm:$0xff]
          %v8674 = vld [vmem:[%s8647 + $0xd0] sm:$0xff]
          %v8675 = vld [vmem:[%s8647 + $0xd8] sm:$0xff]
          %v8676 = vld [vmem:[%s8647 + $0xe0] sm:$0xff]
          %v8677 = vld [vmem:[%s8647 + $0xe8] sm:$0xff]
          %v8678 = vld [vmem:[%s8647 + $0xf0] sm:$0xff]
          %v8679 = vld [vmem:[%s8647 + $0xf8] sm:$0xff]
          %v8682 = vrot.slane %v8330, 4
          %v8683 = vrot.slane %v8331, 4
          %8686 = vmatprep.subr.mxu0 0.0
          %8687 = vmatpush1.msra.mxu0 %v8648
          %8688 = vmatprep.subr.mxu0 0.0
          %8689 = vmatpush1.msra.mxu0 %v8649
          %8690 = vmatprep.subr.mxu0 0.0
          %8691 = vmatpush1.msra.mxu0 %v8650
          %8692 = vmatprep.subr.mxu0 0.0
          %8693 = vmatpush1.msra.mxu0 %v8651
          %8694 = vmatprep.subr.mxu0 0.0
          %8695 = vmatpush1.msra.mxu0 %v8652
          %8696 = vmatprep.subr.mxu0 0.0
          %8697 = vmatpush1.msra.mxu0 %v8653
          %8698 = vmatprep.subr.mxu0 0.0
          %8699 = vmatpush1.msra.mxu0 %v8654
          %8700 = vmatprep.subr.mxu0 0.0
          %8701 = vmatpush1.msra.mxu0 %v8655
          %8702 = vmatprep.subr.mxu0 0.0
          %8703 = vmatpush1.msra.mxu0 %v8656
          %8704 = vmatprep.subr.mxu0 0.0
          %8705 = vmatpush1.msra.mxu0 %v8657
          %8706 = vmatprep.subr.mxu0 0.0
          %8707 = vmatpush1.msra.mxu0 %v8658
          %8708 = vmatprep.subr.mxu0 0.0
          %8709 = vmatpush1.msra.mxu0 %v8659
          %8710 = vmatprep.subr.mxu0 0.0
          %8711 = vmatpush1.msra.mxu0 %v8660
          %8712 = vmatprep.subr.mxu0 0.0
          %8713 = vmatpush1.msra.mxu0 %v8661
          %8714 = vmatprep.subr.mxu0 0.0
          %8715 = vmatpush1.msra.mxu0 %v8662
          %8716 = vmatprep.subr.mxu0 0.0
          %8717 = vmatpush1.msra.mxu0 %v8663
          %8718 = vmatprep.subr.mxu0 0.0
          %8719 = vmatpush1.msra.mxu0 %v8664
          %8720 = vmatprep.subr.mxu0 0.0
          %8721 = vmatpush1.msra.mxu0 %v8665
          %8722 = vmatprep.subr.mxu0 0.0
          %8723 = vmatpush1.msra.mxu0 %v8666
          %8724 = vmatprep.subr.mxu0 0.0
          %8725 = vmatpush1.msra.mxu0 %v8667
          %8726 = vmatprep.subr.mxu0 0.0
          %8727 = vmatpush1.msra.mxu0 %v8668
          %8728 = vmatprep.subr.mxu0 0.0
          %8729 = vmatpush1.msra.mxu0 %v8669
          %8730 = vmatprep.subr.mxu0 0.0
          %8731 = vmatpush1.msra.mxu0 %v8670
          %8732 = vmatprep.subr.mxu0 0.0
          %8733 = vmatpush1.msra.mxu0 %v8671
          %8734 = vmatprep.subr.mxu0 0.0
          %8735 = vmatpush1.msra.mxu0 %v8672
          %8736 = vmatprep.subr.mxu0 0.0
          %8737 = vmatpush1.msra.mxu0 %v8673
          %8738 = vmatprep.subr.mxu0 0.0
          %8739 = vmatpush1.msra.mxu0 %v8674
          %8740 = vmatprep.subr.mxu0 0.0
          %8741 = vmatpush1.msra.mxu0 %v8675
          %8742 = vmatprep.subr.mxu0 0.0
          %8743 = vmatpush1.msra.mxu0 %v8676
          %8744 = vmatprep.subr.mxu0 0.0
          %8745 = vmatpush1.msra.mxu0 %v8677
          %8746 = vmatprep.subr.mxu0 0.0
          %8747 = vmatpush1.msra.mxu0 %v8678
          %8748 = vmatprep.subr.mxu0 0.0
          %8749 = vmatpush1.msra.mxu0 %v8679
          %8750 = vmatprep.mubr.f32.mxu0 %v8683
          %8751 = vmatmul.mubr.f32.gmra.mrb[0].mxu0 %v8682
          %v8752 = vpop.f32.mrb[0].mxu0
          %v8753 = vadd.f32 0.0, %v8752
          %v8754 = vpop.f32.mrb[0].mxu0
          %8755 = vdwg.mxu0
          %v8756 = vadd.f32 %v8646, %v8753
          %v8757 = vld [vmem:[#allocation21] sm:$0x1]
          %v8759 = vlaneseq
          %v8760 = vshrl.u32 %v8759, 7
          %v8761 = vsub.s32 0, %v8760
          %v8762 = vrot.slane %v8757, %v8761
          %v8764 = vadd.f32 %v8756, %v8762
          %vm8765 = vcmask 27648
          %v8766 = vsel %vm8765, %v8764, 0.0
          %v8767 = vrot.slane %v8766, 4
          %v8768 = vadd.f32 %v8766, %v8767
          %v8769 = vrot.slane %v8768, 2
          %v8770 = vadd.f32 %v8768, %v8769
          %v8771 = vrot.slane %v8770, 1
          %v8772 = vadd.f32 %v8770, %v8771
          %v8773 = vrcp.pop 4.0
          %v8774 = vmul.f32 %v8772, %v8773
          %v8775 = vsub.f32 %v8764, %v8774
          %v8776 = vmul.f32 %v8775, %v8775
          %v8777 = vsel %vm8765, %v8776, 0.0
          %v8778 = vrot.slane %v8777, 4
          %v8779 = vadd.f32 %v8777, %v8778
          %v8780 = vrot.slane %v8779, 2
          %v8781 = vadd.f32 %v8779, %v8780
          %v8782 = vrot.slane %v8781, 1
          %v8783 = vadd.f32 %v8781, %v8782
          %v8784 = vmul.f32 %v8783, %v8773
          %v8785 = vadd.f32 %v8784, 1e-05
          %v8786 = vrsqrt.pop %v8785
          %v8787 = vmul.f32 %v8775, %v8786
          %v8788 = vld [vmem:[#allocation23] sm:$0x1]
          %v8790 = vlaneseq
          %v8791 = vshrl.u32 %v8790, 7
          %v8792 = vsub.s32 0, %v8791
          %v8793 = vrot.slane %v8788, %v8792
          %v8795 = vmul.f32 %v8787, %v8793
          %v8796 = vld [vmem:[#allocation24] sm:$0x1]
          %v8798 = vlaneseq
          %v8799 = vshrl.u32 %v8798, 7
          %v8800 = vsub.s32 0, %v8799
          %v8801 = vrot.slane %v8796, %v8800
          %v8803 = vadd.f32 %v8795, %v8801
          %v8804 = vmul.f32 %v8803, 0.5
          %v8805 = vmul.f32 %v8803, 0.70710677
          %vm8806 = vcmp.ge.f32.partialorder %v8805, 0.0
          %v8807 = vsel %vm8806, 1.0, -1.0
          %v8808 = vand.u32 2147483647, %v8805
          %v8809 = vmul.f32 %v8808, 0.3275911
          %v8810 = vadd.f32 %v8809, 1.0
          %v8811 = vrcp.pop %v8810
          %v8812 = vmul.f32 1.0, %v8811
          %v8813 = vmul.f32 %v8812, 1.0614054
          %v8814 = vadd.f32 %v8813, -1.4531521
          %v8815 = vmul.f32 %v8814, %v8812
          %v8816 = vadd.f32 %v8815, 1.4214138
          %v8817 = vmul.f32 %v8816, %v8812
          %v8818 = vadd.f32 %v8817, -0.28449672
          %v8819 = vmul.f32 %v8818, %v8812
          %v8820 = vadd.f32 %v8819, 0.2548296
          %v8821 = vmul.f32 %v8820, %v8812
          %v8822 = vsub.f32 0.0, %v8808
          %v8823 = vmul.f32 %v8822, %v8808
          %v8824 = vmul.f32 %v8823, 1.442695
          %v8825 = vpow.pop %v8824
          %v8826 = vmul.f32 %v8821, %v8825
          %v8827 = vsub.f32 1.0, %v8826
          %v8828 = vmul.f32 %v8807, %v8827
          %v8829 = vadd.f32 %v8828, 1.0
          %v8830 = vmul.f32 %v8804, %v8829
          %8831 = vst.msk [vmem:[#allocation26] sm:$0xf] %vm8765, %v8830
        $region160: #{vit_encoder_forward.1} parent=95 // pred_fallthru
          _
        // Predicated region
        $region161: #{vit_encoder_forward.1} parent=95 // pred_check
          %p8832 = pneg %p521
        $region162: #{vit_encoder_forward.1} parent=95 // pred_check_branch
          %8834 = sbr.rel (%p8832) target = $region164
        $region163: #{vit_encoder_forward.1} parent=95 // pred_region
          %s8836 = ssub.s32 64, 64
          %8837 = vsyncadd [#allocation5], %s8836
          %s8839 = sshll.u32 [#allocation26], 4
          %s8840 = int_to_ptr.vmem [resolvable:$true] %s8839
          %8842 = dma.vmem_to_hbm [thread:$0]  %s8840, 64, %s19, [#allocation5]
        $region164: #{vit_encoder_forward.1} parent=95 // pred_fallthru
          _
        // Predicated region
        $region165: #{vit_encoder_forward.1} parent=95 // pred_check
          %p8843 = pneg %p521
        $region166: #{vit_encoder_forward.1} parent=95 // pred_check_branch
          %8845 = sbr.rel (%p8843) target = $region168
        $region167: #{vit_encoder_forward.1} parent=95 // pred_region
          %8846 = dma.done [#allocation5], 64
        $region168: #{vit_encoder_forward.1} parent=95 // pred_fallthru
          _
      $region96: #{vit_encoder_forward.1} parent=5 // pred_fallthru
        _
      %p8847 = scmp.le.s32.totalorder 2, %s44
      // Predicated region
      $region169: #{vit_encoder_forward.1} parent=5 // pred_check
        %p8848 = pneg %p8847
      $region170: #{vit_encoder_forward.1} parent=5 // pred_check_branch
        %8850 = sbr.rel (%p8848) target = $region172
      $region171: #{vit_encoder_forward.1} parent=5 // pred_region
        %s8851 = ssub.s32 %s44, 2
      $region172: #{vit_encoder_forward.1} parent=5 // pred_fallthru
        _
    $region6: #{vit_encoder_forward.1} parent=1 // loop_footer
      %s48 = sadd.s32 1, %s44
    $region7: #{vit_encoder_forward.1} parent=1 // loop_footer_branch
      %43 = sbr.rel target = $region3
    $region8: #{vit_encoder_forward.1} parent=1 // loop_exit
      _
    %8852 = vsyncpa [#allocation4], 1
    %s8853 = scalar_lea.sflag [#allocation4], 1
    %8854 = vsyncpa %s8853, 1
    %8855 = vsyncpa [#allocation7], 1
    %s8856 = scalar_lea.sflag [#allocation7], 1
    %8857 = vsyncpa %s8856, 1
    %8858 = vsyncpa [#allocation10], 1
    %s8859 = scalar_lea.sflag [#allocation10], 1
    %8860 = vsyncpa %s8859, 1
    %8861 = vsyncpa [#allocation13], 1
    %s8862 = scalar_lea.sflag [#allocation13], 1
    %8863 = vsyncpa %s8862, 1
    %8864 = vsyncpa [#allocation16], 1
    %s8865 = scalar_lea.sflag [#allocation16], 1
    %8866 = vsyncpa %s8865, 1
    %8867 = vsyncpa [#allocation19], 1
    %8868 = vsyncpa [#allocation22], 1
    %8869 = vsyncpa [#allocation25], 1
    %8870 = vsyncpa [#allocation5], 1
    %s8871 = scalar_lea.sflag [#allocation5], 1
    %8872 = vsyncpa %s8871, 1

</llo_original>
